<compile_context>
chip_gen: v6e
topology: v6e:2x2x1
jax: 0.10.0
libtpu: 0.0.40
codegen_flags: <defaults>
</compile_context>

<pallas_src>
from functools import partial

import numpy as np
import jax
import jax.numpy as jnp
from jax import lax
from jax.experimental import pallas as pl
from jax.experimental.pallas import tpu as pltpu


# --------------------------------------------------------------------------
# Pallas kernel: one (WBh rows of windows) x (all window columns) slab of the
# padded image per grid step.  Weights / biases / rel-pos bias are resident
# full-array blocks; x / mask / out are tiled per slab.
# --------------------------------------------------------------------------
def _swin_window_attn_kernel(*refs, ws0, ws1, num_heads, head_dim, n_pad,
                             has_mask, compute_dtype):
    if has_mask:
        (x_ref, wqkv_ref, bqkv_ref, wproj_ref, bproj_ref, rpb_ref,
         mask_ref, o_ref) = refs
    else:
        (x_ref, wqkv_ref, bqkv_ref, wproj_ref, bproj_ref, rpb_ref,
         o_ref) = refs
        mask_ref = None

    C = num_heads * head_dim
    N = ws0 * ws1
    _, rows, pW, _ = x_ref.shape            # block: (1, WBh*ws0, pW, C)
    WBh = rows // ws0
    nWw = pW // ws1
    WB = WBh * nWw                          # windows in this block
    T = rows * pW                           # tokens in this block (= WB * N)

    # ---- fused QKV projection: one (T, C) @ (C, 3C) MXU matmul -------------
    x2d = x_ref[0].reshape(T, C).astype(compute_dtype)
    qkv = jnp.dot(x2d, wqkv_ref[...], preferred_element_type=jnp.float32)
    qkv = (qkv + bqkv_ref[...]).astype(compute_dtype)           # (T, 3C)

    # ---- in-VMEM window partition: (WBh, ws0, nWw, ws1, 3C) -> (WB, N, 3C) -
    qkv = qkv.reshape(WBh, ws0, nWw, ws1, 3 * C)
    qkv = qkv.transpose(0, 2, 1, 3, 4).reshape(WB, N, 3 * C)

    # ---- pad tokens-per-window up to a sublane multiple (n_pad >= N) -------
    if n_pad > N:
        padded = jnp.zeros((WB, n_pad, 3 * C), qkv.dtype)
        qkv = lax.dynamic_update_slice(padded, qkv, (0, 0, 0))

    def split_heads(t):                     # (WB, Np, C) -> (WB*nh, Np, hd)
        t = t.reshape(WB, n_pad, num_heads, head_dim)
        return t.transpose(0, 2, 1, 3).reshape(WB * num_heads, n_pad, head_dim)

    q = split_heads(qkv[:, :, :C])          # 1/sqrt(hd) already folded into W
    k = split_heads(qkv[:, :, C:2 * C])
    v = split_heads(qkv[:, :, 2 * C:])

    # ---- head-batched attention scores (single batch dim = WB*nh) ----------
    s = jnp.einsum('bnd,bmd->bnm', q, k, preferred_element_type=jnp.float32)
    s = s.reshape(WB, num_heads, n_pad, n_pad)
    s = s + rpb_ref[...][None]              # (nh, Np, Np): key-pad mask folded in
    if mask_ref is not None:
        s = s + mask_ref[...][:, None]      # (WB, 1, Np, Np) shift mask

    # ---- single numerically-stable f32 softmax over merged batch -----------
    s = s - jnp.max(s, axis=-1, keepdims=True)
    p = jnp.exp(s)
    denom = jnp.sum(p, axis=-1, keepdims=True)
    if compute_dtype == jnp.bfloat16:
        inv = pl.reciprocal(denom, approx=True)     # EUP slot, ~free
    else:
        inv = 1.0 / denom
    p = (p * inv).astype(compute_dtype).reshape(WB * num_heads, n_pad, n_pad)

    pv = jnp.einsum('bnm,bmd->bnd', p, v, preferred_element_type=jnp.float32)

    # ---- merge heads, single full-K output projection ----------------------
    pv = pv.reshape(WB, num_heads, n_pad, head_dim).transpose(0, 2, 1, 3)
    ctx = pv.reshape(WB * n_pad, C).astype(compute_dtype)
    out = jnp.dot(ctx, wproj_ref[...], preferred_element_type=jnp.float32)
    out = out + bproj_ref[...]

    # ---- drop pad rows, in-VMEM window un-partition, write -----------------
    out = out.reshape(WB, n_pad, C)
    if n_pad > N:
        out = out[:, :N, :]
    out = out.reshape(WBh, nWw, ws0, ws1, C).transpose(0, 2, 1, 3, 4)
    o_ref[0] = out.reshape(rows, pW, C).astype(o_ref.dtype)


def _pick_window_rows(nWh, tokens_per_row, max_tokens):
    """Largest divisor WBh of nWh with WBh * tokens_per_row <= max_tokens."""
    wbh = 1
    for d in range(1, nWh + 1):
        if nWh % d == 0 and d * tokens_per_row <= max_tokens:
            wbh = d
    return wbh


def _windowed_attention_pallas(x, qkv_w, qkv_b, proj_w, proj_b, rel_bias,
                               mask, window_size, num_heads,
                               compute_dtype=jnp.float32,
                               max_block_tokens=1024):
    """x: (B, pH, pW, C) padded + rolled NHWC image -> same shape."""
    B, pH, pW, C = x.shape
    ws0, ws1 = window_size
    assert C % num_heads == 0
    nWh, nWw = pH // ws0, pW // ws1
    nW = nWh * nWw
    N = ws0 * ws1
    n_pad = -(-N // 8) * 8                  # pad tokens/window to sublane mult
    hd = C // num_heads
    scale = hd ** (-0.5)

    # Fold 1/sqrt(hd) into the Q columns of the QKV weight / bias (removes the
    # per-element q*scale VALU pass in the kernel).
    col_scale = jnp.concatenate(
        [jnp.full((C,), scale, jnp.float32), jnp.ones((2 * C,), jnp.float32)])
    wqkv_t = (jnp.asarray(qkv_w, jnp.float32).T * col_scale[None, :]
              ).astype(compute_dtype)                                   # (C, 3C)
    bqkv = (jnp.asarray(qkv_b, jnp.float32) * col_scale).reshape(1, 3 * C)
    wproj_t = jnp.asarray(proj_w, jnp.float32).T.astype(compute_dtype)  # (C, C)
    bproj = jnp.asarray(proj_b, jnp.float32).reshape(1, C)

    # Relative-position bias padded to (nh, Np, Np); padded key columns get a
    # large negative so they vanish from the softmax for every window.
    rpb = jnp.zeros((num_heads, n_pad, n_pad), jnp.float32)
    if n_pad > N:
        rpb = rpb.at[:, :, N:].set(-1e9)
    rpb = rpb.at[:, :N, :N].set(jnp.asarray(rel_bias, jnp.float32))

    has_mask = mask is not None
    if has_mask:
        mask_p = np.zeros((nW, n_pad, n_pad), np.float32)
        mask_p[:, :N, :N] = mask
        mask_p = jnp.asarray(mask_p)

    # Window-row batching: WBh rows of windows (= WBh*nWw windows) per step.
    tokens_per_row = ws0 * pW
    wbh = _pick_window_rows(nWh, tokens_per_row, max_block_tokens)

    x_isize = x.dtype.itemsize
    c_isize = np.dtype(compute_dtype).itemsize

    def vmem_bytes(wbh_):
        blk = wbh_ * ws0 * pW * C
        wb_ = wbh_ * nWw
        weights = (3 * C * C + C * C) * c_isize + 16 * C
        bias_b = num_heads * n_pad * n_pad * 4
        mask_b = wb_ * n_pad * n_pad * 4 if has_mask else 0
        scratch = (blk * 3 * (4 + c_isize)                 # qkv f32 + cast copy
                   + 3 * wb_ * n_pad * C * c_isize         # q, k, v
                   + 2 * wb_ * num_heads * n_pad * n_pad * 4   # scores / probs
                   + 2 * blk * 4)                          # ctx / projected out
        return 2 * (2 * blk * x_isize + weights + bias_b + mask_b) + scratch

    # Shrink the block if the double-buffered footprint would blow the budget.
    while wbh > 1 and vmem_bytes(wbh) > (48 << 20):
        wbh -= 1
        while nWh % wbh:
            wbh -= 1
    WB = wbh * nWw
    est = vmem_bytes(wbh)
    vmem_limit = int(min(est * 3 // 2, 96 << 20)) if est > (24 << 20) else None

    kernel = partial(_swin_window_attn_kernel, ws0=ws0, ws1=ws1,
                     num_heads=num_heads, head_dim=hd, n_pad=n_pad,
                     has_mask=has_mask, compute_dtype=compute_dtype)

    in_specs = [
        pl.BlockSpec((1, wbh * ws0, pW, C), lambda b, i: (b, i, 0, 0)),   # x slab
        pl.BlockSpec((C, 3 * C), lambda b, i: (0, 0)),                    # qkv W^T
        pl.BlockSpec((1, 3 * C), lambda b, i: (0, 0)),                    # qkv bias
        pl.BlockSpec((C, C), lambda b, i: (0, 0)),                        # proj W^T
        pl.BlockSpec((1, C), lambda b, i: (0, 0)),                        # proj bias
        pl.BlockSpec((num_heads, n_pad, n_pad), lambda b, i: (0, 0, 0)),  # rel bias
    ]
    args = [x, wqkv_t, bqkv, wproj_t, bproj, rpb]
    if has_mask:
        in_specs.append(pl.BlockSpec((WB, n_pad, n_pad),
                                     lambda b, i: (i, 0, 0)))             # shift mask
        args.append(mask_p)

    cost = pl.CostEstimate(
        flops=int(2 * B * pH * pW * C * 3 * C
                  + 4 * B * nW * num_heads * n_pad * n_pad * hd
                  + 2 * B * pH * pW * C * C),
        transcendentals=int(B * nW * num_heads * n_pad * n_pad),
        bytes_accessed=int(2 * B * pH * pW * C * x_isize
                           + 4 * C * C * c_isize
                           + (num_heads + (nW if has_mask else 0))
                           * n_pad * n_pad * 4),
    )

    return pl.pallas_call(
        kernel,
        out_shape=jax.ShapeDtypeStruct((B, pH, pW, C), x.dtype),
        grid=(B, nWh // wbh),
        in_specs=in_specs,
        out_specs=pl.BlockSpec((1, wbh * ws0, pW, C), lambda b, i: (b, i, 0, 0)),
        compiler_params=pltpu.CompilerParams(
            dimension_semantics=("parallel", "parallel"),
            vmem_limit_bytes=vmem_limit),
        cost_estimate=cost,
    )(*args)


def _windowed_attention_ref(x, qkv_w, qkv_b, proj_w, proj_b, rel_bias,
                            mask, window_size, num_heads):
    """Pure-JAX f32 reference mirroring the PyTorch math (HIGHEST precision)."""
    B, pH, pW, C = x.shape
    ws0, ws1 = window_size
    nWh, nWw = pH // ws0, pW // ws1
    nW = nWh * nWw
    N = ws0 * ws1
    hd = C // num_heads
    hp = jax.lax.Precision.HIGHEST

    xw = x.reshape(B, nWh, ws0, nWw, ws1, C).transpose(0, 1, 3, 2, 4, 5)
    xw = xw.reshape(B, nW, N, C)
    qkv = jnp.einsum('bwnc,kc->bwnk', xw, qkv_w, precision=hp) + qkv_b
    qkv = qkv.reshape(B, nW, N, 3, num_heads, hd).transpose(3, 0, 1, 4, 2, 5)
    q, k, v = qkv[0], qkv[1], qkv[2]                    # (B, nW, nh, N, hd)
    q = q * hd ** (-0.5)
    attn = jnp.einsum('bwhnd,bwhmd->bwhnm', q, k, precision=hp)
    attn = attn + rel_bias[None, None]
    if mask is not None:
        attn = attn + mask[None, :, None]
    attn = jax.nn.softmax(attn, axis=-1)
    out = jnp.einsum('bwhnm,bwhmd->bwhnd', attn, v, precision=hp)
    out = out.transpose(0, 1, 3, 2, 4).reshape(B, nW, N, C)
    out = jnp.einsum('bwnc,dc->bwnd', out, proj_w, precision=hp) + proj_b
    out = out.reshape(B, nWh, nWw, ws0, ws1, C).transpose(0, 1, 3, 2, 4, 5)
    return out.reshape(B, pH, pW, C)


# --------------------------------------------------------------------------
# Full forward (glue: pad / roll / shift-mask; attention runs in the kernel)
# --------------------------------------------------------------------------
def shifted_window_attention_forward(x, qkv_w, qkv_b, proj_w, proj_b,
                                     rel_bias, window_size, shift_size,
                                     num_heads, use_pallas=True,
                                     compute_dtype=jnp.float32,
                                     max_block_tokens=1024):
    B, H, W, C = x.shape
    ws0, ws1 = window_size
    pad_r = (ws1 - W % ws1) % ws1
    pad_b = (ws0 - H % ws0) % ws0
    xp = jnp.pad(x, ((0, 0), (0, pad_b), (0, pad_r), (0, 0)))
    _, pH, pW, _ = xp.shape

    ss = list(shift_size)
    if ws0 >= pH:
        ss[0] = 0
    if ws1 >= pW:
        ss[1] = 0
    shifted = sum(ss) > 0
    if shifted:
        xp = jnp.roll(xp, shift=(-ss[0], -ss[1]), axis=(1, 2))

    nWh, nWw = pH // ws0, pW // ws1
    nW = nWh * nWw
    N = ws0 * ws1

    # Shift mask (-100 / 0 pattern, identical to the PyTorch implementation);
    # shared across batch, statically dropped from the kernel when unshifted.
    if shifted:
        img_mask = np.zeros((pH, pW), dtype=np.float32)
        h_slices = ((0, -ws0), (-ws0, -ss[0]), (-ss[0], None))
        w_slices = ((0, -ws1), (-ws1, -ss[1]), (-ss[1], None))
        cnt = 0
        for hs in h_slices:
            for wsl in w_slices:
                img_mask[hs[0]:hs[1], wsl[0]:wsl[1]] = cnt
                cnt += 1
        wm = img_mask.reshape(nWh, ws0, nWw, ws1).transpose(0, 2, 1, 3)
        wm = wm.reshape(nW, N)
        diff = wm[:, None, :] - wm[:, :, None]
        mask = np.where(diff != 0, -100.0, 0.0).astype(np.float32)
    else:
        mask = None

    if use_pallas:
        out = _windowed_attention_pallas(
            xp, qkv_w, qkv_b, proj_w, proj_b, rel_bias, mask, (ws0, ws1),
            num_heads, compute_dtype=compute_dtype,
            max_block_tokens=max_block_tokens)
    else:
        out = _windowed_attention_ref(
            xp, qkv_w, qkv_b, proj_w, proj_b, rel_bias,
            None if mask is None else jnp.asarray(mask), (ws0, ws1), num_heads)

    if shifted:
        out = jnp.roll(out, shift=(ss[0], ss[1]), axis=(1, 2))
    return out[:, :H, :W, :]


# --------------------------------------------------------------------------
# Parameter construction (deterministic, matches the module __init__ shapes)
# --------------------------------------------------------------------------
def make_params(key, dim, window_size, num_heads):
    k1, k2, k3, k4, k5 = jax.random.split(key, 5)
    qkv_w = jax.random.normal(k1, (3 * dim, dim), jnp.float32) * 0.02
    qkv_b = jax.random.normal(k2, (3 * dim,), jnp.float32) * 0.02
    proj_w = jax.random.normal(k3, (dim, dim), jnp.float32) * 0.02
    proj_b = jax.random.normal(k4, (dim,), jnp.float32) * 0.02
    table = jax.random.truncated_normal(
        k5, -2.0, 2.0,
        ((2 * window_size[0] - 1) * (2 * window_size[1] - 1), num_heads),
        jnp.float32) * 0.02

    ws0, ws1 = window_size
    coords = np.stack(np.meshgrid(np.arange(ws0), np.arange(ws1), indexing='ij'))
    coords_flat = coords.reshape(2, -1)
    rel = coords_flat[:, :, None] - coords_flat[:, None, :]
    rel = rel.transpose(1, 2, 0).astype(np.int64)
    rel[:, :, 0] += ws0 - 1
    rel[:, :, 1] += ws1 - 1
    rel[:, :, 0] *= 2 * ws1 - 1
    rel_index = rel.sum(-1).reshape(-1)

    N = ws0 * ws1
    rel_bias = jnp.asarray(table)[jnp.asarray(rel_index)]
    rel_bias = rel_bias.reshape(N, N, num_heads).transpose(2, 0, 1)   # (nh, N, N)
    return qkv_w, qkv_b, proj_w, proj_b, rel_bias


if __name__ == "__main__":
    key = jax.random.PRNGKey(0)
    kx1, kp1, kx2, kp2 = jax.random.split(key, 4)

    # Config 1: 4x4 windows, shifted, N = 16 (already sublane aligned).
    B, H, W, C, heads = 2, 8, 8, 32, 4
    win, shift = [4, 4], [2, 2]
    x1 = jax.random.normal(kx1, (B, H, W, C), jnp.float32)
    p1 = make_params(kp1, C, win, heads)

    def run1(use_pallas, dtype):
        return jax.block_until_ready(shifted_window_attention_forward(
            x1, *p1, win, shift, heads, use_pallas=use_pallas,
            compute_dtype=dtype))

    out1 = run1(True, jnp.float32)
    ref1 = run1(False, jnp.float32)
    assert out1.shape == (B, H, W, C)
    np.testing.assert_allclose(np.asarray(out1), np.asarray(ref1),
                               rtol=5e-3, atol=1e-3)

    # Config 2: unshifted windows (mask statically removed from the kernel).
    out2 = jax.block_until_ready(shifted_window_attention_forward(
        x1, *p1, win, [0, 0], heads, use_pallas=True))
    ref2 = jax.block_until_ready(shifted_window_attention_forward(
        x1, *p1, win, [0, 0], heads, use_pallas=False))
    np.testing.assert_allclose(np.asarray(out2), np.asarray(ref2),
                               rtol=5e-3, atol=1e-3)

    # Config 3: 7x7 windows on 14x14 (N = 49 -> in-kernel pad to 56), shifted.
    B3, H3, W3, C3, heads3 = 1, 14, 14, 32, 4
    win3, shift3 = [7, 7], [3, 3]
    x3 = jax.random.normal(kx2, (B3, H3, W3, C3), jnp.float32)
    p3 = make_params(kp2, C3, win3, heads3)
    out3 = jax.block_until_ready(shifted_window_attention_forward(
        x3, *p3, win3, shift3, heads3, use_pallas=True))
    ref3 = jax.block_until_ready(shifted_window_attention_forward(
        x3, *p3, win3, shift3, heads3, use_pallas=False))
    assert out3.shape == (B3, H3, W3, C3)
    np.testing.assert_allclose(np.asarray(out3), np.asarray(ref3),
                               rtol=5e-3, atol=1e-3)

    # Config 4: bf16 MXU operands (f32 accumulate / softmax) — recommended
    # default on v6e / v7x; looser tolerance for the reduced-precision path.
    out4 = run1(True, jnp.bfloat16)
    np.testing.assert_allclose(np.asarray(out4), np.asarray(ref1),
                               rtol=5e-2, atol=5e-3)

    print("KERNEL_OK")
</pallas_src>

<mosaic_0001>
module attributes {stable_mosaic.version = 11 : i64} {
  func.func @_swin_window_attn_kernel(%arg0: i32, %arg1: i32, %arg2: memref<1x8x8x32xf32, #tpu.memory_space<vmem>>, %arg3: memref<32x96xf32, #tpu.memory_space<vmem>>, %arg4: memref<1x96xf32, #tpu.memory_space<vmem>>, %arg5: memref<32x32xf32, #tpu.memory_space<vmem>>, %arg6: memref<1x32xf32, #tpu.memory_space<vmem>>, %arg7: memref<4x16x16xf32, #tpu.memory_space<vmem>>, %arg8: memref<4x16x16xf32, #tpu.memory_space<vmem>>, %arg9: memref<1x8x8x32xf32, #tpu.memory_space<vmem>>) attributes {dimension_semantics = [#tpu.dimension_semantics<parallel>, #tpu.dimension_semantics<parallel>], iteration_bounds = array<i64: 2, 1>, scalar_prefetch = 0 : i64, scratch_operands = 0 : i64, tpu.core_type = #tpu.core_type<tc>, window_params = [{transform_indices = @transform_0, window_bounds = array<i64: 1, 8, 8, 32>}, {pipeline_mode = #tpu.pipeline_mode<synchronous>, transform_indices = @transform_1, window_bounds = array<i64: 32, 96>}, {pipeline_mode = #tpu.pipeline_mode<synchronous>, transform_indices = @transform_2, window_bounds = array<i64: 1, 96>}, {pipeline_mode = #tpu.pipeline_mode<synchronous>, transform_indices = @transform_3, window_bounds = array<i64: 32, 32>}, {pipeline_mode = #tpu.pipeline_mode<synchronous>, transform_indices = @transform_4, window_bounds = array<i64: 1, 32>}, {pipeline_mode = #tpu.pipeline_mode<synchronous>, transform_indices = @transform_5, window_bounds = array<i64: 4, 16, 16>}, {transform_indices = @transform_6, window_bounds = array<i64: 4, 16, 16>}, {transform_indices = @transform_7, window_bounds = array<i64: 1, 8, 8, 32>}]} {
    %c0 = arith.constant 0 : index
    %c0_0 = arith.constant 0 : index
    %c0_1 = arith.constant 0 : index
    %c0_2 = arith.constant 0 : index
    %0 = vector.load %arg2[%c0, %c0_0, %c0_1, %c0_2] : memref<1x8x8x32xf32, #tpu.memory_space<vmem>>, vector<1x8x8x32xf32>
    %1 = vector.shape_cast %0 : vector<1x8x8x32xf32> to vector<8x8x32xf32>
    %2 = vector.shape_cast %1 : vector<8x8x32xf32> to vector<64x32xf32>
    %c0_3 = arith.constant 0 : index
    %c0_4 = arith.constant 0 : index
    %3 = vector.load %arg3[%c0_3, %c0_4] : memref<32x96xf32, #tpu.memory_space<vmem>>, vector<32x96xf32>
    %cst = arith.constant dense<0.000000e+00> : vector<64x96xf32>
    %4 = tpu.matmul %2, %3, %cst {dimension_numbers = #tpu.dot_dimension_numbers<[1], [0], [0], [1], [0, 0, 1, 1], [], []>} : vector<64x32xf32>, vector<32x96xf32>, vector<64x96xf32> -> vector<64x96xf32>
    %c0_5 = arith.constant 0 : index
    %c0_6 = arith.constant 0 : index
    %5 = vector.load %arg4[%c0_5, %c0_6] : memref<1x96xf32, #tpu.memory_space<vmem>>, vector<1x96xf32>
    %6 = vector.broadcast %5 : vector<1x96xf32> to vector<64x96xf32>
    %7 = arith.addf %4, %6 : vector<64x96xf32>
    %8 = vector.shape_cast %7 : vector<64x96xf32> to vector<2x4x2x4x96xf32>
    %9 = tpu.transpose %8, [0, 2, 1, 3, 4] : vector<2x4x2x4x96xf32> -> vector<2x2x4x4x96xf32>
    %10 = vector.shape_cast %9 : vector<2x2x4x4x96xf32> to vector<4x16x96xf32>
    %11 = vector.extract_strided_slice %10 {offsets = [0, 0, 0], sizes = [4, 16, 32], strides = [1, 1, 1]} : vector<4x16x96xf32> to vector<4x16x32xf32>
    %12 = vector.shape_cast %11 : vector<4x16x32xf32> to vector<4x16x4x8xf32>
    %13 = tpu.transpose %12, [0, 2, 1, 3] : vector<4x16x4x8xf32> -> vector<4x4x16x8xf32>
    %14 = vector.shape_cast %13 : vector<4x4x16x8xf32> to vector<16x16x8xf32>
    %15 = vector.extract_strided_slice %10 {offsets = [0, 0, 32], sizes = [4, 16, 32], strides = [1, 1, 1]} : vector<4x16x96xf32> to vector<4x16x32xf32>
    %16 = vector.shape_cast %15 : vector<4x16x32xf32> to vector<4x16x4x8xf32>
    %17 = tpu.transpose %16, [0, 2, 1, 3] : vector<4x16x4x8xf32> -> vector<4x4x16x8xf32>
    %18 = vector.shape_cast %17 : vector<4x4x16x8xf32> to vector<16x16x8xf32>
    %19 = vector.extract_strided_slice %10 {offsets = [0, 0, 64], sizes = [4, 16, 32], strides = [1, 1, 1]} : vector<4x16x96xf32> to vector<4x16x32xf32>
    %20 = vector.shape_cast %19 : vector<4x16x32xf32> to vector<4x16x4x8xf32>
    %21 = tpu.transpose %20, [0, 2, 1, 3] : vector<4x16x4x8xf32> -> vector<4x4x16x8xf32>
    %22 = vector.shape_cast %21 : vector<4x4x16x8xf32> to vector<16x16x8xf32>
    "tpu.trace_start"() <{level = 10 : i32, message = "bnd,bmd->bnm"}> : () -> ()
    %cst_7 = arith.constant dense<0.000000e+00> : vector<16x16x16xf32>
    %23 = tpu.matmul %14, %18, %cst_7 {dimension_numbers = #tpu.dot_dimension_numbers<[2], [2], [1], [1], [0, 0, 0, 1, 1, 1], [0], [0]>} : vector<16x16x8xf32>, vector<16x16x8xf32>, vector<16x16x16xf32> -> vector<16x16x16xf32>
    "tpu.trace_stop"() : () -> ()
    %24 = vector.shape_cast %23 : vector<16x16x16xf32> to vector<4x4x16x16xf32>
    %c0_8 = arith.constant 0 : index
    %c0_9 = arith.constant 0 : index
    %c0_10 = arith.constant 0 : index
    %25 = vector.load %arg7[%c0_8, %c0_9, %c0_10] : memref<4x16x16xf32, #tpu.memory_space<vmem>>, vector<4x16x16xf32>
    %26 = vector.shape_cast %25 : vector<4x16x16xf32> to vector<1x4x16x16xf32>
    %27 = vector.broadcast %26 : vector<1x4x16x16xf32> to vector<4x4x16x16xf32>
    %28 = arith.addf %24, %27 : vector<4x4x16x16xf32>
    %c0_11 = arith.constant 0 : index
    %c0_12 = arith.constant 0 : index
    %c0_13 = arith.constant 0 : index
    %29 = vector.load %arg8[%c0_11, %c0_12, %c0_13] : memref<4x16x16xf32, #tpu.memory_space<vmem>>, vector<4x16x16xf32>
    %30 = vector.shape_cast %29 : vector<4x16x16xf32> to vector<4x1x16x16xf32>
    %31 = vector.broadcast %30 : vector<4x1x16x16xf32> to vector<4x4x16x16xf32>
    %32 = arith.addf %28, %31 : vector<4x4x16x16xf32>
    %cst_14 = arith.constant dense<0xFF800000> : vector<4x4x16xf32>
    %33 = vector.multi_reduction <maximumf>, %32, %cst_14 [3] : vector<4x4x16x16xf32> to vector<4x4x16xf32>
    %34 = vector.shape_cast %33 : vector<4x4x16xf32> to vector<4x4x16x1xf32>
    %35 = vector.broadcast %34 : vector<4x4x16x1xf32> to vector<4x4x16x16xf32>
    %36 = arith.subf %32, %35 : vector<4x4x16x16xf32>
    %37 = math.exp %36 : vector<4x4x16x16xf32>
    %cst_15 = arith.constant dense<0.000000e+00> : vector<4x4x16xf32>
    %38 = vector.multi_reduction <add>, %37, %cst_15 [3] : vector<4x4x16x16xf32> to vector<4x4x16xf32>
    %39 = vector.shape_cast %38 : vector<4x4x16xf32> to vector<4x4x16x1xf32>
    %cst_16 = arith.constant 1.000000e+00 : f32
    %40 = vector.broadcast %cst_16 : f32 to vector<4x4x16x1xf32>
    %41 = arith.divf %40, %39 : vector<4x4x16x1xf32>
    %42 = vector.broadcast %41 : vector<4x4x16x1xf32> to vector<4x4x16x16xf32>
    %43 = arith.mulf %37, %42 : vector<4x4x16x16xf32>
    %44 = vector.shape_cast %43 : vector<4x4x16x16xf32> to vector<16x16x16xf32>
    "tpu.trace_start"() <{level = 10 : i32, message = "bnm,bmd->bnd"}> : () -> ()
    %cst_17 = arith.constant dense<0.000000e+00> : vector<16x16x8xf32>
    %45 = tpu.matmul %44, %22, %cst_17 {dimension_numbers = #tpu.dot_dimension_numbers<[2], [1], [1], [2], [0, 0, 0, 1, 1, 2], [0], [0]>} : vector<16x16x16xf32>, vector<16x16x8xf32>, vector<16x16x8xf32> -> vector<16x16x8xf32>
    "tpu.trace_stop"() : () -> ()
    %46 = vector.shape_cast %45 : vector<16x16x8xf32> to vector<4x4x16x8xf32>
    %47 = tpu.transpose %46, [0, 2, 1, 3] : vector<4x4x16x8xf32> -> vector<4x16x4x8xf32>
    %48 = vector.shape_cast %47 : vector<4x16x4x8xf32> to vector<64x32xf32>
    %c0_18 = arith.constant 0 : index
    %c0_19 = arith.constant 0 : index
    %49 = vector.load %arg5[%c0_18, %c0_19] : memref<32x32xf32, #tpu.memory_space<vmem>>, vector<32x32xf32>
    %cst_20 = arith.constant dense<0.000000e+00> : vector<64x32xf32>
    %50 = tpu.matmul %48, %49, %cst_20 {dimension_numbers = #tpu.dot_dimension_numbers<[1], [0], [0], [1], [0, 0, 1, 1], [], []>} : vector<64x32xf32>, vector<32x32xf32>, vector<64x32xf32> -> vector<64x32xf32>
    %c0_21 = arith.constant 0 : index
    %c0_22 = arith.constant 0 : index
    %51 = vector.load %arg6[%c0_21, %c0_22] : memref<1x32xf32, #tpu.memory_space<vmem>>, vector<1x32xf32>
    %52 = vector.broadcast %51 : vector<1x32xf32> to vector<64x32xf32>
    %53 = arith.addf %50, %52 : vector<64x32xf32>
    %54 = vector.shape_cast %53 : vector<64x32xf32> to vector<4x16x32xf32>
    %55 = vector.shape_cast %54 : vector<4x16x32xf32> to vector<2x2x4x4x32xf32>
    %56 = tpu.transpose %55, [0, 2, 1, 3, 4] : vector<2x2x4x4x32xf32> -> vector<2x4x2x4x32xf32>
    %57 = vector.shape_cast %56 : vector<2x4x2x4x32xf32> to vector<8x8x32xf32>
    %c0_23 = arith.constant 0 : index
    %c0_24 = arith.constant 0 : index
    %c0_25 = arith.constant 0 : index
    %c0_26 = arith.constant 0 : index
    %58 = vector.load %arg9[%c0_23, %c0_24, %c0_25, %c0_26] : memref<1x8x8x32xf32, #tpu.memory_space<vmem>>, vector<1x8x8x32xf32>
    %59 = vector.shape_cast %58 : vector<1x8x8x32xf32> to vector<8x8x32xf32>
    %60 = vector.shape_cast %57 : vector<8x8x32xf32> to vector<1x8x8x32xf32>
    tpu.vector_store %arg9[%c0_23, %c0_24, %c0_25, %c0_26], %60 {strides = array<i32>} : memref<1x8x8x32xf32, #tpu.memory_space<vmem>>, vector<1x8x8x32xf32>,
    return
  }
  func.func @transform_0(%arg0: i32, %arg1: i32) -> (i32, i32, i32, i32) {
    %c0_i32 = arith.constant 0 : i32
    %c0_i32_0 = arith.constant 0 : i32
    %c0_i32_1 = arith.constant 0 : i32
    return %arg0, %arg1, %c0_i32, %c0_i32_0 : i32, i32, i32, i32
  }
  func.func @transform_1(%arg0: i32, %arg1: i32) -> (i32, i32) {
    %c0_i32 = arith.constant 0 : i32
    %c0_i32_0 = arith.constant 0 : i32
    %c0_i32_1 = arith.constant 0 : i32
    return %c0_i32, %c0_i32_0 : i32, i32
  }
  func.func @transform_2(%arg0: i32, %arg1: i32) -> (i32, i32) {
    %c0_i32 = arith.constant 0 : i32
    %c0_i32_0 = arith.constant 0 : i32
    %c0_i32_1 = arith.constant 0 : i32
    return %c0_i32, %c0_i32_0 : i32, i32
  }
  func.func @transform_3(%arg0: i32, %arg1: i32) -> (i32, i32) {
    %c0_i32 = arith.constant 0 : i32
    %c0_i32_0 = arith.constant 0 : i32
    %c0_i32_1 = arith.constant 0 : i32
    return %c0_i32, %c0_i32_0 : i32, i32
  }
  func.func @transform_4(%arg0: i32, %arg1: i32) -> (i32, i32) {
    %c0_i32 = arith.constant 0 : i32
    %c0_i32_0 = arith.constant 0 : i32
    %c0_i32_1 = arith.constant 0 : i32
    return %c0_i32, %c0_i32_0 : i32, i32
  }
  func.func @transform_5(%arg0: i32, %arg1: i32) -> (i32, i32, i32) {
    %c0_i32 = arith.constant 0 : i32
    %c0_i32_0 = arith.constant 0 : i32
    %c0_i32_1 = arith.constant 0 : i32
    %c0_i32_2 = arith.constant 0 : i32
    return %c0_i32, %c0_i32_0, %c0_i32_1 : i32, i32, i32
  }
  func.func @transform_6(%arg0: i32, %arg1: i32) -> (i32, i32, i32) {
    %c0_i32 = arith.constant 0 : i32
    %c0_i32_0 = arith.constant 0 : i32
    %c0_i32_1 = arith.constant 0 : i32
    return %arg1, %c0_i32, %c0_i32_0 : i32, i32, i32
  }
  func.func @transform_7(%arg0: i32, %arg1: i32) -> (i32, i32, i32, i32) {
    %c0_i32 = arith.constant 0 : i32
    %c0_i32_0 = arith.constant 0 : i32
    %c0_i32_1 = arith.constant 0 : i32
    return %arg0, %arg1, %c0_i32, %c0_i32_0 : i32, i32, i32, i32
  }
}

</mosaic_0001>

<llo_original>
// kernel: tpu_custom_call.1
$region0: #{tpu_custom_call.1}
  #allocation0 [shape = 'u32[]', space=smem, size = 0x4, offset = 0x4, fixed_abs, tag = 'smem constant byte address 0x4 - core index']
  #allocation1 [shape = 'u32[144,128]{1,0:T(1,128)}', space=vmem, size = 0x12000, scoped, tag = 'internal scratch']
  %s0 = inlined_call_operand.hbm [shape: f32[2,8,8,32], index: 0, kind: input, shape index: {}]
  %s1 = inlined_call_operand.hbm [shape: f32[32,96], index: 1, kind: input, shape index: {}]
  %s2 = inlined_call_operand.vmem [shape: f32[1,96], index: 2, kind: input, shape index: {}]
  %s3 = inlined_call_operand.hbm [shape: f32[32,32], index: 3, kind: input, shape index: {}]
  %s4 = inlined_call_operand.vmem [shape: f32[1,32], index: 4, kind: input, shape index: {}]
  %s5 = inlined_call_operand.hbm [shape: f32[4,16,16], index: 5, kind: input, shape index: {}]
  %s6 = inlined_call_operand.hbm [shape: f32[4,16,16], index: 6, kind: input, shape index: {}]
  %s7 = inlined_call_operand.hbm [shape: f32[2,8,8,32], index: 7, kind: output, shape index: {}]
  %s8 = sld [smem:[#allocation0]]
  $region81: #{tpu_custom_call.1} parent=0
    _
  %s10 = ssub.s32 1, %s8
  %s11 = scalar_select 0, %s10, %s8
  $region1: #{tpu_custom_call.1} parent=0
    #allocation2 [shape = 'u8[65536]{0}', space=vmem, size = 0x10000, scoped, tag = 'input window, operand 0']
    #allocation3 [shape = 's32[2]{0}', space=sflag, size = 0x8, scoped, tag = 'scoped memory for tpu_custom_call.1']
    #allocation4 [shape = 's32[2]{0}', space=sflag, size = 0x8, scoped, tag = 'scoped memory for tpu_custom_call.1']
    #allocation5 [shape = 'u8[16384]{0}', space=vmem, size = 0x4000, scoped, tag = 'input window, operand 1, single buffered']
    #allocation6 [shape = 's32[1]{0}', space=sflag, size = 0x4, scoped, tag = 'scoped memory for tpu_custom_call.1']
    #allocation7 [shape = 'u8[16384]{0}', space=vmem, size = 0x4000, scoped, tag = 'input window, operand 3, single buffered']
    #allocation8 [shape = 'u8[32768]{0}', space=vmem, size = 0x8000, scoped, tag = 'input window, operand 5, single buffered']
    #allocation9 [shape = 's32[1]{0}', space=sflag, size = 0x4, scoped, tag = 'scoped memory for tpu_custom_call.1']
    #allocation10 [shape = 'u8[32768]{0}', space=vmem, size = 0x8000, scoped, tag = 'input window, operand 6, single buffered']
    #allocation11 [shape = 'u8[65536]{0}', space=vmem, size = 0x10000, scoped, tag = 'output window, operand 0']
    %12 = vsyncpa [#allocation3], 0
    %s13 = scalar_lea.sflag [#allocation3], 1
    %14 = vsyncpa %s13, 0
    %15 = vsyncpa [#allocation6], 0
    %16 = vsyncpa [#allocation9], 0
    %17 = vsyncpa [#allocation4], 0
    %s18 = scalar_lea.sflag [#allocation4], 1
    %19 = vsyncpa %s18, 0
    loop: start=0, step=1, limit=4
    $region2: #{tpu_custom_call.1} parent=1 // loop_pre_header
      _
    $region3: #{tpu_custom_call.1} parent=1 // loop_header
      %s21 = sphi 0, %s25
      %p22 = scmp.ge.s32.totalorder %s21, 4
      %s28 = sphi 0, %s40
      %s29 = sphi 0, %s36
      %s30 = sphi 0, %s28
      %s31 = sphi 0, %s29
      %s32 = sphi 0, %s30
      %s33 = sphi 0, %s31
      %s45 = sphi 0, %s47
      %s48 = sphi 0, %s45
      %s49 = sphi 0, %s48
      %s65 = sphi 0, %s49
      %s69 = sphi 0, %s69
      %s71 = sphi 0, %s69
      %s72 = sphi 0, %s71
      %s86 = sphi 0, %s72
      %s90 = sphi 0, %s90
      %s92 = sphi 0, %s90
      %s93 = sphi 0, %s92
      %s107 = sphi 0, %s93
      %s111 = sphi 0, %s111
      %s113 = sphi 0, %s111
      %s114 = sphi 0, %s113
      %s128 = sphi 0, %s114
      %s132 = sphi 0, %s132
      %s134 = sphi 0, %s132
      %s135 = sphi 0, %s134
      %s149 = sphi 0, %s135
      %s153 = sphi 0, %s153
      %s155 = sphi 0, %s153
      %s156 = sphi 0, %s155
      %s170 = sphi 0, %s156
      %s176 = sphi 0, %s178
      %s179 = sphi 0, %s176
      %s180 = sphi 0, %s179
      %s196 = sphi 0, %s180
      %s204 = sphi 0, %s206
      %s207 = sphi 0, %s204
      %s208 = sphi 0, %s207
      %s224 = sphi 0, %s208
    $region4: #{tpu_custom_call.1} parent=1 // loop_header_branch
      %24 = sbr.rel (%p22) target = $region8
    $region5: #{tpu_custom_call.1} parent=1 // loop_body
      %s26 = ssub.s32 %s21, 1
      %s27 = ssub.s32 %s21, 2
      %s34 = sadd.s32 1, %s29
      %p35 = scmp.ge.s32.totalorder %s34, 1
      %s36 = scalar_select %p35, 0, %s34
      %s37 = sadd.s32 1, %s28
      %s38 = scalar_select %p35, %s37, %s28
      %p39 = scmp.ge.s32.totalorder %s38, 2
      %s40 = scalar_select %p39, 0, %s38
      %s41 = ssub.s32 %s28, %s40
      %s42 = ssub.s32 %s29, %s36
      %s43 = sor.u32 %s41, %s42
      %p44 = scmp.eq.s32.totalorder %s43, 0
      %s46 = sadd.s32 %s45, 1
      %s47 = scalar_select %p44, %s45, %s46
      %p50 = pneg %p44
      %p51 = scmp.eq.s32.totalorder %s21, 1
      %p52 = por %p50, %p51
      %p53 = scmp.ne.s32.totalorder %s45, %s48
      %p54 = scmp.eq.s32.totalorder %s21, 0
      %p55 = por %p53, %p54
      %p56 = scmp.ne.s32.totalorder %s45, %s48
      %p57 = scmp.eq.s32.totalorder %s26, 1
      %p58 = por %p56, %p57
      %p59 = scmp.ne.s32.totalorder %s48, %s49
      %p60 = scmp.eq.s32.totalorder %s26, 0
      %p61 = por %p59, %p60
      %p62 = scmp.ne.s32.totalorder %s48, %s49
      %p63 = scmp.eq.s32.totalorder %s27, 1
      %p64 = por %p62, %p63
      %p66 = scmp.ne.s32.totalorder %s49, %s65
      %p67 = scmp.eq.s32.totalorder %s27, 0
      %p68 = por %p66, %p67
      %s70 = sadd.s32 %s69, 1
      %p73 = scmp.eq.s32.totalorder %s21, 1
      %p74 = scmp.ne.s32.totalorder %s69, %s71
      %p75 = scmp.eq.s32.totalorder %s21, 0
      %p76 = por %p74, %p75
      %p77 = scmp.ne.s32.totalorder %s69, %s71
      %p78 = scmp.eq.s32.totalorder %s26, 1
      %p79 = por %p77, %p78
      %p80 = scmp.ne.s32.totalorder %s71, %s72
      %p81 = scmp.eq.s32.totalorder %s26, 0
      %p82 = por %p80, %p81
      %p83 = scmp.ne.s32.totalorder %s71, %s72
      %p84 = scmp.eq.s32.totalorder %s27, 1
      %p85 = por %p83, %p84
      %p87 = scmp.ne.s32.totalorder %s72, %s86
      %p88 = scmp.eq.s32.totalorder %s27, 0
      %p89 = por %p87, %p88
      %s91 = sadd.s32 %s90, 1
      %p94 = scmp.eq.s32.totalorder %s21, 1
      %p95 = scmp.ne.s32.totalorder %s90, %s92
      %p96 = scmp.eq.s32.totalorder %s21, 0
      %p97 = por %p95, %p96
      %p98 = scmp.ne.s32.totalorder %s90, %s92
      %p99 = scmp.eq.s32.totalorder %s26, 1
      %p100 = por %p98, %p99
      %p101 = scmp.ne.s32.totalorder %s92, %s93
      %p102 = scmp.eq.s32.totalorder %s26, 0
      %p103 = por %p101, %p102
      %p104 = scmp.ne.s32.totalorder %s92, %s93
      %p105 = scmp.eq.s32.totalorder %s27, 1
      %p106 = por %p104, %p105
      %p108 = scmp.ne.s32.totalorder %s93, %s107
      %p109 = scmp.eq.s32.totalorder %s27, 0
      %p110 = por %p108, %p109
      %s112 = sadd.s32 %s111, 1
      %p115 = scmp.eq.s32.totalorder %s21, 1
      %p116 = scmp.ne.s32.totalorder %s111, %s113
      %p117 = scmp.eq.s32.totalorder %s21, 0
      %p118 = por %p116, %p117
      %p119 = scmp.ne.s32.totalorder %s111, %s113
      %p120 = scmp.eq.s32.totalorder %s26, 1
      %p121 = por %p119, %p120
      %p122 = scmp.ne.s32.totalorder %s113, %s114
      %p123 = scmp.eq.s32.totalorder %s26, 0
      %p124 = por %p122, %p123
      %p125 = scmp.ne.s32.totalorder %s113, %s114
      %p126 = scmp.eq.s32.totalorder %s27, 1
      %p127 = por %p125, %p126
      %p129 = scmp.ne.s32.totalorder %s114, %s128
      %p130 = scmp.eq.s32.totalorder %s27, 0
      %p131 = por %p129, %p130
      %s133 = sadd.s32 %s132, 1
      %p136 = scmp.eq.s32.totalorder %s21, 1
      %p137 = scmp.ne.s32.totalorder %s132, %s134
      %p138 = scmp.eq.s32.totalorder %s21, 0
      %p139 = por %p137, %p138
      %p140 = scmp.ne.s32.totalorder %s132, %s134
      %p141 = scmp.eq.s32.totalorder %s26, 1
      %p142 = por %p140, %p141
      %p143 = scmp.ne.s32.totalorder %s134, %s135
      %p144 = scmp.eq.s32.totalorder %s26, 0
      %p145 = por %p143, %p144
      %p146 = scmp.ne.s32.totalorder %s134, %s135
      %p147 = scmp.eq.s32.totalorder %s27, 1
      %p148 = por %p146, %p147
      %p150 = scmp.ne.s32.totalorder %s135, %s149
      %p151 = scmp.eq.s32.totalorder %s27, 0
      %p152 = por %p150, %p151
      %s154 = sadd.s32 %s153, 1
      %p157 = scmp.eq.s32.totalorder %s21, 1
      %p158 = scmp.ne.s32.totalorder %s153, %s155
      %p159 = scmp.eq.s32.totalorder %s21, 0
      %p160 = por %p158, %p159
      %p161 = scmp.ne.s32.totalorder %s153, %s155
      %p162 = scmp.eq.s32.totalorder %s26, 1
      %p163 = por %p161, %p162
      %p164 = scmp.ne.s32.totalorder %s155, %s156
      %p165 = scmp.eq.s32.totalorder %s26, 0
      %p166 = por %p164, %p165
      %p167 = scmp.ne.s32.totalorder %s155, %s156
      %p168 = scmp.eq.s32.totalorder %s27, 1
      %p169 = por %p167, %p168
      %p171 = scmp.ne.s32.totalorder %s156, %s170
      %p172 = scmp.eq.s32.totalorder %s27, 0
      %p173 = por %p171, %p172
      %s174 = ssub.s32 %s29, %s36
      %p175 = scmp.eq.s32.totalorder %s174, 0
      %s177 = sadd.s32 %s176, 1
      %s178 = scalar_select %p175, %s176, %s177
      %p181 = pneg %p175
      %p182 = scmp.eq.s32.totalorder %s21, 1
      %p183 = por %p181, %p182
      %p184 = scmp.ne.s32.totalorder %s176, %s179
      %p185 = scmp.eq.s32.totalorder %s21, 0
      %p186 = por %p184, %p185
      %p187 = scmp.ne.s32.totalorder %s176, %s179
      %p188 = scmp.eq.s32.totalorder %s26, 1
      %p189 = por %p187, %p188
      %p190 = scmp.ne.s32.totalorder %s179, %s180
      %p191 = scmp.eq.s32.totalorder %s26, 0
      %p192 = por %p190, %p191
      %p193 = scmp.ne.s32.totalorder %s179, %s180
      %p194 = scmp.eq.s32.totalorder %s27, 1
      %p195 = por %p193, %p194
      %p197 = scmp.ne.s32.totalorder %s180, %s196
      %p198 = scmp.eq.s32.totalorder %s27, 0
      %p199 = por %p197, %p198
      %s200 = ssub.s32 %s28, %s40
      %s201 = ssub.s32 %s29, %s36
      %s202 = sor.u32 %s200, %s201
      %p203 = scmp.eq.s32.totalorder %s202, 0
      %s205 = sadd.s32 %s204, 1
      %s206 = scalar_select %p203, %s204, %s205
      %p209 = pneg %p203
      %p210 = scmp.eq.s32.totalorder %s21, 1
      %p211 = por %p209, %p210
      %p212 = scmp.ne.s32.totalorder %s204, %s207
      %p213 = scmp.eq.s32.totalorder %s21, 0
      %p214 = por %p212, %p213
      %p215 = scmp.ne.s32.totalorder %s204, %s207
      %p216 = scmp.eq.s32.totalorder %s26, 1
      %p217 = por %p215, %p216
      %p218 = scmp.ne.s32.totalorder %s207, %s208
      %p219 = scmp.eq.s32.totalorder %s26, 0
      %p220 = por %p218, %p219
      %p221 = scmp.ne.s32.totalorder %s207, %s208
      %p222 = scmp.eq.s32.totalorder %s27, 1
      %p223 = por %p221, %p222
      %p225 = scmp.ne.s32.totalorder %s208, %s224
      %p226 = scmp.eq.s32.totalorder %s27, 0
      %p227 = por %p225, %p226
      %p228 = scmp.le.s32.totalorder 1, %s21
      %p229 = scmp.lt.s32.totalorder %s21, 3
      %p230 = pnand %p228, %p229
      %p231 = pneg %p230
      // Predicated region
      $region9: #{tpu_custom_call.1} parent=5 // pred_check
        _
      $region10: #{tpu_custom_call.1} parent=5 // pred_check_branch
        %233 = sbr.rel (%p230) target = $region12
      $region11: #{tpu_custom_call.1} parent=5 // pred_region
        %s234 = ssub.s32 %s21, 1
        // Predicated region
        $region13: #{tpu_custom_call.1} parent=11 // pred_check
          %p235 = pneg %p82
        $region14: #{tpu_custom_call.1} parent=11 // pred_check_branch
          %237 = sbr.rel (%p235) target = $region16
        $region15: #{tpu_custom_call.1} parent=11 // pred_region
          %s239 = ssub.s32 512, 512
          %240 = vsyncadd [#allocation6], %s239
          %s241 = sshll.u32 [#allocation5], 4
          %s242 = int_to_ptr.vmem [resolvable:$true] %s241
          %247 = dma.hbm_to_vmem [thread:$0]  %s1, 512, %s242, [#allocation6], 128, 128, 8
        $region16: #{tpu_custom_call.1} parent=11 // pred_fallthru
          _
        // Predicated region
        $region17: #{tpu_custom_call.1} parent=11 // pred_check
          %p248 = pneg %p103
        $region18: #{tpu_custom_call.1} parent=11 // pred_check_branch
          %250 = sbr.rel (%p248) target = $region20
        $region19: #{tpu_custom_call.1} parent=11 // pred_region
          _
        $region20: #{tpu_custom_call.1} parent=11 // pred_fallthru
          _
        // Predicated region
        $region21: #{tpu_custom_call.1} parent=11 // pred_check
          %p251 = pneg %p124
        $region22: #{tpu_custom_call.1} parent=11 // pred_check_branch
          %253 = sbr.rel (%p251) target = $region24
        $region23: #{tpu_custom_call.1} parent=11 // pred_region
          %s255 = ssub.s32 512, 512
          %256 = vsyncadd [#allocation6], %s255
          %s257 = sshll.u32 [#allocation7], 4
          %s258 = int_to_ptr.vmem [resolvable:$true] %s257
          %263 = dma.hbm_to_vmem [thread:$0]  %s3, 512, %s258, [#allocation6], 128, 128, 8
        $region24: #{tpu_custom_call.1} parent=11 // pred_fallthru
          _
        // Predicated region
        $region25: #{tpu_custom_call.1} parent=11 // pred_check
          %p264 = pneg %p145
        $region26: #{tpu_custom_call.1} parent=11 // pred_check_branch
          %266 = sbr.rel (%p264) target = $region28
        $region27: #{tpu_custom_call.1} parent=11 // pred_region
          _
        $region28: #{tpu_custom_call.1} parent=11 // pred_fallthru
          _
        // Predicated region
        $region29: #{tpu_custom_call.1} parent=11 // pred_check
          %p267 = pneg %p166
        $region30: #{tpu_custom_call.1} parent=11 // pred_check_branch
          %269 = sbr.rel (%p267) target = $region32
        $region31: #{tpu_custom_call.1} parent=11 // pred_region
          %s271 = ssub.s32 1024, 1024
          %272 = vsyncadd [#allocation9], %s271
          %s273 = sshll.u32 [#allocation8], 4
          %s274 = int_to_ptr.vmem [resolvable:$true] %s273
          %279 = dma.hbm_to_vmem [thread:$0]  %s5, 1024, %s274, [#allocation9], 128, 128, 8
        $region32: #{tpu_custom_call.1} parent=11 // pred_fallthru
          _
        // Predicated region
        $region33: #{tpu_custom_call.1} parent=11 // pred_check
          %p280 = pneg %p192
        $region34: #{tpu_custom_call.1} parent=11 // pred_check_branch
          %282 = sbr.rel (%p280) target = $region36
        $region35: #{tpu_custom_call.1} parent=11 // pred_region
          %s283 = smul.u32 4, %s31
          %s285 = ssub.s32 1024, 1024
          %286 = vsyncadd [#allocation9], %s285
          %s287 = smul.addr %s283, 2
          %s288 = smul.addr %s287, 128
          %s289 = scalar_lea.hbm %s6, %s288
          %s290 = sshll.u32 [#allocation10], 4
          %s291 = int_to_ptr.vmem [resolvable:$true] %s290
          %296 = dma.hbm_to_vmem [thread:$0]  %s289, 1024, %s291, [#allocation9], 128, 128, 8
        $region36: #{tpu_custom_call.1} parent=11 // pred_fallthru
          _
      $region12: #{tpu_custom_call.1} parent=5 // pred_fallthru
        _
      %p297 = scmp.lt.s32.totalorder %s21, 2
      // Predicated region
      $region37: #{tpu_custom_call.1} parent=5 // pred_check
        %p298 = pneg %p297
      $region38: #{tpu_custom_call.1} parent=5 // pred_check_branch
        %300 = sbr.rel (%p298) target = $region40
      $region39: #{tpu_custom_call.1} parent=5 // pred_region
        // Predicated region
        $region41: #{tpu_custom_call.1} parent=39 // pred_check
          %p301 = pneg %p55
        $region42: #{tpu_custom_call.1} parent=39 // pred_check_branch
          %303 = sbr.rel (%p301) target = $region44
        $region43: #{tpu_custom_call.1} parent=39 // pred_region
          %s304 = sand.u32 %s45, 1
          %s305 = scalar_lea.sflag [#allocation3], %s304
          %s306 = sand.u32 %s45, 1
          %s307 = smul.addr %s306, 64
          %s308 = scalar_lea.vmem [#allocation2], %s307
          %s309 = smul.u32 8, %s29
          %s311 = ssub.s32 1024, 1024
          %312 = vsyncadd %s305, %s311
          %s313 = smul.addr %s28, 8
          %s314 = sadd.s32 %s309, %s313
          %s315 = smul.addr %s314, 128
          %s316 = scalar_lea.hbm %s0, %s315
          %s317 = sshll.u32 %s308, 4
          %s318 = int_to_ptr.vmem [resolvable:$true] %s317
          %323 = dma.hbm_to_vmem [thread:$0]  %s316, 1024, %s318, %s305, 128, 128, 8
        $region44: #{tpu_custom_call.1} parent=39 // pred_fallthru
          _
      $region40: #{tpu_custom_call.1} parent=5 // pred_fallthru
        _
      %p324 = scmp.le.s32.totalorder 1, %s21
      %p325 = scmp.lt.s32.totalorder %s21, 3
      %p326 = pnand %p324, %p325
      %p327 = pneg %p326
      // Predicated region
      $region45: #{tpu_custom_call.1} parent=5 // pred_check
        _
      $region46: #{tpu_custom_call.1} parent=5 // pred_check_branch
        %329 = sbr.rel (%p326) target = $region48
      $region47: #{tpu_custom_call.1} parent=5 // pred_region
        %s330 = ssub.s32 %s21, 1
        %s331 = sand.u32 %s48, 1
        %s332 = scalar_lea.sflag [#allocation3], %s331
        %s333 = sand.u32 %s48, 1
        %s334 = smul.addr %s333, 64
        %s335 = scalar_lea.vmem [#allocation2], %s334
        // Predicated region
        $region49: #{tpu_custom_call.1} parent=47 // pred_check
          %p336 = pneg %p61
        $region50: #{tpu_custom_call.1} parent=47 // pred_check_branch
          %338 = sbr.rel (%p336) target = $region52
        $region51: #{tpu_custom_call.1} parent=47 // pred_region
          %339 = dma.done %s332, 1024
        $region52: #{tpu_custom_call.1} parent=47 // pred_fallthru
          _
        // Predicated region
        $region53: #{tpu_custom_call.1} parent=47 // pred_check
          %p340 = pneg %p82
        $region54: #{tpu_custom_call.1} parent=47 // pred_check_branch
          %342 = sbr.rel (%p340) target = $region56
        $region55: #{tpu_custom_call.1} parent=47 // pred_region
          %343 = dma.done [#allocation6], 512
        $region56: #{tpu_custom_call.1} parent=47 // pred_fallthru
          _
        // Predicated region
        $region57: #{tpu_custom_call.1} parent=47 // pred_check
          %p344 = pneg %p124
        $region58: #{tpu_custom_call.1} parent=47 // pred_check_branch
          %346 = sbr.rel (%p344) target = $region60
        $region59: #{tpu_custom_call.1} parent=47 // pred_region
          %347 = dma.done [#allocation6], 512
        $region60: #{tpu_custom_call.1} parent=47 // pred_fallthru
          _
        // Predicated region
        $region61: #{tpu_custom_call.1} parent=47 // pred_check
          %p348 = pneg %p166
        $region62: #{tpu_custom_call.1} parent=47 // pred_check_branch
          %350 = sbr.rel (%p348) target = $region64
        $region63: #{tpu_custom_call.1} parent=47 // pred_region
          %351 = dma.done [#allocation9], 1024
        $region64: #{tpu_custom_call.1} parent=47 // pred_fallthru
          _
        // Predicated region
        $region65: #{tpu_custom_call.1} parent=47 // pred_check
          %p352 = pneg %p192
        $region66: #{tpu_custom_call.1} parent=47 // pred_check_branch
          %354 = sbr.rel (%p352) target = $region68
        $region67: #{tpu_custom_call.1} parent=47 // pred_region
          %355 = dma.done [#allocation9], 1024
        $region68: #{tpu_custom_call.1} parent=47 // pred_fallthru
          _
        %s356 = sand.u32 %s48, 1
        %s357 = scalar_lea.sflag [#allocation3], %s356
        %s358 = sand.u32 %s48, 1
        %s359 = smul.addr %s358, 64
        %s360 = scalar_lea.vmem [#allocation2], %s359
        %p361 = pneg %p61
        %p362 = pneg %p58
        %p363 = pneg %p82
        %p364 = pneg %p79
        %p365 = pneg %p103
        %p366 = pneg %p100
        %p367 = pneg %p124
        %p368 = pneg %p121
        %p369 = pneg %p145
        %p370 = pneg %p142
        %p371 = pneg %p166
        %p372 = pneg %p163
        %p373 = pneg %p192
        %p374 = pneg %p189
        %p375 = pneg %p220
        %p376 = pneg %p217
        %s377 = sand.u32 %s207, 1
        %s378 = scalar_lea.sflag [#allocation4], %s377
        %s379 = sand.u32 %s207, 1
        %s380 = smul.addr %s379, 64
        %s381 = scalar_lea.vmem [#allocation11], %s380
        %s382 = smul.u32 8, %s31
        %s383 = smul.u32 4, %s31
        %s384 = smul.u32 8, %s31
        %v385 = vld [vmem:[%s335] sm:$0xff]
        %v386 = vld [vmem:[%s335 + $0x8] sm:$0xff]
        %v387 = vld [vmem:[%s335 + $0x10] sm:$0xff]
        %v388 = vld [vmem:[%s335 + $0x18] sm:$0xff]
        %v389 = vld [vmem:[%s335 + $0x20] sm:$0xff]
        %v390 = vld [vmem:[%s335 + $0x28] sm:$0xff]
        %v391 = vld [vmem:[%s335 + $0x30] sm:$0xff]
        %v392 = vld [vmem:[%s335 + $0x38] sm:$0xff]
        %v393 = vld [vmem:[#allocation5] sm:$0xff]
        %v394 = vld [vmem:[#allocation5 + $0x8] sm:$0xff]
        %v395 = vld [vmem:[#allocation5 + $0x10] sm:$0xff]
        %v396 = vld [vmem:[#allocation5 + $0x18] sm:$0xff]
        %v397 = vld [vmem:[%s2] sm:$0x1]
        %v399 = vlaneseq
        %v400 = vshrl.u32 %v399, 7
        %v401 = vsub.s32 0, %v400
        %v402 = vrot.slane %v397, %v401
        %vm404 = vcmask 261120
        %v406 = vsel %vm404, %v385, 0
        %v409 = vsel %vm404, %v386, 0
        %v412 = vsel %vm404, %v387, 0
        %v415 = vsel %vm404, %v388, 0
        %v418 = vsel %vm404, %v389, 0
        %v421 = vsel %vm404, %v390, 0
        %v424 = vsel %vm404, %v391, 0
        %v427 = vsel %vm404, %v392, 0
        %429 = vmatprep.subr.mxu0 0.0
        %430 = vmatpush1.msra.mxu0 0.0
        %431 = vmatprep.subr.mxu0 0.0
        %432 = vmatpush1.msra.mxu0 0.0
        %433 = vmatprep.subr.mxu0 0.0
        %434 = vmatpush1.msra.mxu0 0.0
        %435 = vmatprep.subr.mxu0 0.0
        %436 = vmatpush1.msra.mxu0 0.0
        %437 = vmatprep.subr.mxu0 0.0
        %438 = vmatpush1.msra.mxu0 0.0
        %439 = vmatprep.subr.mxu0 0.0
        %440 = vmatpush1.msra.mxu0 0.0
        %441 = vmatprep.subr.mxu0 0.0
        %442 = vmatpush1.msra.mxu0 0.0
        %443 = vmatprep.subr.mxu0 0.0
        %444 = vmatpush1.msra.mxu0 0.0
        %445 = vmatprep.subr.mxu0 0.0
        %446 = vmatpush1.msra.mxu0 0.0
        %447 = vmatprep.subr.mxu0 0.0
        %448 = vmatpush1.msra.mxu0 0.0
        %449 = vmatprep.subr.mxu0 0.0
        %450 = vmatpush1.msra.mxu0 0.0
        %451 = vmatprep.subr.mxu0 0.0
        %452 = vmatpush1.msra.mxu0 0.0
        %453 = vmatprep.subr.mxu0 0.0
        %454 = vmatpush1.msra.mxu0 %v396
        %455 = vmatprep.subr.mxu0 0.0
        %456 = vmatpush1.msra.mxu0 %v395
        %457 = vmatprep.subr.mxu0 0.0
        %458 = vmatpush1.msra.mxu0 %v394
        %459 = vmatprep.subr.mxu0 0.0
        %460 = vmatpush1.msra.mxu0 %v393
        %461 = vmatprep.subr.mxu0 0.0
        %462 = vmatpush2.msra.mxu0 0.0
        %463 = vmatprep.subr.mxu0 0.0
        %464 = vmatpush2.msra.mxu0 0.0
        %465 = vmatprep.subr.mxu0 0.0
        %466 = vmatpush2.msra.mxu0 0.0
        %467 = vmatprep.subr.mxu0 0.0
        %468 = vmatpush2.msra.mxu0 0.0
        %469 = vmatprep.subr.mxu0 0.0
        %470 = vmatpush2.msra.mxu0 0.0
        %471 = vmatprep.subr.mxu0 0.0
        %472 = vmatpush2.msra.mxu0 0.0
        %473 = vmatprep.subr.mxu0 0.0
        %474 = vmatpush2.msra.mxu0 0.0
        %475 = vmatprep.subr.mxu0 0.0
        %476 = vmatpush2.msra.mxu0 0.0
        %477 = vmatprep.subr.mxu0 0.0
        %478 = vmatpush2.msra.mxu0 0.0
        %479 = vmatprep.subr.mxu0 0.0
        %480 = vmatpush2.msra.mxu0 0.0
        %481 = vmatprep.subr.mxu0 0.0
        %482 = vmatpush2.msra.mxu0 0.0
        %483 = vmatprep.subr.mxu0 0.0
        %484 = vmatpush2.msra.mxu0 0.0
        %485 = vmatprep.subr.mxu0 0.0
        %486 = vmatpush2.msra.mxu0 0.0
        %487 = vmatprep.subr.mxu0 0.0
        %488 = vmatpush2.msra.mxu0 0.0
        %489 = vmatprep.subr.mxu0 0.0
        %490 = vmatpush2.msra.mxu0 0.0
        %491 = vmatprep.subr.mxu0 0.0
        %492 = vmatpush2.msra.mxu0 0.0
        %493 = vmatprep.mubr.f32.mxu0 0.0
        %494 = vmatmul.mubr.f32.gmra.mxu0 %v406
        %v495 = vpop.f32.mrf.mxu0
        %v496 = vadd.f32 %v402, %v495
        %v497 = vpop.f32.mrf.mxu0
        %498 = vmatprep.mubr.f32.mxu0 0.0
        %499 = vmatmul.mubr.f32.gmra.mxu0 %v409
        %v500 = vpop.f32.mrf.mxu0
        %v501 = vadd.f32 %v402, %v500
        %v502 = vpop.f32.mrf.mxu0
        %503 = vmatprep.mubr.f32.mxu0 0.0
        %504 = vmatmul.mubr.f32.gmra.mxu0 %v412
        %v505 = vpop.f32.mrf.mxu0
        %v506 = vadd.f32 %v402, %v505
        %v507 = vpop.f32.mrf.mxu0
        %508 = vmatprep.mubr.f32.mxu0 0.0
        %509 = vmatmul.mubr.f32.gmra.mxu0 %v415
        %v510 = vpop.f32.mrf.mxu0
        %v511 = vadd.f32 %v402, %v510
        %v512 = vpop.f32.mrf.mxu0
        %513 = vmatprep.mubr.f32.mxu0 0.0
        %514 = vmatmul.mubr.f32.gmra.mxu0 %v418
        %v515 = vpop.f32.mrf.mxu0
        %v516 = vadd.f32 %v402, %v515
        %v517 = vpop.f32.mrf.mxu0
        %518 = vmatprep.mubr.f32.mxu0 0.0
        %519 = vmatmul.mubr.f32.gmra.mxu0 %v421
        %v520 = vpop.f32.mrf.mxu0
        %v521 = vadd.f32 %v402, %v520
        %v522 = vpop.f32.mrf.mxu0
        %523 = vmatprep.mubr.f32.mxu0 0.0
        %524 = vmatmul.mubr.f32.gmra.mxu0 %v424
        %v525 = vpop.f32.mrf.mxu0
        %v526 = vadd.f32 %v402, %v525
        %v527 = vpop.f32.mrf.mxu0
        %528 = vmatprep.mubr.f32.mxu0 0.0
        %529 = vmatmul.mubr.f32.gmra.mxu0 %v427
        %v530 = vpop.f32.mrf.mxu0
        %v531 = vadd.f32 %v402, %v530
        %v532 = vpop.f32.mrf.mxu0
        %533 = vdwg.mxu0
        %v542 = vcombine.high %v496, %v496
        %v543 = vcombine.high %v501, %v501
        %v544 = vcombine.high %v506, %v506
        %v545 = vcombine.high %v511, %v511
        %v546 = vcombine.high %v516, %v516
        %v547 = vcombine.high %v521, %v521
        %v548 = vcombine.high %v526, %v526
        %v549 = vcombine.high %v531, %v531
        %558 = vrot.lane.b32.xlu0 %v496, 120
        %v559 = vpop.permute.xlu0 %558
        %560 = vrot.lane.b32.xlu0 %v501, 120
        %v561 = vpop.permute.xlu0 %560
        %562 = vrot.lane.b32.xlu0 %v506, 120
        %v563 = vpop.permute.xlu0 %562
        %564 = vrot.lane.b32.xlu0 %v511, 120
        %v565 = vpop.permute.xlu0 %564
        %566 = vrot.lane.b32.xlu0 %v542, 120
        %v567 = vpop.permute.xlu0 %566
        %568 = vrot.lane.b32.xlu0 %v543, 120
        %v569 = vpop.permute.xlu0 %568
        %570 = vrot.lane.b32.xlu0 %v544, 120
        %v571 = vpop.permute.xlu0 %570
        %572 = vrot.lane.b32.xlu0 %v545, 120
        %v573 = vpop.permute.xlu0 %572
        %574 = vrot.lane.b32.xlu0 %v516, 120
        %v575 = vpop.permute.xlu0 %574
        %576 = vrot.lane.b32.xlu0 %v521, 120
        %v577 = vpop.permute.xlu0 %576
        %578 = vrot.lane.b32.xlu0 %v526, 120
        %v579 = vpop.permute.xlu0 %578
        %580 = vrot.lane.b32.xlu0 %v531, 120
        %v581 = vpop.permute.xlu0 %580
        %582 = vrot.lane.b32.xlu0 %v546, 120
        %v583 = vpop.permute.xlu0 %582
        %584 = vrot.lane.b32.xlu0 %v547, 120
        %v585 = vpop.permute.xlu0 %584
        %586 = vrot.lane.b32.xlu0 %v548, 120
        %v587 = vpop.permute.xlu0 %586
        %588 = vrot.lane.b32.xlu0 %v549, 120
        %v589 = vpop.permute.xlu0 %588
        %606 = vrot.lane.b32.xlu0 %v496, 112
        %v607 = vpop.permute.xlu0 %606
        %608 = vrot.lane.b32.xlu0 %v501, 112
        %v609 = vpop.permute.xlu0 %608
        %610 = vrot.lane.b32.xlu0 %v506, 112
        %v611 = vpop.permute.xlu0 %610
        %612 = vrot.lane.b32.xlu0 %v511, 112
        %v613 = vpop.permute.xlu0 %612
        %614 = vrot.lane.b32.xlu0 %v542, 112
        %v615 = vpop.permute.xlu0 %614
        %616 = vrot.lane.b32.xlu0 %v543, 112
        %v617 = vpop.permute.xlu0 %616
        %618 = vrot.lane.b32.xlu0 %v544, 112
        %v619 = vpop.permute.xlu0 %618
        %620 = vrot.lane.b32.xlu0 %v545, 112
        %v621 = vpop.permute.xlu0 %620
        %622 = vrot.lane.b32.xlu0 %v516, 112
        %v623 = vpop.permute.xlu0 %622
        %624 = vrot.lane.b32.xlu0 %v521, 112
        %v625 = vpop.permute.xlu0 %624
        %626 = vrot.lane.b32.xlu0 %v526, 112
        %v627 = vpop.permute.xlu0 %626
        %628 = vrot.lane.b32.xlu0 %v531, 112
        %v629 = vpop.permute.xlu0 %628
        %630 = vrot.lane.b32.xlu0 %v546, 112
        %v631 = vpop.permute.xlu0 %630
        %632 = vrot.lane.b32.xlu0 %v547, 112
        %v633 = vpop.permute.xlu0 %632
        %634 = vrot.lane.b32.xlu0 %v548, 112
        %v635 = vpop.permute.xlu0 %634
        %636 = vrot.lane.b32.xlu0 %v549, 112
        %v637 = vpop.permute.xlu0 %636
        %654 = vrot.lane.b32.xlu0 %v496, 104
        %v655 = vpop.permute.xlu0 %654
        %656 = vrot.lane.b32.xlu0 %v501, 104
        %v657 = vpop.permute.xlu0 %656
        %658 = vrot.lane.b32.xlu0 %v506, 104
        %v659 = vpop.permute.xlu0 %658
        %660 = vrot.lane.b32.xlu0 %v511, 104
        %v661 = vpop.permute.xlu0 %660
        %662 = vrot.lane.b32.xlu0 %v542, 104
        %v663 = vpop.permute.xlu0 %662
        %664 = vrot.lane.b32.xlu0 %v543, 104
        %v665 = vpop.permute.xlu0 %664
        %666 = vrot.lane.b32.xlu0 %v544, 104
        %v667 = vpop.permute.xlu0 %666
        %668 = vrot.lane.b32.xlu0 %v545, 104
        %v669 = vpop.permute.xlu0 %668
        %670 = vrot.lane.b32.xlu0 %v516, 104
        %v671 = vpop.permute.xlu0 %670
        %672 = vrot.lane.b32.xlu0 %v521, 104
        %v673 = vpop.permute.xlu0 %672
        %674 = vrot.lane.b32.xlu0 %v526, 104
        %v675 = vpop.permute.xlu0 %674
        %676 = vrot.lane.b32.xlu0 %v531, 104
        %v677 = vpop.permute.xlu0 %676
        %678 = vrot.lane.b32.xlu0 %v546, 104
        %v679 = vpop.permute.xlu0 %678
        %680 = vrot.lane.b32.xlu0 %v547, 104
        %v681 = vpop.permute.xlu0 %680
        %682 = vrot.lane.b32.xlu0 %v548, 104
        %v683 = vpop.permute.xlu0 %682
        %684 = vrot.lane.b32.xlu0 %v549, 104
        %v685 = vpop.permute.xlu0 %684
        %v702 = vcombine.low %v496, %v607
        %v704 = vunpack.c.l.s4 1983009808
        %v705 = vunpack.c.0.s8 %v704
        %v706 = vlaneseq
        %v707 = vshrl.u32 %v706, 7
        %v708 = vsub.s32 %v705, %v707
        %v709 = vrot.slane %v702, %v708
        %v710 = vcombine.low %v559, %v655
        %v712 = vunpack.c.l.s4 1983009808
        %v713 = vunpack.c.0.s8 %v712
        %v714 = vlaneseq
        %v715 = vshrl.u32 %v714, 7
        %v716 = vsub.s32 %v713, %v715
        %v717 = vrot.slane %v710, %v716
        %v718 = vcombine.low %v709, %v717
        %v719 = vcombine.high %v709, %v717
        %v721 = vunpack.c.l.s4 1934713408
        %v722 = vunpack.c.0.s8 %v721
        %v723 = vlaneseq
        %v724 = vshrl.u32 %v723, 7
        %v725 = vsub.s32 %v722, %v724
        %v726 = vrot.slane %v718, %v725
        %v728 = vunpack.c.l.s4 1934713408
        %v729 = vunpack.c.0.s8 %v728
        %v730 = vlaneseq
        %v731 = vshrl.u32 %v730, 7
        %v732 = vsub.s32 %v729, %v731
        %v733 = vrot.slane %v719, %v732
        %v734 = vcombine.high %v726, 0.0
        %v735 = vcombine.high %v733, 0.0
        %v736 = vcombine.low %v501, %v609
        %v738 = vunpack.c.l.s4 1983009808
        %v739 = vunpack.c.0.s8 %v738
        %v740 = vlaneseq
        %v741 = vshrl.u32 %v740, 7
        %v742 = vsub.s32 %v739, %v741
        %v743 = vrot.slane %v736, %v742
        %v744 = vcombine.low %v561, %v657
        %v746 = vunpack.c.l.s4 1983009808
        %v747 = vunpack.c.0.s8 %v746
        %v748 = vlaneseq
        %v749 = vshrl.u32 %v748, 7
        %v750 = vsub.s32 %v747, %v749
        %v751 = vrot.slane %v744, %v750
        %v752 = vcombine.low %v743, %v751
        %v753 = vcombine.high %v743, %v751
        %v755 = vunpack.c.l.s4 1934713408
        %v756 = vunpack.c.0.s8 %v755
        %v757 = vlaneseq
        %v758 = vshrl.u32 %v757, 7
        %v759 = vsub.s32 %v756, %v758
        %v760 = vrot.slane %v752, %v759
        %v762 = vunpack.c.l.s4 1934713408
        %v763 = vunpack.c.0.s8 %v762
        %v764 = vlaneseq
        %v765 = vshrl.u32 %v764, 7
        %v766 = vsub.s32 %v763, %v765
        %v767 = vrot.slane %v753, %v766
        %v768 = vcombine.high %v760, 0.0
        %v769 = vcombine.high %v767, 0.0
        %v770 = vcombine.low %v506, %v611
        %v772 = vunpack.c.l.s4 1983009808
        %v773 = vunpack.c.0.s8 %v772
        %v774 = vlaneseq
        %v775 = vshrl.u32 %v774, 7
        %v776 = vsub.s32 %v773, %v775
        %v777 = vrot.slane %v770, %v776
        %v778 = vcombine.low %v563, %v659
        %v780 = vunpack.c.l.s4 1983009808
        %v781 = vunpack.c.0.s8 %v780
        %v782 = vlaneseq
        %v783 = vshrl.u32 %v782, 7
        %v784 = vsub.s32 %v781, %v783
        %v785 = vrot.slane %v778, %v784
        %v786 = vcombine.low %v777, %v785
        %v787 = vcombine.high %v777, %v785
        %v789 = vunpack.c.l.s4 1934713408
        %v790 = vunpack.c.0.s8 %v789
        %v791 = vlaneseq
        %v792 = vshrl.u32 %v791, 7
        %v793 = vsub.s32 %v790, %v792
        %v794 = vrot.slane %v786, %v793
        %v796 = vunpack.c.l.s4 1934713408
        %v797 = vunpack.c.0.s8 %v796
        %v798 = vlaneseq
        %v799 = vshrl.u32 %v798, 7
        %v800 = vsub.s32 %v797, %v799
        %v801 = vrot.slane %v787, %v800
        %v802 = vcombine.high %v794, 0.0
        %v803 = vcombine.high %v801, 0.0
        %v804 = vcombine.low %v511, %v613
        %v806 = vunpack.c.l.s4 1983009808
        %v807 = vunpack.c.0.s8 %v806
        %v808 = vlaneseq
        %v809 = vshrl.u32 %v808, 7
        %v810 = vsub.s32 %v807, %v809
        %v811 = vrot.slane %v804, %v810
        %v812 = vcombine.low %v565, %v661
        %v814 = vunpack.c.l.s4 1983009808
        %v815 = vunpack.c.0.s8 %v814
        %v816 = vlaneseq
        %v817 = vshrl.u32 %v816, 7
        %v818 = vsub.s32 %v815, %v817
        %v819 = vrot.slane %v812, %v818
        %v820 = vcombine.low %v811, %v819
        %v821 = vcombine.high %v811, %v819
        %v823 = vunpack.c.l.s4 1934713408
        %v824 = vunpack.c.0.s8 %v823
        %v825 = vlaneseq
        %v826 = vshrl.u32 %v825, 7
        %v827 = vsub.s32 %v824, %v826
        %v828 = vrot.slane %v820, %v827
        %v830 = vunpack.c.l.s4 1934713408
        %v831 = vunpack.c.0.s8 %v830
        %v832 = vlaneseq
        %v833 = vshrl.u32 %v832, 7
        %v834 = vsub.s32 %v831, %v833
        %v835 = vrot.slane %v821, %v834
        %v836 = vcombine.high %v828, 0.0
        %v837 = vcombine.high %v835, 0.0
        %v838 = vcombine.low %v542, %v615
        %v840 = vunpack.c.l.s4 1983009808
        %v841 = vunpack.c.0.s8 %v840
        %v842 = vlaneseq
        %v843 = vshrl.u32 %v842, 7
        %v844 = vsub.s32 %v841, %v843
        %v845 = vrot.slane %v838, %v844
        %v846 = vcombine.low %v567, %v663
        %v848 = vunpack.c.l.s4 1983009808
        %v849 = vunpack.c.0.s8 %v848
        %v850 = vlaneseq
        %v851 = vshrl.u32 %v850, 7
        %v852 = vsub.s32 %v849, %v851
        %v853 = vrot.slane %v846, %v852
        %v854 = vcombine.low %v845, %v853
        %v855 = vcombine.high %v845, %v853
        %v857 = vunpack.c.l.s4 1934713408
        %v858 = vunpack.c.0.s8 %v857
        %v859 = vlaneseq
        %v860 = vshrl.u32 %v859, 7
        %v861 = vsub.s32 %v858, %v860
        %v862 = vrot.slane %v854, %v861
        %v864 = vunpack.c.l.s4 1934713408
        %v865 = vunpack.c.0.s8 %v864
        %v866 = vlaneseq
        %v867 = vshrl.u32 %v866, 7
        %v868 = vsub.s32 %v865, %v867
        %v869 = vrot.slane %v855, %v868
        %v870 = vcombine.high %v862, 0.0
        %v871 = vcombine.high %v869, 0.0
        %v872 = vcombine.low %v543, %v617
        %v874 = vunpack.c.l.s4 1983009808
        %v875 = vunpack.c.0.s8 %v874
        %v876 = vlaneseq
        %v877 = vshrl.u32 %v876, 7
        %v878 = vsub.s32 %v875, %v877
        %v879 = vrot.slane %v872, %v878
        %v880 = vcombine.low %v569, %v665
        %v882 = vunpack.c.l.s4 1983009808
        %v883 = vunpack.c.0.s8 %v882
        %v884 = vlaneseq
        %v885 = vshrl.u32 %v884, 7
        %v886 = vsub.s32 %v883, %v885
        %v887 = vrot.slane %v880, %v886
        %v888 = vcombine.low %v879, %v887
        %v889 = vcombine.high %v879, %v887
        %v891 = vunpack.c.l.s4 1934713408
        %v892 = vunpack.c.0.s8 %v891
        %v893 = vlaneseq
        %v894 = vshrl.u32 %v893, 7
        %v895 = vsub.s32 %v892, %v894
        %v896 = vrot.slane %v888, %v895
        %v898 = vunpack.c.l.s4 1934713408
        %v899 = vunpack.c.0.s8 %v898
        %v900 = vlaneseq
        %v901 = vshrl.u32 %v900, 7
        %v902 = vsub.s32 %v899, %v901
        %v903 = vrot.slane %v889, %v902
        %v904 = vcombine.high %v896, 0.0
        %v905 = vcombine.high %v903, 0.0
        %v906 = vcombine.low %v544, %v619
        %v908 = vunpack.c.l.s4 1983009808
        %v909 = vunpack.c.0.s8 %v908
        %v910 = vlaneseq
        %v911 = vshrl.u32 %v910, 7
        %v912 = vsub.s32 %v909, %v911
        %v913 = vrot.slane %v906, %v912
        %v914 = vcombine.low %v571, %v667
        %v916 = vunpack.c.l.s4 1983009808
        %v917 = vunpack.c.0.s8 %v916
        %v918 = vlaneseq
        %v919 = vshrl.u32 %v918, 7
        %v920 = vsub.s32 %v917, %v919
        %v921 = vrot.slane %v914, %v920
        %v922 = vcombine.low %v913, %v921
        %v923 = vcombine.high %v913, %v921
        %v925 = vunpack.c.l.s4 1934713408
        %v926 = vunpack.c.0.s8 %v925
        %v927 = vlaneseq
        %v928 = vshrl.u32 %v927, 7
        %v929 = vsub.s32 %v926, %v928
        %v930 = vrot.slane %v922, %v929
        %v932 = vunpack.c.l.s4 1934713408
        %v933 = vunpack.c.0.s8 %v932
        %v934 = vlaneseq
        %v935 = vshrl.u32 %v934, 7
        %v936 = vsub.s32 %v933, %v935
        %v937 = vrot.slane %v923, %v936
        %v938 = vcombine.high %v930, 0.0
        %v939 = vcombine.high %v937, 0.0
        %v940 = vcombine.low %v545, %v621
        %v942 = vunpack.c.l.s4 1983009808
        %v943 = vunpack.c.0.s8 %v942
        %v944 = vlaneseq
        %v945 = vshrl.u32 %v944, 7
        %v946 = vsub.s32 %v943, %v945
        %v947 = vrot.slane %v940, %v946
        %v948 = vcombine.low %v573, %v669
        %v950 = vunpack.c.l.s4 1983009808
        %v951 = vunpack.c.0.s8 %v950
        %v952 = vlaneseq
        %v953 = vshrl.u32 %v952, 7
        %v954 = vsub.s32 %v951, %v953
        %v955 = vrot.slane %v948, %v954
        %v956 = vcombine.low %v947, %v955
        %v957 = vcombine.high %v947, %v955
        %v959 = vunpack.c.l.s4 1934713408
        %v960 = vunpack.c.0.s8 %v959
        %v961 = vlaneseq
        %v962 = vshrl.u32 %v961, 7
        %v963 = vsub.s32 %v960, %v962
        %v964 = vrot.slane %v956, %v963
        %v966 = vunpack.c.l.s4 1934713408
        %v967 = vunpack.c.0.s8 %v966
        %v968 = vlaneseq
        %v969 = vshrl.u32 %v968, 7
        %v970 = vsub.s32 %v967, %v969
        %v971 = vrot.slane %v957, %v970
        %v972 = vcombine.high %v964, 0.0
        %v973 = vcombine.high %v971, 0.0
        %v974 = vcombine.low %v516, %v623
        %v976 = vunpack.c.l.s4 1983009808
        %v977 = vunpack.c.0.s8 %v976
        %v978 = vlaneseq
        %v979 = vshrl.u32 %v978, 7
        %v980 = vsub.s32 %v977, %v979
        %v981 = vrot.slane %v974, %v980
        %v982 = vcombine.low %v575, %v671
        %v984 = vunpack.c.l.s4 1983009808
        %v985 = vunpack.c.0.s8 %v984
        %v986 = vlaneseq
        %v987 = vshrl.u32 %v986, 7
        %v988 = vsub.s32 %v985, %v987
        %v989 = vrot.slane %v982, %v988
        %v990 = vcombine.low %v981, %v989
        %v991 = vcombine.high %v981, %v989
        %v993 = vunpack.c.l.s4 1934713408
        %v994 = vunpack.c.0.s8 %v993
        %v995 = vlaneseq
        %v996 = vshrl.u32 %v995, 7
        %v997 = vsub.s32 %v994, %v996
        %v998 = vrot.slane %v990, %v997
        %v1000 = vunpack.c.l.s4 1934713408
        %v1001 = vunpack.c.0.s8 %v1000
        %v1002 = vlaneseq
        %v1003 = vshrl.u32 %v1002, 7
        %v1004 = vsub.s32 %v1001, %v1003
        %v1005 = vrot.slane %v991, %v1004
        %v1006 = vcombine.high %v998, 0.0
        %v1007 = vcombine.high %v1005, 0.0
        %v1008 = vcombine.low %v521, %v625
        %v1010 = vunpack.c.l.s4 1983009808
        %v1011 = vunpack.c.0.s8 %v1010
        %v1012 = vlaneseq
        %v1013 = vshrl.u32 %v1012, 7
        %v1014 = vsub.s32 %v1011, %v1013
        %v1015 = vrot.slane %v1008, %v1014
        %v1016 = vcombine.low %v577, %v673
        %v1018 = vunpack.c.l.s4 1983009808
        %v1019 = vunpack.c.0.s8 %v1018
        %v1020 = vlaneseq
        %v1021 = vshrl.u32 %v1020, 7
        %v1022 = vsub.s32 %v1019, %v1021
        %v1023 = vrot.slane %v1016, %v1022
        %v1024 = vcombine.low %v1015, %v1023
        %v1025 = vcombine.high %v1015, %v1023
        %v1027 = vunpack.c.l.s4 1934713408
        %v1028 = vunpack.c.0.s8 %v1027
        %v1029 = vlaneseq
        %v1030 = vshrl.u32 %v1029, 7
        %v1031 = vsub.s32 %v1028, %v1030
        %v1032 = vrot.slane %v1024, %v1031
        %v1034 = vunpack.c.l.s4 1934713408
        %v1035 = vunpack.c.0.s8 %v1034
        %v1036 = vlaneseq
        %v1037 = vshrl.u32 %v1036, 7
        %v1038 = vsub.s32 %v1035, %v1037
        %v1039 = vrot.slane %v1025, %v1038
        %v1040 = vcombine.high %v1032, 0.0
        %v1041 = vcombine.high %v1039, 0.0
        %v1042 = vcombine.low %v526, %v627
        %v1044 = vunpack.c.l.s4 1983009808
        %v1045 = vunpack.c.0.s8 %v1044
        %v1046 = vlaneseq
        %v1047 = vshrl.u32 %v1046, 7
        %v1048 = vsub.s32 %v1045, %v1047
        %v1049 = vrot.slane %v1042, %v1048
        %v1050 = vcombine.low %v579, %v675
        %v1052 = vunpack.c.l.s4 1983009808
        %v1053 = vunpack.c.0.s8 %v1052
        %v1054 = vlaneseq
        %v1055 = vshrl.u32 %v1054, 7
        %v1056 = vsub.s32 %v1053, %v1055
        %v1057 = vrot.slane %v1050, %v1056
        %v1058 = vcombine.low %v1049, %v1057
        %v1059 = vcombine.high %v1049, %v1057
        %v1061 = vunpack.c.l.s4 1934713408
        %v1062 = vunpack.c.0.s8 %v1061
        %v1063 = vlaneseq
        %v1064 = vshrl.u32 %v1063, 7
        %v1065 = vsub.s32 %v1062, %v1064
        %v1066 = vrot.slane %v1058, %v1065
        %v1068 = vunpack.c.l.s4 1934713408
        %v1069 = vunpack.c.0.s8 %v1068
        %v1070 = vlaneseq
        %v1071 = vshrl.u32 %v1070, 7
        %v1072 = vsub.s32 %v1069, %v1071
        %v1073 = vrot.slane %v1059, %v1072
        %v1074 = vcombine.high %v1066, 0.0
        %v1075 = vcombine.high %v1073, 0.0
        %v1076 = vcombine.low %v531, %v629
        %v1078 = vunpack.c.l.s4 1983009808
        %v1079 = vunpack.c.0.s8 %v1078
        %v1080 = vlaneseq
        %v1081 = vshrl.u32 %v1080, 7
        %v1082 = vsub.s32 %v1079, %v1081
        %v1083 = vrot.slane %v1076, %v1082
        %v1084 = vcombine.low %v581, %v677
        %v1086 = vunpack.c.l.s4 1983009808
        %v1087 = vunpack.c.0.s8 %v1086
        %v1088 = vlaneseq
        %v1089 = vshrl.u32 %v1088, 7
        %v1090 = vsub.s32 %v1087, %v1089
        %v1091 = vrot.slane %v1084, %v1090
        %v1092 = vcombine.low %v1083, %v1091
        %v1093 = vcombine.high %v1083, %v1091
        %v1095 = vunpack.c.l.s4 1934713408
        %v1096 = vunpack.c.0.s8 %v1095
        %v1097 = vlaneseq
        %v1098 = vshrl.u32 %v1097, 7
        %v1099 = vsub.s32 %v1096, %v1098
        %v1100 = vrot.slane %v1092, %v1099
        %v1102 = vunpack.c.l.s4 1934713408
        %v1103 = vunpack.c.0.s8 %v1102
        %v1104 = vlaneseq
        %v1105 = vshrl.u32 %v1104, 7
        %v1106 = vsub.s32 %v1103, %v1105
        %v1107 = vrot.slane %v1093, %v1106
        %v1108 = vcombine.high %v1100, 0.0
        %v1109 = vcombine.high %v1107, 0.0
        %v1110 = vcombine.low %v546, %v631
        %v1112 = vunpack.c.l.s4 1983009808
        %v1113 = vunpack.c.0.s8 %v1112
        %v1114 = vlaneseq
        %v1115 = vshrl.u32 %v1114, 7
        %v1116 = vsub.s32 %v1113, %v1115
        %v1117 = vrot.slane %v1110, %v1116
        %v1118 = vcombine.low %v583, %v679
        %v1120 = vunpack.c.l.s4 1983009808
        %v1121 = vunpack.c.0.s8 %v1120
        %v1122 = vlaneseq
        %v1123 = vshrl.u32 %v1122, 7
        %v1124 = vsub.s32 %v1121, %v1123
        %v1125 = vrot.slane %v1118, %v1124
        %v1126 = vcombine.low %v1117, %v1125
        %v1127 = vcombine.high %v1117, %v1125
        %v1129 = vunpack.c.l.s4 1934713408
        %v1130 = vunpack.c.0.s8 %v1129
        %v1131 = vlaneseq
        %v1132 = vshrl.u32 %v1131, 7
        %v1133 = vsub.s32 %v1130, %v1132
        %v1134 = vrot.slane %v1126, %v1133
        %v1136 = vunpack.c.l.s4 1934713408
        %v1137 = vunpack.c.0.s8 %v1136
        %v1138 = vlaneseq
        %v1139 = vshrl.u32 %v1138, 7
        %v1140 = vsub.s32 %v1137, %v1139
        %v1141 = vrot.slane %v1127, %v1140
        %v1142 = vcombine.high %v1134, 0.0
        %v1143 = vcombine.high %v1141, 0.0
        %v1144 = vcombine.low %v547, %v633
        %v1146 = vunpack.c.l.s4 1983009808
        %v1147 = vunpack.c.0.s8 %v1146
        %v1148 = vlaneseq
        %v1149 = vshrl.u32 %v1148, 7
        %v1150 = vsub.s32 %v1147, %v1149
        %v1151 = vrot.slane %v1144, %v1150
        %v1152 = vcombine.low %v585, %v681
        %v1154 = vunpack.c.l.s4 1983009808
        %v1155 = vunpack.c.0.s8 %v1154
        %v1156 = vlaneseq
        %v1157 = vshrl.u32 %v1156, 7
        %v1158 = vsub.s32 %v1155, %v1157
        %v1159 = vrot.slane %v1152, %v1158
        %v1160 = vcombine.low %v1151, %v1159
        %v1161 = vcombine.high %v1151, %v1159
        %v1163 = vunpack.c.l.s4 1934713408
        %v1164 = vunpack.c.0.s8 %v1163
        %v1165 = vlaneseq
        %v1166 = vshrl.u32 %v1165, 7
        %v1167 = vsub.s32 %v1164, %v1166
        %v1168 = vrot.slane %v1160, %v1167
        %v1170 = vunpack.c.l.s4 1934713408
        %v1171 = vunpack.c.0.s8 %v1170
        %v1172 = vlaneseq
        %v1173 = vshrl.u32 %v1172, 7
        %v1174 = vsub.s32 %v1171, %v1173
        %v1175 = vrot.slane %v1161, %v1174
        %v1176 = vcombine.high %v1168, 0.0
        %v1177 = vcombine.high %v1175, 0.0
        %v1178 = vcombine.low %v548, %v635
        %v1180 = vunpack.c.l.s4 1983009808
        %v1181 = vunpack.c.0.s8 %v1180
        %v1182 = vlaneseq
        %v1183 = vshrl.u32 %v1182, 7
        %v1184 = vsub.s32 %v1181, %v1183
        %v1185 = vrot.slane %v1178, %v1184
        %v1186 = vcombine.low %v587, %v683
        %v1188 = vunpack.c.l.s4 1983009808
        %v1189 = vunpack.c.0.s8 %v1188
        %v1190 = vlaneseq
        %v1191 = vshrl.u32 %v1190, 7
        %v1192 = vsub.s32 %v1189, %v1191
        %v1193 = vrot.slane %v1186, %v1192
        %v1194 = vcombine.low %v1185, %v1193
        %v1195 = vcombine.high %v1185, %v1193
        %v1197 = vunpack.c.l.s4 1934713408
        %v1198 = vunpack.c.0.s8 %v1197
        %v1199 = vlaneseq
        %v1200 = vshrl.u32 %v1199, 7
        %v1201 = vsub.s32 %v1198, %v1200
        %v1202 = vrot.slane %v1194, %v1201
        %v1204 = vunpack.c.l.s4 1934713408
        %v1205 = vunpack.c.0.s8 %v1204
        %v1206 = vlaneseq
        %v1207 = vshrl.u32 %v1206, 7
        %v1208 = vsub.s32 %v1205, %v1207
        %v1209 = vrot.slane %v1195, %v1208
        %v1210 = vcombine.high %v1202, 0.0
        %v1211 = vcombine.high %v1209, 0.0
        %v1212 = vcombine.low %v549, %v637
        %v1214 = vunpack.c.l.s4 1983009808
        %v1215 = vunpack.c.0.s8 %v1214
        %v1216 = vlaneseq
        %v1217 = vshrl.u32 %v1216, 7
        %v1218 = vsub.s32 %v1215, %v1217
        %v1219 = vrot.slane %v1212, %v1218
        %v1220 = vcombine.low %v589, %v685
        %v1222 = vunpack.c.l.s4 1983009808
        %v1223 = vunpack.c.0.s8 %v1222
        %v1224 = vlaneseq
        %v1225 = vshrl.u32 %v1224, 7
        %v1226 = vsub.s32 %v1223, %v1225
        %v1227 = vrot.slane %v1220, %v1226
        %v1228 = vcombine.low %v1219, %v1227
        %v1229 = vcombine.high %v1219, %v1227
        %v1231 = vunpack.c.l.s4 1934713408
        %v1232 = vunpack.c.0.s8 %v1231
        %v1233 = vlaneseq
        %v1234 = vshrl.u32 %v1233, 7
        %v1235 = vsub.s32 %v1232, %v1234
        %v1236 = vrot.slane %v1228, %v1235
        %v1238 = vunpack.c.l.s4 1934713408
        %v1239 = vunpack.c.0.s8 %v1238
        %v1240 = vlaneseq
        %v1241 = vshrl.u32 %v1240, 7
        %v1242 = vsub.s32 %v1239, %v1241
        %v1243 = vrot.slane %v1229, %v1242
        %v1244 = vcombine.high %v1236, 0.0
        %v1245 = vcombine.high %v1243, 0.0
        %v1246 = vcombine.low %v726, %v733
        %v1248 = vunpack.c.l.s4 1983009808
        %v1249 = vunpack.c.0.s8 %v1248
        %v1250 = vlaneseq
        %v1251 = vshrl.u32 %v1250, 7
        %v1252 = vsub.s32 %v1249, %v1251
        %v1253 = vrot.slane %v1246, %v1252
        %v1254 = vcombine.low %v734, %v735
        %v1256 = vunpack.c.l.s4 1983009808
        %v1257 = vunpack.c.0.s8 %v1256
        %v1258 = vlaneseq
        %v1259 = vshrl.u32 %v1258, 7
        %v1260 = vsub.s32 %v1257, %v1259
        %v1261 = vrot.slane %v1254, %v1260
        %v1262 = vcombine.low %v1253, %v1261
        %v1263 = vcombine.high %v1253, %v1261
        %v1265 = vunpack.c.l.s4 1934713408
        %v1266 = vunpack.c.0.s8 %v1265
        %v1267 = vlaneseq
        %v1268 = vshrl.u32 %v1267, 7
        %v1269 = vsub.s32 %v1266, %v1268
        %v1270 = vrot.slane %v1262, %v1269
        %v1272 = vunpack.c.l.s4 1934713408
        %v1273 = vunpack.c.0.s8 %v1272
        %v1274 = vlaneseq
        %v1275 = vshrl.u32 %v1274, 7
        %v1276 = vsub.s32 %v1273, %v1275
        %v1277 = vrot.slane %v1263, %v1276
        %v1278 = vcombine.high %v1270, 0.0
        %v1279 = vcombine.high %v1277, 0.0
        %v1280 = vcombine.low %v760, %v767
        %v1282 = vunpack.c.l.s4 1983009808
        %v1283 = vunpack.c.0.s8 %v1282
        %v1284 = vlaneseq
        %v1285 = vshrl.u32 %v1284, 7
        %v1286 = vsub.s32 %v1283, %v1285
        %v1287 = vrot.slane %v1280, %v1286
        %v1288 = vcombine.low %v768, %v769
        %v1290 = vunpack.c.l.s4 1983009808
        %v1291 = vunpack.c.0.s8 %v1290
        %v1292 = vlaneseq
        %v1293 = vshrl.u32 %v1292, 7
        %v1294 = vsub.s32 %v1291, %v1293
        %v1295 = vrot.slane %v1288, %v1294
        %v1296 = vcombine.low %v1287, %v1295
        %v1297 = vcombine.high %v1287, %v1295
        %v1299 = vunpack.c.l.s4 1934713408
        %v1300 = vunpack.c.0.s8 %v1299
        %v1301 = vlaneseq
        %v1302 = vshrl.u32 %v1301, 7
        %v1303 = vsub.s32 %v1300, %v1302
        %v1304 = vrot.slane %v1296, %v1303
        %v1306 = vunpack.c.l.s4 1934713408
        %v1307 = vunpack.c.0.s8 %v1306
        %v1308 = vlaneseq
        %v1309 = vshrl.u32 %v1308, 7
        %v1310 = vsub.s32 %v1307, %v1309
        %v1311 = vrot.slane %v1297, %v1310
        %v1312 = vcombine.high %v1304, 0.0
        %v1313 = vcombine.high %v1311, 0.0
        %v1314 = vcombine.low %v794, %v801
        %v1316 = vunpack.c.l.s4 1983009808
        %v1317 = vunpack.c.0.s8 %v1316
        %v1318 = vlaneseq
        %v1319 = vshrl.u32 %v1318, 7
        %v1320 = vsub.s32 %v1317, %v1319
        %v1321 = vrot.slane %v1314, %v1320
        %v1322 = vcombine.low %v802, %v803
        %v1324 = vunpack.c.l.s4 1983009808
        %v1325 = vunpack.c.0.s8 %v1324
        %v1326 = vlaneseq
        %v1327 = vshrl.u32 %v1326, 7
        %v1328 = vsub.s32 %v1325, %v1327
        %v1329 = vrot.slane %v1322, %v1328
        %v1330 = vcombine.low %v1321, %v1329
        %v1331 = vcombine.high %v1321, %v1329
        %v1333 = vunpack.c.l.s4 1934713408
        %v1334 = vunpack.c.0.s8 %v1333
        %v1335 = vlaneseq
        %v1336 = vshrl.u32 %v1335, 7
        %v1337 = vsub.s32 %v1334, %v1336
        %v1338 = vrot.slane %v1330, %v1337
        %v1340 = vunpack.c.l.s4 1934713408
        %v1341 = vunpack.c.0.s8 %v1340
        %v1342 = vlaneseq
        %v1343 = vshrl.u32 %v1342, 7
        %v1344 = vsub.s32 %v1341, %v1343
        %v1345 = vrot.slane %v1331, %v1344
        %v1346 = vcombine.high %v1338, 0.0
        %v1347 = vcombine.high %v1345, 0.0
        %v1348 = vcombine.low %v828, %v835
        %v1350 = vunpack.c.l.s4 1983009808
        %v1351 = vunpack.c.0.s8 %v1350
        %v1352 = vlaneseq
        %v1353 = vshrl.u32 %v1352, 7
        %v1354 = vsub.s32 %v1351, %v1353
        %v1355 = vrot.slane %v1348, %v1354
        %v1356 = vcombine.low %v836, %v837
        %v1358 = vunpack.c.l.s4 1983009808
        %v1359 = vunpack.c.0.s8 %v1358
        %v1360 = vlaneseq
        %v1361 = vshrl.u32 %v1360, 7
        %v1362 = vsub.s32 %v1359, %v1361
        %v1363 = vrot.slane %v1356, %v1362
        %v1364 = vcombine.low %v1355, %v1363
        %v1365 = vcombine.high %v1355, %v1363
        %v1367 = vunpack.c.l.s4 1934713408
        %v1368 = vunpack.c.0.s8 %v1367
        %v1369 = vlaneseq
        %v1370 = vshrl.u32 %v1369, 7
        %v1371 = vsub.s32 %v1368, %v1370
        %v1372 = vrot.slane %v1364, %v1371
        %v1374 = vunpack.c.l.s4 1934713408
        %v1375 = vunpack.c.0.s8 %v1374
        %v1376 = vlaneseq
        %v1377 = vshrl.u32 %v1376, 7
        %v1378 = vsub.s32 %v1375, %v1377
        %v1379 = vrot.slane %v1365, %v1378
        %v1380 = vcombine.high %v1372, 0.0
        %v1381 = vcombine.high %v1379, 0.0
        %v1382 = vcombine.low %v862, %v869
        %v1384 = vunpack.c.l.s4 1983009808
        %v1385 = vunpack.c.0.s8 %v1384
        %v1386 = vlaneseq
        %v1387 = vshrl.u32 %v1386, 7
        %v1388 = vsub.s32 %v1385, %v1387
        %v1389 = vrot.slane %v1382, %v1388
        %v1390 = vcombine.low %v870, %v871
        %v1392 = vunpack.c.l.s4 1983009808
        %v1393 = vunpack.c.0.s8 %v1392
        %v1394 = vlaneseq
        %v1395 = vshrl.u32 %v1394, 7
        %v1396 = vsub.s32 %v1393, %v1395
        %v1397 = vrot.slane %v1390, %v1396
        %v1398 = vcombine.low %v1389, %v1397
        %v1399 = vcombine.high %v1389, %v1397
        %v1401 = vunpack.c.l.s4 1934713408
        %v1402 = vunpack.c.0.s8 %v1401
        %v1403 = vlaneseq
        %v1404 = vshrl.u32 %v1403, 7
        %v1405 = vsub.s32 %v1402, %v1404
        %v1406 = vrot.slane %v1398, %v1405
        %v1408 = vunpack.c.l.s4 1934713408
        %v1409 = vunpack.c.0.s8 %v1408
        %v1410 = vlaneseq
        %v1411 = vshrl.u32 %v1410, 7
        %v1412 = vsub.s32 %v1409, %v1411
        %v1413 = vrot.slane %v1399, %v1412
        %v1414 = vcombine.high %v1406, 0.0
        %v1415 = vcombine.high %v1413, 0.0
        %v1416 = vcombine.low %v896, %v903
        %v1418 = vunpack.c.l.s4 1983009808
        %v1419 = vunpack.c.0.s8 %v1418
        %v1420 = vlaneseq
        %v1421 = vshrl.u32 %v1420, 7
        %v1422 = vsub.s32 %v1419, %v1421
        %v1423 = vrot.slane %v1416, %v1422
        %v1424 = vcombine.low %v904, %v905
        %v1426 = vunpack.c.l.s4 1983009808
        %v1427 = vunpack.c.0.s8 %v1426
        %v1428 = vlaneseq
        %v1429 = vshrl.u32 %v1428, 7
        %v1430 = vsub.s32 %v1427, %v1429
        %v1431 = vrot.slane %v1424, %v1430
        %v1432 = vcombine.low %v1423, %v1431
        %v1433 = vcombine.high %v1423, %v1431
        %v1435 = vunpack.c.l.s4 1934713408
        %v1436 = vunpack.c.0.s8 %v1435
        %v1437 = vlaneseq
        %v1438 = vshrl.u32 %v1437, 7
        %v1439 = vsub.s32 %v1436, %v1438
        %v1440 = vrot.slane %v1432, %v1439
        %v1442 = vunpack.c.l.s4 1934713408
        %v1443 = vunpack.c.0.s8 %v1442
        %v1444 = vlaneseq
        %v1445 = vshrl.u32 %v1444, 7
        %v1446 = vsub.s32 %v1443, %v1445
        %v1447 = vrot.slane %v1433, %v1446
        %v1448 = vcombine.high %v1440, 0.0
        %v1449 = vcombine.high %v1447, 0.0
        %v1450 = vcombine.low %v930, %v937
        %v1452 = vunpack.c.l.s4 1983009808
        %v1453 = vunpack.c.0.s8 %v1452
        %v1454 = vlaneseq
        %v1455 = vshrl.u32 %v1454, 7
        %v1456 = vsub.s32 %v1453, %v1455
        %v1457 = vrot.slane %v1450, %v1456
        %v1458 = vcombine.low %v938, %v939
        %v1460 = vunpack.c.l.s4 1983009808
        %v1461 = vunpack.c.0.s8 %v1460
        %v1462 = vlaneseq
        %v1463 = vshrl.u32 %v1462, 7
        %v1464 = vsub.s32 %v1461, %v1463
        %v1465 = vrot.slane %v1458, %v1464
        %v1466 = vcombine.low %v1457, %v1465
        %v1467 = vcombine.high %v1457, %v1465
        %v1469 = vunpack.c.l.s4 1934713408
        %v1470 = vunpack.c.0.s8 %v1469
        %v1471 = vlaneseq
        %v1472 = vshrl.u32 %v1471, 7
        %v1473 = vsub.s32 %v1470, %v1472
        %v1474 = vrot.slane %v1466, %v1473
        %v1476 = vunpack.c.l.s4 1934713408
        %v1477 = vunpack.c.0.s8 %v1476
        %v1478 = vlaneseq
        %v1479 = vshrl.u32 %v1478, 7
        %v1480 = vsub.s32 %v1477, %v1479
        %v1481 = vrot.slane %v1467, %v1480
        %v1482 = vcombine.high %v1474, 0.0
        %v1483 = vcombine.high %v1481, 0.0
        %v1484 = vcombine.low %v964, %v971
        %v1486 = vunpack.c.l.s4 1983009808
        %v1487 = vunpack.c.0.s8 %v1486
        %v1488 = vlaneseq
        %v1489 = vshrl.u32 %v1488, 7
        %v1490 = vsub.s32 %v1487, %v1489
        %v1491 = vrot.slane %v1484, %v1490
        %v1492 = vcombine.low %v972, %v973
        %v1494 = vunpack.c.l.s4 1983009808
        %v1495 = vunpack.c.0.s8 %v1494
        %v1496 = vlaneseq
        %v1497 = vshrl.u32 %v1496, 7
        %v1498 = vsub.s32 %v1495, %v1497
        %v1499 = vrot.slane %v1492, %v1498
        %v1500 = vcombine.low %v1491, %v1499
        %v1501 = vcombine.high %v1491, %v1499
        %v1503 = vunpack.c.l.s4 1934713408
        %v1504 = vunpack.c.0.s8 %v1503
        %v1505 = vlaneseq
        %v1506 = vshrl.u32 %v1505, 7
        %v1507 = vsub.s32 %v1504, %v1506
        %v1508 = vrot.slane %v1500, %v1507
        %v1510 = vunpack.c.l.s4 1934713408
        %v1511 = vunpack.c.0.s8 %v1510
        %v1512 = vlaneseq
        %v1513 = vshrl.u32 %v1512, 7
        %v1514 = vsub.s32 %v1511, %v1513
        %v1515 = vrot.slane %v1501, %v1514
        %v1516 = vcombine.high %v1508, 0.0
        %v1517 = vcombine.high %v1515, 0.0
        %v1518 = vcombine.low %v998, %v1005
        %v1520 = vunpack.c.l.s4 1983009808
        %v1521 = vunpack.c.0.s8 %v1520
        %v1522 = vlaneseq
        %v1523 = vshrl.u32 %v1522, 7
        %v1524 = vsub.s32 %v1521, %v1523
        %v1525 = vrot.slane %v1518, %v1524
        %v1526 = vcombine.low %v1006, %v1007
        %v1528 = vunpack.c.l.s4 1983009808
        %v1529 = vunpack.c.0.s8 %v1528
        %v1530 = vlaneseq
        %v1531 = vshrl.u32 %v1530, 7
        %v1532 = vsub.s32 %v1529, %v1531
        %v1533 = vrot.slane %v1526, %v1532
        %v1534 = vcombine.low %v1525, %v1533
        %v1535 = vcombine.high %v1525, %v1533
        %v1537 = vunpack.c.l.s4 1934713408
        %v1538 = vunpack.c.0.s8 %v1537
        %v1539 = vlaneseq
        %v1540 = vshrl.u32 %v1539, 7
        %v1541 = vsub.s32 %v1538, %v1540
        %v1542 = vrot.slane %v1534, %v1541
        %v1544 = vunpack.c.l.s4 1934713408
        %v1545 = vunpack.c.0.s8 %v1544
        %v1546 = vlaneseq
        %v1547 = vshrl.u32 %v1546, 7
        %v1548 = vsub.s32 %v1545, %v1547
        %v1549 = vrot.slane %v1535, %v1548
        %v1550 = vcombine.high %v1542, 0.0
        %v1551 = vcombine.high %v1549, 0.0
        %v1552 = vcombine.low %v1032, %v1039
        %v1554 = vunpack.c.l.s4 1983009808
        %v1555 = vunpack.c.0.s8 %v1554
        %v1556 = vlaneseq
        %v1557 = vshrl.u32 %v1556, 7
        %v1558 = vsub.s32 %v1555, %v1557
        %v1559 = vrot.slane %v1552, %v1558
        %v1560 = vcombine.low %v1040, %v1041
        %v1562 = vunpack.c.l.s4 1983009808
        %v1563 = vunpack.c.0.s8 %v1562
        %v1564 = vlaneseq
        %v1565 = vshrl.u32 %v1564, 7
        %v1566 = vsub.s32 %v1563, %v1565
        %v1567 = vrot.slane %v1560, %v1566
        %v1568 = vcombine.low %v1559, %v1567
        %v1569 = vcombine.high %v1559, %v1567
        %v1571 = vunpack.c.l.s4 1934713408
        %v1572 = vunpack.c.0.s8 %v1571
        %v1573 = vlaneseq
        %v1574 = vshrl.u32 %v1573, 7
        %v1575 = vsub.s32 %v1572, %v1574
        %v1576 = vrot.slane %v1568, %v1575
        %v1578 = vunpack.c.l.s4 1934713408
        %v1579 = vunpack.c.0.s8 %v1578
        %v1580 = vlaneseq
        %v1581 = vshrl.u32 %v1580, 7
        %v1582 = vsub.s32 %v1579, %v1581
        %v1583 = vrot.slane %v1569, %v1582
        %v1584 = vcombine.high %v1576, 0.0
        %v1585 = vcombine.high %v1583, 0.0
        %v1586 = vcombine.low %v1066, %v1073
        %v1588 = vunpack.c.l.s4 1983009808
        %v1589 = vunpack.c.0.s8 %v1588
        %v1590 = vlaneseq
        %v1591 = vshrl.u32 %v1590, 7
        %v1592 = vsub.s32 %v1589, %v1591
        %v1593 = vrot.slane %v1586, %v1592
        %v1594 = vcombine.low %v1074, %v1075
        %v1596 = vunpack.c.l.s4 1983009808
        %v1597 = vunpack.c.0.s8 %v1596
        %v1598 = vlaneseq
        %v1599 = vshrl.u32 %v1598, 7
        %v1600 = vsub.s32 %v1597, %v1599
        %v1601 = vrot.slane %v1594, %v1600
        %v1602 = vcombine.low %v1593, %v1601
        %v1603 = vcombine.high %v1593, %v1601
        %v1605 = vunpack.c.l.s4 1934713408
        %v1606 = vunpack.c.0.s8 %v1605
        %v1607 = vlaneseq
        %v1608 = vshrl.u32 %v1607, 7
        %v1609 = vsub.s32 %v1606, %v1608
        %v1610 = vrot.slane %v1602, %v1609
        %v1612 = vunpack.c.l.s4 1934713408
        %v1613 = vunpack.c.0.s8 %v1612
        %v1614 = vlaneseq
        %v1615 = vshrl.u32 %v1614, 7
        %v1616 = vsub.s32 %v1613, %v1615
        %v1617 = vrot.slane %v1603, %v1616
        %v1618 = vcombine.high %v1610, 0.0
        %v1619 = vcombine.high %v1617, 0.0
        %v1620 = vcombine.low %v1100, %v1107
        %v1622 = vunpack.c.l.s4 1983009808
        %v1623 = vunpack.c.0.s8 %v1622
        %v1624 = vlaneseq
        %v1625 = vshrl.u32 %v1624, 7
        %v1626 = vsub.s32 %v1623, %v1625
        %v1627 = vrot.slane %v1620, %v1626
        %v1628 = vcombine.low %v1108, %v1109
        %v1630 = vunpack.c.l.s4 1983009808
        %v1631 = vunpack.c.0.s8 %v1630
        %v1632 = vlaneseq
        %v1633 = vshrl.u32 %v1632, 7
        %v1634 = vsub.s32 %v1631, %v1633
        %v1635 = vrot.slane %v1628, %v1634
        %v1636 = vcombine.low %v1627, %v1635
        %v1637 = vcombine.high %v1627, %v1635
        %v1639 = vunpack.c.l.s4 1934713408
        %v1640 = vunpack.c.0.s8 %v1639
        %v1641 = vlaneseq
        %v1642 = vshrl.u32 %v1641, 7
        %v1643 = vsub.s32 %v1640, %v1642
        %v1644 = vrot.slane %v1636, %v1643
        %v1646 = vunpack.c.l.s4 1934713408
        %v1647 = vunpack.c.0.s8 %v1646
        %v1648 = vlaneseq
        %v1649 = vshrl.u32 %v1648, 7
        %v1650 = vsub.s32 %v1647, %v1649
        %v1651 = vrot.slane %v1637, %v1650
        %v1652 = vcombine.high %v1644, 0.0
        %v1653 = vcombine.high %v1651, 0.0
        %v1654 = vcombine.low %v1134, %v1141
        %v1656 = vunpack.c.l.s4 1983009808
        %v1657 = vunpack.c.0.s8 %v1656
        %v1658 = vlaneseq
        %v1659 = vshrl.u32 %v1658, 7
        %v1660 = vsub.s32 %v1657, %v1659
        %v1661 = vrot.slane %v1654, %v1660
        %v1662 = vcombine.low %v1142, %v1143
        %v1664 = vunpack.c.l.s4 1983009808
        %v1665 = vunpack.c.0.s8 %v1664
        %v1666 = vlaneseq
        %v1667 = vshrl.u32 %v1666, 7
        %v1668 = vsub.s32 %v1665, %v1667
        %v1669 = vrot.slane %v1662, %v1668
        %v1670 = vcombine.low %v1661, %v1669
        %v1671 = vcombine.high %v1661, %v1669
        %v1673 = vunpack.c.l.s4 1934713408
        %v1674 = vunpack.c.0.s8 %v1673
        %v1675 = vlaneseq
        %v1676 = vshrl.u32 %v1675, 7
        %v1677 = vsub.s32 %v1674, %v1676
        %v1678 = vrot.slane %v1670, %v1677
        %v1680 = vunpack.c.l.s4 1934713408
        %v1681 = vunpack.c.0.s8 %v1680
        %v1682 = vlaneseq
        %v1683 = vshrl.u32 %v1682, 7
        %v1684 = vsub.s32 %v1681, %v1683
        %v1685 = vrot.slane %v1671, %v1684
        %v1686 = vcombine.high %v1678, 0.0
        %v1687 = vcombine.high %v1685, 0.0
        %v1688 = vcombine.low %v1168, %v1175
        %v1690 = vunpack.c.l.s4 1983009808
        %v1691 = vunpack.c.0.s8 %v1690
        %v1692 = vlaneseq
        %v1693 = vshrl.u32 %v1692, 7
        %v1694 = vsub.s32 %v1691, %v1693
        %v1695 = vrot.slane %v1688, %v1694
        %v1696 = vcombine.low %v1176, %v1177
        %v1698 = vunpack.c.l.s4 1983009808
        %v1699 = vunpack.c.0.s8 %v1698
        %v1700 = vlaneseq
        %v1701 = vshrl.u32 %v1700, 7
        %v1702 = vsub.s32 %v1699, %v1701
        %v1703 = vrot.slane %v1696, %v1702
        %v1704 = vcombine.low %v1695, %v1703
        %v1705 = vcombine.high %v1695, %v1703
        %v1707 = vunpack.c.l.s4 1934713408
        %v1708 = vunpack.c.0.s8 %v1707
        %v1709 = vlaneseq
        %v1710 = vshrl.u32 %v1709, 7
        %v1711 = vsub.s32 %v1708, %v1710
        %v1712 = vrot.slane %v1704, %v1711
        %v1714 = vunpack.c.l.s4 1934713408
        %v1715 = vunpack.c.0.s8 %v1714
        %v1716 = vlaneseq
        %v1717 = vshrl.u32 %v1716, 7
        %v1718 = vsub.s32 %v1715, %v1717
        %v1719 = vrot.slane %v1705, %v1718
        %v1720 = vcombine.high %v1712, 0.0
        %v1721 = vcombine.high %v1719, 0.0
        %v1722 = vcombine.low %v1202, %v1209
        %v1724 = vunpack.c.l.s4 1983009808
        %v1725 = vunpack.c.0.s8 %v1724
        %v1726 = vlaneseq
        %v1727 = vshrl.u32 %v1726, 7
        %v1728 = vsub.s32 %v1725, %v1727
        %v1729 = vrot.slane %v1722, %v1728
        %v1730 = vcombine.low %v1210, %v1211
        %v1732 = vunpack.c.l.s4 1983009808
        %v1733 = vunpack.c.0.s8 %v1732
        %v1734 = vlaneseq
        %v1735 = vshrl.u32 %v1734, 7
        %v1736 = vsub.s32 %v1733, %v1735
        %v1737 = vrot.slane %v1730, %v1736
        %v1738 = vcombine.low %v1729, %v1737
        %v1739 = vcombine.high %v1729, %v1737
        %v1741 = vunpack.c.l.s4 1934713408
        %v1742 = vunpack.c.0.s8 %v1741
        %v1743 = vlaneseq
        %v1744 = vshrl.u32 %v1743, 7
        %v1745 = vsub.s32 %v1742, %v1744
        %v1746 = vrot.slane %v1738, %v1745
        %v1748 = vunpack.c.l.s4 1934713408
        %v1749 = vunpack.c.0.s8 %v1748
        %v1750 = vlaneseq
        %v1751 = vshrl.u32 %v1750, 7
        %v1752 = vsub.s32 %v1749, %v1751
        %v1753 = vrot.slane %v1739, %v1752
        %v1754 = vcombine.high %v1746, 0.0
        %v1755 = vcombine.high %v1753, 0.0
        %v1756 = vcombine.low %v1236, %v1243
        %v1758 = vunpack.c.l.s4 1983009808
        %v1759 = vunpack.c.0.s8 %v1758
        %v1760 = vlaneseq
        %v1761 = vshrl.u32 %v1760, 7
        %v1762 = vsub.s32 %v1759, %v1761
        %v1763 = vrot.slane %v1756, %v1762
        %v1764 = vcombine.low %v1244, %v1245
        %v1766 = vunpack.c.l.s4 1983009808
        %v1767 = vunpack.c.0.s8 %v1766
        %v1768 = vlaneseq
        %v1769 = vshrl.u32 %v1768, 7
        %v1770 = vsub.s32 %v1767, %v1769
        %v1771 = vrot.slane %v1764, %v1770
        %v1772 = vcombine.low %v1763, %v1771
        %v1773 = vcombine.high %v1763, %v1771
        %v1775 = vunpack.c.l.s4 1934713408
        %v1776 = vunpack.c.0.s8 %v1775
        %v1777 = vlaneseq
        %v1778 = vshrl.u32 %v1777, 7
        %v1779 = vsub.s32 %v1776, %v1778
        %v1780 = vrot.slane %v1772, %v1779
        %v1782 = vunpack.c.l.s4 1934713408
        %v1783 = vunpack.c.0.s8 %v1782
        %v1784 = vlaneseq
        %v1785 = vshrl.u32 %v1784, 7
        %v1786 = vsub.s32 %v1783, %v1785
        %v1787 = vrot.slane %v1773, %v1786
        %v1788 = vcombine.high %v1780, 0.0
        %v1789 = vcombine.high %v1787, 0.0
        %1790 = vrot.lane.b32.xlu0 %v496, 96
        %v1791 = vpop.permute.xlu0 %1790
        %1792 = vrot.lane.b32.xlu0 %v501, 96
        %v1793 = vpop.permute.xlu0 %1792
        %1794 = vrot.lane.b32.xlu0 %v506, 96
        %v1795 = vpop.permute.xlu0 %1794
        %1796 = vrot.lane.b32.xlu0 %v511, 96
        %v1797 = vpop.permute.xlu0 %1796
        %1798 = vrot.lane.b32.xlu0 %v559, 96
        %v1799 = vpop.permute.xlu0 %1798
        %1800 = vrot.lane.b32.xlu0 %v561, 96
        %v1801 = vpop.permute.xlu0 %1800
        %1802 = vrot.lane.b32.xlu0 %v563, 96
        %v1803 = vpop.permute.xlu0 %1802
        %1804 = vrot.lane.b32.xlu0 %v565, 96
        %v1805 = vpop.permute.xlu0 %1804
        %1806 = vrot.lane.b32.xlu0 %v607, 96
        %v1807 = vpop.permute.xlu0 %1806
        %1808 = vrot.lane.b32.xlu0 %v609, 96
        %v1809 = vpop.permute.xlu0 %1808
        %1810 = vrot.lane.b32.xlu0 %v611, 96
        %v1811 = vpop.permute.xlu0 %1810
        %1812 = vrot.lane.b32.xlu0 %v613, 96
        %v1813 = vpop.permute.xlu0 %1812
        %1814 = vrot.lane.b32.xlu0 %v655, 96
        %v1815 = vpop.permute.xlu0 %1814
        %1816 = vrot.lane.b32.xlu0 %v657, 96
        %v1817 = vpop.permute.xlu0 %1816
        %1818 = vrot.lane.b32.xlu0 %v659, 96
        %v1819 = vpop.permute.xlu0 %1818
        %1820 = vrot.lane.b32.xlu0 %v661, 96
        %v1821 = vpop.permute.xlu0 %1820
        %1822 = vrot.lane.b32.xlu0 %v542, 96
        %v1823 = vpop.permute.xlu0 %1822
        %1824 = vrot.lane.b32.xlu0 %v543, 96
        %v1825 = vpop.permute.xlu0 %1824
        %1826 = vrot.lane.b32.xlu0 %v544, 96
        %v1827 = vpop.permute.xlu0 %1826
        %1828 = vrot.lane.b32.xlu0 %v545, 96
        %v1829 = vpop.permute.xlu0 %1828
        %1830 = vrot.lane.b32.xlu0 %v567, 96
        %v1831 = vpop.permute.xlu0 %1830
        %1832 = vrot.lane.b32.xlu0 %v569, 96
        %v1833 = vpop.permute.xlu0 %1832
        %1834 = vrot.lane.b32.xlu0 %v571, 96
        %v1835 = vpop.permute.xlu0 %1834
        %1836 = vrot.lane.b32.xlu0 %v573, 96
        %v1837 = vpop.permute.xlu0 %1836
        %1838 = vrot.lane.b32.xlu0 %v615, 96
        %v1839 = vpop.permute.xlu0 %1838
        %1840 = vrot.lane.b32.xlu0 %v617, 96
        %v1841 = vpop.permute.xlu0 %1840
        %1842 = vrot.lane.b32.xlu0 %v619, 96
        %v1843 = vpop.permute.xlu0 %1842
        %1844 = vrot.lane.b32.xlu0 %v621, 96
        %v1845 = vpop.permute.xlu0 %1844
        %1846 = vrot.lane.b32.xlu0 %v663, 96
        %v1847 = vpop.permute.xlu0 %1846
        %1848 = vrot.lane.b32.xlu0 %v665, 96
        %v1849 = vpop.permute.xlu0 %1848
        %1850 = vrot.lane.b32.xlu0 %v667, 96
        %v1851 = vpop.permute.xlu0 %1850
        %1852 = vrot.lane.b32.xlu0 %v669, 96
        %v1853 = vpop.permute.xlu0 %1852
        %1854 = vrot.lane.b32.xlu0 %v516, 96
        %v1855 = vpop.permute.xlu0 %1854
        %1856 = vrot.lane.b32.xlu0 %v521, 96
        %v1857 = vpop.permute.xlu0 %1856
        %1858 = vrot.lane.b32.xlu0 %v526, 96
        %v1859 = vpop.permute.xlu0 %1858
        %1860 = vrot.lane.b32.xlu0 %v531, 96
        %v1861 = vpop.permute.xlu0 %1860
        %1862 = vrot.lane.b32.xlu0 %v575, 96
        %v1863 = vpop.permute.xlu0 %1862
        %1864 = vrot.lane.b32.xlu0 %v577, 96
        %v1865 = vpop.permute.xlu0 %1864
        %1866 = vrot.lane.b32.xlu0 %v579, 96
        %v1867 = vpop.permute.xlu0 %1866
        %1868 = vrot.lane.b32.xlu0 %v581, 96
        %v1869 = vpop.permute.xlu0 %1868
        %1870 = vrot.lane.b32.xlu0 %v623, 96
        %v1871 = vpop.permute.xlu0 %1870
        %1872 = vrot.lane.b32.xlu0 %v625, 96
        %v1873 = vpop.permute.xlu0 %1872
        %1874 = vrot.lane.b32.xlu0 %v627, 96
        %v1875 = vpop.permute.xlu0 %1874
        %1876 = vrot.lane.b32.xlu0 %v629, 96
        %v1877 = vpop.permute.xlu0 %1876
        %1878 = vrot.lane.b32.xlu0 %v671, 96
        %v1879 = vpop.permute.xlu0 %1878
        %1880 = vrot.lane.b32.xlu0 %v673, 96
        %v1881 = vpop.permute.xlu0 %1880
        %1882 = vrot.lane.b32.xlu0 %v675, 96
        %v1883 = vpop.permute.xlu0 %1882
        %1884 = vrot.lane.b32.xlu0 %v677, 96
        %v1885 = vpop.permute.xlu0 %1884
        %1886 = vrot.lane.b32.xlu0 %v546, 96
        %v1887 = vpop.permute.xlu0 %1886
        %1888 = vrot.lane.b32.xlu0 %v547, 96
        %v1889 = vpop.permute.xlu0 %1888
        %1890 = vrot.lane.b32.xlu0 %v548, 96
        %v1891 = vpop.permute.xlu0 %1890
        %1892 = vrot.lane.b32.xlu0 %v549, 96
        %v1893 = vpop.permute.xlu0 %1892
        %1894 = vrot.lane.b32.xlu0 %v583, 96
        %v1895 = vpop.permute.xlu0 %1894
        %1896 = vrot.lane.b32.xlu0 %v585, 96
        %v1897 = vpop.permute.xlu0 %1896
        %1898 = vrot.lane.b32.xlu0 %v587, 96
        %v1899 = vpop.permute.xlu0 %1898
        %1900 = vrot.lane.b32.xlu0 %v589, 96
        %v1901 = vpop.permute.xlu0 %1900
        %1902 = vrot.lane.b32.xlu0 %v631, 96
        %v1903 = vpop.permute.xlu0 %1902
        %1904 = vrot.lane.b32.xlu0 %v633, 96
        %v1905 = vpop.permute.xlu0 %1904
        %1906 = vrot.lane.b32.xlu0 %v635, 96
        %v1907 = vpop.permute.xlu0 %1906
        %1908 = vrot.lane.b32.xlu0 %v637, 96
        %v1909 = vpop.permute.xlu0 %1908
        %1910 = vrot.lane.b32.xlu0 %v679, 96
        %v1911 = vpop.permute.xlu0 %1910
        %1912 = vrot.lane.b32.xlu0 %v681, 96
        %v1913 = vpop.permute.xlu0 %1912
        %1914 = vrot.lane.b32.xlu0 %v683, 96
        %v1915 = vpop.permute.xlu0 %1914
        %1916 = vrot.lane.b32.xlu0 %v685, 96
        %v1917 = vpop.permute.xlu0 %1916
        %v1982 = vcombine.low %v1791, %v1807
        %v1984 = vunpack.c.l.s4 1983009808
        %v1985 = vunpack.c.0.s8 %v1984
        %v1986 = vlaneseq
        %v1987 = vshrl.u32 %v1986, 7
        %v1988 = vsub.s32 %v1985, %v1987
        %v1989 = vrot.slane %v1982, %v1988
        %v1990 = vcombine.low %v1799, %v1815
        %v1992 = vunpack.c.l.s4 1983009808
        %v1993 = vunpack.c.0.s8 %v1992
        %v1994 = vlaneseq
        %v1995 = vshrl.u32 %v1994, 7
        %v1996 = vsub.s32 %v1993, %v1995
        %v1997 = vrot.slane %v1990, %v1996
        %v1998 = vcombine.low %v1989, %v1997
        %v1999 = vcombine.high %v1989, %v1997
        %v2001 = vunpack.c.l.s4 1934713408
        %v2002 = vunpack.c.0.s8 %v2001
        %v2003 = vlaneseq
        %v2004 = vshrl.u32 %v2003, 7
        %v2005 = vsub.s32 %v2002, %v2004
        %v2006 = vrot.slane %v1998, %v2005
        %v2008 = vunpack.c.l.s4 1934713408
        %v2009 = vunpack.c.0.s8 %v2008
        %v2010 = vlaneseq
        %v2011 = vshrl.u32 %v2010, 7
        %v2012 = vsub.s32 %v2009, %v2011
        %v2013 = vrot.slane %v1999, %v2012
        %v2014 = vcombine.high %v2006, 0.0
        %v2015 = vcombine.high %v2013, 0.0
        %v2016 = vcombine.low %v1793, %v1809
        %v2018 = vunpack.c.l.s4 1983009808
        %v2019 = vunpack.c.0.s8 %v2018
        %v2020 = vlaneseq
        %v2021 = vshrl.u32 %v2020, 7
        %v2022 = vsub.s32 %v2019, %v2021
        %v2023 = vrot.slane %v2016, %v2022
        %v2024 = vcombine.low %v1801, %v1817
        %v2026 = vunpack.c.l.s4 1983009808
        %v2027 = vunpack.c.0.s8 %v2026
        %v2028 = vlaneseq
        %v2029 = vshrl.u32 %v2028, 7
        %v2030 = vsub.s32 %v2027, %v2029
        %v2031 = vrot.slane %v2024, %v2030
        %v2032 = vcombine.low %v2023, %v2031
        %v2033 = vcombine.high %v2023, %v2031
        %v2035 = vunpack.c.l.s4 1934713408
        %v2036 = vunpack.c.0.s8 %v2035
        %v2037 = vlaneseq
        %v2038 = vshrl.u32 %v2037, 7
        %v2039 = vsub.s32 %v2036, %v2038
        %v2040 = vrot.slane %v2032, %v2039
        %v2042 = vunpack.c.l.s4 1934713408
        %v2043 = vunpack.c.0.s8 %v2042
        %v2044 = vlaneseq
        %v2045 = vshrl.u32 %v2044, 7
        %v2046 = vsub.s32 %v2043, %v2045
        %v2047 = vrot.slane %v2033, %v2046
        %v2048 = vcombine.high %v2040, 0.0
        %v2049 = vcombine.high %v2047, 0.0
        %v2050 = vcombine.low %v1795, %v1811
        %v2052 = vunpack.c.l.s4 1983009808
        %v2053 = vunpack.c.0.s8 %v2052
        %v2054 = vlaneseq
        %v2055 = vshrl.u32 %v2054, 7
        %v2056 = vsub.s32 %v2053, %v2055
        %v2057 = vrot.slane %v2050, %v2056
        %v2058 = vcombine.low %v1803, %v1819
        %v2060 = vunpack.c.l.s4 1983009808
        %v2061 = vunpack.c.0.s8 %v2060
        %v2062 = vlaneseq
        %v2063 = vshrl.u32 %v2062, 7
        %v2064 = vsub.s32 %v2061, %v2063
        %v2065 = vrot.slane %v2058, %v2064
        %v2066 = vcombine.low %v2057, %v2065
        %v2067 = vcombine.high %v2057, %v2065
        %v2069 = vunpack.c.l.s4 1934713408
        %v2070 = vunpack.c.0.s8 %v2069
        %v2071 = vlaneseq
        %v2072 = vshrl.u32 %v2071, 7
        %v2073 = vsub.s32 %v2070, %v2072
        %v2074 = vrot.slane %v2066, %v2073
        %v2076 = vunpack.c.l.s4 1934713408
        %v2077 = vunpack.c.0.s8 %v2076
        %v2078 = vlaneseq
        %v2079 = vshrl.u32 %v2078, 7
        %v2080 = vsub.s32 %v2077, %v2079
        %v2081 = vrot.slane %v2067, %v2080
        %v2082 = vcombine.high %v2074, 0.0
        %v2083 = vcombine.high %v2081, 0.0
        %v2084 = vcombine.low %v1797, %v1813
        %v2086 = vunpack.c.l.s4 1983009808
        %v2087 = vunpack.c.0.s8 %v2086
        %v2088 = vlaneseq
        %v2089 = vshrl.u32 %v2088, 7
        %v2090 = vsub.s32 %v2087, %v2089
        %v2091 = vrot.slane %v2084, %v2090
        %v2092 = vcombine.low %v1805, %v1821
        %v2094 = vunpack.c.l.s4 1983009808
        %v2095 = vunpack.c.0.s8 %v2094
        %v2096 = vlaneseq
        %v2097 = vshrl.u32 %v2096, 7
        %v2098 = vsub.s32 %v2095, %v2097
        %v2099 = vrot.slane %v2092, %v2098
        %v2100 = vcombine.low %v2091, %v2099
        %v2101 = vcombine.high %v2091, %v2099
        %v2103 = vunpack.c.l.s4 1934713408
        %v2104 = vunpack.c.0.s8 %v2103
        %v2105 = vlaneseq
        %v2106 = vshrl.u32 %v2105, 7
        %v2107 = vsub.s32 %v2104, %v2106
        %v2108 = vrot.slane %v2100, %v2107
        %v2110 = vunpack.c.l.s4 1934713408
        %v2111 = vunpack.c.0.s8 %v2110
        %v2112 = vlaneseq
        %v2113 = vshrl.u32 %v2112, 7
        %v2114 = vsub.s32 %v2111, %v2113
        %v2115 = vrot.slane %v2101, %v2114
        %v2116 = vcombine.high %v2108, 0.0
        %v2117 = vcombine.high %v2115, 0.0
        %v2118 = vcombine.low %v1823, %v1839
        %v2120 = vunpack.c.l.s4 1983009808
        %v2121 = vunpack.c.0.s8 %v2120
        %v2122 = vlaneseq
        %v2123 = vshrl.u32 %v2122, 7
        %v2124 = vsub.s32 %v2121, %v2123
        %v2125 = vrot.slane %v2118, %v2124
        %v2126 = vcombine.low %v1831, %v1847
        %v2128 = vunpack.c.l.s4 1983009808
        %v2129 = vunpack.c.0.s8 %v2128
        %v2130 = vlaneseq
        %v2131 = vshrl.u32 %v2130, 7
        %v2132 = vsub.s32 %v2129, %v2131
        %v2133 = vrot.slane %v2126, %v2132
        %v2134 = vcombine.low %v2125, %v2133
        %v2135 = vcombine.high %v2125, %v2133
        %v2137 = vunpack.c.l.s4 1934713408
        %v2138 = vunpack.c.0.s8 %v2137
        %v2139 = vlaneseq
        %v2140 = vshrl.u32 %v2139, 7
        %v2141 = vsub.s32 %v2138, %v2140
        %v2142 = vrot.slane %v2134, %v2141
        %v2144 = vunpack.c.l.s4 1934713408
        %v2145 = vunpack.c.0.s8 %v2144
        %v2146 = vlaneseq
        %v2147 = vshrl.u32 %v2146, 7
        %v2148 = vsub.s32 %v2145, %v2147
        %v2149 = vrot.slane %v2135, %v2148
        %v2150 = vcombine.high %v2142, 0.0
        %v2151 = vcombine.high %v2149, 0.0
        %v2152 = vcombine.low %v1825, %v1841
        %v2154 = vunpack.c.l.s4 1983009808
        %v2155 = vunpack.c.0.s8 %v2154
        %v2156 = vlaneseq
        %v2157 = vshrl.u32 %v2156, 7
        %v2158 = vsub.s32 %v2155, %v2157
        %v2159 = vrot.slane %v2152, %v2158
        %v2160 = vcombine.low %v1833, %v1849
        %v2162 = vunpack.c.l.s4 1983009808
        %v2163 = vunpack.c.0.s8 %v2162
        %v2164 = vlaneseq
        %v2165 = vshrl.u32 %v2164, 7
        %v2166 = vsub.s32 %v2163, %v2165
        %v2167 = vrot.slane %v2160, %v2166
        %v2168 = vcombine.low %v2159, %v2167
        %v2169 = vcombine.high %v2159, %v2167
        %v2171 = vunpack.c.l.s4 1934713408
        %v2172 = vunpack.c.0.s8 %v2171
        %v2173 = vlaneseq
        %v2174 = vshrl.u32 %v2173, 7
        %v2175 = vsub.s32 %v2172, %v2174
        %v2176 = vrot.slane %v2168, %v2175
        %v2178 = vunpack.c.l.s4 1934713408
        %v2179 = vunpack.c.0.s8 %v2178
        %v2180 = vlaneseq
        %v2181 = vshrl.u32 %v2180, 7
        %v2182 = vsub.s32 %v2179, %v2181
        %v2183 = vrot.slane %v2169, %v2182
        %v2184 = vcombine.high %v2176, 0.0
        %v2185 = vcombine.high %v2183, 0.0
        %v2186 = vcombine.low %v1827, %v1843
        %v2188 = vunpack.c.l.s4 1983009808
        %v2189 = vunpack.c.0.s8 %v2188
        %v2190 = vlaneseq
        %v2191 = vshrl.u32 %v2190, 7
        %v2192 = vsub.s32 %v2189, %v2191
        %v2193 = vrot.slane %v2186, %v2192
        %v2194 = vcombine.low %v1835, %v1851
        %v2196 = vunpack.c.l.s4 1983009808
        %v2197 = vunpack.c.0.s8 %v2196
        %v2198 = vlaneseq
        %v2199 = vshrl.u32 %v2198, 7
        %v2200 = vsub.s32 %v2197, %v2199
        %v2201 = vrot.slane %v2194, %v2200
        %v2202 = vcombine.low %v2193, %v2201
        %v2203 = vcombine.high %v2193, %v2201
        %v2205 = vunpack.c.l.s4 1934713408
        %v2206 = vunpack.c.0.s8 %v2205
        %v2207 = vlaneseq
        %v2208 = vshrl.u32 %v2207, 7
        %v2209 = vsub.s32 %v2206, %v2208
        %v2210 = vrot.slane %v2202, %v2209
        %v2212 = vunpack.c.l.s4 1934713408
        %v2213 = vunpack.c.0.s8 %v2212
        %v2214 = vlaneseq
        %v2215 = vshrl.u32 %v2214, 7
        %v2216 = vsub.s32 %v2213, %v2215
        %v2217 = vrot.slane %v2203, %v2216
        %v2218 = vcombine.high %v2210, 0.0
        %v2219 = vcombine.high %v2217, 0.0
        %v2220 = vcombine.low %v1829, %v1845
        %v2222 = vunpack.c.l.s4 1983009808
        %v2223 = vunpack.c.0.s8 %v2222
        %v2224 = vlaneseq
        %v2225 = vshrl.u32 %v2224, 7
        %v2226 = vsub.s32 %v2223, %v2225
        %v2227 = vrot.slane %v2220, %v2226
        %v2228 = vcombine.low %v1837, %v1853
        %v2230 = vunpack.c.l.s4 1983009808
        %v2231 = vunpack.c.0.s8 %v2230
        %v2232 = vlaneseq
        %v2233 = vshrl.u32 %v2232, 7
        %v2234 = vsub.s32 %v2231, %v2233
        %v2235 = vrot.slane %v2228, %v2234
        %v2236 = vcombine.low %v2227, %v2235
        %v2237 = vcombine.high %v2227, %v2235
        %v2239 = vunpack.c.l.s4 1934713408
        %v2240 = vunpack.c.0.s8 %v2239
        %v2241 = vlaneseq
        %v2242 = vshrl.u32 %v2241, 7
        %v2243 = vsub.s32 %v2240, %v2242
        %v2244 = vrot.slane %v2236, %v2243
        %v2246 = vunpack.c.l.s4 1934713408
        %v2247 = vunpack.c.0.s8 %v2246
        %v2248 = vlaneseq
        %v2249 = vshrl.u32 %v2248, 7
        %v2250 = vsub.s32 %v2247, %v2249
        %v2251 = vrot.slane %v2237, %v2250
        %v2252 = vcombine.high %v2244, 0.0
        %v2253 = vcombine.high %v2251, 0.0
        %v2254 = vcombine.low %v1855, %v1871
        %v2256 = vunpack.c.l.s4 1983009808
        %v2257 = vunpack.c.0.s8 %v2256
        %v2258 = vlaneseq
        %v2259 = vshrl.u32 %v2258, 7
        %v2260 = vsub.s32 %v2257, %v2259
        %v2261 = vrot.slane %v2254, %v2260
        %v2262 = vcombine.low %v1863, %v1879
        %v2264 = vunpack.c.l.s4 1983009808
        %v2265 = vunpack.c.0.s8 %v2264
        %v2266 = vlaneseq
        %v2267 = vshrl.u32 %v2266, 7
        %v2268 = vsub.s32 %v2265, %v2267
        %v2269 = vrot.slane %v2262, %v2268
        %v2270 = vcombine.low %v2261, %v2269
        %v2271 = vcombine.high %v2261, %v2269
        %v2273 = vunpack.c.l.s4 1934713408
        %v2274 = vunpack.c.0.s8 %v2273
        %v2275 = vlaneseq
        %v2276 = vshrl.u32 %v2275, 7
        %v2277 = vsub.s32 %v2274, %v2276
        %v2278 = vrot.slane %v2270, %v2277
        %v2280 = vunpack.c.l.s4 1934713408
        %v2281 = vunpack.c.0.s8 %v2280
        %v2282 = vlaneseq
        %v2283 = vshrl.u32 %v2282, 7
        %v2284 = vsub.s32 %v2281, %v2283
        %v2285 = vrot.slane %v2271, %v2284
        %v2286 = vcombine.high %v2278, 0.0
        %v2287 = vcombine.high %v2285, 0.0
        %v2288 = vcombine.low %v1857, %v1873
        %v2290 = vunpack.c.l.s4 1983009808
        %v2291 = vunpack.c.0.s8 %v2290
        %v2292 = vlaneseq
        %v2293 = vshrl.u32 %v2292, 7
        %v2294 = vsub.s32 %v2291, %v2293
        %v2295 = vrot.slane %v2288, %v2294
        %v2296 = vcombine.low %v1865, %v1881
        %v2298 = vunpack.c.l.s4 1983009808
        %v2299 = vunpack.c.0.s8 %v2298
        %v2300 = vlaneseq
        %v2301 = vshrl.u32 %v2300, 7
        %v2302 = vsub.s32 %v2299, %v2301
        %v2303 = vrot.slane %v2296, %v2302
        %v2304 = vcombine.low %v2295, %v2303
        %v2305 = vcombine.high %v2295, %v2303
        %v2307 = vunpack.c.l.s4 1934713408
        %v2308 = vunpack.c.0.s8 %v2307
        %v2309 = vlaneseq
        %v2310 = vshrl.u32 %v2309, 7
        %v2311 = vsub.s32 %v2308, %v2310
        %v2312 = vrot.slane %v2304, %v2311
        %v2314 = vunpack.c.l.s4 1934713408
        %v2315 = vunpack.c.0.s8 %v2314
        %v2316 = vlaneseq
        %v2317 = vshrl.u32 %v2316, 7
        %v2318 = vsub.s32 %v2315, %v2317
        %v2319 = vrot.slane %v2305, %v2318
        %v2320 = vcombine.high %v2312, 0.0
        %v2321 = vcombine.high %v2319, 0.0
        %v2322 = vcombine.low %v1859, %v1875
        %v2324 = vunpack.c.l.s4 1983009808
        %v2325 = vunpack.c.0.s8 %v2324
        %v2326 = vlaneseq
        %v2327 = vshrl.u32 %v2326, 7
        %v2328 = vsub.s32 %v2325, %v2327
        %v2329 = vrot.slane %v2322, %v2328
        %v2330 = vcombine.low %v1867, %v1883
        %v2332 = vunpack.c.l.s4 1983009808
        %v2333 = vunpack.c.0.s8 %v2332
        %v2334 = vlaneseq
        %v2335 = vshrl.u32 %v2334, 7
        %v2336 = vsub.s32 %v2333, %v2335
        %v2337 = vrot.slane %v2330, %v2336
        %v2338 = vcombine.low %v2329, %v2337
        %v2339 = vcombine.high %v2329, %v2337
        %v2341 = vunpack.c.l.s4 1934713408
        %v2342 = vunpack.c.0.s8 %v2341
        %v2343 = vlaneseq
        %v2344 = vshrl.u32 %v2343, 7
        %v2345 = vsub.s32 %v2342, %v2344
        %v2346 = vrot.slane %v2338, %v2345
        %v2348 = vunpack.c.l.s4 1934713408
        %v2349 = vunpack.c.0.s8 %v2348
        %v2350 = vlaneseq
        %v2351 = vshrl.u32 %v2350, 7
        %v2352 = vsub.s32 %v2349, %v2351
        %v2353 = vrot.slane %v2339, %v2352
        %v2354 = vcombine.high %v2346, 0.0
        %v2355 = vcombine.high %v2353, 0.0
        %v2356 = vcombine.low %v1861, %v1877
        %v2358 = vunpack.c.l.s4 1983009808
        %v2359 = vunpack.c.0.s8 %v2358
        %v2360 = vlaneseq
        %v2361 = vshrl.u32 %v2360, 7
        %v2362 = vsub.s32 %v2359, %v2361
        %v2363 = vrot.slane %v2356, %v2362
        %v2364 = vcombine.low %v1869, %v1885
        %v2366 = vunpack.c.l.s4 1983009808
        %v2367 = vunpack.c.0.s8 %v2366
        %v2368 = vlaneseq
        %v2369 = vshrl.u32 %v2368, 7
        %v2370 = vsub.s32 %v2367, %v2369
        %v2371 = vrot.slane %v2364, %v2370
        %v2372 = vcombine.low %v2363, %v2371
        %v2373 = vcombine.high %v2363, %v2371
        %v2375 = vunpack.c.l.s4 1934713408
        %v2376 = vunpack.c.0.s8 %v2375
        %v2377 = vlaneseq
        %v2378 = vshrl.u32 %v2377, 7
        %v2379 = vsub.s32 %v2376, %v2378
        %v2380 = vrot.slane %v2372, %v2379
        %v2382 = vunpack.c.l.s4 1934713408
        %v2383 = vunpack.c.0.s8 %v2382
        %v2384 = vlaneseq
        %v2385 = vshrl.u32 %v2384, 7
        %v2386 = vsub.s32 %v2383, %v2385
        %v2387 = vrot.slane %v2373, %v2386
        %v2388 = vcombine.high %v2380, 0.0
        %v2389 = vcombine.high %v2387, 0.0
        %v2390 = vcombine.low %v1887, %v1903
        %v2392 = vunpack.c.l.s4 1983009808
        %v2393 = vunpack.c.0.s8 %v2392
        %v2394 = vlaneseq
        %v2395 = vshrl.u32 %v2394, 7
        %v2396 = vsub.s32 %v2393, %v2395
        %v2397 = vrot.slane %v2390, %v2396
        %v2398 = vcombine.low %v1895, %v1911
        %v2400 = vunpack.c.l.s4 1983009808
        %v2401 = vunpack.c.0.s8 %v2400
        %v2402 = vlaneseq
        %v2403 = vshrl.u32 %v2402, 7
        %v2404 = vsub.s32 %v2401, %v2403
        %v2405 = vrot.slane %v2398, %v2404
        %v2406 = vcombine.low %v2397, %v2405
        %v2407 = vcombine.high %v2397, %v2405
        %v2409 = vunpack.c.l.s4 1934713408
        %v2410 = vunpack.c.0.s8 %v2409
        %v2411 = vlaneseq
        %v2412 = vshrl.u32 %v2411, 7
        %v2413 = vsub.s32 %v2410, %v2412
        %v2414 = vrot.slane %v2406, %v2413
        %v2416 = vunpack.c.l.s4 1934713408
        %v2417 = vunpack.c.0.s8 %v2416
        %v2418 = vlaneseq
        %v2419 = vshrl.u32 %v2418, 7
        %v2420 = vsub.s32 %v2417, %v2419
        %v2421 = vrot.slane %v2407, %v2420
        %v2422 = vcombine.high %v2414, 0.0
        %v2423 = vcombine.high %v2421, 0.0
        %v2424 = vcombine.low %v1889, %v1905
        %v2426 = vunpack.c.l.s4 1983009808
        %v2427 = vunpack.c.0.s8 %v2426
        %v2428 = vlaneseq
        %v2429 = vshrl.u32 %v2428, 7
        %v2430 = vsub.s32 %v2427, %v2429
        %v2431 = vrot.slane %v2424, %v2430
        %v2432 = vcombine.low %v1897, %v1913
        %v2434 = vunpack.c.l.s4 1983009808
        %v2435 = vunpack.c.0.s8 %v2434
        %v2436 = vlaneseq
        %v2437 = vshrl.u32 %v2436, 7
        %v2438 = vsub.s32 %v2435, %v2437
        %v2439 = vrot.slane %v2432, %v2438
        %v2440 = vcombine.low %v2431, %v2439
        %v2441 = vcombine.high %v2431, %v2439
        %v2443 = vunpack.c.l.s4 1934713408
        %v2444 = vunpack.c.0.s8 %v2443
        %v2445 = vlaneseq
        %v2446 = vshrl.u32 %v2445, 7
        %v2447 = vsub.s32 %v2444, %v2446
        %v2448 = vrot.slane %v2440, %v2447
        %v2450 = vunpack.c.l.s4 1934713408
        %v2451 = vunpack.c.0.s8 %v2450
        %v2452 = vlaneseq
        %v2453 = vshrl.u32 %v2452, 7
        %v2454 = vsub.s32 %v2451, %v2453
        %v2455 = vrot.slane %v2441, %v2454
        %v2456 = vcombine.high %v2448, 0.0
        %v2457 = vcombine.high %v2455, 0.0
        %v2458 = vcombine.low %v1891, %v1907
        %v2460 = vunpack.c.l.s4 1983009808
        %v2461 = vunpack.c.0.s8 %v2460
        %v2462 = vlaneseq
        %v2463 = vshrl.u32 %v2462, 7
        %v2464 = vsub.s32 %v2461, %v2463
        %v2465 = vrot.slane %v2458, %v2464
        %v2466 = vcombine.low %v1899, %v1915
        %v2468 = vunpack.c.l.s4 1983009808
        %v2469 = vunpack.c.0.s8 %v2468
        %v2470 = vlaneseq
        %v2471 = vshrl.u32 %v2470, 7
        %v2472 = vsub.s32 %v2469, %v2471
        %v2473 = vrot.slane %v2466, %v2472
        %v2474 = vcombine.low %v2465, %v2473
        %v2475 = vcombine.high %v2465, %v2473
        %v2477 = vunpack.c.l.s4 1934713408
        %v2478 = vunpack.c.0.s8 %v2477
        %v2479 = vlaneseq
        %v2480 = vshrl.u32 %v2479, 7
        %v2481 = vsub.s32 %v2478, %v2480
        %v2482 = vrot.slane %v2474, %v2481
        %v2484 = vunpack.c.l.s4 1934713408
        %v2485 = vunpack.c.0.s8 %v2484
        %v2486 = vlaneseq
        %v2487 = vshrl.u32 %v2486, 7
        %v2488 = vsub.s32 %v2485, %v2487
        %v2489 = vrot.slane %v2475, %v2488
        %v2490 = vcombine.high %v2482, 0.0
        %v2491 = vcombine.high %v2489, 0.0
        %v2492 = vcombine.low %v1893, %v1909
        %v2494 = vunpack.c.l.s4 1983009808
        %v2495 = vunpack.c.0.s8 %v2494
        %v2496 = vlaneseq
        %v2497 = vshrl.u32 %v2496, 7
        %v2498 = vsub.s32 %v2495, %v2497
        %v2499 = vrot.slane %v2492, %v2498
        %v2500 = vcombine.low %v1901, %v1917
        %v2502 = vunpack.c.l.s4 1983009808
        %v2503 = vunpack.c.0.s8 %v2502
        %v2504 = vlaneseq
        %v2505 = vshrl.u32 %v2504, 7
        %v2506 = vsub.s32 %v2503, %v2505
        %v2507 = vrot.slane %v2500, %v2506
        %v2508 = vcombine.low %v2499, %v2507
        %v2509 = vcombine.high %v2499, %v2507
        %v2511 = vunpack.c.l.s4 1934713408
        %v2512 = vunpack.c.0.s8 %v2511
        %v2513 = vlaneseq
        %v2514 = vshrl.u32 %v2513, 7
        %v2515 = vsub.s32 %v2512, %v2514
        %v2516 = vrot.slane %v2508, %v2515
        %v2518 = vunpack.c.l.s4 1934713408
        %v2519 = vunpack.c.0.s8 %v2518
        %v2520 = vlaneseq
        %v2521 = vshrl.u32 %v2520, 7
        %v2522 = vsub.s32 %v2519, %v2521
        %v2523 = vrot.slane %v2509, %v2522
        %v2524 = vcombine.high %v2516, 0.0
        %v2525 = vcombine.high %v2523, 0.0
        %v2526 = vcombine.low %v2006, %v2013
        %v2528 = vunpack.c.l.s4 1983009808
        %v2529 = vunpack.c.0.s8 %v2528
        %v2530 = vlaneseq
        %v2531 = vshrl.u32 %v2530, 7
        %v2532 = vsub.s32 %v2529, %v2531
        %v2533 = vrot.slane %v2526, %v2532
        %v2534 = vcombine.low %v2014, %v2015
        %v2536 = vunpack.c.l.s4 1983009808
        %v2537 = vunpack.c.0.s8 %v2536
        %v2538 = vlaneseq
        %v2539 = vshrl.u32 %v2538, 7
        %v2540 = vsub.s32 %v2537, %v2539
        %v2541 = vrot.slane %v2534, %v2540
        %v2542 = vcombine.low %v2533, %v2541
        %v2543 = vcombine.high %v2533, %v2541
        %v2545 = vunpack.c.l.s4 1934713408
        %v2546 = vunpack.c.0.s8 %v2545
        %v2547 = vlaneseq
        %v2548 = vshrl.u32 %v2547, 7
        %v2549 = vsub.s32 %v2546, %v2548
        %v2550 = vrot.slane %v2542, %v2549
        %v2552 = vunpack.c.l.s4 1934713408
        %v2553 = vunpack.c.0.s8 %v2552
        %v2554 = vlaneseq
        %v2555 = vshrl.u32 %v2554, 7
        %v2556 = vsub.s32 %v2553, %v2555
        %v2557 = vrot.slane %v2543, %v2556
        %v2558 = vcombine.high %v2550, 0.0
        %v2559 = vcombine.high %v2557, 0.0
        %v2560 = vcombine.low %v2040, %v2047
        %v2562 = vunpack.c.l.s4 1983009808
        %v2563 = vunpack.c.0.s8 %v2562
        %v2564 = vlaneseq
        %v2565 = vshrl.u32 %v2564, 7
        %v2566 = vsub.s32 %v2563, %v2565
        %v2567 = vrot.slane %v2560, %v2566
        %v2568 = vcombine.low %v2048, %v2049
        %v2570 = vunpack.c.l.s4 1983009808
        %v2571 = vunpack.c.0.s8 %v2570
        %v2572 = vlaneseq
        %v2573 = vshrl.u32 %v2572, 7
        %v2574 = vsub.s32 %v2571, %v2573
        %v2575 = vrot.slane %v2568, %v2574
        %v2576 = vcombine.low %v2567, %v2575
        %v2577 = vcombine.high %v2567, %v2575
        %v2579 = vunpack.c.l.s4 1934713408
        %v2580 = vunpack.c.0.s8 %v2579
        %v2581 = vlaneseq
        %v2582 = vshrl.u32 %v2581, 7
        %v2583 = vsub.s32 %v2580, %v2582
        %v2584 = vrot.slane %v2576, %v2583
        %v2586 = vunpack.c.l.s4 1934713408
        %v2587 = vunpack.c.0.s8 %v2586
        %v2588 = vlaneseq
        %v2589 = vshrl.u32 %v2588, 7
        %v2590 = vsub.s32 %v2587, %v2589
        %v2591 = vrot.slane %v2577, %v2590
        %v2592 = vcombine.high %v2584, 0.0
        %v2593 = vcombine.high %v2591, 0.0
        %v2594 = vcombine.low %v2074, %v2081
        %v2596 = vunpack.c.l.s4 1983009808
        %v2597 = vunpack.c.0.s8 %v2596
        %v2598 = vlaneseq
        %v2599 = vshrl.u32 %v2598, 7
        %v2600 = vsub.s32 %v2597, %v2599
        %v2601 = vrot.slane %v2594, %v2600
        %v2602 = vcombine.low %v2082, %v2083
        %v2604 = vunpack.c.l.s4 1983009808
        %v2605 = vunpack.c.0.s8 %v2604
        %v2606 = vlaneseq
        %v2607 = vshrl.u32 %v2606, 7
        %v2608 = vsub.s32 %v2605, %v2607
        %v2609 = vrot.slane %v2602, %v2608
        %v2610 = vcombine.low %v2601, %v2609
        %v2611 = vcombine.high %v2601, %v2609
        %v2613 = vunpack.c.l.s4 1934713408
        %v2614 = vunpack.c.0.s8 %v2613
        %v2615 = vlaneseq
        %v2616 = vshrl.u32 %v2615, 7
        %v2617 = vsub.s32 %v2614, %v2616
        %v2618 = vrot.slane %v2610, %v2617
        %v2620 = vunpack.c.l.s4 1934713408
        %v2621 = vunpack.c.0.s8 %v2620
        %v2622 = vlaneseq
        %v2623 = vshrl.u32 %v2622, 7
        %v2624 = vsub.s32 %v2621, %v2623
        %v2625 = vrot.slane %v2611, %v2624
        %v2626 = vcombine.high %v2618, 0.0
        %v2627 = vcombine.high %v2625, 0.0
        %v2628 = vcombine.low %v2108, %v2115
        %v2630 = vunpack.c.l.s4 1983009808
        %v2631 = vunpack.c.0.s8 %v2630
        %v2632 = vlaneseq
        %v2633 = vshrl.u32 %v2632, 7
        %v2634 = vsub.s32 %v2631, %v2633
        %v2635 = vrot.slane %v2628, %v2634
        %v2636 = vcombine.low %v2116, %v2117
        %v2638 = vunpack.c.l.s4 1983009808
        %v2639 = vunpack.c.0.s8 %v2638
        %v2640 = vlaneseq
        %v2641 = vshrl.u32 %v2640, 7
        %v2642 = vsub.s32 %v2639, %v2641
        %v2643 = vrot.slane %v2636, %v2642
        %v2644 = vcombine.low %v2635, %v2643
        %v2645 = vcombine.high %v2635, %v2643
        %v2647 = vunpack.c.l.s4 1934713408
        %v2648 = vunpack.c.0.s8 %v2647
        %v2649 = vlaneseq
        %v2650 = vshrl.u32 %v2649, 7
        %v2651 = vsub.s32 %v2648, %v2650
        %v2652 = vrot.slane %v2644, %v2651
        %v2654 = vunpack.c.l.s4 1934713408
        %v2655 = vunpack.c.0.s8 %v2654
        %v2656 = vlaneseq
        %v2657 = vshrl.u32 %v2656, 7
        %v2658 = vsub.s32 %v2655, %v2657
        %v2659 = vrot.slane %v2645, %v2658
        %v2660 = vcombine.high %v2652, 0.0
        %v2661 = vcombine.high %v2659, 0.0
        %v2662 = vcombine.low %v2142, %v2149
        %v2664 = vunpack.c.l.s4 1983009808
        %v2665 = vunpack.c.0.s8 %v2664
        %v2666 = vlaneseq
        %v2667 = vshrl.u32 %v2666, 7
        %v2668 = vsub.s32 %v2665, %v2667
        %v2669 = vrot.slane %v2662, %v2668
        %v2670 = vcombine.low %v2150, %v2151
        %v2672 = vunpack.c.l.s4 1983009808
        %v2673 = vunpack.c.0.s8 %v2672
        %v2674 = vlaneseq
        %v2675 = vshrl.u32 %v2674, 7
        %v2676 = vsub.s32 %v2673, %v2675
        %v2677 = vrot.slane %v2670, %v2676
        %v2678 = vcombine.low %v2669, %v2677
        %v2679 = vcombine.high %v2669, %v2677
        %v2681 = vunpack.c.l.s4 1934713408
        %v2682 = vunpack.c.0.s8 %v2681
        %v2683 = vlaneseq
        %v2684 = vshrl.u32 %v2683, 7
        %v2685 = vsub.s32 %v2682, %v2684
        %v2686 = vrot.slane %v2678, %v2685
        %v2688 = vunpack.c.l.s4 1934713408
        %v2689 = vunpack.c.0.s8 %v2688
        %v2690 = vlaneseq
        %v2691 = vshrl.u32 %v2690, 7
        %v2692 = vsub.s32 %v2689, %v2691
        %v2693 = vrot.slane %v2679, %v2692
        %v2694 = vcombine.high %v2686, 0.0
        %v2695 = vcombine.high %v2693, 0.0
        %v2696 = vcombine.low %v2176, %v2183
        %v2698 = vunpack.c.l.s4 1983009808
        %v2699 = vunpack.c.0.s8 %v2698
        %v2700 = vlaneseq
        %v2701 = vshrl.u32 %v2700, 7
        %v2702 = vsub.s32 %v2699, %v2701
        %v2703 = vrot.slane %v2696, %v2702
        %v2704 = vcombine.low %v2184, %v2185
        %v2706 = vunpack.c.l.s4 1983009808
        %v2707 = vunpack.c.0.s8 %v2706
        %v2708 = vlaneseq
        %v2709 = vshrl.u32 %v2708, 7
        %v2710 = vsub.s32 %v2707, %v2709
        %v2711 = vrot.slane %v2704, %v2710
        %v2712 = vcombine.low %v2703, %v2711
        %v2713 = vcombine.high %v2703, %v2711
        %v2715 = vunpack.c.l.s4 1934713408
        %v2716 = vunpack.c.0.s8 %v2715
        %v2717 = vlaneseq
        %v2718 = vshrl.u32 %v2717, 7
        %v2719 = vsub.s32 %v2716, %v2718
        %v2720 = vrot.slane %v2712, %v2719
        %v2722 = vunpack.c.l.s4 1934713408
        %v2723 = vunpack.c.0.s8 %v2722
        %v2724 = vlaneseq
        %v2725 = vshrl.u32 %v2724, 7
        %v2726 = vsub.s32 %v2723, %v2725
        %v2727 = vrot.slane %v2713, %v2726
        %v2728 = vcombine.high %v2720, 0.0
        %v2729 = vcombine.high %v2727, 0.0
        %v2730 = vcombine.low %v2210, %v2217
        %v2732 = vunpack.c.l.s4 1983009808
        %v2733 = vunpack.c.0.s8 %v2732
        %v2734 = vlaneseq
        %v2735 = vshrl.u32 %v2734, 7
        %v2736 = vsub.s32 %v2733, %v2735
        %v2737 = vrot.slane %v2730, %v2736
        %v2738 = vcombine.low %v2218, %v2219
        %v2740 = vunpack.c.l.s4 1983009808
        %v2741 = vunpack.c.0.s8 %v2740
        %v2742 = vlaneseq
        %v2743 = vshrl.u32 %v2742, 7
        %v2744 = vsub.s32 %v2741, %v2743
        %v2745 = vrot.slane %v2738, %v2744
        %v2746 = vcombine.low %v2737, %v2745
        %v2747 = vcombine.high %v2737, %v2745
        %v2749 = vunpack.c.l.s4 1934713408
        %v2750 = vunpack.c.0.s8 %v2749
        %v2751 = vlaneseq
        %v2752 = vshrl.u32 %v2751, 7
        %v2753 = vsub.s32 %v2750, %v2752
        %v2754 = vrot.slane %v2746, %v2753
        %v2756 = vunpack.c.l.s4 1934713408
        %v2757 = vunpack.c.0.s8 %v2756
        %v2758 = vlaneseq
        %v2759 = vshrl.u32 %v2758, 7
        %v2760 = vsub.s32 %v2757, %v2759
        %v2761 = vrot.slane %v2747, %v2760
        %v2762 = vcombine.high %v2754, 0.0
        %v2763 = vcombine.high %v2761, 0.0
        %v2764 = vcombine.low %v2244, %v2251
        %v2766 = vunpack.c.l.s4 1983009808
        %v2767 = vunpack.c.0.s8 %v2766
        %v2768 = vlaneseq
        %v2769 = vshrl.u32 %v2768, 7
        %v2770 = vsub.s32 %v2767, %v2769
        %v2771 = vrot.slane %v2764, %v2770
        %v2772 = vcombine.low %v2252, %v2253
        %v2774 = vunpack.c.l.s4 1983009808
        %v2775 = vunpack.c.0.s8 %v2774
        %v2776 = vlaneseq
        %v2777 = vshrl.u32 %v2776, 7
        %v2778 = vsub.s32 %v2775, %v2777
        %v2779 = vrot.slane %v2772, %v2778
        %v2780 = vcombine.low %v2771, %v2779
        %v2781 = vcombine.high %v2771, %v2779
        %v2783 = vunpack.c.l.s4 1934713408
        %v2784 = vunpack.c.0.s8 %v2783
        %v2785 = vlaneseq
        %v2786 = vshrl.u32 %v2785, 7
        %v2787 = vsub.s32 %v2784, %v2786
        %v2788 = vrot.slane %v2780, %v2787
        %v2790 = vunpack.c.l.s4 1934713408
        %v2791 = vunpack.c.0.s8 %v2790
        %v2792 = vlaneseq
        %v2793 = vshrl.u32 %v2792, 7
        %v2794 = vsub.s32 %v2791, %v2793
        %v2795 = vrot.slane %v2781, %v2794
        %v2796 = vcombine.high %v2788, 0.0
        %v2797 = vcombine.high %v2795, 0.0
        %v2798 = vcombine.low %v2278, %v2285
        %v2800 = vunpack.c.l.s4 1983009808
        %v2801 = vunpack.c.0.s8 %v2800
        %v2802 = vlaneseq
        %v2803 = vshrl.u32 %v2802, 7
        %v2804 = vsub.s32 %v2801, %v2803
        %v2805 = vrot.slane %v2798, %v2804
        %v2806 = vcombine.low %v2286, %v2287
        %v2808 = vunpack.c.l.s4 1983009808
        %v2809 = vunpack.c.0.s8 %v2808
        %v2810 = vlaneseq
        %v2811 = vshrl.u32 %v2810, 7
        %v2812 = vsub.s32 %v2809, %v2811
        %v2813 = vrot.slane %v2806, %v2812
        %v2814 = vcombine.low %v2805, %v2813
        %v2815 = vcombine.high %v2805, %v2813
        %v2817 = vunpack.c.l.s4 1934713408
        %v2818 = vunpack.c.0.s8 %v2817
        %v2819 = vlaneseq
        %v2820 = vshrl.u32 %v2819, 7
        %v2821 = vsub.s32 %v2818, %v2820
        %v2822 = vrot.slane %v2814, %v2821
        %v2824 = vunpack.c.l.s4 1934713408
        %v2825 = vunpack.c.0.s8 %v2824
        %v2826 = vlaneseq
        %v2827 = vshrl.u32 %v2826, 7
        %v2828 = vsub.s32 %v2825, %v2827
        %v2829 = vrot.slane %v2815, %v2828
        %v2830 = vcombine.high %v2822, 0.0
        %v2831 = vcombine.high %v2829, 0.0
        %v2832 = vcombine.low %v2312, %v2319
        %v2834 = vunpack.c.l.s4 1983009808
        %v2835 = vunpack.c.0.s8 %v2834
        %v2836 = vlaneseq
        %v2837 = vshrl.u32 %v2836, 7
        %v2838 = vsub.s32 %v2835, %v2837
        %v2839 = vrot.slane %v2832, %v2838
        %v2840 = vcombine.low %v2320, %v2321
        %v2842 = vunpack.c.l.s4 1983009808
        %v2843 = vunpack.c.0.s8 %v2842
        %v2844 = vlaneseq
        %v2845 = vshrl.u32 %v2844, 7
        %v2846 = vsub.s32 %v2843, %v2845
        %v2847 = vrot.slane %v2840, %v2846
        %v2848 = vcombine.low %v2839, %v2847
        %v2849 = vcombine.high %v2839, %v2847
        %v2851 = vunpack.c.l.s4 1934713408
        %v2852 = vunpack.c.0.s8 %v2851
        %v2853 = vlaneseq
        %v2854 = vshrl.u32 %v2853, 7
        %v2855 = vsub.s32 %v2852, %v2854
        %v2856 = vrot.slane %v2848, %v2855
        %v2858 = vunpack.c.l.s4 1934713408
        %v2859 = vunpack.c.0.s8 %v2858
        %v2860 = vlaneseq
        %v2861 = vshrl.u32 %v2860, 7
        %v2862 = vsub.s32 %v2859, %v2861
        %v2863 = vrot.slane %v2849, %v2862
        %v2864 = vcombine.high %v2856, 0.0
        %v2865 = vcombine.high %v2863, 0.0
        %v2866 = vcombine.low %v2346, %v2353
        %v2868 = vunpack.c.l.s4 1983009808
        %v2869 = vunpack.c.0.s8 %v2868
        %v2870 = vlaneseq
        %v2871 = vshrl.u32 %v2870, 7
        %v2872 = vsub.s32 %v2869, %v2871
        %v2873 = vrot.slane %v2866, %v2872
        %v2874 = vcombine.low %v2354, %v2355
        %v2876 = vunpack.c.l.s4 1983009808
        %v2877 = vunpack.c.0.s8 %v2876
        %v2878 = vlaneseq
        %v2879 = vshrl.u32 %v2878, 7
        %v2880 = vsub.s32 %v2877, %v2879
        %v2881 = vrot.slane %v2874, %v2880
        %v2882 = vcombine.low %v2873, %v2881
        %v2883 = vcombine.high %v2873, %v2881
        %v2885 = vunpack.c.l.s4 1934713408
        %v2886 = vunpack.c.0.s8 %v2885
        %v2887 = vlaneseq
        %v2888 = vshrl.u32 %v2887, 7
        %v2889 = vsub.s32 %v2886, %v2888
        %v2890 = vrot.slane %v2882, %v2889
        %v2892 = vunpack.c.l.s4 1934713408
        %v2893 = vunpack.c.0.s8 %v2892
        %v2894 = vlaneseq
        %v2895 = vshrl.u32 %v2894, 7
        %v2896 = vsub.s32 %v2893, %v2895
        %v2897 = vrot.slane %v2883, %v2896
        %v2898 = vcombine.high %v2890, 0.0
        %v2899 = vcombine.high %v2897, 0.0
        %v2900 = vcombine.low %v2380, %v2387
        %v2902 = vunpack.c.l.s4 1983009808
        %v2903 = vunpack.c.0.s8 %v2902
        %v2904 = vlaneseq
        %v2905 = vshrl.u32 %v2904, 7
        %v2906 = vsub.s32 %v2903, %v2905
        %v2907 = vrot.slane %v2900, %v2906
        %v2908 = vcombine.low %v2388, %v2389
        %v2910 = vunpack.c.l.s4 1983009808
        %v2911 = vunpack.c.0.s8 %v2910
        %v2912 = vlaneseq
        %v2913 = vshrl.u32 %v2912, 7
        %v2914 = vsub.s32 %v2911, %v2913
        %v2915 = vrot.slane %v2908, %v2914
        %v2916 = vcombine.low %v2907, %v2915
        %v2917 = vcombine.high %v2907, %v2915
        %v2919 = vunpack.c.l.s4 1934713408
        %v2920 = vunpack.c.0.s8 %v2919
        %v2921 = vlaneseq
        %v2922 = vshrl.u32 %v2921, 7
        %v2923 = vsub.s32 %v2920, %v2922
        %v2924 = vrot.slane %v2916, %v2923
        %v2926 = vunpack.c.l.s4 1934713408
        %v2927 = vunpack.c.0.s8 %v2926
        %v2928 = vlaneseq
        %v2929 = vshrl.u32 %v2928, 7
        %v2930 = vsub.s32 %v2927, %v2929
        %v2931 = vrot.slane %v2917, %v2930
        %v2932 = vcombine.high %v2924, 0.0
        %v2933 = vcombine.high %v2931, 0.0
        %v2934 = vcombine.low %v2414, %v2421
        %v2936 = vunpack.c.l.s4 1983009808
        %v2937 = vunpack.c.0.s8 %v2936
        %v2938 = vlaneseq
        %v2939 = vshrl.u32 %v2938, 7
        %v2940 = vsub.s32 %v2937, %v2939
        %v2941 = vrot.slane %v2934, %v2940
        %v2942 = vcombine.low %v2422, %v2423
        %v2944 = vunpack.c.l.s4 1983009808
        %v2945 = vunpack.c.0.s8 %v2944
        %v2946 = vlaneseq
        %v2947 = vshrl.u32 %v2946, 7
        %v2948 = vsub.s32 %v2945, %v2947
        %v2949 = vrot.slane %v2942, %v2948
        %v2950 = vcombine.low %v2941, %v2949
        %v2951 = vcombine.high %v2941, %v2949
        %v2953 = vunpack.c.l.s4 1934713408
        %v2954 = vunpack.c.0.s8 %v2953
        %v2955 = vlaneseq
        %v2956 = vshrl.u32 %v2955, 7
        %v2957 = vsub.s32 %v2954, %v2956
        %v2958 = vrot.slane %v2950, %v2957
        %v2960 = vunpack.c.l.s4 1934713408
        %v2961 = vunpack.c.0.s8 %v2960
        %v2962 = vlaneseq
        %v2963 = vshrl.u32 %v2962, 7
        %v2964 = vsub.s32 %v2961, %v2963
        %v2965 = vrot.slane %v2951, %v2964
        %v2966 = vcombine.high %v2958, 0.0
        %v2967 = vcombine.high %v2965, 0.0
        %v2968 = vcombine.low %v2448, %v2455
        %v2970 = vunpack.c.l.s4 1983009808
        %v2971 = vunpack.c.0.s8 %v2970
        %v2972 = vlaneseq
        %v2973 = vshrl.u32 %v2972, 7
        %v2974 = vsub.s32 %v2971, %v2973
        %v2975 = vrot.slane %v2968, %v2974
        %v2976 = vcombine.low %v2456, %v2457
        %v2978 = vunpack.c.l.s4 1983009808
        %v2979 = vunpack.c.0.s8 %v2978
        %v2980 = vlaneseq
        %v2981 = vshrl.u32 %v2980, 7
        %v2982 = vsub.s32 %v2979, %v2981
        %v2983 = vrot.slane %v2976, %v2982
        %v2984 = vcombine.low %v2975, %v2983
        %v2985 = vcombine.high %v2975, %v2983
        %v2987 = vunpack.c.l.s4 1934713408
        %v2988 = vunpack.c.0.s8 %v2987
        %v2989 = vlaneseq
        %v2990 = vshrl.u32 %v2989, 7
        %v2991 = vsub.s32 %v2988, %v2990
        %v2992 = vrot.slane %v2984, %v2991
        %v2994 = vunpack.c.l.s4 1934713408
        %v2995 = vunpack.c.0.s8 %v2994
        %v2996 = vlaneseq
        %v2997 = vshrl.u32 %v2996, 7
        %v2998 = vsub.s32 %v2995, %v2997
        %v2999 = vrot.slane %v2985, %v2998
        %v3000 = vcombine.high %v2992, 0.0
        %v3001 = vcombine.high %v2999, 0.0
        %v3002 = vcombine.low %v2482, %v2489
        %v3004 = vunpack.c.l.s4 1983009808
        %v3005 = vunpack.c.0.s8 %v3004
        %v3006 = vlaneseq
        %v3007 = vshrl.u32 %v3006, 7
        %v3008 = vsub.s32 %v3005, %v3007
        %v3009 = vrot.slane %v3002, %v3008
        %v3010 = vcombine.low %v2490, %v2491
        %v3012 = vunpack.c.l.s4 1983009808
        %v3013 = vunpack.c.0.s8 %v3012
        %v3014 = vlaneseq
        %v3015 = vshrl.u32 %v3014, 7
        %v3016 = vsub.s32 %v3013, %v3015
        %v3017 = vrot.slane %v3010, %v3016
        %v3018 = vcombine.low %v3009, %v3017
        %v3019 = vcombine.high %v3009, %v3017
        %v3021 = vunpack.c.l.s4 1934713408
        %v3022 = vunpack.c.0.s8 %v3021
        %v3023 = vlaneseq
        %v3024 = vshrl.u32 %v3023, 7
        %v3025 = vsub.s32 %v3022, %v3024
        %v3026 = vrot.slane %v3018, %v3025
        %v3028 = vunpack.c.l.s4 1934713408
        %v3029 = vunpack.c.0.s8 %v3028
        %v3030 = vlaneseq
        %v3031 = vshrl.u32 %v3030, 7
        %v3032 = vsub.s32 %v3029, %v3031
        %v3033 = vrot.slane %v3019, %v3032
        %v3034 = vcombine.high %v3026, 0.0
        %v3035 = vcombine.high %v3033, 0.0
        %v3036 = vcombine.low %v2516, %v2523
        %v3038 = vunpack.c.l.s4 1983009808
        %v3039 = vunpack.c.0.s8 %v3038
        %v3040 = vlaneseq
        %v3041 = vshrl.u32 %v3040, 7
        %v3042 = vsub.s32 %v3039, %v3041
        %v3043 = vrot.slane %v3036, %v3042
        %v3044 = vcombine.low %v2524, %v2525
        %v3046 = vunpack.c.l.s4 1983009808
        %v3047 = vunpack.c.0.s8 %v3046
        %v3048 = vlaneseq
        %v3049 = vshrl.u32 %v3048, 7
        %v3050 = vsub.s32 %v3047, %v3049
        %v3051 = vrot.slane %v3044, %v3050
        %v3052 = vcombine.low %v3043, %v3051
        %v3053 = vcombine.high %v3043, %v3051
        %v3055 = vunpack.c.l.s4 1934713408
        %v3056 = vunpack.c.0.s8 %v3055
        %v3057 = vlaneseq
        %v3058 = vshrl.u32 %v3057, 7
        %v3059 = vsub.s32 %v3056, %v3058
        %v3060 = vrot.slane %v3052, %v3059
        %v3062 = vunpack.c.l.s4 1934713408
        %v3063 = vunpack.c.0.s8 %v3062
        %v3064 = vlaneseq
        %v3065 = vshrl.u32 %v3064, 7
        %v3066 = vsub.s32 %v3063, %v3065
        %v3067 = vrot.slane %v3053, %v3066
        %v3068 = vcombine.high %v3060, 0.0
        %v3069 = vcombine.high %v3067, 0.0
        %3070 = vrot.lane.b32.xlu0 %v496, 64
        %v3071 = vpop.permute.xlu0 %3070
        %3072 = vrot.lane.b32.xlu0 %v501, 64
        %v3073 = vpop.permute.xlu0 %3072
        %3074 = vrot.lane.b32.xlu0 %v506, 64
        %v3075 = vpop.permute.xlu0 %3074
        %3076 = vrot.lane.b32.xlu0 %v511, 64
        %v3077 = vpop.permute.xlu0 %3076
        %3078 = vrot.lane.b32.xlu0 %v559, 64
        %v3079 = vpop.permute.xlu0 %3078
        %3080 = vrot.lane.b32.xlu0 %v561, 64
        %v3081 = vpop.permute.xlu0 %3080
        %3082 = vrot.lane.b32.xlu0 %v563, 64
        %v3083 = vpop.permute.xlu0 %3082
        %3084 = vrot.lane.b32.xlu0 %v565, 64
        %v3085 = vpop.permute.xlu0 %3084
        %3086 = vrot.lane.b32.xlu0 %v607, 64
        %v3087 = vpop.permute.xlu0 %3086
        %3088 = vrot.lane.b32.xlu0 %v609, 64
        %v3089 = vpop.permute.xlu0 %3088
        %3090 = vrot.lane.b32.xlu0 %v611, 64
        %v3091 = vpop.permute.xlu0 %3090
        %3092 = vrot.lane.b32.xlu0 %v613, 64
        %v3093 = vpop.permute.xlu0 %3092
        %3094 = vrot.lane.b32.xlu0 %v655, 64
        %v3095 = vpop.permute.xlu0 %3094
        %3096 = vrot.lane.b32.xlu0 %v657, 64
        %v3097 = vpop.permute.xlu0 %3096
        %3098 = vrot.lane.b32.xlu0 %v659, 64
        %v3099 = vpop.permute.xlu0 %3098
        %3100 = vrot.lane.b32.xlu0 %v661, 64
        %v3101 = vpop.permute.xlu0 %3100
        %3102 = vrot.lane.b32.xlu0 %v542, 64
        %v3103 = vpop.permute.xlu0 %3102
        %3104 = vrot.lane.b32.xlu0 %v543, 64
        %v3105 = vpop.permute.xlu0 %3104
        %3106 = vrot.lane.b32.xlu0 %v544, 64
        %v3107 = vpop.permute.xlu0 %3106
        %3108 = vrot.lane.b32.xlu0 %v545, 64
        %v3109 = vpop.permute.xlu0 %3108
        %3110 = vrot.lane.b32.xlu0 %v567, 64
        %v3111 = vpop.permute.xlu0 %3110
        %3112 = vrot.lane.b32.xlu0 %v569, 64
        %v3113 = vpop.permute.xlu0 %3112
        %3114 = vrot.lane.b32.xlu0 %v571, 64
        %v3115 = vpop.permute.xlu0 %3114
        %3116 = vrot.lane.b32.xlu0 %v573, 64
        %v3117 = vpop.permute.xlu0 %3116
        %3118 = vrot.lane.b32.xlu0 %v615, 64
        %v3119 = vpop.permute.xlu0 %3118
        %3120 = vrot.lane.b32.xlu0 %v617, 64
        %v3121 = vpop.permute.xlu0 %3120
        %3122 = vrot.lane.b32.xlu0 %v619, 64
        %v3123 = vpop.permute.xlu0 %3122
        %3124 = vrot.lane.b32.xlu0 %v621, 64
        %v3125 = vpop.permute.xlu0 %3124
        %3126 = vrot.lane.b32.xlu0 %v663, 64
        %v3127 = vpop.permute.xlu0 %3126
        %3128 = vrot.lane.b32.xlu0 %v665, 64
        %v3129 = vpop.permute.xlu0 %3128
        %3130 = vrot.lane.b32.xlu0 %v667, 64
        %v3131 = vpop.permute.xlu0 %3130
        %3132 = vrot.lane.b32.xlu0 %v669, 64
        %v3133 = vpop.permute.xlu0 %3132
        %3134 = vrot.lane.b32.xlu0 %v516, 64
        %v3135 = vpop.permute.xlu0 %3134
        %3136 = vrot.lane.b32.xlu0 %v521, 64
        %v3137 = vpop.permute.xlu0 %3136
        %3138 = vrot.lane.b32.xlu0 %v526, 64
        %v3139 = vpop.permute.xlu0 %3138
        %3140 = vrot.lane.b32.xlu0 %v531, 64
        %v3141 = vpop.permute.xlu0 %3140
        %3142 = vrot.lane.b32.xlu0 %v575, 64
        %v3143 = vpop.permute.xlu0 %3142
        %3144 = vrot.lane.b32.xlu0 %v577, 64
        %v3145 = vpop.permute.xlu0 %3144
        %3146 = vrot.lane.b32.xlu0 %v579, 64
        %v3147 = vpop.permute.xlu0 %3146
        %3148 = vrot.lane.b32.xlu0 %v581, 64
        %v3149 = vpop.permute.xlu0 %3148
        %3150 = vrot.lane.b32.xlu0 %v623, 64
        %v3151 = vpop.permute.xlu0 %3150
        %3152 = vrot.lane.b32.xlu0 %v625, 64
        %v3153 = vpop.permute.xlu0 %3152
        %3154 = vrot.lane.b32.xlu0 %v627, 64
        %v3155 = vpop.permute.xlu0 %3154
        %3156 = vrot.lane.b32.xlu0 %v629, 64
        %v3157 = vpop.permute.xlu0 %3156
        %3158 = vrot.lane.b32.xlu0 %v671, 64
        %v3159 = vpop.permute.xlu0 %3158
        %3160 = vrot.lane.b32.xlu0 %v673, 64
        %v3161 = vpop.permute.xlu0 %3160
        %3162 = vrot.lane.b32.xlu0 %v675, 64
        %v3163 = vpop.permute.xlu0 %3162
        %3164 = vrot.lane.b32.xlu0 %v677, 64
        %v3165 = vpop.permute.xlu0 %3164
        %3166 = vrot.lane.b32.xlu0 %v546, 64
        %v3167 = vpop.permute.xlu0 %3166
        %3168 = vrot.lane.b32.xlu0 %v547, 64
        %v3169 = vpop.permute.xlu0 %3168
        %3170 = vrot.lane.b32.xlu0 %v548, 64
        %v3171 = vpop.permute.xlu0 %3170
        %3172 = vrot.lane.b32.xlu0 %v549, 64
        %v3173 = vpop.permute.xlu0 %3172
        %3174 = vrot.lane.b32.xlu0 %v583, 64
        %v3175 = vpop.permute.xlu0 %3174
        %3176 = vrot.lane.b32.xlu0 %v585, 64
        %v3177 = vpop.permute.xlu0 %3176
        %3178 = vrot.lane.b32.xlu0 %v587, 64
        %v3179 = vpop.permute.xlu0 %3178
        %3180 = vrot.lane.b32.xlu0 %v589, 64
        %v3181 = vpop.permute.xlu0 %3180
        %3182 = vrot.lane.b32.xlu0 %v631, 64
        %v3183 = vpop.permute.xlu0 %3182
        %3184 = vrot.lane.b32.xlu0 %v633, 64
        %v3185 = vpop.permute.xlu0 %3184
        %3186 = vrot.lane.b32.xlu0 %v635, 64
        %v3187 = vpop.permute.xlu0 %3186
        %3188 = vrot.lane.b32.xlu0 %v637, 64
        %v3189 = vpop.permute.xlu0 %3188
        %3190 = vrot.lane.b32.xlu0 %v679, 64
        %v3191 = vpop.permute.xlu0 %3190
        %3192 = vrot.lane.b32.xlu0 %v681, 64
        %v3193 = vpop.permute.xlu0 %3192
        %3194 = vrot.lane.b32.xlu0 %v683, 64
        %v3195 = vpop.permute.xlu0 %3194
        %3196 = vrot.lane.b32.xlu0 %v685, 64
        %v3197 = vpop.permute.xlu0 %3196
        %v3262 = vcombine.low %v3071, %v3087
        %v3264 = vunpack.c.l.s4 1983009808
        %v3265 = vunpack.c.0.s8 %v3264
        %v3266 = vlaneseq
        %v3267 = vshrl.u32 %v3266, 7
        %v3268 = vsub.s32 %v3265, %v3267
        %v3269 = vrot.slane %v3262, %v3268
        %v3270 = vcombine.low %v3079, %v3095
        %v3272 = vunpack.c.l.s4 1983009808
        %v3273 = vunpack.c.0.s8 %v3272
        %v3274 = vlaneseq
        %v3275 = vshrl.u32 %v3274, 7
        %v3276 = vsub.s32 %v3273, %v3275
        %v3277 = vrot.slane %v3270, %v3276
        %v3278 = vcombine.low %v3269, %v3277
        %v3279 = vcombine.high %v3269, %v3277
        %v3281 = vunpack.c.l.s4 1934713408
        %v3282 = vunpack.c.0.s8 %v3281
        %v3283 = vlaneseq
        %v3284 = vshrl.u32 %v3283, 7
        %v3285 = vsub.s32 %v3282, %v3284
        %v3286 = vrot.slane %v3278, %v3285
        %v3288 = vunpack.c.l.s4 1934713408
        %v3289 = vunpack.c.0.s8 %v3288
        %v3290 = vlaneseq
        %v3291 = vshrl.u32 %v3290, 7
        %v3292 = vsub.s32 %v3289, %v3291
        %v3293 = vrot.slane %v3279, %v3292
        %v3294 = vcombine.high %v3286, 0.0
        %v3295 = vcombine.high %v3293, 0.0
        %v3296 = vcombine.low %v3073, %v3089
        %v3298 = vunpack.c.l.s4 1983009808
        %v3299 = vunpack.c.0.s8 %v3298
        %v3300 = vlaneseq
        %v3301 = vshrl.u32 %v3300, 7
        %v3302 = vsub.s32 %v3299, %v3301
        %v3303 = vrot.slane %v3296, %v3302
        %v3304 = vcombine.low %v3081, %v3097
        %v3306 = vunpack.c.l.s4 1983009808
        %v3307 = vunpack.c.0.s8 %v3306
        %v3308 = vlaneseq
        %v3309 = vshrl.u32 %v3308, 7
        %v3310 = vsub.s32 %v3307, %v3309
        %v3311 = vrot.slane %v3304, %v3310
        %v3312 = vcombine.low %v3303, %v3311
        %v3313 = vcombine.high %v3303, %v3311
        %v3315 = vunpack.c.l.s4 1934713408
        %v3316 = vunpack.c.0.s8 %v3315
        %v3317 = vlaneseq
        %v3318 = vshrl.u32 %v3317, 7
        %v3319 = vsub.s32 %v3316, %v3318
        %v3320 = vrot.slane %v3312, %v3319
        %v3322 = vunpack.c.l.s4 1934713408
        %v3323 = vunpack.c.0.s8 %v3322
        %v3324 = vlaneseq
        %v3325 = vshrl.u32 %v3324, 7
        %v3326 = vsub.s32 %v3323, %v3325
        %v3327 = vrot.slane %v3313, %v3326
        %v3328 = vcombine.high %v3320, 0.0
        %v3329 = vcombine.high %v3327, 0.0
        %v3330 = vcombine.low %v3075, %v3091
        %v3332 = vunpack.c.l.s4 1983009808
        %v3333 = vunpack.c.0.s8 %v3332
        %v3334 = vlaneseq
        %v3335 = vshrl.u32 %v3334, 7
        %v3336 = vsub.s32 %v3333, %v3335
        %v3337 = vrot.slane %v3330, %v3336
        %v3338 = vcombine.low %v3083, %v3099
        %v3340 = vunpack.c.l.s4 1983009808
        %v3341 = vunpack.c.0.s8 %v3340
        %v3342 = vlaneseq
        %v3343 = vshrl.u32 %v3342, 7
        %v3344 = vsub.s32 %v3341, %v3343
        %v3345 = vrot.slane %v3338, %v3344
        %v3346 = vcombine.low %v3337, %v3345
        %v3347 = vcombine.high %v3337, %v3345
        %v3349 = vunpack.c.l.s4 1934713408
        %v3350 = vunpack.c.0.s8 %v3349
        %v3351 = vlaneseq
        %v3352 = vshrl.u32 %v3351, 7
        %v3353 = vsub.s32 %v3350, %v3352
        %v3354 = vrot.slane %v3346, %v3353
        %v3356 = vunpack.c.l.s4 1934713408
        %v3357 = vunpack.c.0.s8 %v3356
        %v3358 = vlaneseq
        %v3359 = vshrl.u32 %v3358, 7
        %v3360 = vsub.s32 %v3357, %v3359
        %v3361 = vrot.slane %v3347, %v3360
        %v3362 = vcombine.high %v3354, 0.0
        %v3363 = vcombine.high %v3361, 0.0
        %v3364 = vcombine.low %v3077, %v3093
        %v3366 = vunpack.c.l.s4 1983009808
        %v3367 = vunpack.c.0.s8 %v3366
        %v3368 = vlaneseq
        %v3369 = vshrl.u32 %v3368, 7
        %v3370 = vsub.s32 %v3367, %v3369
        %v3371 = vrot.slane %v3364, %v3370
        %v3372 = vcombine.low %v3085, %v3101
        %v3374 = vunpack.c.l.s4 1983009808
        %v3375 = vunpack.c.0.s8 %v3374
        %v3376 = vlaneseq
        %v3377 = vshrl.u32 %v3376, 7
        %v3378 = vsub.s32 %v3375, %v3377
        %v3379 = vrot.slane %v3372, %v3378
        %v3380 = vcombine.low %v3371, %v3379
        %v3381 = vcombine.high %v3371, %v3379
        %v3383 = vunpack.c.l.s4 1934713408
        %v3384 = vunpack.c.0.s8 %v3383
        %v3385 = vlaneseq
        %v3386 = vshrl.u32 %v3385, 7
        %v3387 = vsub.s32 %v3384, %v3386
        %v3388 = vrot.slane %v3380, %v3387
        %v3390 = vunpack.c.l.s4 1934713408
        %v3391 = vunpack.c.0.s8 %v3390
        %v3392 = vlaneseq
        %v3393 = vshrl.u32 %v3392, 7
        %v3394 = vsub.s32 %v3391, %v3393
        %v3395 = vrot.slane %v3381, %v3394
        %v3396 = vcombine.high %v3388, 0.0
        %v3397 = vcombine.high %v3395, 0.0
        %v3398 = vcombine.low %v3103, %v3119
        %v3400 = vunpack.c.l.s4 1983009808
        %v3401 = vunpack.c.0.s8 %v3400
        %v3402 = vlaneseq
        %v3403 = vshrl.u32 %v3402, 7
        %v3404 = vsub.s32 %v3401, %v3403
        %v3405 = vrot.slane %v3398, %v3404
        %v3406 = vcombine.low %v3111, %v3127
        %v3408 = vunpack.c.l.s4 1983009808
        %v3409 = vunpack.c.0.s8 %v3408
        %v3410 = vlaneseq
        %v3411 = vshrl.u32 %v3410, 7
        %v3412 = vsub.s32 %v3409, %v3411
        %v3413 = vrot.slane %v3406, %v3412
        %v3414 = vcombine.low %v3405, %v3413
        %v3415 = vcombine.high %v3405, %v3413
        %v3417 = vunpack.c.l.s4 1934713408
        %v3418 = vunpack.c.0.s8 %v3417
        %v3419 = vlaneseq
        %v3420 = vshrl.u32 %v3419, 7
        %v3421 = vsub.s32 %v3418, %v3420
        %v3422 = vrot.slane %v3414, %v3421
        %v3424 = vunpack.c.l.s4 1934713408
        %v3425 = vunpack.c.0.s8 %v3424
        %v3426 = vlaneseq
        %v3427 = vshrl.u32 %v3426, 7
        %v3428 = vsub.s32 %v3425, %v3427
        %v3429 = vrot.slane %v3415, %v3428
        %v3430 = vcombine.high %v3422, 0.0
        %v3431 = vcombine.high %v3429, 0.0
        %v3432 = vcombine.low %v3105, %v3121
        %v3434 = vunpack.c.l.s4 1983009808
        %v3435 = vunpack.c.0.s8 %v3434
        %v3436 = vlaneseq
        %v3437 = vshrl.u32 %v3436, 7
        %v3438 = vsub.s32 %v3435, %v3437
        %v3439 = vrot.slane %v3432, %v3438
        %v3440 = vcombine.low %v3113, %v3129
        %v3442 = vunpack.c.l.s4 1983009808
        %v3443 = vunpack.c.0.s8 %v3442
        %v3444 = vlaneseq
        %v3445 = vshrl.u32 %v3444, 7
        %v3446 = vsub.s32 %v3443, %v3445
        %v3447 = vrot.slane %v3440, %v3446
        %v3448 = vcombine.low %v3439, %v3447
        %v3449 = vcombine.high %v3439, %v3447
        %v3451 = vunpack.c.l.s4 1934713408
        %v3452 = vunpack.c.0.s8 %v3451
        %v3453 = vlaneseq
        %v3454 = vshrl.u32 %v3453, 7
        %v3455 = vsub.s32 %v3452, %v3454
        %v3456 = vrot.slane %v3448, %v3455
        %v3458 = vunpack.c.l.s4 1934713408
        %v3459 = vunpack.c.0.s8 %v3458
        %v3460 = vlaneseq
        %v3461 = vshrl.u32 %v3460, 7
        %v3462 = vsub.s32 %v3459, %v3461
        %v3463 = vrot.slane %v3449, %v3462
        %v3464 = vcombine.high %v3456, 0.0
        %v3465 = vcombine.high %v3463, 0.0
        %v3466 = vcombine.low %v3107, %v3123
        %v3468 = vunpack.c.l.s4 1983009808
        %v3469 = vunpack.c.0.s8 %v3468
        %v3470 = vlaneseq
        %v3471 = vshrl.u32 %v3470, 7
        %v3472 = vsub.s32 %v3469, %v3471
        %v3473 = vrot.slane %v3466, %v3472
        %v3474 = vcombine.low %v3115, %v3131
        %v3476 = vunpack.c.l.s4 1983009808
        %v3477 = vunpack.c.0.s8 %v3476
        %v3478 = vlaneseq
        %v3479 = vshrl.u32 %v3478, 7
        %v3480 = vsub.s32 %v3477, %v3479
        %v3481 = vrot.slane %v3474, %v3480
        %v3482 = vcombine.low %v3473, %v3481
        %v3483 = vcombine.high %v3473, %v3481
        %v3485 = vunpack.c.l.s4 1934713408
        %v3486 = vunpack.c.0.s8 %v3485
        %v3487 = vlaneseq
        %v3488 = vshrl.u32 %v3487, 7
        %v3489 = vsub.s32 %v3486, %v3488
        %v3490 = vrot.slane %v3482, %v3489
        %v3492 = vunpack.c.l.s4 1934713408
        %v3493 = vunpack.c.0.s8 %v3492
        %v3494 = vlaneseq
        %v3495 = vshrl.u32 %v3494, 7
        %v3496 = vsub.s32 %v3493, %v3495
        %v3497 = vrot.slane %v3483, %v3496
        %v3498 = vcombine.high %v3490, 0.0
        %v3499 = vcombine.high %v3497, 0.0
        %v3500 = vcombine.low %v3109, %v3125
        %v3502 = vunpack.c.l.s4 1983009808
        %v3503 = vunpack.c.0.s8 %v3502
        %v3504 = vlaneseq
        %v3505 = vshrl.u32 %v3504, 7
        %v3506 = vsub.s32 %v3503, %v3505
        %v3507 = vrot.slane %v3500, %v3506
        %v3508 = vcombine.low %v3117, %v3133
        %v3510 = vunpack.c.l.s4 1983009808
        %v3511 = vunpack.c.0.s8 %v3510
        %v3512 = vlaneseq
        %v3513 = vshrl.u32 %v3512, 7
        %v3514 = vsub.s32 %v3511, %v3513
        %v3515 = vrot.slane %v3508, %v3514
        %v3516 = vcombine.low %v3507, %v3515
        %v3517 = vcombine.high %v3507, %v3515
        %v3519 = vunpack.c.l.s4 1934713408
        %v3520 = vunpack.c.0.s8 %v3519
        %v3521 = vlaneseq
        %v3522 = vshrl.u32 %v3521, 7
        %v3523 = vsub.s32 %v3520, %v3522
        %v3524 = vrot.slane %v3516, %v3523
        %v3526 = vunpack.c.l.s4 1934713408
        %v3527 = vunpack.c.0.s8 %v3526
        %v3528 = vlaneseq
        %v3529 = vshrl.u32 %v3528, 7
        %v3530 = vsub.s32 %v3527, %v3529
        %v3531 = vrot.slane %v3517, %v3530
        %v3532 = vcombine.high %v3524, 0.0
        %v3533 = vcombine.high %v3531, 0.0
        %v3534 = vcombine.low %v3135, %v3151
        %v3536 = vunpack.c.l.s4 1983009808
        %v3537 = vunpack.c.0.s8 %v3536
        %v3538 = vlaneseq
        %v3539 = vshrl.u32 %v3538, 7
        %v3540 = vsub.s32 %v3537, %v3539
        %v3541 = vrot.slane %v3534, %v3540
        %v3542 = vcombine.low %v3143, %v3159
        %v3544 = vunpack.c.l.s4 1983009808
        %v3545 = vunpack.c.0.s8 %v3544
        %v3546 = vlaneseq
        %v3547 = vshrl.u32 %v3546, 7
        %v3548 = vsub.s32 %v3545, %v3547
        %v3549 = vrot.slane %v3542, %v3548
        %v3550 = vcombine.low %v3541, %v3549
        %v3551 = vcombine.high %v3541, %v3549
        %v3553 = vunpack.c.l.s4 1934713408
        %v3554 = vunpack.c.0.s8 %v3553
        %v3555 = vlaneseq
        %v3556 = vshrl.u32 %v3555, 7
        %v3557 = vsub.s32 %v3554, %v3556
        %v3558 = vrot.slane %v3550, %v3557
        %v3560 = vunpack.c.l.s4 1934713408
        %v3561 = vunpack.c.0.s8 %v3560
        %v3562 = vlaneseq
        %v3563 = vshrl.u32 %v3562, 7
        %v3564 = vsub.s32 %v3561, %v3563
        %v3565 = vrot.slane %v3551, %v3564
        %v3566 = vcombine.high %v3558, 0.0
        %v3567 = vcombine.high %v3565, 0.0
        %v3568 = vcombine.low %v3137, %v3153
        %v3570 = vunpack.c.l.s4 1983009808
        %v3571 = vunpack.c.0.s8 %v3570
        %v3572 = vlaneseq
        %v3573 = vshrl.u32 %v3572, 7
        %v3574 = vsub.s32 %v3571, %v3573
        %v3575 = vrot.slane %v3568, %v3574
        %v3576 = vcombine.low %v3145, %v3161
        %v3578 = vunpack.c.l.s4 1983009808
        %v3579 = vunpack.c.0.s8 %v3578
        %v3580 = vlaneseq
        %v3581 = vshrl.u32 %v3580, 7
        %v3582 = vsub.s32 %v3579, %v3581
        %v3583 = vrot.slane %v3576, %v3582
        %v3584 = vcombine.low %v3575, %v3583
        %v3585 = vcombine.high %v3575, %v3583
        %v3587 = vunpack.c.l.s4 1934713408
        %v3588 = vunpack.c.0.s8 %v3587
        %v3589 = vlaneseq
        %v3590 = vshrl.u32 %v3589, 7
        %v3591 = vsub.s32 %v3588, %v3590
        %v3592 = vrot.slane %v3584, %v3591
        %v3594 = vunpack.c.l.s4 1934713408
        %v3595 = vunpack.c.0.s8 %v3594
        %v3596 = vlaneseq
        %v3597 = vshrl.u32 %v3596, 7
        %v3598 = vsub.s32 %v3595, %v3597
        %v3599 = vrot.slane %v3585, %v3598
        %v3600 = vcombine.high %v3592, 0.0
        %v3601 = vcombine.high %v3599, 0.0
        %v3602 = vcombine.low %v3139, %v3155
        %v3604 = vunpack.c.l.s4 1983009808
        %v3605 = vunpack.c.0.s8 %v3604
        %v3606 = vlaneseq
        %v3607 = vshrl.u32 %v3606, 7
        %v3608 = vsub.s32 %v3605, %v3607
        %v3609 = vrot.slane %v3602, %v3608
        %v3610 = vcombine.low %v3147, %v3163
        %v3612 = vunpack.c.l.s4 1983009808
        %v3613 = vunpack.c.0.s8 %v3612
        %v3614 = vlaneseq
        %v3615 = vshrl.u32 %v3614, 7
        %v3616 = vsub.s32 %v3613, %v3615
        %v3617 = vrot.slane %v3610, %v3616
        %v3618 = vcombine.low %v3609, %v3617
        %v3619 = vcombine.high %v3609, %v3617
        %v3621 = vunpack.c.l.s4 1934713408
        %v3622 = vunpack.c.0.s8 %v3621
        %v3623 = vlaneseq
        %v3624 = vshrl.u32 %v3623, 7
        %v3625 = vsub.s32 %v3622, %v3624
        %v3626 = vrot.slane %v3618, %v3625
        %v3628 = vunpack.c.l.s4 1934713408
        %v3629 = vunpack.c.0.s8 %v3628
        %v3630 = vlaneseq
        %v3631 = vshrl.u32 %v3630, 7
        %v3632 = vsub.s32 %v3629, %v3631
        %v3633 = vrot.slane %v3619, %v3632
        %v3634 = vcombine.high %v3626, 0.0
        %v3635 = vcombine.high %v3633, 0.0
        %v3636 = vcombine.low %v3141, %v3157
        %v3638 = vunpack.c.l.s4 1983009808
        %v3639 = vunpack.c.0.s8 %v3638
        %v3640 = vlaneseq
        %v3641 = vshrl.u32 %v3640, 7
        %v3642 = vsub.s32 %v3639, %v3641
        %v3643 = vrot.slane %v3636, %v3642
        %v3644 = vcombine.low %v3149, %v3165
        %v3646 = vunpack.c.l.s4 1983009808
        %v3647 = vunpack.c.0.s8 %v3646
        %v3648 = vlaneseq
        %v3649 = vshrl.u32 %v3648, 7
        %v3650 = vsub.s32 %v3647, %v3649
        %v3651 = vrot.slane %v3644, %v3650
        %v3652 = vcombine.low %v3643, %v3651
        %v3653 = vcombine.high %v3643, %v3651
        %v3655 = vunpack.c.l.s4 1934713408
        %v3656 = vunpack.c.0.s8 %v3655
        %v3657 = vlaneseq
        %v3658 = vshrl.u32 %v3657, 7
        %v3659 = vsub.s32 %v3656, %v3658
        %v3660 = vrot.slane %v3652, %v3659
        %v3662 = vunpack.c.l.s4 1934713408
        %v3663 = vunpack.c.0.s8 %v3662
        %v3664 = vlaneseq
        %v3665 = vshrl.u32 %v3664, 7
        %v3666 = vsub.s32 %v3663, %v3665
        %v3667 = vrot.slane %v3653, %v3666
        %v3668 = vcombine.high %v3660, 0.0
        %v3669 = vcombine.high %v3667, 0.0
        %v3670 = vcombine.low %v3167, %v3183
        %v3672 = vunpack.c.l.s4 1983009808
        %v3673 = vunpack.c.0.s8 %v3672
        %v3674 = vlaneseq
        %v3675 = vshrl.u32 %v3674, 7
        %v3676 = vsub.s32 %v3673, %v3675
        %v3677 = vrot.slane %v3670, %v3676
        %v3678 = vcombine.low %v3175, %v3191
        %v3680 = vunpack.c.l.s4 1983009808
        %v3681 = vunpack.c.0.s8 %v3680
        %v3682 = vlaneseq
        %v3683 = vshrl.u32 %v3682, 7
        %v3684 = vsub.s32 %v3681, %v3683
        %v3685 = vrot.slane %v3678, %v3684
        %v3686 = vcombine.low %v3677, %v3685
        %v3687 = vcombine.high %v3677, %v3685
        %v3689 = vunpack.c.l.s4 1934713408
        %v3690 = vunpack.c.0.s8 %v3689
        %v3691 = vlaneseq
        %v3692 = vshrl.u32 %v3691, 7
        %v3693 = vsub.s32 %v3690, %v3692
        %v3694 = vrot.slane %v3686, %v3693
        %v3696 = vunpack.c.l.s4 1934713408
        %v3697 = vunpack.c.0.s8 %v3696
        %v3698 = vlaneseq
        %v3699 = vshrl.u32 %v3698, 7
        %v3700 = vsub.s32 %v3697, %v3699
        %v3701 = vrot.slane %v3687, %v3700
        %v3702 = vcombine.high %v3694, 0.0
        %v3703 = vcombine.high %v3701, 0.0
        %v3704 = vcombine.low %v3169, %v3185
        %v3706 = vunpack.c.l.s4 1983009808
        %v3707 = vunpack.c.0.s8 %v3706
        %v3708 = vlaneseq
        %v3709 = vshrl.u32 %v3708, 7
        %v3710 = vsub.s32 %v3707, %v3709
        %v3711 = vrot.slane %v3704, %v3710
        %v3712 = vcombine.low %v3177, %v3193
        %v3714 = vunpack.c.l.s4 1983009808
        %v3715 = vunpack.c.0.s8 %v3714
        %v3716 = vlaneseq
        %v3717 = vshrl.u32 %v3716, 7
        %v3718 = vsub.s32 %v3715, %v3717
        %v3719 = vrot.slane %v3712, %v3718
        %v3720 = vcombine.low %v3711, %v3719
        %v3721 = vcombine.high %v3711, %v3719
        %v3723 = vunpack.c.l.s4 1934713408
        %v3724 = vunpack.c.0.s8 %v3723
        %v3725 = vlaneseq
        %v3726 = vshrl.u32 %v3725, 7
        %v3727 = vsub.s32 %v3724, %v3726
        %v3728 = vrot.slane %v3720, %v3727
        %v3730 = vunpack.c.l.s4 1934713408
        %v3731 = vunpack.c.0.s8 %v3730
        %v3732 = vlaneseq
        %v3733 = vshrl.u32 %v3732, 7
        %v3734 = vsub.s32 %v3731, %v3733
        %v3735 = vrot.slane %v3721, %v3734
        %v3736 = vcombine.high %v3728, 0.0
        %v3737 = vcombine.high %v3735, 0.0
        %v3738 = vcombine.low %v3171, %v3187
        %v3740 = vunpack.c.l.s4 1983009808
        %v3741 = vunpack.c.0.s8 %v3740
        %v3742 = vlaneseq
        %v3743 = vshrl.u32 %v3742, 7
        %v3744 = vsub.s32 %v3741, %v3743
        %v3745 = vrot.slane %v3738, %v3744
        %v3746 = vcombine.low %v3179, %v3195
        %v3748 = vunpack.c.l.s4 1983009808
        %v3749 = vunpack.c.0.s8 %v3748
        %v3750 = vlaneseq
        %v3751 = vshrl.u32 %v3750, 7
        %v3752 = vsub.s32 %v3749, %v3751
        %v3753 = vrot.slane %v3746, %v3752
        %v3754 = vcombine.low %v3745, %v3753
        %v3755 = vcombine.high %v3745, %v3753
        %v3757 = vunpack.c.l.s4 1934713408
        %v3758 = vunpack.c.0.s8 %v3757
        %v3759 = vlaneseq
        %v3760 = vshrl.u32 %v3759, 7
        %v3761 = vsub.s32 %v3758, %v3760
        %v3762 = vrot.slane %v3754, %v3761
        %v3764 = vunpack.c.l.s4 1934713408
        %v3765 = vunpack.c.0.s8 %v3764
        %v3766 = vlaneseq
        %v3767 = vshrl.u32 %v3766, 7
        %v3768 = vsub.s32 %v3765, %v3767
        %v3769 = vrot.slane %v3755, %v3768
        %v3770 = vcombine.high %v3762, 0.0
        %v3771 = vcombine.high %v3769, 0.0
        %v3772 = vcombine.low %v3173, %v3189
        %v3774 = vunpack.c.l.s4 1983009808
        %v3775 = vunpack.c.0.s8 %v3774
        %v3776 = vlaneseq
        %v3777 = vshrl.u32 %v3776, 7
        %v3778 = vsub.s32 %v3775, %v3777
        %v3779 = vrot.slane %v3772, %v3778
        %v3780 = vcombine.low %v3181, %v3197
        %v3782 = vunpack.c.l.s4 1983009808
        %v3783 = vunpack.c.0.s8 %v3782
        %v3784 = vlaneseq
        %v3785 = vshrl.u32 %v3784, 7
        %v3786 = vsub.s32 %v3783, %v3785
        %v3787 = vrot.slane %v3780, %v3786
        %v3788 = vcombine.low %v3779, %v3787
        %v3789 = vcombine.high %v3779, %v3787
        %v3791 = vunpack.c.l.s4 1934713408
        %v3792 = vunpack.c.0.s8 %v3791
        %v3793 = vlaneseq
        %v3794 = vshrl.u32 %v3793, 7
        %v3795 = vsub.s32 %v3792, %v3794
        %v3796 = vrot.slane %v3788, %v3795
        %v3798 = vunpack.c.l.s4 1934713408
        %v3799 = vunpack.c.0.s8 %v3798
        %v3800 = vlaneseq
        %v3801 = vshrl.u32 %v3800, 7
        %v3802 = vsub.s32 %v3799, %v3801
        %v3803 = vrot.slane %v3789, %v3802
        %v3804 = vcombine.high %v3796, 0.0
        %v3805 = vcombine.high %v3803, 0.0
        %v3806 = vcombine.low %v3286, %v3293
        %v3808 = vunpack.c.l.s4 1983009808
        %v3809 = vunpack.c.0.s8 %v3808
        %v3810 = vlaneseq
        %v3811 = vshrl.u32 %v3810, 7
        %v3812 = vsub.s32 %v3809, %v3811
        %v3813 = vrot.slane %v3806, %v3812
        %v3814 = vcombine.low %v3294, %v3295
        %v3816 = vunpack.c.l.s4 1983009808
        %v3817 = vunpack.c.0.s8 %v3816
        %v3818 = vlaneseq
        %v3819 = vshrl.u32 %v3818, 7
        %v3820 = vsub.s32 %v3817, %v3819
        %v3821 = vrot.slane %v3814, %v3820
        %v3822 = vcombine.low %v3813, %v3821
        %v3823 = vcombine.high %v3813, %v3821
        %v3825 = vunpack.c.l.s4 1934713408
        %v3826 = vunpack.c.0.s8 %v3825
        %v3827 = vlaneseq
        %v3828 = vshrl.u32 %v3827, 7
        %v3829 = vsub.s32 %v3826, %v3828
        %v3830 = vrot.slane %v3822, %v3829
        %v3832 = vunpack.c.l.s4 1934713408
        %v3833 = vunpack.c.0.s8 %v3832
        %v3834 = vlaneseq
        %v3835 = vshrl.u32 %v3834, 7
        %v3836 = vsub.s32 %v3833, %v3835
        %v3837 = vrot.slane %v3823, %v3836
        %v3838 = vcombine.high %v3830, 0.0
        %v3839 = vcombine.high %v3837, 0.0
        %v3840 = vcombine.low %v3320, %v3327
        %v3842 = vunpack.c.l.s4 1983009808
        %v3843 = vunpack.c.0.s8 %v3842
        %v3844 = vlaneseq
        %v3845 = vshrl.u32 %v3844, 7
        %v3846 = vsub.s32 %v3843, %v3845
        %v3847 = vrot.slane %v3840, %v3846
        %v3848 = vcombine.low %v3328, %v3329
        %v3850 = vunpack.c.l.s4 1983009808
        %v3851 = vunpack.c.0.s8 %v3850
        %v3852 = vlaneseq
        %v3853 = vshrl.u32 %v3852, 7
        %v3854 = vsub.s32 %v3851, %v3853
        %v3855 = vrot.slane %v3848, %v3854
        %v3856 = vcombine.low %v3847, %v3855
        %v3857 = vcombine.high %v3847, %v3855
        %v3859 = vunpack.c.l.s4 1934713408
        %v3860 = vunpack.c.0.s8 %v3859
        %v3861 = vlaneseq
        %v3862 = vshrl.u32 %v3861, 7
        %v3863 = vsub.s32 %v3860, %v3862
        %v3864 = vrot.slane %v3856, %v3863
        %v3866 = vunpack.c.l.s4 1934713408
        %v3867 = vunpack.c.0.s8 %v3866
        %v3868 = vlaneseq
        %v3869 = vshrl.u32 %v3868, 7
        %v3870 = vsub.s32 %v3867, %v3869
        %v3871 = vrot.slane %v3857, %v3870
        %v3872 = vcombine.high %v3864, 0.0
        %v3873 = vcombine.high %v3871, 0.0
        %v3874 = vcombine.low %v3354, %v3361
        %v3876 = vunpack.c.l.s4 1983009808
        %v3877 = vunpack.c.0.s8 %v3876
        %v3878 = vlaneseq
        %v3879 = vshrl.u32 %v3878, 7
        %v3880 = vsub.s32 %v3877, %v3879
        %v3881 = vrot.slane %v3874, %v3880
        %v3882 = vcombine.low %v3362, %v3363
        %v3884 = vunpack.c.l.s4 1983009808
        %v3885 = vunpack.c.0.s8 %v3884
        %v3886 = vlaneseq
        %v3887 = vshrl.u32 %v3886, 7
        %v3888 = vsub.s32 %v3885, %v3887
        %v3889 = vrot.slane %v3882, %v3888
        %v3890 = vcombine.low %v3881, %v3889
        %v3891 = vcombine.high %v3881, %v3889
        %v3893 = vunpack.c.l.s4 1934713408
        %v3894 = vunpack.c.0.s8 %v3893
        %v3895 = vlaneseq
        %v3896 = vshrl.u32 %v3895, 7
        %v3897 = vsub.s32 %v3894, %v3896
        %v3898 = vrot.slane %v3890, %v3897
        %v3900 = vunpack.c.l.s4 1934713408
        %v3901 = vunpack.c.0.s8 %v3900
        %v3902 = vlaneseq
        %v3903 = vshrl.u32 %v3902, 7
        %v3904 = vsub.s32 %v3901, %v3903
        %v3905 = vrot.slane %v3891, %v3904
        %v3906 = vcombine.high %v3898, 0.0
        %v3907 = vcombine.high %v3905, 0.0
        %v3908 = vcombine.low %v3388, %v3395
        %v3910 = vunpack.c.l.s4 1983009808
        %v3911 = vunpack.c.0.s8 %v3910
        %v3912 = vlaneseq
        %v3913 = vshrl.u32 %v3912, 7
        %v3914 = vsub.s32 %v3911, %v3913
        %v3915 = vrot.slane %v3908, %v3914
        %v3916 = vcombine.low %v3396, %v3397
        %v3918 = vunpack.c.l.s4 1983009808
        %v3919 = vunpack.c.0.s8 %v3918
        %v3920 = vlaneseq
        %v3921 = vshrl.u32 %v3920, 7
        %v3922 = vsub.s32 %v3919, %v3921
        %v3923 = vrot.slane %v3916, %v3922
        %v3924 = vcombine.low %v3915, %v3923
        %v3925 = vcombine.high %v3915, %v3923
        %v3927 = vunpack.c.l.s4 1934713408
        %v3928 = vunpack.c.0.s8 %v3927
        %v3929 = vlaneseq
        %v3930 = vshrl.u32 %v3929, 7
        %v3931 = vsub.s32 %v3928, %v3930
        %v3932 = vrot.slane %v3924, %v3931
        %v3934 = vunpack.c.l.s4 1934713408
        %v3935 = vunpack.c.0.s8 %v3934
        %v3936 = vlaneseq
        %v3937 = vshrl.u32 %v3936, 7
        %v3938 = vsub.s32 %v3935, %v3937
        %v3939 = vrot.slane %v3925, %v3938
        %v3940 = vcombine.high %v3932, 0.0
        %v3941 = vcombine.high %v3939, 0.0
        %v3942 = vcombine.low %v3422, %v3429
        %v3944 = vunpack.c.l.s4 1983009808
        %v3945 = vunpack.c.0.s8 %v3944
        %v3946 = vlaneseq
        %v3947 = vshrl.u32 %v3946, 7
        %v3948 = vsub.s32 %v3945, %v3947
        %v3949 = vrot.slane %v3942, %v3948
        %v3950 = vcombine.low %v3430, %v3431
        %v3952 = vunpack.c.l.s4 1983009808
        %v3953 = vunpack.c.0.s8 %v3952
        %v3954 = vlaneseq
        %v3955 = vshrl.u32 %v3954, 7
        %v3956 = vsub.s32 %v3953, %v3955
        %v3957 = vrot.slane %v3950, %v3956
        %v3958 = vcombine.low %v3949, %v3957
        %v3959 = vcombine.high %v3949, %v3957
        %v3961 = vunpack.c.l.s4 1934713408
        %v3962 = vunpack.c.0.s8 %v3961
        %v3963 = vlaneseq
        %v3964 = vshrl.u32 %v3963, 7
        %v3965 = vsub.s32 %v3962, %v3964
        %v3966 = vrot.slane %v3958, %v3965
        %v3968 = vunpack.c.l.s4 1934713408
        %v3969 = vunpack.c.0.s8 %v3968
        %v3970 = vlaneseq
        %v3971 = vshrl.u32 %v3970, 7
        %v3972 = vsub.s32 %v3969, %v3971
        %v3973 = vrot.slane %v3959, %v3972
        %v3974 = vcombine.high %v3966, 0.0
        %v3975 = vcombine.high %v3973, 0.0
        %v3976 = vcombine.low %v3456, %v3463
        %v3978 = vunpack.c.l.s4 1983009808
        %v3979 = vunpack.c.0.s8 %v3978
        %v3980 = vlaneseq
        %v3981 = vshrl.u32 %v3980, 7
        %v3982 = vsub.s32 %v3979, %v3981
        %v3983 = vrot.slane %v3976, %v3982
        %v3984 = vcombine.low %v3464, %v3465
        %v3986 = vunpack.c.l.s4 1983009808
        %v3987 = vunpack.c.0.s8 %v3986
        %v3988 = vlaneseq
        %v3989 = vshrl.u32 %v3988, 7
        %v3990 = vsub.s32 %v3987, %v3989
        %v3991 = vrot.slane %v3984, %v3990
        %v3992 = vcombine.low %v3983, %v3991
        %v3993 = vcombine.high %v3983, %v3991
        %v3995 = vunpack.c.l.s4 1934713408
        %v3996 = vunpack.c.0.s8 %v3995
        %v3997 = vlaneseq
        %v3998 = vshrl.u32 %v3997, 7
        %v3999 = vsub.s32 %v3996, %v3998
        %v4000 = vrot.slane %v3992, %v3999
        %v4002 = vunpack.c.l.s4 1934713408
        %v4003 = vunpack.c.0.s8 %v4002
        %v4004 = vlaneseq
        %v4005 = vshrl.u32 %v4004, 7
        %v4006 = vsub.s32 %v4003, %v4005
        %v4007 = vrot.slane %v3993, %v4006
        %v4008 = vcombine.high %v4000, 0.0
        %v4009 = vcombine.high %v4007, 0.0
        %v4010 = vcombine.low %v3490, %v3497
        %v4012 = vunpack.c.l.s4 1983009808
        %v4013 = vunpack.c.0.s8 %v4012
        %v4014 = vlaneseq
        %v4015 = vshrl.u32 %v4014, 7
        %v4016 = vsub.s32 %v4013, %v4015
        %v4017 = vrot.slane %v4010, %v4016
        %v4018 = vcombine.low %v3498, %v3499
        %v4020 = vunpack.c.l.s4 1983009808
        %v4021 = vunpack.c.0.s8 %v4020
        %v4022 = vlaneseq
        %v4023 = vshrl.u32 %v4022, 7
        %v4024 = vsub.s32 %v4021, %v4023
        %v4025 = vrot.slane %v4018, %v4024
        %v4026 = vcombine.low %v4017, %v4025
        %v4027 = vcombine.high %v4017, %v4025
        %v4029 = vunpack.c.l.s4 1934713408
        %v4030 = vunpack.c.0.s8 %v4029
        %v4031 = vlaneseq
        %v4032 = vshrl.u32 %v4031, 7
        %v4033 = vsub.s32 %v4030, %v4032
        %v4034 = vrot.slane %v4026, %v4033
        %v4036 = vunpack.c.l.s4 1934713408
        %v4037 = vunpack.c.0.s8 %v4036
        %v4038 = vlaneseq
        %v4039 = vshrl.u32 %v4038, 7
        %v4040 = vsub.s32 %v4037, %v4039
        %v4041 = vrot.slane %v4027, %v4040
        %v4042 = vcombine.high %v4034, 0.0
        %v4043 = vcombine.high %v4041, 0.0
        %v4044 = vcombine.low %v3524, %v3531
        %v4046 = vunpack.c.l.s4 1983009808
        %v4047 = vunpack.c.0.s8 %v4046
        %v4048 = vlaneseq
        %v4049 = vshrl.u32 %v4048, 7
        %v4050 = vsub.s32 %v4047, %v4049
        %v4051 = vrot.slane %v4044, %v4050
        %v4052 = vcombine.low %v3532, %v3533
        %v4054 = vunpack.c.l.s4 1983009808
        %v4055 = vunpack.c.0.s8 %v4054
        %v4056 = vlaneseq
        %v4057 = vshrl.u32 %v4056, 7
        %v4058 = vsub.s32 %v4055, %v4057
        %v4059 = vrot.slane %v4052, %v4058
        %v4060 = vcombine.low %v4051, %v4059
        %v4061 = vcombine.high %v4051, %v4059
        %v4063 = vunpack.c.l.s4 1934713408
        %v4064 = vunpack.c.0.s8 %v4063
        %v4065 = vlaneseq
        %v4066 = vshrl.u32 %v4065, 7
        %v4067 = vsub.s32 %v4064, %v4066
        %v4068 = vrot.slane %v4060, %v4067
        %v4070 = vunpack.c.l.s4 1934713408
        %v4071 = vunpack.c.0.s8 %v4070
        %v4072 = vlaneseq
        %v4073 = vshrl.u32 %v4072, 7
        %v4074 = vsub.s32 %v4071, %v4073
        %v4075 = vrot.slane %v4061, %v4074
        %v4076 = vcombine.high %v4068, 0.0
        %v4077 = vcombine.high %v4075, 0.0
        %v4078 = vcombine.low %v3558, %v3565
        %v4080 = vunpack.c.l.s4 1983009808
        %v4081 = vunpack.c.0.s8 %v4080
        %v4082 = vlaneseq
        %v4083 = vshrl.u32 %v4082, 7
        %v4084 = vsub.s32 %v4081, %v4083
        %v4085 = vrot.slane %v4078, %v4084
        %v4086 = vcombine.low %v3566, %v3567
        %v4088 = vunpack.c.l.s4 1983009808
        %v4089 = vunpack.c.0.s8 %v4088
        %v4090 = vlaneseq
        %v4091 = vshrl.u32 %v4090, 7
        %v4092 = vsub.s32 %v4089, %v4091
        %v4093 = vrot.slane %v4086, %v4092
        %v4094 = vcombine.low %v4085, %v4093
        %v4095 = vcombine.high %v4085, %v4093
        %v4097 = vunpack.c.l.s4 1934713408
        %v4098 = vunpack.c.0.s8 %v4097
        %v4099 = vlaneseq
        %v4100 = vshrl.u32 %v4099, 7
        %v4101 = vsub.s32 %v4098, %v4100
        %v4102 = vrot.slane %v4094, %v4101
        %v4104 = vunpack.c.l.s4 1934713408
        %v4105 = vunpack.c.0.s8 %v4104
        %v4106 = vlaneseq
        %v4107 = vshrl.u32 %v4106, 7
        %v4108 = vsub.s32 %v4105, %v4107
        %v4109 = vrot.slane %v4095, %v4108
        %v4110 = vcombine.high %v4102, 0.0
        %v4111 = vcombine.high %v4109, 0.0
        %v4112 = vcombine.low %v3592, %v3599
        %v4114 = vunpack.c.l.s4 1983009808
        %v4115 = vunpack.c.0.s8 %v4114
        %v4116 = vlaneseq
        %v4117 = vshrl.u32 %v4116, 7
        %v4118 = vsub.s32 %v4115, %v4117
        %v4119 = vrot.slane %v4112, %v4118
        %v4120 = vcombine.low %v3600, %v3601
        %v4122 = vunpack.c.l.s4 1983009808
        %v4123 = vunpack.c.0.s8 %v4122
        %v4124 = vlaneseq
        %v4125 = vshrl.u32 %v4124, 7
        %v4126 = vsub.s32 %v4123, %v4125
        %v4127 = vrot.slane %v4120, %v4126
        %v4128 = vcombine.low %v4119, %v4127
        %v4129 = vcombine.high %v4119, %v4127
        %v4131 = vunpack.c.l.s4 1934713408
        %v4132 = vunpack.c.0.s8 %v4131
        %v4133 = vlaneseq
        %v4134 = vshrl.u32 %v4133, 7
        %v4135 = vsub.s32 %v4132, %v4134
        %v4136 = vrot.slane %v4128, %v4135
        %v4138 = vunpack.c.l.s4 1934713408
        %v4139 = vunpack.c.0.s8 %v4138
        %v4140 = vlaneseq
        %v4141 = vshrl.u32 %v4140, 7
        %v4142 = vsub.s32 %v4139, %v4141
        %v4143 = vrot.slane %v4129, %v4142
        %v4144 = vcombine.high %v4136, 0.0
        %v4145 = vcombine.high %v4143, 0.0
        %v4146 = vcombine.low %v3626, %v3633
        %v4148 = vunpack.c.l.s4 1983009808
        %v4149 = vunpack.c.0.s8 %v4148
        %v4150 = vlaneseq
        %v4151 = vshrl.u32 %v4150, 7
        %v4152 = vsub.s32 %v4149, %v4151
        %v4153 = vrot.slane %v4146, %v4152
        %v4154 = vcombine.low %v3634, %v3635
        %v4156 = vunpack.c.l.s4 1983009808
        %v4157 = vunpack.c.0.s8 %v4156
        %v4158 = vlaneseq
        %v4159 = vshrl.u32 %v4158, 7
        %v4160 = vsub.s32 %v4157, %v4159
        %v4161 = vrot.slane %v4154, %v4160
        %v4162 = vcombine.low %v4153, %v4161
        %v4163 = vcombine.high %v4153, %v4161
        %v4165 = vunpack.c.l.s4 1934713408
        %v4166 = vunpack.c.0.s8 %v4165
        %v4167 = vlaneseq
        %v4168 = vshrl.u32 %v4167, 7
        %v4169 = vsub.s32 %v4166, %v4168
        %v4170 = vrot.slane %v4162, %v4169
        %v4172 = vunpack.c.l.s4 1934713408
        %v4173 = vunpack.c.0.s8 %v4172
        %v4174 = vlaneseq
        %v4175 = vshrl.u32 %v4174, 7
        %v4176 = vsub.s32 %v4173, %v4175
        %v4177 = vrot.slane %v4163, %v4176
        %v4178 = vcombine.high %v4170, 0.0
        %v4179 = vcombine.high %v4177, 0.0
        %v4180 = vcombine.low %v3660, %v3667
        %v4182 = vunpack.c.l.s4 1983009808
        %v4183 = vunpack.c.0.s8 %v4182
        %v4184 = vlaneseq
        %v4185 = vshrl.u32 %v4184, 7
        %v4186 = vsub.s32 %v4183, %v4185
        %v4187 = vrot.slane %v4180, %v4186
        %v4188 = vcombine.low %v3668, %v3669
        %v4190 = vunpack.c.l.s4 1983009808
        %v4191 = vunpack.c.0.s8 %v4190
        %v4192 = vlaneseq
        %v4193 = vshrl.u32 %v4192, 7
        %v4194 = vsub.s32 %v4191, %v4193
        %v4195 = vrot.slane %v4188, %v4194
        %v4196 = vcombine.low %v4187, %v4195
        %v4197 = vcombine.high %v4187, %v4195
        %v4199 = vunpack.c.l.s4 1934713408
        %v4200 = vunpack.c.0.s8 %v4199
        %v4201 = vlaneseq
        %v4202 = vshrl.u32 %v4201, 7
        %v4203 = vsub.s32 %v4200, %v4202
        %v4204 = vrot.slane %v4196, %v4203
        %v4206 = vunpack.c.l.s4 1934713408
        %v4207 = vunpack.c.0.s8 %v4206
        %v4208 = vlaneseq
        %v4209 = vshrl.u32 %v4208, 7
        %v4210 = vsub.s32 %v4207, %v4209
        %v4211 = vrot.slane %v4197, %v4210
        %v4212 = vcombine.high %v4204, 0.0
        %v4213 = vcombine.high %v4211, 0.0
        %v4214 = vcombine.low %v3694, %v3701
        %v4216 = vunpack.c.l.s4 1983009808
        %v4217 = vunpack.c.0.s8 %v4216
        %v4218 = vlaneseq
        %v4219 = vshrl.u32 %v4218, 7
        %v4220 = vsub.s32 %v4217, %v4219
        %v4221 = vrot.slane %v4214, %v4220
        %v4222 = vcombine.low %v3702, %v3703
        %v4224 = vunpack.c.l.s4 1983009808
        %v4225 = vunpack.c.0.s8 %v4224
        %v4226 = vlaneseq
        %v4227 = vshrl.u32 %v4226, 7
        %v4228 = vsub.s32 %v4225, %v4227
        %v4229 = vrot.slane %v4222, %v4228
        %v4230 = vcombine.low %v4221, %v4229
        %v4231 = vcombine.high %v4221, %v4229
        %v4233 = vunpack.c.l.s4 1934713408
        %v4234 = vunpack.c.0.s8 %v4233
        %v4235 = vlaneseq
        %v4236 = vshrl.u32 %v4235, 7
        %v4237 = vsub.s32 %v4234, %v4236
        %v4238 = vrot.slane %v4230, %v4237
        %v4240 = vunpack.c.l.s4 1934713408
        %v4241 = vunpack.c.0.s8 %v4240
        %v4242 = vlaneseq
        %v4243 = vshrl.u32 %v4242, 7
        %v4244 = vsub.s32 %v4241, %v4243
        %v4245 = vrot.slane %v4231, %v4244
        %v4246 = vcombine.high %v4238, 0.0
        %v4247 = vcombine.high %v4245, 0.0
        %v4248 = vcombine.low %v3728, %v3735
        %v4250 = vunpack.c.l.s4 1983009808
        %v4251 = vunpack.c.0.s8 %v4250
        %v4252 = vlaneseq
        %v4253 = vshrl.u32 %v4252, 7
        %v4254 = vsub.s32 %v4251, %v4253
        %v4255 = vrot.slane %v4248, %v4254
        %v4256 = vcombine.low %v3736, %v3737
        %v4258 = vunpack.c.l.s4 1983009808
        %v4259 = vunpack.c.0.s8 %v4258
        %v4260 = vlaneseq
        %v4261 = vshrl.u32 %v4260, 7
        %v4262 = vsub.s32 %v4259, %v4261
        %v4263 = vrot.slane %v4256, %v4262
        %v4264 = vcombine.low %v4255, %v4263
        %v4265 = vcombine.high %v4255, %v4263
        %v4267 = vunpack.c.l.s4 1934713408
        %v4268 = vunpack.c.0.s8 %v4267
        %v4269 = vlaneseq
        %v4270 = vshrl.u32 %v4269, 7
        %v4271 = vsub.s32 %v4268, %v4270
        %v4272 = vrot.slane %v4264, %v4271
        %v4274 = vunpack.c.l.s4 1934713408
        %v4275 = vunpack.c.0.s8 %v4274
        %v4276 = vlaneseq
        %v4277 = vshrl.u32 %v4276, 7
        %v4278 = vsub.s32 %v4275, %v4277
        %v4279 = vrot.slane %v4265, %v4278
        %v4280 = vcombine.high %v4272, 0.0
        %v4281 = vcombine.high %v4279, 0.0
        %v4282 = vcombine.low %v3762, %v3769
        %v4284 = vunpack.c.l.s4 1983009808
        %v4285 = vunpack.c.0.s8 %v4284
        %v4286 = vlaneseq
        %v4287 = vshrl.u32 %v4286, 7
        %v4288 = vsub.s32 %v4285, %v4287
        %v4289 = vrot.slane %v4282, %v4288
        %v4290 = vcombine.low %v3770, %v3771
        %v4292 = vunpack.c.l.s4 1983009808
        %v4293 = vunpack.c.0.s8 %v4292
        %v4294 = vlaneseq
        %v4295 = vshrl.u32 %v4294, 7
        %v4296 = vsub.s32 %v4293, %v4295
        %v4297 = vrot.slane %v4290, %v4296
        %v4298 = vcombine.low %v4289, %v4297
        %v4299 = vcombine.high %v4289, %v4297
        %v4301 = vunpack.c.l.s4 1934713408
        %v4302 = vunpack.c.0.s8 %v4301
        %v4303 = vlaneseq
        %v4304 = vshrl.u32 %v4303, 7
        %v4305 = vsub.s32 %v4302, %v4304
        %v4306 = vrot.slane %v4298, %v4305
        %v4308 = vunpack.c.l.s4 1934713408
        %v4309 = vunpack.c.0.s8 %v4308
        %v4310 = vlaneseq
        %v4311 = vshrl.u32 %v4310, 7
        %v4312 = vsub.s32 %v4309, %v4311
        %v4313 = vrot.slane %v4299, %v4312
        %v4314 = vcombine.high %v4306, 0.0
        %v4315 = vcombine.high %v4313, 0.0
        %v4316 = vcombine.low %v3796, %v3803
        %v4318 = vunpack.c.l.s4 1983009808
        %v4319 = vunpack.c.0.s8 %v4318
        %v4320 = vlaneseq
        %v4321 = vshrl.u32 %v4320, 7
        %v4322 = vsub.s32 %v4319, %v4321
        %v4323 = vrot.slane %v4316, %v4322
        %v4324 = vcombine.low %v3804, %v3805
        %v4326 = vunpack.c.l.s4 1983009808
        %v4327 = vunpack.c.0.s8 %v4326
        %v4328 = vlaneseq
        %v4329 = vshrl.u32 %v4328, 7
        %v4330 = vsub.s32 %v4327, %v4329
        %v4331 = vrot.slane %v4324, %v4330
        %v4332 = vcombine.low %v4323, %v4331
        %v4333 = vcombine.high %v4323, %v4331
        %v4335 = vunpack.c.l.s4 1934713408
        %v4336 = vunpack.c.0.s8 %v4335
        %v4337 = vlaneseq
        %v4338 = vshrl.u32 %v4337, 7
        %v4339 = vsub.s32 %v4336, %v4338
        %v4340 = vrot.slane %v4332, %v4339
        %v4342 = vunpack.c.l.s4 1934713408
        %v4343 = vunpack.c.0.s8 %v4342
        %v4344 = vlaneseq
        %v4345 = vshrl.u32 %v4344, 7
        %v4346 = vsub.s32 %v4343, %v4345
        %v4347 = vrot.slane %v4333, %v4346
        %v4348 = vcombine.high %v4340, 0.0
        %v4349 = vcombine.high %v4347, 0.0
        %v4354 = vcombine.low %v1270, %v1304
        %v4355 = vcombine.low %v1338, %v1372
        %v4360 = vcombine.low %v2550, %v2584
        %v4361 = vcombine.low %v2618, %v2652
        %vm4362 = vcmask 64512
        %v4363 = vsel %vm4362, %v4354, 0
        %v4365 = vsel %vm4362, %v4355, 0
        %v4367 = vsel %vm4362, %v4360, 0
        %v4369 = vsel %vm4362, %v4361, 0
        %4371 = vmatprep.subr.mxu0 0.0
        %4372 = vmatpush1.xpose.msra.mxu0 0.0
        %4373 = vmatprep.subr.mxu0 0.0
        %4374 = vmatpush1.xpose.msra.mxu0 0.0
        %4375 = vmatprep.subr.mxu0 0.0
        %4376 = vmatpush1.xpose.msra.mxu0 0.0
        %4377 = vmatprep.subr.mxu0 0.0
        %4378 = vmatpush1.xpose.msra.mxu0 0.0
        %4379 = vmatprep.subr.mxu0 0.0
        %4380 = vmatpush1.xpose.msra.mxu0 0.0
        %4381 = vmatprep.subr.mxu0 0.0
        %4382 = vmatpush1.xpose.msra.mxu0 0.0
        %4383 = vmatprep.subr.mxu0 0.0
        %4384 = vmatpush1.xpose.msra.mxu0 0.0
        %4385 = vmatprep.subr.mxu0 0.0
        %4386 = vmatpush1.xpose.msra.mxu0 0.0
        %4387 = vmatprep.subr.mxu0 0.0
        %4388 = vmatpush1.xpose.msra.mxu0 0.0
        %4389 = vmatprep.subr.mxu0 0.0
        %4390 = vmatpush1.xpose.msra.mxu0 0.0
        %4391 = vmatprep.subr.mxu0 0.0
        %4392 = vmatpush1.xpose.msra.mxu0 0.0
        %4393 = vmatprep.subr.mxu0 0.0
        %4394 = vmatpush1.xpose.msra.mxu0 0.0
        %4395 = vmatprep.subr.mxu0 0.0
        %4396 = vmatpush1.xpose.msra.mxu0 0.0
        %4397 = vmatprep.subr.mxu0 0.0
        %4398 = vmatpush1.xpose.msra.mxu0 0.0
        %4399 = vmatprep.subr.mxu0 0.0
        %4400 = vmatpush1.xpose.msra.mxu0 %v4369
        %4401 = vmatprep.subr.mxu0 0.0
        %4402 = vmatpush1.xpose.msra.mxu0 %v4367
        %4403 = vmatprep.subr.mxu0 0.0
        %4404 = vmatpush2.xpose.msra.mxu0 0.0
        %4405 = vmatprep.subr.mxu0 0.0
        %4406 = vmatpush2.xpose.msra.mxu0 0.0
        %4407 = vmatprep.subr.mxu0 0.0
        %4408 = vmatpush2.xpose.msra.mxu0 0.0
        %4409 = vmatprep.subr.mxu0 0.0
        %4410 = vmatpush2.xpose.msra.mxu0 0.0
        %4411 = vmatprep.subr.mxu0 0.0
        %4412 = vmatpush2.xpose.msra.mxu0 0.0
        %4413 = vmatprep.subr.mxu0 0.0
        %4414 = vmatpush2.xpose.msra.mxu0 0.0
        %4415 = vmatprep.subr.mxu0 0.0
        %4416 = vmatpush2.xpose.msra.mxu0 0.0
        %4417 = vmatprep.subr.mxu0 0.0
        %4418 = vmatpush2.xpose.msra.mxu0 0.0
        %4419 = vmatprep.subr.mxu0 0.0
        %4420 = vmatpush2.xpose.msra.mxu0 0.0
        %4421 = vmatprep.subr.mxu0 0.0
        %4422 = vmatpush2.xpose.msra.mxu0 0.0
        %4423 = vmatprep.subr.mxu0 0.0
        %4424 = vmatpush2.xpose.msra.mxu0 0.0
        %4425 = vmatprep.subr.mxu0 0.0
        %4426 = vmatpush2.xpose.msra.mxu0 0.0
        %4427 = vmatprep.subr.mxu0 0.0
        %4428 = vmatpush2.xpose.msra.mxu0 0.0
        %4429 = vmatprep.subr.mxu0 0.0
        %4430 = vmatpush2.xpose.msra.mxu0 0.0
        %4431 = vmatprep.subr.mxu0 0.0
        %4432 = vmatpush2.xpose.msra.mxu0 0.0
        %4433 = vmatprep.subr.mxu0 0.0
        %4434 = vmatpush2.xpose.msra.mxu0 0.0
        %4435 = vmatprep.mubr.f32.mxu0 0.0
        %4436 = vmatmul.mubr.f32.gmra.mxu0 %v4363
        %v4437 = vpop.f32.mrf.mxu0
        %v4438 = vadd.f32 0.0, %v4437
        %v4439 = vpop.f32.mrf.mxu0
        %4440 = vmatprep.mubr.f32.mxu0 0.0
        %4441 = vmatmul.mubr.f32.gmra.mxu0 %v4365
        %v4442 = vpop.f32.mrf.mxu0
        %v4443 = vadd.f32 0.0, %v4442
        %v4444 = vpop.f32.mrf.mxu0
        %4445 = vdwg.mxu0
        %v4450 = vcombine.low %v1278, %v1312
        %v4451 = vcombine.low %v1346, %v1380
        %v4456 = vcombine.low %v2558, %v2592
        %v4457 = vcombine.low %v2626, %v2660
        %v4458 = vsel %vm4362, %v4450, 0
        %v4460 = vsel %vm4362, %v4451, 0
        %v4462 = vsel %vm4362, %v4456, 0
        %v4464 = vsel %vm4362, %v4457, 0
        %4466 = vmatprep.subr.mxu0 0.0
        %4467 = vmatpush1.xpose.msra.mxu0 0.0
        %4468 = vmatprep.subr.mxu0 0.0
        %4469 = vmatpush1.xpose.msra.mxu0 0.0
        %4470 = vmatprep.subr.mxu0 0.0
        %4471 = vmatpush1.xpose.msra.mxu0 0.0
        %4472 = vmatprep.subr.mxu0 0.0
        %4473 = vmatpush1.xpose.msra.mxu0 0.0
        %4474 = vmatprep.subr.mxu0 0.0
        %4475 = vmatpush1.xpose.msra.mxu0 0.0
        %4476 = vmatprep.subr.mxu0 0.0
        %4477 = vmatpush1.xpose.msra.mxu0 0.0
        %4478 = vmatprep.subr.mxu0 0.0
        %4479 = vmatpush1.xpose.msra.mxu0 0.0
        %4480 = vmatprep.subr.mxu0 0.0
        %4481 = vmatpush1.xpose.msra.mxu0 0.0
        %4482 = vmatprep.subr.mxu0 0.0
        %4483 = vmatpush1.xpose.msra.mxu0 0.0
        %4484 = vmatprep.subr.mxu0 0.0
        %4485 = vmatpush1.xpose.msra.mxu0 0.0
        %4486 = vmatprep.subr.mxu0 0.0
        %4487 = vmatpush1.xpose.msra.mxu0 0.0
        %4488 = vmatprep.subr.mxu0 0.0
        %4489 = vmatpush1.xpose.msra.mxu0 0.0
        %4490 = vmatprep.subr.mxu0 0.0
        %4491 = vmatpush1.xpose.msra.mxu0 0.0
        %4492 = vmatprep.subr.mxu0 0.0
        %4493 = vmatpush1.xpose.msra.mxu0 0.0
        %4494 = vmatprep.subr.mxu0 0.0
        %4495 = vmatpush1.xpose.msra.mxu0 %v4464
        %4496 = vmatprep.subr.mxu0 0.0
        %4497 = vmatpush1.xpose.msra.mxu0 %v4462
        %4498 = vmatprep.subr.mxu0 0.0
        %4499 = vmatpush2.xpose.msra.mxu0 0.0
        %4500 = vmatprep.subr.mxu0 0.0
        %4501 = vmatpush2.xpose.msra.mxu0 0.0
        %4502 = vmatprep.subr.mxu0 0.0
        %4503 = vmatpush2.xpose.msra.mxu0 0.0
        %4504 = vmatprep.subr.mxu0 0.0
        %4505 = vmatpush2.xpose.msra.mxu0 0.0
        %4506 = vmatprep.subr.mxu0 0.0
        %4507 = vmatpush2.xpose.msra.mxu0 0.0
        %4508 = vmatprep.subr.mxu0 0.0
        %4509 = vmatpush2.xpose.msra.mxu0 0.0
        %4510 = vmatprep.subr.mxu0 0.0
        %4511 = vmatpush2.xpose.msra.mxu0 0.0
        %4512 = vmatprep.subr.mxu0 0.0
        %4513 = vmatpush2.xpose.msra.mxu0 0.0
        %4514 = vmatprep.subr.mxu0 0.0
        %4515 = vmatpush2.xpose.msra.mxu0 0.0
        %4516 = vmatprep.subr.mxu0 0.0
        %4517 = vmatpush2.xpose.msra.mxu0 0.0
        %4518 = vmatprep.subr.mxu0 0.0
        %4519 = vmatpush2.xpose.msra.mxu0 0.0
        %4520 = vmatprep.subr.mxu0 0.0
        %4521 = vmatpush2.xpose.msra.mxu0 0.0
        %4522 = vmatprep.subr.mxu0 0.0
        %4523 = vmatpush2.xpose.msra.mxu0 0.0
        %4524 = vmatprep.subr.mxu0 0.0
        %4525 = vmatpush2.xpose.msra.mxu0 0.0
        %4526 = vmatprep.subr.mxu0 0.0
        %4527 = vmatpush2.xpose.msra.mxu0 0.0
        %4528 = vmatprep.subr.mxu0 0.0
        %4529 = vmatpush2.xpose.msra.mxu0 0.0
        %4530 = vmatprep.mubr.f32.mxu0 0.0
        %4531 = vmatmul.mubr.f32.gmra.mxu0 %v4458
        %v4532 = vpop.f32.mrf.mxu0
        %v4533 = vadd.f32 0.0, %v4532
        %v4534 = vpop.f32.mrf.mxu0
        %4535 = vmatprep.mubr.f32.mxu0 0.0
        %4536 = vmatmul.mubr.f32.gmra.mxu0 %v4460
        %v4537 = vpop.f32.mrf.mxu0
        %v4538 = vadd.f32 0.0, %v4537
        %v4539 = vpop.f32.mrf.mxu0
        %4540 = vdwg.mxu0
        %v4545 = vcombine.low %v1277, %v1311
        %v4546 = vcombine.low %v1345, %v1379
        %v4551 = vcombine.low %v2557, %v2591
        %v4552 = vcombine.low %v2625, %v2659
        %v4553 = vsel %vm4362, %v4545, 0
        %v4555 = vsel %vm4362, %v4546, 0
        %v4557 = vsel %vm4362, %v4551, 0
        %v4559 = vsel %vm4362, %v4552, 0
        %4561 = vmatprep.subr.mxu0 0.0
        %4562 = vmatpush1.xpose.msra.mxu0 0.0
        %4563 = vmatprep.subr.mxu0 0.0
        %4564 = vmatpush1.xpose.msra.mxu0 0.0
        %4565 = vmatprep.subr.mxu0 0.0
        %4566 = vmatpush1.xpose.msra.mxu0 0.0
        %4567 = vmatprep.subr.mxu0 0.0
        %4568 = vmatpush1.xpose.msra.mxu0 0.0
        %4569 = vmatprep.subr.mxu0 0.0
        %4570 = vmatpush1.xpose.msra.mxu0 0.0
        %4571 = vmatprep.subr.mxu0 0.0
        %4572 = vmatpush1.xpose.msra.mxu0 0.0
        %4573 = vmatprep.subr.mxu0 0.0
        %4574 = vmatpush1.xpose.msra.mxu0 0.0
        %4575 = vmatprep.subr.mxu0 0.0
        %4576 = vmatpush1.xpose.msra.mxu0 0.0
        %4577 = vmatprep.subr.mxu0 0.0
        %4578 = vmatpush1.xpose.msra.mxu0 0.0
        %4579 = vmatprep.subr.mxu0 0.0
        %4580 = vmatpush1.xpose.msra.mxu0 0.0
        %4581 = vmatprep.subr.mxu0 0.0
        %4582 = vmatpush1.xpose.msra.mxu0 0.0
        %4583 = vmatprep.subr.mxu0 0.0
        %4584 = vmatpush1.xpose.msra.mxu0 0.0
        %4585 = vmatprep.subr.mxu0 0.0
        %4586 = vmatpush1.xpose.msra.mxu0 0.0
        %4587 = vmatprep.subr.mxu0 0.0
        %4588 = vmatpush1.xpose.msra.mxu0 0.0
        %4589 = vmatprep.subr.mxu0 0.0
        %4590 = vmatpush1.xpose.msra.mxu0 %v4559
        %4591 = vmatprep.subr.mxu0 0.0
        %4592 = vmatpush1.xpose.msra.mxu0 %v4557
        %4593 = vmatprep.subr.mxu0 0.0
        %4594 = vmatpush2.xpose.msra.mxu0 0.0
        %4595 = vmatprep.subr.mxu0 0.0
        %4596 = vmatpush2.xpose.msra.mxu0 0.0
        %4597 = vmatprep.subr.mxu0 0.0
        %4598 = vmatpush2.xpose.msra.mxu0 0.0
        %4599 = vmatprep.subr.mxu0 0.0
        %4600 = vmatpush2.xpose.msra.mxu0 0.0
        %4601 = vmatprep.subr.mxu0 0.0
        %4602 = vmatpush2.xpose.msra.mxu0 0.0
        %4603 = vmatprep.subr.mxu0 0.0
        %4604 = vmatpush2.xpose.msra.mxu0 0.0
        %4605 = vmatprep.subr.mxu0 0.0
        %4606 = vmatpush2.xpose.msra.mxu0 0.0
        %4607 = vmatprep.subr.mxu0 0.0
        %4608 = vmatpush2.xpose.msra.mxu0 0.0
        %4609 = vmatprep.subr.mxu0 0.0
        %4610 = vmatpush2.xpose.msra.mxu0 0.0
        %4611 = vmatprep.subr.mxu0 0.0
        %4612 = vmatpush2.xpose.msra.mxu0 0.0
        %4613 = vmatprep.subr.mxu0 0.0
        %4614 = vmatpush2.xpose.msra.mxu0 0.0
        %4615 = vmatprep.subr.mxu0 0.0
        %4616 = vmatpush2.xpose.msra.mxu0 0.0
        %4617 = vmatprep.subr.mxu0 0.0
        %4618 = vmatpush2.xpose.msra.mxu0 0.0
        %4619 = vmatprep.subr.mxu0 0.0
        %4620 = vmatpush2.xpose.msra.mxu0 0.0
        %4621 = vmatprep.subr.mxu0 0.0
        %4622 = vmatpush2.xpose.msra.mxu0 0.0
        %4623 = vmatprep.subr.mxu0 0.0
        %4624 = vmatpush2.xpose.msra.mxu0 0.0
        %4625 = vmatprep.mubr.f32.mxu0 0.0
        %4626 = vmatmul.mubr.f32.gmra.mxu0 %v4553
        %v4627 = vpop.f32.mrf.mxu0
        %v4628 = vadd.f32 0.0, %v4627
        %v4629 = vpop.f32.mrf.mxu0
        %4630 = vmatprep.mubr.f32.mxu0 0.0
        %4631 = vmatmul.mubr.f32.gmra.mxu0 %v4555
        %v4632 = vpop.f32.mrf.mxu0
        %v4633 = vadd.f32 0.0, %v4632
        %v4634 = vpop.f32.mrf.mxu0
        %4635 = vdwg.mxu0
        %v4640 = vcombine.low %v1279, %v1313
        %v4641 = vcombine.low %v1347, %v1381
        %v4646 = vcombine.low %v2559, %v2593
        %v4647 = vcombine.low %v2627, %v2661
        %v4648 = vsel %vm4362, %v4640, 0
        %v4650 = vsel %vm4362, %v4641, 0
        %v4652 = vsel %vm4362, %v4646, 0
        %v4654 = vsel %vm4362, %v4647, 0
        %4656 = vmatprep.subr.mxu0 0.0
        %4657 = vmatpush1.xpose.msra.mxu0 0.0
        %4658 = vmatprep.subr.mxu0 0.0
        %4659 = vmatpush1.xpose.msra.mxu0 0.0
        %4660 = vmatprep.subr.mxu0 0.0
        %4661 = vmatpush1.xpose.msra.mxu0 0.0
        %4662 = vmatprep.subr.mxu0 0.0
        %4663 = vmatpush1.xpose.msra.mxu0 0.0
        %4664 = vmatprep.subr.mxu0 0.0
        %4665 = vmatpush1.xpose.msra.mxu0 0.0
        %4666 = vmatprep.subr.mxu0 0.0
        %4667 = vmatpush1.xpose.msra.mxu0 0.0
        %4668 = vmatprep.subr.mxu0 0.0
        %4669 = vmatpush1.xpose.msra.mxu0 0.0
        %4670 = vmatprep.subr.mxu0 0.0
        %4671 = vmatpush1.xpose.msra.mxu0 0.0
        %4672 = vmatprep.subr.mxu0 0.0
        %4673 = vmatpush1.xpose.msra.mxu0 0.0
        %4674 = vmatprep.subr.mxu0 0.0
        %4675 = vmatpush1.xpose.msra.mxu0 0.0
        %4676 = vmatprep.subr.mxu0 0.0
        %4677 = vmatpush1.xpose.msra.mxu0 0.0
        %4678 = vmatprep.subr.mxu0 0.0
        %4679 = vmatpush1.xpose.msra.mxu0 0.0
        %4680 = vmatprep.subr.mxu0 0.0
        %4681 = vmatpush1.xpose.msra.mxu0 0.0
        %4682 = vmatprep.subr.mxu0 0.0
        %4683 = vmatpush1.xpose.msra.mxu0 0.0
        %4684 = vmatprep.subr.mxu0 0.0
        %4685 = vmatpush1.xpose.msra.mxu0 %v4654
        %4686 = vmatprep.subr.mxu0 0.0
        %4687 = vmatpush1.xpose.msra.mxu0 %v4652
        %4688 = vmatprep.subr.mxu0 0.0
        %4689 = vmatpush2.xpose.msra.mxu0 0.0
        %4690 = vmatprep.subr.mxu0 0.0
        %4691 = vmatpush2.xpose.msra.mxu0 0.0
        %4692 = vmatprep.subr.mxu0 0.0
        %4693 = vmatpush2.xpose.msra.mxu0 0.0
        %4694 = vmatprep.subr.mxu0 0.0
        %4695 = vmatpush2.xpose.msra.mxu0 0.0
        %4696 = vmatprep.subr.mxu0 0.0
        %4697 = vmatpush2.xpose.msra.mxu0 0.0
        %4698 = vmatprep.subr.mxu0 0.0
        %4699 = vmatpush2.xpose.msra.mxu0 0.0
        %4700 = vmatprep.subr.mxu0 0.0
        %4701 = vmatpush2.xpose.msra.mxu0 0.0
        %4702 = vmatprep.subr.mxu0 0.0
        %4703 = vmatpush2.xpose.msra.mxu0 0.0
        %4704 = vmatprep.subr.mxu0 0.0
        %4705 = vmatpush2.xpose.msra.mxu0 0.0
        %4706 = vmatprep.subr.mxu0 0.0
        %4707 = vmatpush2.xpose.msra.mxu0 0.0
        %4708 = vmatprep.subr.mxu0 0.0
        %4709 = vmatpush2.xpose.msra.mxu0 0.0
        %4710 = vmatprep.subr.mxu0 0.0
        %4711 = vmatpush2.xpose.msra.mxu0 0.0
        %4712 = vmatprep.subr.mxu0 0.0
        %4713 = vmatpush2.xpose.msra.mxu0 0.0
        %4714 = vmatprep.subr.mxu0 0.0
        %4715 = vmatpush2.xpose.msra.mxu0 0.0
        %4716 = vmatprep.subr.mxu0 0.0
        %4717 = vmatpush2.xpose.msra.mxu0 0.0
        %4718 = vmatprep.subr.mxu0 0.0
        %4719 = vmatpush2.xpose.msra.mxu0 0.0
        %4720 = vmatprep.mubr.f32.mxu0 0.0
        %4721 = vmatmul.mubr.f32.gmra.mxu0 %v4648
        %v4722 = vpop.f32.mrf.mxu0
        %v4723 = vadd.f32 0.0, %v4722
        %v4724 = vpop.f32.mrf.mxu0
        %4725 = vmatprep.mubr.f32.mxu0 0.0
        %4726 = vmatmul.mubr.f32.gmra.mxu0 %v4650
        %v4727 = vpop.f32.mrf.mxu0
        %v4728 = vadd.f32 0.0, %v4727
        %v4729 = vpop.f32.mrf.mxu0
        %4730 = vdwg.mxu0
        %v4735 = vcombine.low %v1406, %v1440
        %v4736 = vcombine.low %v1474, %v1508
        %v4741 = vcombine.low %v2686, %v2720
        %v4742 = vcombine.low %v2754, %v2788
        %v4743 = vsel %vm4362, %v4735, 0
        %v4745 = vsel %vm4362, %v4736, 0
        %v4747 = vsel %vm4362, %v4741, 0
        %v4749 = vsel %vm4362, %v4742, 0
        %4751 = vmatprep.subr.mxu0 0.0
        %4752 = vmatpush1.xpose.msra.mxu0 0.0
        %4753 = vmatprep.subr.mxu0 0.0
        %4754 = vmatpush1.xpose.msra.mxu0 0.0
        %4755 = vmatprep.subr.mxu0 0.0
        %4756 = vmatpush1.xpose.msra.mxu0 0.0
        %4757 = vmatprep.subr.mxu0 0.0
        %4758 = vmatpush1.xpose.msra.mxu0 0.0
        %4759 = vmatprep.subr.mxu0 0.0
        %4760 = vmatpush1.xpose.msra.mxu0 0.0
        %4761 = vmatprep.subr.mxu0 0.0
        %4762 = vmatpush1.xpose.msra.mxu0 0.0
        %4763 = vmatprep.subr.mxu0 0.0
        %4764 = vmatpush1.xpose.msra.mxu0 0.0
        %4765 = vmatprep.subr.mxu0 0.0
        %4766 = vmatpush1.xpose.msra.mxu0 0.0
        %4767 = vmatprep.subr.mxu0 0.0
        %4768 = vmatpush1.xpose.msra.mxu0 0.0
        %4769 = vmatprep.subr.mxu0 0.0
        %4770 = vmatpush1.xpose.msra.mxu0 0.0
        %4771 = vmatprep.subr.mxu0 0.0
        %4772 = vmatpush1.xpose.msra.mxu0 0.0
        %4773 = vmatprep.subr.mxu0 0.0
        %4774 = vmatpush1.xpose.msra.mxu0 0.0
        %4775 = vmatprep.subr.mxu0 0.0
        %4776 = vmatpush1.xpose.msra.mxu0 0.0
        %4777 = vmatprep.subr.mxu0 0.0
        %4778 = vmatpush1.xpose.msra.mxu0 0.0
        %4779 = vmatprep.subr.mxu0 0.0
        %4780 = vmatpush1.xpose.msra.mxu0 %v4749
        %4781 = vmatprep.subr.mxu0 0.0
        %4782 = vmatpush1.xpose.msra.mxu0 %v4747
        %4783 = vmatprep.subr.mxu0 0.0
        %4784 = vmatpush2.xpose.msra.mxu0 0.0
        %4785 = vmatprep.subr.mxu0 0.0
        %4786 = vmatpush2.xpose.msra.mxu0 0.0
        %4787 = vmatprep.subr.mxu0 0.0
        %4788 = vmatpush2.xpose.msra.mxu0 0.0
        %4789 = vmatprep.subr.mxu0 0.0
        %4790 = vmatpush2.xpose.msra.mxu0 0.0
        %4791 = vmatprep.subr.mxu0 0.0
        %4792 = vmatpush2.xpose.msra.mxu0 0.0
        %4793 = vmatprep.subr.mxu0 0.0
        %4794 = vmatpush2.xpose.msra.mxu0 0.0
        %4795 = vmatprep.subr.mxu0 0.0
        %4796 = vmatpush2.xpose.msra.mxu0 0.0
        %4797 = vmatprep.subr.mxu0 0.0
        %4798 = vmatpush2.xpose.msra.mxu0 0.0
        %4799 = vmatprep.subr.mxu0 0.0
        %4800 = vmatpush2.xpose.msra.mxu0 0.0
        %4801 = vmatprep.subr.mxu0 0.0
        %4802 = vmatpush2.xpose.msra.mxu0 0.0
        %4803 = vmatprep.subr.mxu0 0.0
        %4804 = vmatpush2.xpose.msra.mxu0 0.0
        %4805 = vmatprep.subr.mxu0 0.0
        %4806 = vmatpush2.xpose.msra.mxu0 0.0
        %4807 = vmatprep.subr.mxu0 0.0
        %4808 = vmatpush2.xpose.msra.mxu0 0.0
        %4809 = vmatprep.subr.mxu0 0.0
        %4810 = vmatpush2.xpose.msra.mxu0 0.0
        %4811 = vmatprep.subr.mxu0 0.0
        %4812 = vmatpush2.xpose.msra.mxu0 0.0
        %4813 = vmatprep.subr.mxu0 0.0
        %4814 = vmatpush2.xpose.msra.mxu0 0.0
        %4815 = vmatprep.mubr.f32.mxu0 0.0
        %4816 = vmatmul.mubr.f32.gmra.mxu0 %v4743
        %v4817 = vpop.f32.mrf.mxu0
        %v4818 = vadd.f32 0.0, %v4817
        %v4819 = vpop.f32.mrf.mxu0
        %4820 = vmatprep.mubr.f32.mxu0 0.0
        %4821 = vmatmul.mubr.f32.gmra.mxu0 %v4745
        %v4822 = vpop.f32.mrf.mxu0
        %v4823 = vadd.f32 0.0, %v4822
        %v4824 = vpop.f32.mrf.mxu0
        %4825 = vdwg.mxu0
        %v4830 = vcombine.low %v1414, %v1448
        %v4831 = vcombine.low %v1482, %v1516
        %v4836 = vcombine.low %v2694, %v2728
        %v4837 = vcombine.low %v2762, %v2796
        %v4838 = vsel %vm4362, %v4830, 0
        %v4840 = vsel %vm4362, %v4831, 0
        %v4842 = vsel %vm4362, %v4836, 0
        %v4844 = vsel %vm4362, %v4837, 0
        %4846 = vmatprep.subr.mxu0 0.0
        %4847 = vmatpush1.xpose.msra.mxu0 0.0
        %4848 = vmatprep.subr.mxu0 0.0
        %4849 = vmatpush1.xpose.msra.mxu0 0.0
        %4850 = vmatprep.subr.mxu0 0.0
        %4851 = vmatpush1.xpose.msra.mxu0 0.0
        %4852 = vmatprep.subr.mxu0 0.0
        %4853 = vmatpush1.xpose.msra.mxu0 0.0
        %4854 = vmatprep.subr.mxu0 0.0
        %4855 = vmatpush1.xpose.msra.mxu0 0.0
        %4856 = vmatprep.subr.mxu0 0.0
        %4857 = vmatpush1.xpose.msra.mxu0 0.0
        %4858 = vmatprep.subr.mxu0 0.0
        %4859 = vmatpush1.xpose.msra.mxu0 0.0
        %4860 = vmatprep.subr.mxu0 0.0
        %4861 = vmatpush1.xpose.msra.mxu0 0.0
        %4862 = vmatprep.subr.mxu0 0.0
        %4863 = vmatpush1.xpose.msra.mxu0 0.0
        %4864 = vmatprep.subr.mxu0 0.0
        %4865 = vmatpush1.xpose.msra.mxu0 0.0
        %4866 = vmatprep.subr.mxu0 0.0
        %4867 = vmatpush1.xpose.msra.mxu0 0.0
        %4868 = vmatprep.subr.mxu0 0.0
        %4869 = vmatpush1.xpose.msra.mxu0 0.0
        %4870 = vmatprep.subr.mxu0 0.0
        %4871 = vmatpush1.xpose.msra.mxu0 0.0
        %4872 = vmatprep.subr.mxu0 0.0
        %4873 = vmatpush1.xpose.msra.mxu0 0.0
        %4874 = vmatprep.subr.mxu0 0.0
        %4875 = vmatpush1.xpose.msra.mxu0 %v4844
        %4876 = vmatprep.subr.mxu0 0.0
        %4877 = vmatpush1.xpose.msra.mxu0 %v4842
        %4878 = vmatprep.subr.mxu0 0.0
        %4879 = vmatpush2.xpose.msra.mxu0 0.0
        %4880 = vmatprep.subr.mxu0 0.0
        %4881 = vmatpush2.xpose.msra.mxu0 0.0
        %4882 = vmatprep.subr.mxu0 0.0
        %4883 = vmatpush2.xpose.msra.mxu0 0.0
        %4884 = vmatprep.subr.mxu0 0.0
        %4885 = vmatpush2.xpose.msra.mxu0 0.0
        %4886 = vmatprep.subr.mxu0 0.0
        %4887 = vmatpush2.xpose.msra.mxu0 0.0
        %4888 = vmatprep.subr.mxu0 0.0
        %4889 = vmatpush2.xpose.msra.mxu0 0.0
        %4890 = vmatprep.subr.mxu0 0.0
        %4891 = vmatpush2.xpose.msra.mxu0 0.0
        %4892 = vmatprep.subr.mxu0 0.0
        %4893 = vmatpush2.xpose.msra.mxu0 0.0
        %4894 = vmatprep.subr.mxu0 0.0
        %4895 = vmatpush2.xpose.msra.mxu0 0.0
        %4896 = vmatprep.subr.mxu0 0.0
        %4897 = vmatpush2.xpose.msra.mxu0 0.0
        %4898 = vmatprep.subr.mxu0 0.0
        %4899 = vmatpush2.xpose.msra.mxu0 0.0
        %4900 = vmatprep.subr.mxu0 0.0
        %4901 = vmatpush2.xpose.msra.mxu0 0.0
        %4902 = vmatprep.subr.mxu0 0.0
        %4903 = vmatpush2.xpose.msra.mxu0 0.0
        %4904 = vmatprep.subr.mxu0 0.0
        %4905 = vmatpush2.xpose.msra.mxu0 0.0
        %4906 = vmatprep.subr.mxu0 0.0
        %4907 = vmatpush2.xpose.msra.mxu0 0.0
        %4908 = vmatprep.subr.mxu0 0.0
        %4909 = vmatpush2.xpose.msra.mxu0 0.0
        %4910 = vmatprep.mubr.f32.mxu0 0.0
        %4911 = vmatmul.mubr.f32.gmra.mxu0 %v4838
        %v4912 = vpop.f32.mrf.mxu0
        %v4913 = vadd.f32 0.0, %v4912
        %v4914 = vpop.f32.mrf.mxu0
        %4915 = vmatprep.mubr.f32.mxu0 0.0
        %4916 = vmatmul.mubr.f32.gmra.mxu0 %v4840
        %v4917 = vpop.f32.mrf.mxu0
        %v4918 = vadd.f32 0.0, %v4917
        %v4919 = vpop.f32.mrf.mxu0
        %4920 = vdwg.mxu0
        %v4925 = vcombine.low %v1413, %v1447
        %v4926 = vcombine.low %v1481, %v1515
        %v4931 = vcombine.low %v2693, %v2727
        %v4932 = vcombine.low %v2761, %v2795
        %v4933 = vsel %vm4362, %v4925, 0
        %v4935 = vsel %vm4362, %v4926, 0
        %v4937 = vsel %vm4362, %v4931, 0
        %v4939 = vsel %vm4362, %v4932, 0
        %4941 = vmatprep.subr.mxu0 0.0
        %4942 = vmatpush1.xpose.msra.mxu0 0.0
        %4943 = vmatprep.subr.mxu0 0.0
        %4944 = vmatpush1.xpose.msra.mxu0 0.0
        %4945 = vmatprep.subr.mxu0 0.0
        %4946 = vmatpush1.xpose.msra.mxu0 0.0
        %4947 = vmatprep.subr.mxu0 0.0
        %4948 = vmatpush1.xpose.msra.mxu0 0.0
        %4949 = vmatprep.subr.mxu0 0.0
        %4950 = vmatpush1.xpose.msra.mxu0 0.0
        %4951 = vmatprep.subr.mxu0 0.0
        %4952 = vmatpush1.xpose.msra.mxu0 0.0
        %4953 = vmatprep.subr.mxu0 0.0
        %4954 = vmatpush1.xpose.msra.mxu0 0.0
        %4955 = vmatprep.subr.mxu0 0.0
        %4956 = vmatpush1.xpose.msra.mxu0 0.0
        %4957 = vmatprep.subr.mxu0 0.0
        %4958 = vmatpush1.xpose.msra.mxu0 0.0
        %4959 = vmatprep.subr.mxu0 0.0
        %4960 = vmatpush1.xpose.msra.mxu0 0.0
        %4961 = vmatprep.subr.mxu0 0.0
        %4962 = vmatpush1.xpose.msra.mxu0 0.0
        %4963 = vmatprep.subr.mxu0 0.0
        %4964 = vmatpush1.xpose.msra.mxu0 0.0
        %4965 = vmatprep.subr.mxu0 0.0
        %4966 = vmatpush1.xpose.msra.mxu0 0.0
        %4967 = vmatprep.subr.mxu0 0.0
        %4968 = vmatpush1.xpose.msra.mxu0 0.0
        %4969 = vmatprep.subr.mxu0 0.0
        %4970 = vmatpush1.xpose.msra.mxu0 %v4939
        %4971 = vmatprep.subr.mxu0 0.0
        %4972 = vmatpush1.xpose.msra.mxu0 %v4937
        %4973 = vmatprep.subr.mxu0 0.0
        %4974 = vmatpush2.xpose.msra.mxu0 0.0
        %4975 = vmatprep.subr.mxu0 0.0
        %4976 = vmatpush2.xpose.msra.mxu0 0.0
        %4977 = vmatprep.subr.mxu0 0.0
        %4978 = vmatpush2.xpose.msra.mxu0 0.0
        %4979 = vmatprep.subr.mxu0 0.0
        %4980 = vmatpush2.xpose.msra.mxu0 0.0
        %4981 = vmatprep.subr.mxu0 0.0
        %4982 = vmatpush2.xpose.msra.mxu0 0.0
        %4983 = vmatprep.subr.mxu0 0.0
        %4984 = vmatpush2.xpose.msra.mxu0 0.0
        %4985 = vmatprep.subr.mxu0 0.0
        %4986 = vmatpush2.xpose.msra.mxu0 0.0
        %4987 = vmatprep.subr.mxu0 0.0
        %4988 = vmatpush2.xpose.msra.mxu0 0.0
        %4989 = vmatprep.subr.mxu0 0.0
        %4990 = vmatpush2.xpose.msra.mxu0 0.0
        %4991 = vmatprep.subr.mxu0 0.0
        %4992 = vmatpush2.xpose.msra.mxu0 0.0
        %4993 = vmatprep.subr.mxu0 0.0
        %4994 = vmatpush2.xpose.msra.mxu0 0.0
        %4995 = vmatprep.subr.mxu0 0.0
        %4996 = vmatpush2.xpose.msra.mxu0 0.0
        %4997 = vmatprep.subr.mxu0 0.0
        %4998 = vmatpush2.xpose.msra.mxu0 0.0
        %4999 = vmatprep.subr.mxu0 0.0
        %5000 = vmatpush2.xpose.msra.mxu0 0.0
        %5001 = vmatprep.subr.mxu0 0.0
        %5002 = vmatpush2.xpose.msra.mxu0 0.0
        %5003 = vmatprep.subr.mxu0 0.0
        %5004 = vmatpush2.xpose.msra.mxu0 0.0
        %5005 = vmatprep.mubr.f32.mxu0 0.0
        %5006 = vmatmul.mubr.f32.gmra.mxu0 %v4933
        %v5007 = vpop.f32.mrf.mxu0
        %v5008 = vadd.f32 0.0, %v5007
        %v5009 = vpop.f32.mrf.mxu0
        %5010 = vmatprep.mubr.f32.mxu0 0.0
        %5011 = vmatmul.mubr.f32.gmra.mxu0 %v4935
        %v5012 = vpop.f32.mrf.mxu0
        %v5013 = vadd.f32 0.0, %v5012
        %v5014 = vpop.f32.mrf.mxu0
        %5015 = vdwg.mxu0
        %v5020 = vcombine.low %v1415, %v1449
        %v5021 = vcombine.low %v1483, %v1517
        %v5026 = vcombine.low %v2695, %v2729
        %v5027 = vcombine.low %v2763, %v2797
        %v5028 = vsel %vm4362, %v5020, 0
        %v5030 = vsel %vm4362, %v5021, 0
        %v5032 = vsel %vm4362, %v5026, 0
        %v5034 = vsel %vm4362, %v5027, 0
        %5036 = vmatprep.subr.mxu0 0.0
        %5037 = vmatpush1.xpose.msra.mxu0 0.0
        %5038 = vmatprep.subr.mxu0 0.0
        %5039 = vmatpush1.xpose.msra.mxu0 0.0
        %5040 = vmatprep.subr.mxu0 0.0
        %5041 = vmatpush1.xpose.msra.mxu0 0.0
        %5042 = vmatprep.subr.mxu0 0.0
        %5043 = vmatpush1.xpose.msra.mxu0 0.0
        %5044 = vmatprep.subr.mxu0 0.0
        %5045 = vmatpush1.xpose.msra.mxu0 0.0
        %5046 = vmatprep.subr.mxu0 0.0
        %5047 = vmatpush1.xpose.msra.mxu0 0.0
        %5048 = vmatprep.subr.mxu0 0.0
        %5049 = vmatpush1.xpose.msra.mxu0 0.0
        %5050 = vmatprep.subr.mxu0 0.0
        %5051 = vmatpush1.xpose.msra.mxu0 0.0
        %5052 = vmatprep.subr.mxu0 0.0
        %5053 = vmatpush1.xpose.msra.mxu0 0.0
        %5054 = vmatprep.subr.mxu0 0.0
        %5055 = vmatpush1.xpose.msra.mxu0 0.0
        %5056 = vmatprep.subr.mxu0 0.0
        %5057 = vmatpush1.xpose.msra.mxu0 0.0
        %5058 = vmatprep.subr.mxu0 0.0
        %5059 = vmatpush1.xpose.msra.mxu0 0.0
        %5060 = vmatprep.subr.mxu0 0.0
        %5061 = vmatpush1.xpose.msra.mxu0 0.0
        %5062 = vmatprep.subr.mxu0 0.0
        %5063 = vmatpush1.xpose.msra.mxu0 0.0
        %5064 = vmatprep.subr.mxu0 0.0
        %5065 = vmatpush1.xpose.msra.mxu0 %v5034
        %5066 = vmatprep.subr.mxu0 0.0
        %5067 = vmatpush1.xpose.msra.mxu0 %v5032
        %5068 = vmatprep.subr.mxu0 0.0
        %5069 = vmatpush2.xpose.msra.mxu0 0.0
        %5070 = vmatprep.subr.mxu0 0.0
        %5071 = vmatpush2.xpose.msra.mxu0 0.0
        %5072 = vmatprep.subr.mxu0 0.0
        %5073 = vmatpush2.xpose.msra.mxu0 0.0
        %5074 = vmatprep.subr.mxu0 0.0
        %5075 = vmatpush2.xpose.msra.mxu0 0.0
        %5076 = vmatprep.subr.mxu0 0.0
        %5077 = vmatpush2.xpose.msra.mxu0 0.0
        %5078 = vmatprep.subr.mxu0 0.0
        %5079 = vmatpush2.xpose.msra.mxu0 0.0
        %5080 = vmatprep.subr.mxu0 0.0
        %5081 = vmatpush2.xpose.msra.mxu0 0.0
        %5082 = vmatprep.subr.mxu0 0.0
        %5083 = vmatpush2.xpose.msra.mxu0 0.0
        %5084 = vmatprep.subr.mxu0 0.0
        %5085 = vmatpush2.xpose.msra.mxu0 0.0
        %5086 = vmatprep.subr.mxu0 0.0
        %5087 = vmatpush2.xpose.msra.mxu0 0.0
        %5088 = vmatprep.subr.mxu0 0.0
        %5089 = vmatpush2.xpose.msra.mxu0 0.0
        %5090 = vmatprep.subr.mxu0 0.0
        %5091 = vmatpush2.xpose.msra.mxu0 0.0
        %5092 = vmatprep.subr.mxu0 0.0
        %5093 = vmatpush2.xpose.msra.mxu0 0.0
        %5094 = vmatprep.subr.mxu0 0.0
        %5095 = vmatpush2.xpose.msra.mxu0 0.0
        %5096 = vmatprep.subr.mxu0 0.0
        %5097 = vmatpush2.xpose.msra.mxu0 0.0
        %5098 = vmatprep.subr.mxu0 0.0
        %5099 = vmatpush2.xpose.msra.mxu0 0.0
        %5100 = vmatprep.mubr.f32.mxu0 0.0
        %5101 = vmatmul.mubr.f32.gmra.mxu0 %v5028
        %v5102 = vpop.f32.mrf.mxu0
        %v5103 = vadd.f32 0.0, %v5102
        %v5104 = vpop.f32.mrf.mxu0
        %5105 = vmatprep.mubr.f32.mxu0 0.0
        %5106 = vmatmul.mubr.f32.gmra.mxu0 %v5030
        %v5107 = vpop.f32.mrf.mxu0
        %v5108 = vadd.f32 0.0, %v5107
        %v5109 = vpop.f32.mrf.mxu0
        %5110 = vdwg.mxu0
        %v5115 = vcombine.low %v1542, %v1576
        %v5116 = vcombine.low %v1610, %v1644
        %v5121 = vcombine.low %v2822, %v2856
        %v5122 = vcombine.low %v2890, %v2924
        %v5123 = vsel %vm4362, %v5115, 0
        %v5125 = vsel %vm4362, %v5116, 0
        %v5127 = vsel %vm4362, %v5121, 0
        %v5129 = vsel %vm4362, %v5122, 0
        %5131 = vmatprep.subr.mxu0 0.0
        %5132 = vmatpush1.xpose.msra.mxu0 0.0
        %5133 = vmatprep.subr.mxu0 0.0
        %5134 = vmatpush1.xpose.msra.mxu0 0.0
        %5135 = vmatprep.subr.mxu0 0.0
        %5136 = vmatpush1.xpose.msra.mxu0 0.0
        %5137 = vmatprep.subr.mxu0 0.0
        %5138 = vmatpush1.xpose.msra.mxu0 0.0
        %5139 = vmatprep.subr.mxu0 0.0
        %5140 = vmatpush1.xpose.msra.mxu0 0.0
        %5141 = vmatprep.subr.mxu0 0.0
        %5142 = vmatpush1.xpose.msra.mxu0 0.0
        %5143 = vmatprep.subr.mxu0 0.0
        %5144 = vmatpush1.xpose.msra.mxu0 0.0
        %5145 = vmatprep.subr.mxu0 0.0
        %5146 = vmatpush1.xpose.msra.mxu0 0.0
        %5147 = vmatprep.subr.mxu0 0.0
        %5148 = vmatpush1.xpose.msra.mxu0 0.0
        %5149 = vmatprep.subr.mxu0 0.0
        %5150 = vmatpush1.xpose.msra.mxu0 0.0
        %5151 = vmatprep.subr.mxu0 0.0
        %5152 = vmatpush1.xpose.msra.mxu0 0.0
        %5153 = vmatprep.subr.mxu0 0.0
        %5154 = vmatpush1.xpose.msra.mxu0 0.0
        %5155 = vmatprep.subr.mxu0 0.0
        %5156 = vmatpush1.xpose.msra.mxu0 0.0
        %5157 = vmatprep.subr.mxu0 0.0
        %5158 = vmatpush1.xpose.msra.mxu0 0.0
        %5159 = vmatprep.subr.mxu0 0.0
        %5160 = vmatpush1.xpose.msra.mxu0 %v5129
        %5161 = vmatprep.subr.mxu0 0.0
        %5162 = vmatpush1.xpose.msra.mxu0 %v5127
        %5163 = vmatprep.subr.mxu0 0.0
        %5164 = vmatpush2.xpose.msra.mxu0 0.0
        %5165 = vmatprep.subr.mxu0 0.0
        %5166 = vmatpush2.xpose.msra.mxu0 0.0
        %5167 = vmatprep.subr.mxu0 0.0
        %5168 = vmatpush2.xpose.msra.mxu0 0.0
        %5169 = vmatprep.subr.mxu0 0.0
        %5170 = vmatpush2.xpose.msra.mxu0 0.0
        %5171 = vmatprep.subr.mxu0 0.0
        %5172 = vmatpush2.xpose.msra.mxu0 0.0
        %5173 = vmatprep.subr.mxu0 0.0
        %5174 = vmatpush2.xpose.msra.mxu0 0.0
        %5175 = vmatprep.subr.mxu0 0.0
        %5176 = vmatpush2.xpose.msra.mxu0 0.0
        %5177 = vmatprep.subr.mxu0 0.0
        %5178 = vmatpush2.xpose.msra.mxu0 0.0
        %5179 = vmatprep.subr.mxu0 0.0
        %5180 = vmatpush2.xpose.msra.mxu0 0.0
        %5181 = vmatprep.subr.mxu0 0.0
        %5182 = vmatpush2.xpose.msra.mxu0 0.0
        %5183 = vmatprep.subr.mxu0 0.0
        %5184 = vmatpush2.xpose.msra.mxu0 0.0
        %5185 = vmatprep.subr.mxu0 0.0
        %5186 = vmatpush2.xpose.msra.mxu0 0.0
        %5187 = vmatprep.subr.mxu0 0.0
        %5188 = vmatpush2.xpose.msra.mxu0 0.0
        %5189 = vmatprep.subr.mxu0 0.0
        %5190 = vmatpush2.xpose.msra.mxu0 0.0
        %5191 = vmatprep.subr.mxu0 0.0
        %5192 = vmatpush2.xpose.msra.mxu0 0.0
        %5193 = vmatprep.subr.mxu0 0.0
        %5194 = vmatpush2.xpose.msra.mxu0 0.0
        %5195 = vmatprep.mubr.f32.mxu0 0.0
        %5196 = vmatmul.mubr.f32.gmra.mxu0 %v5123
        %v5197 = vpop.f32.mrf.mxu0
        %v5198 = vadd.f32 0.0, %v5197
        %v5199 = vpop.f32.mrf.mxu0
        %5200 = vmatprep.mubr.f32.mxu0 0.0
        %5201 = vmatmul.mubr.f32.gmra.mxu0 %v5125
        %v5202 = vpop.f32.mrf.mxu0
        %v5203 = vadd.f32 0.0, %v5202
        %v5204 = vpop.f32.mrf.mxu0
        %5205 = vdwg.mxu0
        %v5210 = vcombine.low %v1550, %v1584
        %v5211 = vcombine.low %v1618, %v1652
        %v5216 = vcombine.low %v2830, %v2864
        %v5217 = vcombine.low %v2898, %v2932
        %v5218 = vsel %vm4362, %v5210, 0
        %v5220 = vsel %vm4362, %v5211, 0
        %v5222 = vsel %vm4362, %v5216, 0
        %v5224 = vsel %vm4362, %v5217, 0
        %5226 = vmatprep.subr.mxu0 0.0
        %5227 = vmatpush1.xpose.msra.mxu0 0.0
        %5228 = vmatprep.subr.mxu0 0.0
        %5229 = vmatpush1.xpose.msra.mxu0 0.0
        %5230 = vmatprep.subr.mxu0 0.0
        %5231 = vmatpush1.xpose.msra.mxu0 0.0
        %5232 = vmatprep.subr.mxu0 0.0
        %5233 = vmatpush1.xpose.msra.mxu0 0.0
        %5234 = vmatprep.subr.mxu0 0.0
        %5235 = vmatpush1.xpose.msra.mxu0 0.0
        %5236 = vmatprep.subr.mxu0 0.0
        %5237 = vmatpush1.xpose.msra.mxu0 0.0
        %5238 = vmatprep.subr.mxu0 0.0
        %5239 = vmatpush1.xpose.msra.mxu0 0.0
        %5240 = vmatprep.subr.mxu0 0.0
        %5241 = vmatpush1.xpose.msra.mxu0 0.0
        %5242 = vmatprep.subr.mxu0 0.0
        %5243 = vmatpush1.xpose.msra.mxu0 0.0
        %5244 = vmatprep.subr.mxu0 0.0
        %5245 = vmatpush1.xpose.msra.mxu0 0.0
        %5246 = vmatprep.subr.mxu0 0.0
        %5247 = vmatpush1.xpose.msra.mxu0 0.0
        %5248 = vmatprep.subr.mxu0 0.0
        %5249 = vmatpush1.xpose.msra.mxu0 0.0
        %5250 = vmatprep.subr.mxu0 0.0
        %5251 = vmatpush1.xpose.msra.mxu0 0.0
        %5252 = vmatprep.subr.mxu0 0.0
        %5253 = vmatpush1.xpose.msra.mxu0 0.0
        %5254 = vmatprep.subr.mxu0 0.0
        %5255 = vmatpush1.xpose.msra.mxu0 %v5224
        %5256 = vmatprep.subr.mxu0 0.0
        %5257 = vmatpush1.xpose.msra.mxu0 %v5222
        %5258 = vmatprep.subr.mxu0 0.0
        %5259 = vmatpush2.xpose.msra.mxu0 0.0
        %5260 = vmatprep.subr.mxu0 0.0
        %5261 = vmatpush2.xpose.msra.mxu0 0.0
        %5262 = vmatprep.subr.mxu0 0.0
        %5263 = vmatpush2.xpose.msra.mxu0 0.0
        %5264 = vmatprep.subr.mxu0 0.0
        %5265 = vmatpush2.xpose.msra.mxu0 0.0
        %5266 = vmatprep.subr.mxu0 0.0
        %5267 = vmatpush2.xpose.msra.mxu0 0.0
        %5268 = vmatprep.subr.mxu0 0.0
        %5269 = vmatpush2.xpose.msra.mxu0 0.0
        %5270 = vmatprep.subr.mxu0 0.0
        %5271 = vmatpush2.xpose.msra.mxu0 0.0
        %5272 = vmatprep.subr.mxu0 0.0
        %5273 = vmatpush2.xpose.msra.mxu0 0.0
        %5274 = vmatprep.subr.mxu0 0.0
        %5275 = vmatpush2.xpose.msra.mxu0 0.0
        %5276 = vmatprep.subr.mxu0 0.0
        %5277 = vmatpush2.xpose.msra.mxu0 0.0
        %5278 = vmatprep.subr.mxu0 0.0
        %5279 = vmatpush2.xpose.msra.mxu0 0.0
        %5280 = vmatprep.subr.mxu0 0.0
        %5281 = vmatpush2.xpose.msra.mxu0 0.0
        %5282 = vmatprep.subr.mxu0 0.0
        %5283 = vmatpush2.xpose.msra.mxu0 0.0
        %5284 = vmatprep.subr.mxu0 0.0
        %5285 = vmatpush2.xpose.msra.mxu0 0.0
        %5286 = vmatprep.subr.mxu0 0.0
        %5287 = vmatpush2.xpose.msra.mxu0 0.0
        %5288 = vmatprep.subr.mxu0 0.0
        %5289 = vmatpush2.xpose.msra.mxu0 0.0
        %5290 = vmatprep.mubr.f32.mxu0 0.0
        %5291 = vmatmul.mubr.f32.gmra.mxu0 %v5218
        %v5292 = vpop.f32.mrf.mxu0
        %v5293 = vadd.f32 0.0, %v5292
        %v5294 = vpop.f32.mrf.mxu0
        %5295 = vmatprep.mubr.f32.mxu0 0.0
        %5296 = vmatmul.mubr.f32.gmra.mxu0 %v5220
        %v5297 = vpop.f32.mrf.mxu0
        %v5298 = vadd.f32 0.0, %v5297
        %v5299 = vpop.f32.mrf.mxu0
        %5300 = vdwg.mxu0
        %v5305 = vcombine.low %v1549, %v1583
        %v5306 = vcombine.low %v1617, %v1651
        %v5311 = vcombine.low %v2829, %v2863
        %v5312 = vcombine.low %v2897, %v2931
        %v5313 = vsel %vm4362, %v5305, 0
        %v5315 = vsel %vm4362, %v5306, 0
        %v5317 = vsel %vm4362, %v5311, 0
        %v5319 = vsel %vm4362, %v5312, 0
        %5321 = vmatprep.subr.mxu0 0.0
        %5322 = vmatpush1.xpose.msra.mxu0 0.0
        %5323 = vmatprep.subr.mxu0 0.0
        %5324 = vmatpush1.xpose.msra.mxu0 0.0
        %5325 = vmatprep.subr.mxu0 0.0
        %5326 = vmatpush1.xpose.msra.mxu0 0.0
        %5327 = vmatprep.subr.mxu0 0.0
        %5328 = vmatpush1.xpose.msra.mxu0 0.0
        %5329 = vmatprep.subr.mxu0 0.0
        %5330 = vmatpush1.xpose.msra.mxu0 0.0
        %5331 = vmatprep.subr.mxu0 0.0
        %5332 = vmatpush1.xpose.msra.mxu0 0.0
        %5333 = vmatprep.subr.mxu0 0.0
        %5334 = vmatpush1.xpose.msra.mxu0 0.0
        %5335 = vmatprep.subr.mxu0 0.0
        %5336 = vmatpush1.xpose.msra.mxu0 0.0
        %5337 = vmatprep.subr.mxu0 0.0
        %5338 = vmatpush1.xpose.msra.mxu0 0.0
        %5339 = vmatprep.subr.mxu0 0.0
        %5340 = vmatpush1.xpose.msra.mxu0 0.0
        %5341 = vmatprep.subr.mxu0 0.0
        %5342 = vmatpush1.xpose.msra.mxu0 0.0
        %5343 = vmatprep.subr.mxu0 0.0
        %5344 = vmatpush1.xpose.msra.mxu0 0.0
        %5345 = vmatprep.subr.mxu0 0.0
        %5346 = vmatpush1.xpose.msra.mxu0 0.0
        %5347 = vmatprep.subr.mxu0 0.0
        %5348 = vmatpush1.xpose.msra.mxu0 0.0
        %5349 = vmatprep.subr.mxu0 0.0
        %5350 = vmatpush1.xpose.msra.mxu0 %v5319
        %5351 = vmatprep.subr.mxu0 0.0
        %5352 = vmatpush1.xpose.msra.mxu0 %v5317
        %5353 = vmatprep.subr.mxu0 0.0
        %5354 = vmatpush2.xpose.msra.mxu0 0.0
        %5355 = vmatprep.subr.mxu0 0.0
        %5356 = vmatpush2.xpose.msra.mxu0 0.0
        %5357 = vmatprep.subr.mxu0 0.0
        %5358 = vmatpush2.xpose.msra.mxu0 0.0
        %5359 = vmatprep.subr.mxu0 0.0
        %5360 = vmatpush2.xpose.msra.mxu0 0.0
        %5361 = vmatprep.subr.mxu0 0.0
        %5362 = vmatpush2.xpose.msra.mxu0 0.0
        %5363 = vmatprep.subr.mxu0 0.0
        %5364 = vmatpush2.xpose.msra.mxu0 0.0
        %5365 = vmatprep.subr.mxu0 0.0
        %5366 = vmatpush2.xpose.msra.mxu0 0.0
        %5367 = vmatprep.subr.mxu0 0.0
        %5368 = vmatpush2.xpose.msra.mxu0 0.0
        %5369 = vmatprep.subr.mxu0 0.0
        %5370 = vmatpush2.xpose.msra.mxu0 0.0
        %5371 = vmatprep.subr.mxu0 0.0
        %5372 = vmatpush2.xpose.msra.mxu0 0.0
        %5373 = vmatprep.subr.mxu0 0.0
        %5374 = vmatpush2.xpose.msra.mxu0 0.0
        %5375 = vmatprep.subr.mxu0 0.0
        %5376 = vmatpush2.xpose.msra.mxu0 0.0
        %5377 = vmatprep.subr.mxu0 0.0
        %5378 = vmatpush2.xpose.msra.mxu0 0.0
        %5379 = vmatprep.subr.mxu0 0.0
        %5380 = vmatpush2.xpose.msra.mxu0 0.0
        %5381 = vmatprep.subr.mxu0 0.0
        %5382 = vmatpush2.xpose.msra.mxu0 0.0
        %5383 = vmatprep.subr.mxu0 0.0
        %5384 = vmatpush2.xpose.msra.mxu0 0.0
        %5385 = vmatprep.mubr.f32.mxu0 0.0
        %5386 = vmatmul.mubr.f32.gmra.mxu0 %v5313
        %v5387 = vpop.f32.mrf.mxu0
        %v5388 = vadd.f32 0.0, %v5387
        %v5389 = vpop.f32.mrf.mxu0
        %5390 = vmatprep.mubr.f32.mxu0 0.0
        %5391 = vmatmul.mubr.f32.gmra.mxu0 %v5315
        %v5392 = vpop.f32.mrf.mxu0
        %v5393 = vadd.f32 0.0, %v5392
        %v5394 = vpop.f32.mrf.mxu0
        %5395 = vdwg.mxu0
        %v5400 = vcombine.low %v1551, %v1585
        %v5401 = vcombine.low %v1619, %v1653
        %v5406 = vcombine.low %v2831, %v2865
        %v5407 = vcombine.low %v2899, %v2933
        %v5408 = vsel %vm4362, %v5400, 0
        %v5410 = vsel %vm4362, %v5401, 0
        %v5412 = vsel %vm4362, %v5406, 0
        %v5414 = vsel %vm4362, %v5407, 0
        %5416 = vmatprep.subr.mxu0 0.0
        %5417 = vmatpush1.xpose.msra.mxu0 0.0
        %5418 = vmatprep.subr.mxu0 0.0
        %5419 = vmatpush1.xpose.msra.mxu0 0.0
        %5420 = vmatprep.subr.mxu0 0.0
        %5421 = vmatpush1.xpose.msra.mxu0 0.0
        %5422 = vmatprep.subr.mxu0 0.0
        %5423 = vmatpush1.xpose.msra.mxu0 0.0
        %5424 = vmatprep.subr.mxu0 0.0
        %5425 = vmatpush1.xpose.msra.mxu0 0.0
        %5426 = vmatprep.subr.mxu0 0.0
        %5427 = vmatpush1.xpose.msra.mxu0 0.0
        %5428 = vmatprep.subr.mxu0 0.0
        %5429 = vmatpush1.xpose.msra.mxu0 0.0
        %5430 = vmatprep.subr.mxu0 0.0
        %5431 = vmatpush1.xpose.msra.mxu0 0.0
        %5432 = vmatprep.subr.mxu0 0.0
        %5433 = vmatpush1.xpose.msra.mxu0 0.0
        %5434 = vmatprep.subr.mxu0 0.0
        %5435 = vmatpush1.xpose.msra.mxu0 0.0
        %5436 = vmatprep.subr.mxu0 0.0
        %5437 = vmatpush1.xpose.msra.mxu0 0.0
        %5438 = vmatprep.subr.mxu0 0.0
        %5439 = vmatpush1.xpose.msra.mxu0 0.0
        %5440 = vmatprep.subr.mxu0 0.0
        %5441 = vmatpush1.xpose.msra.mxu0 0.0
        %5442 = vmatprep.subr.mxu0 0.0
        %5443 = vmatpush1.xpose.msra.mxu0 0.0
        %5444 = vmatprep.subr.mxu0 0.0
        %5445 = vmatpush1.xpose.msra.mxu0 %v5414
        %5446 = vmatprep.subr.mxu0 0.0
        %5447 = vmatpush1.xpose.msra.mxu0 %v5412
        %5448 = vmatprep.subr.mxu0 0.0
        %5449 = vmatpush2.xpose.msra.mxu0 0.0
        %5450 = vmatprep.subr.mxu0 0.0
        %5451 = vmatpush2.xpose.msra.mxu0 0.0
        %5452 = vmatprep.subr.mxu0 0.0
        %5453 = vmatpush2.xpose.msra.mxu0 0.0
        %5454 = vmatprep.subr.mxu0 0.0
        %5455 = vmatpush2.xpose.msra.mxu0 0.0
        %5456 = vmatprep.subr.mxu0 0.0
        %5457 = vmatpush2.xpose.msra.mxu0 0.0
        %5458 = vmatprep.subr.mxu0 0.0
        %5459 = vmatpush2.xpose.msra.mxu0 0.0
        %5460 = vmatprep.subr.mxu0 0.0
        %5461 = vmatpush2.xpose.msra.mxu0 0.0
        %5462 = vmatprep.subr.mxu0 0.0
        %5463 = vmatpush2.xpose.msra.mxu0 0.0
        %5464 = vmatprep.subr.mxu0 0.0
        %5465 = vmatpush2.xpose.msra.mxu0 0.0
        %5466 = vmatprep.subr.mxu0 0.0
        %5467 = vmatpush2.xpose.msra.mxu0 0.0
        %5468 = vmatprep.subr.mxu0 0.0
        %5469 = vmatpush2.xpose.msra.mxu0 0.0
        %5470 = vmatprep.subr.mxu0 0.0
        %5471 = vmatpush2.xpose.msra.mxu0 0.0
        %5472 = vmatprep.subr.mxu0 0.0
        %5473 = vmatpush2.xpose.msra.mxu0 0.0
        %5474 = vmatprep.subr.mxu0 0.0
        %5475 = vmatpush2.xpose.msra.mxu0 0.0
        %5476 = vmatprep.subr.mxu0 0.0
        %5477 = vmatpush2.xpose.msra.mxu0 0.0
        %5478 = vmatprep.subr.mxu0 0.0
        %5479 = vmatpush2.xpose.msra.mxu0 0.0
        %5480 = vmatprep.mubr.f32.mxu0 0.0
        %5481 = vmatmul.mubr.f32.gmra.mxu0 %v5408
        %v5482 = vpop.f32.mrf.mxu0
        %v5483 = vadd.f32 0.0, %v5482
        %v5484 = vpop.f32.mrf.mxu0
        %5485 = vmatprep.mubr.f32.mxu0 0.0
        %5486 = vmatmul.mubr.f32.gmra.mxu0 %v5410
        %v5487 = vpop.f32.mrf.mxu0
        %v5488 = vadd.f32 0.0, %v5487
        %v5489 = vpop.f32.mrf.mxu0
        %5490 = vdwg.mxu0
        %v5495 = vcombine.low %v1678, %v1712
        %v5496 = vcombine.low %v1746, %v1780
        %v5501 = vcombine.low %v2958, %v2992
        %v5502 = vcombine.low %v3026, %v3060
        %v5503 = vsel %vm4362, %v5495, 0
        %v5505 = vsel %vm4362, %v5496, 0
        %v5507 = vsel %vm4362, %v5501, 0
        %v5509 = vsel %vm4362, %v5502, 0
        %5511 = vmatprep.subr.mxu0 0.0
        %5512 = vmatpush1.xpose.msra.mxu0 0.0
        %5513 = vmatprep.subr.mxu0 0.0
        %5514 = vmatpush1.xpose.msra.mxu0 0.0
        %5515 = vmatprep.subr.mxu0 0.0
        %5516 = vmatpush1.xpose.msra.mxu0 0.0
        %5517 = vmatprep.subr.mxu0 0.0
        %5518 = vmatpush1.xpose.msra.mxu0 0.0
        %5519 = vmatprep.subr.mxu0 0.0
        %5520 = vmatpush1.xpose.msra.mxu0 0.0
        %5521 = vmatprep.subr.mxu0 0.0
        %5522 = vmatpush1.xpose.msra.mxu0 0.0
        %5523 = vmatprep.subr.mxu0 0.0
        %5524 = vmatpush1.xpose.msra.mxu0 0.0
        %5525 = vmatprep.subr.mxu0 0.0
        %5526 = vmatpush1.xpose.msra.mxu0 0.0
        %5527 = vmatprep.subr.mxu0 0.0
        %5528 = vmatpush1.xpose.msra.mxu0 0.0
        %5529 = vmatprep.subr.mxu0 0.0
        %5530 = vmatpush1.xpose.msra.mxu0 0.0
        %5531 = vmatprep.subr.mxu0 0.0
        %5532 = vmatpush1.xpose.msra.mxu0 0.0
        %5533 = vmatprep.subr.mxu0 0.0
        %5534 = vmatpush1.xpose.msra.mxu0 0.0
        %5535 = vmatprep.subr.mxu0 0.0
        %5536 = vmatpush1.xpose.msra.mxu0 0.0
        %5537 = vmatprep.subr.mxu0 0.0
        %5538 = vmatpush1.xpose.msra.mxu0 0.0
        %5539 = vmatprep.subr.mxu0 0.0
        %5540 = vmatpush1.xpose.msra.mxu0 %v5509
        %5541 = vmatprep.subr.mxu0 0.0
        %5542 = vmatpush1.xpose.msra.mxu0 %v5507
        %5543 = vmatprep.subr.mxu0 0.0
        %5544 = vmatpush2.xpose.msra.mxu0 0.0
        %5545 = vmatprep.subr.mxu0 0.0
        %5546 = vmatpush2.xpose.msra.mxu0 0.0
        %5547 = vmatprep.subr.mxu0 0.0
        %5548 = vmatpush2.xpose.msra.mxu0 0.0
        %5549 = vmatprep.subr.mxu0 0.0
        %5550 = vmatpush2.xpose.msra.mxu0 0.0
        %5551 = vmatprep.subr.mxu0 0.0
        %5552 = vmatpush2.xpose.msra.mxu0 0.0
        %5553 = vmatprep.subr.mxu0 0.0
        %5554 = vmatpush2.xpose.msra.mxu0 0.0
        %5555 = vmatprep.subr.mxu0 0.0
        %5556 = vmatpush2.xpose.msra.mxu0 0.0
        %5557 = vmatprep.subr.mxu0 0.0
        %5558 = vmatpush2.xpose.msra.mxu0 0.0
        %5559 = vmatprep.subr.mxu0 0.0
        %5560 = vmatpush2.xpose.msra.mxu0 0.0
        %5561 = vmatprep.subr.mxu0 0.0
        %5562 = vmatpush2.xpose.msra.mxu0 0.0
        %5563 = vmatprep.subr.mxu0 0.0
        %5564 = vmatpush2.xpose.msra.mxu0 0.0
        %5565 = vmatprep.subr.mxu0 0.0
        %5566 = vmatpush2.xpose.msra.mxu0 0.0
        %5567 = vmatprep.subr.mxu0 0.0
        %5568 = vmatpush2.xpose.msra.mxu0 0.0
        %5569 = vmatprep.subr.mxu0 0.0
        %5570 = vmatpush2.xpose.msra.mxu0 0.0
        %5571 = vmatprep.subr.mxu0 0.0
        %5572 = vmatpush2.xpose.msra.mxu0 0.0
        %5573 = vmatprep.subr.mxu0 0.0
        %5574 = vmatpush2.xpose.msra.mxu0 0.0
        %5575 = vmatprep.mubr.f32.mxu0 0.0
        %5576 = vmatmul.mubr.f32.gmra.mxu0 %v5503
        %v5577 = vpop.f32.mrf.mxu0
        %v5578 = vadd.f32 0.0, %v5577
        %v5579 = vpop.f32.mrf.mxu0
        %5580 = vmatprep.mubr.f32.mxu0 0.0
        %5581 = vmatmul.mubr.f32.gmra.mxu0 %v5505
        %v5582 = vpop.f32.mrf.mxu0
        %v5583 = vadd.f32 0.0, %v5582
        %v5584 = vpop.f32.mrf.mxu0
        %5585 = vdwg.mxu0
        %v5590 = vcombine.low %v1686, %v1720
        %v5591 = vcombine.low %v1754, %v1788
        %v5596 = vcombine.low %v2966, %v3000
        %v5597 = vcombine.low %v3034, %v3068
        %v5598 = vsel %vm4362, %v5590, 0
        %v5600 = vsel %vm4362, %v5591, 0
        %v5602 = vsel %vm4362, %v5596, 0
        %v5604 = vsel %vm4362, %v5597, 0
        %5606 = vmatprep.subr.mxu0 0.0
        %5607 = vmatpush1.xpose.msra.mxu0 0.0
        %5608 = vmatprep.subr.mxu0 0.0
        %5609 = vmatpush1.xpose.msra.mxu0 0.0
        %5610 = vmatprep.subr.mxu0 0.0
        %5611 = vmatpush1.xpose.msra.mxu0 0.0
        %5612 = vmatprep.subr.mxu0 0.0
        %5613 = vmatpush1.xpose.msra.mxu0 0.0
        %5614 = vmatprep.subr.mxu0 0.0
        %5615 = vmatpush1.xpose.msra.mxu0 0.0
        %5616 = vmatprep.subr.mxu0 0.0
        %5617 = vmatpush1.xpose.msra.mxu0 0.0
        %5618 = vmatprep.subr.mxu0 0.0
        %5619 = vmatpush1.xpose.msra.mxu0 0.0
        %5620 = vmatprep.subr.mxu0 0.0
        %5621 = vmatpush1.xpose.msra.mxu0 0.0
        %5622 = vmatprep.subr.mxu0 0.0
        %5623 = vmatpush1.xpose.msra.mxu0 0.0
        %5624 = vmatprep.subr.mxu0 0.0
        %5625 = vmatpush1.xpose.msra.mxu0 0.0
        %5626 = vmatprep.subr.mxu0 0.0
        %5627 = vmatpush1.xpose.msra.mxu0 0.0
        %5628 = vmatprep.subr.mxu0 0.0
        %5629 = vmatpush1.xpose.msra.mxu0 0.0
        %5630 = vmatprep.subr.mxu0 0.0
        %5631 = vmatpush1.xpose.msra.mxu0 0.0
        %5632 = vmatprep.subr.mxu0 0.0
        %5633 = vmatpush1.xpose.msra.mxu0 0.0
        %5634 = vmatprep.subr.mxu0 0.0
        %5635 = vmatpush1.xpose.msra.mxu0 %v5604
        %5636 = vmatprep.subr.mxu0 0.0
        %5637 = vmatpush1.xpose.msra.mxu0 %v5602
        %5638 = vmatprep.subr.mxu0 0.0
        %5639 = vmatpush2.xpose.msra.mxu0 0.0
        %5640 = vmatprep.subr.mxu0 0.0
        %5641 = vmatpush2.xpose.msra.mxu0 0.0
        %5642 = vmatprep.subr.mxu0 0.0
        %5643 = vmatpush2.xpose.msra.mxu0 0.0
        %5644 = vmatprep.subr.mxu0 0.0
        %5645 = vmatpush2.xpose.msra.mxu0 0.0
        %5646 = vmatprep.subr.mxu0 0.0
        %5647 = vmatpush2.xpose.msra.mxu0 0.0
        %5648 = vmatprep.subr.mxu0 0.0
        %5649 = vmatpush2.xpose.msra.mxu0 0.0
        %5650 = vmatprep.subr.mxu0 0.0
        %5651 = vmatpush2.xpose.msra.mxu0 0.0
        %5652 = vmatprep.subr.mxu0 0.0
        %5653 = vmatpush2.xpose.msra.mxu0 0.0
        %5654 = vmatprep.subr.mxu0 0.0
        %5655 = vmatpush2.xpose.msra.mxu0 0.0
        %5656 = vmatprep.subr.mxu0 0.0
        %5657 = vmatpush2.xpose.msra.mxu0 0.0
        %5658 = vmatprep.subr.mxu0 0.0
        %5659 = vmatpush2.xpose.msra.mxu0 0.0
        %5660 = vmatprep.subr.mxu0 0.0
        %5661 = vmatpush2.xpose.msra.mxu0 0.0
        %5662 = vmatprep.subr.mxu0 0.0
        %5663 = vmatpush2.xpose.msra.mxu0 0.0
        %5664 = vmatprep.subr.mxu0 0.0
        %5665 = vmatpush2.xpose.msra.mxu0 0.0
        %5666 = vmatprep.subr.mxu0 0.0
        %5667 = vmatpush2.xpose.msra.mxu0 0.0
        %5668 = vmatprep.subr.mxu0 0.0
        %5669 = vmatpush2.xpose.msra.mxu0 0.0
        %5670 = vmatprep.mubr.f32.mxu0 0.0
        %5671 = vmatmul.mubr.f32.gmra.mxu0 %v5598
        %v5672 = vpop.f32.mrf.mxu0
        %v5673 = vadd.f32 0.0, %v5672
        %v5674 = vpop.f32.mrf.mxu0
        %5675 = vmatprep.mubr.f32.mxu0 0.0
        %5676 = vmatmul.mubr.f32.gmra.mxu0 %v5600
        %v5677 = vpop.f32.mrf.mxu0
        %v5678 = vadd.f32 0.0, %v5677
        %v5679 = vpop.f32.mrf.mxu0
        %5680 = vdwg.mxu0
        %v5685 = vcombine.low %v1685, %v1719
        %v5686 = vcombine.low %v1753, %v1787
        %v5691 = vcombine.low %v2965, %v2999
        %v5692 = vcombine.low %v3033, %v3067
        %v5693 = vsel %vm4362, %v5685, 0
        %v5695 = vsel %vm4362, %v5686, 0
        %v5697 = vsel %vm4362, %v5691, 0
        %v5699 = vsel %vm4362, %v5692, 0
        %5701 = vmatprep.subr.mxu0 0.0
        %5702 = vmatpush1.xpose.msra.mxu0 0.0
        %5703 = vmatprep.subr.mxu0 0.0
        %5704 = vmatpush1.xpose.msra.mxu0 0.0
        %5705 = vmatprep.subr.mxu0 0.0
        %5706 = vmatpush1.xpose.msra.mxu0 0.0
        %5707 = vmatprep.subr.mxu0 0.0
        %5708 = vmatpush1.xpose.msra.mxu0 0.0
        %5709 = vmatprep.subr.mxu0 0.0
        %5710 = vmatpush1.xpose.msra.mxu0 0.0
        %5711 = vmatprep.subr.mxu0 0.0
        %5712 = vmatpush1.xpose.msra.mxu0 0.0
        %5713 = vmatprep.subr.mxu0 0.0
        %5714 = vmatpush1.xpose.msra.mxu0 0.0
        %5715 = vmatprep.subr.mxu0 0.0
        %5716 = vmatpush1.xpose.msra.mxu0 0.0
        %5717 = vmatprep.subr.mxu0 0.0
        %5718 = vmatpush1.xpose.msra.mxu0 0.0
        %5719 = vmatprep.subr.mxu0 0.0
        %5720 = vmatpush1.xpose.msra.mxu0 0.0
        %5721 = vmatprep.subr.mxu0 0.0
        %5722 = vmatpush1.xpose.msra.mxu0 0.0
        %5723 = vmatprep.subr.mxu0 0.0
        %5724 = vmatpush1.xpose.msra.mxu0 0.0
        %5725 = vmatprep.subr.mxu0 0.0
        %5726 = vmatpush1.xpose.msra.mxu0 0.0
        %5727 = vmatprep.subr.mxu0 0.0
        %5728 = vmatpush1.xpose.msra.mxu0 0.0
        %5729 = vmatprep.subr.mxu0 0.0
        %5730 = vmatpush1.xpose.msra.mxu0 %v5699
        %5731 = vmatprep.subr.mxu0 0.0
        %5732 = vmatpush1.xpose.msra.mxu0 %v5697
        %5733 = vmatprep.subr.mxu0 0.0
        %5734 = vmatpush2.xpose.msra.mxu0 0.0
        %5735 = vmatprep.subr.mxu0 0.0
        %5736 = vmatpush2.xpose.msra.mxu0 0.0
        %5737 = vmatprep.subr.mxu0 0.0
        %5738 = vmatpush2.xpose.msra.mxu0 0.0
        %5739 = vmatprep.subr.mxu0 0.0
        %5740 = vmatpush2.xpose.msra.mxu0 0.0
        %5741 = vmatprep.subr.mxu0 0.0
        %5742 = vmatpush2.xpose.msra.mxu0 0.0
        %5743 = vmatprep.subr.mxu0 0.0
        %5744 = vmatpush2.xpose.msra.mxu0 0.0
        %5745 = vmatprep.subr.mxu0 0.0
        %5746 = vmatpush2.xpose.msra.mxu0 0.0
        %5747 = vmatprep.subr.mxu0 0.0
        %5748 = vmatpush2.xpose.msra.mxu0 0.0
        %5749 = vmatprep.subr.mxu0 0.0
        %5750 = vmatpush2.xpose.msra.mxu0 0.0
        %5751 = vmatprep.subr.mxu0 0.0
        %5752 = vmatpush2.xpose.msra.mxu0 0.0
        %5753 = vmatprep.subr.mxu0 0.0
        %5754 = vmatpush2.xpose.msra.mxu0 0.0
        %5755 = vmatprep.subr.mxu0 0.0
        %5756 = vmatpush2.xpose.msra.mxu0 0.0
        %5757 = vmatprep.subr.mxu0 0.0
        %5758 = vmatpush2.xpose.msra.mxu0 0.0
        %5759 = vmatprep.subr.mxu0 0.0
        %5760 = vmatpush2.xpose.msra.mxu0 0.0
        %5761 = vmatprep.subr.mxu0 0.0
        %5762 = vmatpush2.xpose.msra.mxu0 0.0
        %5763 = vmatprep.subr.mxu0 0.0
        %5764 = vmatpush2.xpose.msra.mxu0 0.0
        %5765 = vmatprep.mubr.f32.mxu0 0.0
        %5766 = vmatmul.mubr.f32.gmra.mxu0 %v5693
        %v5767 = vpop.f32.mrf.mxu0
        %v5768 = vadd.f32 0.0, %v5767
        %v5769 = vpop.f32.mrf.mxu0
        %5770 = vmatprep.mubr.f32.mxu0 0.0
        %5771 = vmatmul.mubr.f32.gmra.mxu0 %v5695
        %v5772 = vpop.f32.mrf.mxu0
        %v5773 = vadd.f32 0.0, %v5772
        %v5774 = vpop.f32.mrf.mxu0
        %5775 = vdwg.mxu0
        %v5780 = vcombine.low %v1687, %v1721
        %v5781 = vcombine.low %v1755, %v1789
        %v5786 = vcombine.low %v2967, %v3001
        %v5787 = vcombine.low %v3035, %v3069
        %v5788 = vsel %vm4362, %v5780, 0
        %v5790 = vsel %vm4362, %v5781, 0
        %v5792 = vsel %vm4362, %v5786, 0
        %v5794 = vsel %vm4362, %v5787, 0
        %5796 = vmatprep.subr.mxu0 0.0
        %5797 = vmatpush1.xpose.msra.mxu0 0.0
        %5798 = vmatprep.subr.mxu0 0.0
        %5799 = vmatpush1.xpose.msra.mxu0 0.0
        %5800 = vmatprep.subr.mxu0 0.0
        %5801 = vmatpush1.xpose.msra.mxu0 0.0
        %5802 = vmatprep.subr.mxu0 0.0
        %5803 = vmatpush1.xpose.msra.mxu0 0.0
        %5804 = vmatprep.subr.mxu0 0.0
        %5805 = vmatpush1.xpose.msra.mxu0 0.0
        %5806 = vmatprep.subr.mxu0 0.0
        %5807 = vmatpush1.xpose.msra.mxu0 0.0
        %5808 = vmatprep.subr.mxu0 0.0
        %5809 = vmatpush1.xpose.msra.mxu0 0.0
        %5810 = vmatprep.subr.mxu0 0.0
        %5811 = vmatpush1.xpose.msra.mxu0 0.0
        %5812 = vmatprep.subr.mxu0 0.0
        %5813 = vmatpush1.xpose.msra.mxu0 0.0
        %5814 = vmatprep.subr.mxu0 0.0
        %5815 = vmatpush1.xpose.msra.mxu0 0.0
        %5816 = vmatprep.subr.mxu0 0.0
        %5817 = vmatpush1.xpose.msra.mxu0 0.0
        %5818 = vmatprep.subr.mxu0 0.0
        %5819 = vmatpush1.xpose.msra.mxu0 0.0
        %5820 = vmatprep.subr.mxu0 0.0
        %5821 = vmatpush1.xpose.msra.mxu0 0.0
        %5822 = vmatprep.subr.mxu0 0.0
        %5823 = vmatpush1.xpose.msra.mxu0 0.0
        %5824 = vmatprep.subr.mxu0 0.0
        %5825 = vmatpush1.xpose.msra.mxu0 %v5794
        %5826 = vmatprep.subr.mxu0 0.0
        %5827 = vmatpush1.xpose.msra.mxu0 %v5792
        %5828 = vmatprep.subr.mxu0 0.0
        %5829 = vmatpush2.xpose.msra.mxu0 0.0
        %5830 = vmatprep.subr.mxu0 0.0
        %5831 = vmatpush2.xpose.msra.mxu0 0.0
        %5832 = vmatprep.subr.mxu0 0.0
        %5833 = vmatpush2.xpose.msra.mxu0 0.0
        %5834 = vmatprep.subr.mxu0 0.0
        %5835 = vmatpush2.xpose.msra.mxu0 0.0
        %5836 = vmatprep.subr.mxu0 0.0
        %5837 = vmatpush2.xpose.msra.mxu0 0.0
        %5838 = vmatprep.subr.mxu0 0.0
        %5839 = vmatpush2.xpose.msra.mxu0 0.0
        %5840 = vmatprep.subr.mxu0 0.0
        %5841 = vmatpush2.xpose.msra.mxu0 0.0
        %5842 = vmatprep.subr.mxu0 0.0
        %5843 = vmatpush2.xpose.msra.mxu0 0.0
        %5844 = vmatprep.subr.mxu0 0.0
        %5845 = vmatpush2.xpose.msra.mxu0 0.0
        %5846 = vmatprep.subr.mxu0 0.0
        %5847 = vmatpush2.xpose.msra.mxu0 0.0
        %5848 = vmatprep.subr.mxu0 0.0
        %5849 = vmatpush2.xpose.msra.mxu0 0.0
        %5850 = vmatprep.subr.mxu0 0.0
        %5851 = vmatpush2.xpose.msra.mxu0 0.0
        %5852 = vmatprep.subr.mxu0 0.0
        %5853 = vmatpush2.xpose.msra.mxu0 0.0
        %5854 = vmatprep.subr.mxu0 0.0
        %5855 = vmatpush2.xpose.msra.mxu0 0.0
        %5856 = vmatprep.subr.mxu0 0.0
        %5857 = vmatpush2.xpose.msra.mxu0 0.0
        %5858 = vmatprep.subr.mxu0 0.0
        %5859 = vmatpush2.xpose.msra.mxu0 0.0
        %5860 = vmatprep.mubr.f32.mxu0 0.0
        %5861 = vmatmul.mubr.f32.gmra.mxu0 %v5788
        %v5862 = vpop.f32.mrf.mxu0
        %v5863 = vadd.f32 0.0, %v5862
        %v5864 = vpop.f32.mrf.mxu0
        %5865 = vmatprep.mubr.f32.mxu0 0.0
        %5866 = vmatmul.mubr.f32.gmra.mxu0 %v5790
        %v5867 = vpop.f32.mrf.mxu0
        %v5868 = vadd.f32 0.0, %v5867
        %v5869 = vpop.f32.mrf.mxu0
        %5870 = vdwg.mxu0
        %v5871 = vld [vmem:[#allocation8] sm:$0xff]
        %v5872 = vld [vmem:[#allocation8 + $0x8] sm:$0xff]
        %v5873 = vld [vmem:[#allocation8 + $0x10] sm:$0xff]
        %v5874 = vld [vmem:[#allocation8 + $0x18] sm:$0xff]
        %v5875 = vld [vmem:[#allocation8 + $0x20] sm:$0xff]
        %v5876 = vld [vmem:[#allocation8 + $0x28] sm:$0xff]
        %v5877 = vld [vmem:[#allocation8 + $0x30] sm:$0xff]
        %v5878 = vld [vmem:[#allocation8 + $0x38] sm:$0xff]
        %v5879 = vadd.f32 %v4438, %v5871
        %v5880 = vadd.f32 %v4443, %v5872
        %v5881 = vadd.f32 %v4533, %v5873
        %v5882 = vadd.f32 %v4538, %v5874
        %v5883 = vadd.f32 %v4628, %v5875
        %v5884 = vadd.f32 %v4633, %v5876
        %v5885 = vadd.f32 %v4723, %v5877
        %v5886 = vadd.f32 %v4728, %v5878
        %v5887 = vadd.f32 %v4818, %v5871
        %v5888 = vadd.f32 %v4823, %v5872
        %v5889 = vadd.f32 %v4913, %v5873
        %v5890 = vadd.f32 %v4918, %v5874
        %v5891 = vadd.f32 %v5008, %v5875
        %v5892 = vadd.f32 %v5013, %v5876
        %v5893 = vadd.f32 %v5103, %v5877
        %v5894 = vadd.f32 %v5108, %v5878
        %v5895 = vadd.f32 %v5198, %v5871
        %v5896 = vadd.f32 %v5203, %v5872
        %v5897 = vadd.f32 %v5293, %v5873
        %v5898 = vadd.f32 %v5298, %v5874
        %v5899 = vadd.f32 %v5388, %v5875
        %v5900 = vadd.f32 %v5393, %v5876
        %v5901 = vadd.f32 %v5483, %v5877
        %v5902 = vadd.f32 %v5488, %v5878
        %v5903 = vadd.f32 %v5578, %v5871
        %v5904 = vadd.f32 %v5583, %v5872
        %v5905 = vadd.f32 %v5673, %v5873
        %v5906 = vadd.f32 %v5678, %v5874
        %v5907 = vadd.f32 %v5768, %v5875
        %v5908 = vadd.f32 %v5773, %v5876
        %v5909 = vadd.f32 %v5863, %v5877
        %v5910 = vadd.f32 %v5868, %v5878
        %v5911 = vld [vmem:[#allocation10] sm:$0xff]
        %v5912 = vld [vmem:[#allocation10 + $0x8] sm:$0xff]
        %v5913 = vld [vmem:[#allocation10 + $0x10] sm:$0xff]
        %v5914 = vld [vmem:[#allocation10 + $0x18] sm:$0xff]
        %v5915 = vld [vmem:[#allocation10 + $0x20] sm:$0xff]
        %v5916 = vld [vmem:[#allocation10 + $0x28] sm:$0xff]
        %v5917 = vld [vmem:[#allocation10 + $0x30] sm:$0xff]
        %v5918 = vld [vmem:[#allocation10 + $0x38] sm:$0xff]
        %v5919 = vadd.f32 %v5879, %v5911
        %v5920 = vadd.f32 %v5880, %v5912
        %v5921 = vadd.f32 %v5881, %v5911
        %v5922 = vadd.f32 %v5882, %v5912
        %v5923 = vadd.f32 %v5883, %v5911
        %v5924 = vadd.f32 %v5884, %v5912
        %v5925 = vadd.f32 %v5885, %v5911
        %v5926 = vadd.f32 %v5886, %v5912
        %v5927 = vadd.f32 %v5887, %v5913
        %v5928 = vadd.f32 %v5888, %v5914
        %v5929 = vadd.f32 %v5889, %v5913
        %v5930 = vadd.f32 %v5890, %v5914
        %v5931 = vadd.f32 %v5891, %v5913
        %v5932 = vadd.f32 %v5892, %v5914
        %v5933 = vadd.f32 %v5893, %v5913
        %v5934 = vadd.f32 %v5894, %v5914
        %v5935 = vadd.f32 %v5895, %v5915
        %v5936 = vadd.f32 %v5896, %v5916
        %v5937 = vadd.f32 %v5897, %v5915
        %v5938 = vadd.f32 %v5898, %v5916
        %v5939 = vadd.f32 %v5899, %v5915
        %v5940 = vadd.f32 %v5900, %v5916
        %v5941 = vadd.f32 %v5901, %v5915
        %v5942 = vadd.f32 %v5902, %v5916
        %v5943 = vadd.f32 %v5903, %v5917
        %v5944 = vadd.f32 %v5904, %v5918
        %v5945 = vadd.f32 %v5905, %v5917
        %v5946 = vadd.f32 %v5906, %v5918
        %v5947 = vadd.f32 %v5907, %v5917
        %v5948 = vadd.f32 %v5908, %v5918
        %v5949 = vadd.f32 %v5909, %v5917
        %v5950 = vadd.f32 %v5910, %v5918
        %vm5951 = vcmask 130048
        %v5952 = vsel %vm5951, %v5919, -inf
        %5953 = vmax.xlane.f32.xlu0 %v5952
        %v5954 = vpop.xlane.xlu0 %5953
        %v5955 = vsel %vm5951, %v5920, -inf
        %5956 = vmax.xlane.f32.xlu0 %v5955
        %v5957 = vpop.xlane.xlu0 %5956
        %v5958 = vsel %vm5951, %v5921, -inf
        %5959 = vmax.xlane.f32.xlu0 %v5958
        %v5960 = vpop.xlane.xlu0 %5959
        %v5961 = vsel %vm5951, %v5922, -inf
        %5962 = vmax.xlane.f32.xlu0 %v5961
        %v5963 = vpop.xlane.xlu0 %5962
        %v5964 = vsel %vm5951, %v5923, -inf
        %5965 = vmax.xlane.f32.xlu0 %v5964
        %v5966 = vpop.xlane.xlu0 %5965
        %v5967 = vsel %vm5951, %v5924, -inf
        %5968 = vmax.xlane.f32.xlu0 %v5967
        %v5969 = vpop.xlane.xlu0 %5968
        %v5970 = vsel %vm5951, %v5925, -inf
        %5971 = vmax.xlane.f32.xlu0 %v5970
        %v5972 = vpop.xlane.xlu0 %5971
        %v5973 = vsel %vm5951, %v5926, -inf
        %5974 = vmax.xlane.f32.xlu0 %v5973
        %v5975 = vpop.xlane.xlu0 %5974
        %v5976 = vsel %vm5951, %v5927, -inf
        %5977 = vmax.xlane.f32.xlu0 %v5976
        %v5978 = vpop.xlane.xlu0 %5977
        %v5979 = vsel %vm5951, %v5928, -inf
        %5980 = vmax.xlane.f32.xlu0 %v5979
        %v5981 = vpop.xlane.xlu0 %5980
        %v5982 = vsel %vm5951, %v5929, -inf
        %5983 = vmax.xlane.f32.xlu0 %v5982
        %v5984 = vpop.xlane.xlu0 %5983
        %v5985 = vsel %vm5951, %v5930, -inf
        %5986 = vmax.xlane.f32.xlu0 %v5985
        %v5987 = vpop.xlane.xlu0 %5986
        %v5988 = vsel %vm5951, %v5931, -inf
        %5989 = vmax.xlane.f32.xlu0 %v5988
        %v5990 = vpop.xlane.xlu0 %5989
        %v5991 = vsel %vm5951, %v5932, -inf
        %5992 = vmax.xlane.f32.xlu0 %v5991
        %v5993 = vpop.xlane.xlu0 %5992
        %v5994 = vsel %vm5951, %v5933, -inf
        %5995 = vmax.xlane.f32.xlu0 %v5994
        %v5996 = vpop.xlane.xlu0 %5995
        %v5997 = vsel %vm5951, %v5934, -inf
        %5998 = vmax.xlane.f32.xlu0 %v5997
        %v5999 = vpop.xlane.xlu0 %5998
        %v6000 = vsel %vm5951, %v5935, -inf
        %6001 = vmax.xlane.f32.xlu0 %v6000
        %v6002 = vpop.xlane.xlu0 %6001
        %v6003 = vsel %vm5951, %v5936, -inf
        %6004 = vmax.xlane.f32.xlu0 %v6003
        %v6005 = vpop.xlane.xlu0 %6004
        %v6006 = vsel %vm5951, %v5937, -inf
        %6007 = vmax.xlane.f32.xlu0 %v6006
        %v6008 = vpop.xlane.xlu0 %6007
        %v6009 = vsel %vm5951, %v5938, -inf
        %6010 = vmax.xlane.f32.xlu0 %v6009
        %v6011 = vpop.xlane.xlu0 %6010
        %v6012 = vsel %vm5951, %v5939, -inf
        %6013 = vmax.xlane.f32.xlu0 %v6012
        %v6014 = vpop.xlane.xlu0 %6013
        %v6015 = vsel %vm5951, %v5940, -inf
        %6016 = vmax.xlane.f32.xlu0 %v6015
        %v6017 = vpop.xlane.xlu0 %6016
        %v6018 = vsel %vm5951, %v5941, -inf
        %6019 = vmax.xlane.f32.xlu0 %v6018
        %v6020 = vpop.xlane.xlu0 %6019
        %v6021 = vsel %vm5951, %v5942, -inf
        %6022 = vmax.xlane.f32.xlu0 %v6021
        %v6023 = vpop.xlane.xlu0 %6022
        %v6024 = vsel %vm5951, %v5943, -inf
        %6025 = vmax.xlane.f32.xlu0 %v6024
        %v6026 = vpop.xlane.xlu0 %6025
        %v6027 = vsel %vm5951, %v5944, -inf
        %6028 = vmax.xlane.f32.xlu0 %v6027
        %v6029 = vpop.xlane.xlu0 %6028
        %v6030 = vsel %vm5951, %v5945, -inf
        %6031 = vmax.xlane.f32.xlu0 %v6030
        %v6032 = vpop.xlane.xlu0 %6031
        %v6033 = vsel %vm5951, %v5946, -inf
        %6034 = vmax.xlane.f32.xlu0 %v6033
        %v6035 = vpop.xlane.xlu0 %6034
        %v6036 = vsel %vm5951, %v5947, -inf
        %6037 = vmax.xlane.f32.xlu0 %v6036
        %v6038 = vpop.xlane.xlu0 %6037
        %v6039 = vsel %vm5951, %v5948, -inf
        %6040 = vmax.xlane.f32.xlu0 %v6039
        %v6041 = vpop.xlane.xlu0 %6040
        %v6042 = vsel %vm5951, %v5949, -inf
        %6043 = vmax.xlane.f32.xlu0 %v6042
        %v6044 = vpop.xlane.xlu0 %6043
        %v6045 = vsel %vm5951, %v5950, -inf
        %6046 = vmax.xlane.f32.xlu0 %v6045
        %v6047 = vpop.xlane.xlu0 %6046
        %v6048 = vsub.f32 %v5919, %v5954
        %v6049 = vsub.f32 %v5920, %v5957
        %v6050 = vsub.f32 %v5921, %v5960
        %v6051 = vsub.f32 %v5922, %v5963
        %v6052 = vsub.f32 %v5923, %v5966
        %v6053 = vsub.f32 %v5924, %v5969
        %v6054 = vsub.f32 %v5925, %v5972
        %v6055 = vsub.f32 %v5926, %v5975
        %v6056 = vsub.f32 %v5927, %v5978
        %v6057 = vsub.f32 %v5928, %v5981
        %v6058 = vsub.f32 %v5929, %v5984
        %v6059 = vsub.f32 %v5930, %v5987
        %v6060 = vsub.f32 %v5931, %v5990
        %v6061 = vsub.f32 %v5932, %v5993
        %v6062 = vsub.f32 %v5933, %v5996
        %v6063 = vsub.f32 %v5934, %v5999
        %v6064 = vsub.f32 %v5935, %v6002
        %v6065 = vsub.f32 %v5936, %v6005
        %v6066 = vsub.f32 %v5937, %v6008
        %v6067 = vsub.f32 %v5938, %v6011
        %v6068 = vsub.f32 %v5939, %v6014
        %v6069 = vsub.f32 %v5940, %v6017
        %v6070 = vsub.f32 %v5941, %v6020
        %v6071 = vsub.f32 %v5942, %v6023
        %v6072 = vsub.f32 %v5943, %v6026
        %v6073 = vsub.f32 %v5944, %v6029
        %v6074 = vsub.f32 %v5945, %v6032
        %v6075 = vsub.f32 %v5946, %v6035
        %v6076 = vsub.f32 %v5947, %v6038
        %v6077 = vsub.f32 %v5948, %v6041
        %v6078 = vsub.f32 %v5949, %v6044
        %v6079 = vsub.f32 %v5950, %v6047
        %v6080 = vmul.f32 %v6048, 1.442695
        %v6081 = vpow.pop %v6080
        %v6082 = vmul.f32 %v6049, 1.442695
        %v6083 = vpow.pop %v6082
        %v6084 = vmul.f32 %v6050, 1.442695
        %v6085 = vpow.pop %v6084
        %v6086 = vmul.f32 %v6051, 1.442695
        %v6087 = vpow.pop %v6086
        %v6088 = vmul.f32 %v6052, 1.442695
        %v6089 = vpow.pop %v6088
        %v6090 = vmul.f32 %v6053, 1.442695
        %v6091 = vpow.pop %v6090
        %v6092 = vmul.f32 %v6054, 1.442695
        %v6093 = vpow.pop %v6092
        %v6094 = vmul.f32 %v6055, 1.442695
        %v6095 = vpow.pop %v6094
        %v6096 = vmul.f32 %v6056, 1.442695
        %v6097 = vpow.pop %v6096
        %v6098 = vmul.f32 %v6057, 1.442695
        %v6099 = vpow.pop %v6098
        %v6100 = vmul.f32 %v6058, 1.442695
        %v6101 = vpow.pop %v6100
        %v6102 = vmul.f32 %v6059, 1.442695
        %v6103 = vpow.pop %v6102
        %v6104 = vmul.f32 %v6060, 1.442695
        %v6105 = vpow.pop %v6104
        %v6106 = vmul.f32 %v6061, 1.442695
        %v6107 = vpow.pop %v6106
        %v6108 = vmul.f32 %v6062, 1.442695
        %v6109 = vpow.pop %v6108
        %v6110 = vmul.f32 %v6063, 1.442695
        %v6111 = vpow.pop %v6110
        %v6112 = vmul.f32 %v6064, 1.442695
        %v6113 = vpow.pop %v6112
        %v6114 = vmul.f32 %v6065, 1.442695
        %v6115 = vpow.pop %v6114
        %v6116 = vmul.f32 %v6066, 1.442695
        %v6117 = vpow.pop %v6116
        %v6118 = vmul.f32 %v6067, 1.442695
        %v6119 = vpow.pop %v6118
        %v6120 = vmul.f32 %v6068, 1.442695
        %v6121 = vpow.pop %v6120
        %v6122 = vmul.f32 %v6069, 1.442695
        %v6123 = vpow.pop %v6122
        %v6124 = vmul.f32 %v6070, 1.442695
        %v6125 = vpow.pop %v6124
        %v6126 = vmul.f32 %v6071, 1.442695
        %v6127 = vpow.pop %v6126
        %v6128 = vmul.f32 %v6072, 1.442695
        %v6129 = vpow.pop %v6128
        %v6130 = vmul.f32 %v6073, 1.442695
        %v6131 = vpow.pop %v6130
        %v6132 = vmul.f32 %v6074, 1.442695
        %v6133 = vpow.pop %v6132
        %v6134 = vmul.f32 %v6075, 1.442695
        %v6135 = vpow.pop %v6134
        %v6136 = vmul.f32 %v6076, 1.442695
        %v6137 = vpow.pop %v6136
        %v6138 = vmul.f32 %v6077, 1.442695
        %v6139 = vpow.pop %v6138
        %v6140 = vmul.f32 %v6078, 1.442695
        %v6141 = vpow.pop %v6140
        %v6142 = vmul.f32 %v6079, 1.442695
        %v6143 = vpow.pop %v6142
        %v6144 = vsel %vm5951, %v6081, 0.0
        %6145 = vadd.xlane.f32.xlu0 %v6144
        %v6146 = vpop.xlane.xlu0 %6145
        %v6147 = vsel %vm5951, %v6083, 0.0
        %6148 = vadd.xlane.f32.xlu0 %v6147
        %v6149 = vpop.xlane.xlu0 %6148
        %v6150 = vsel %vm5951, %v6085, 0.0
        %6151 = vadd.xlane.f32.xlu0 %v6150
        %v6152 = vpop.xlane.xlu0 %6151
        %v6153 = vsel %vm5951, %v6087, 0.0
        %6154 = vadd.xlane.f32.xlu0 %v6153
        %v6155 = vpop.xlane.xlu0 %6154
        %v6156 = vsel %vm5951, %v6089, 0.0
        %6157 = vadd.xlane.f32.xlu0 %v6156
        %v6158 = vpop.xlane.xlu0 %6157
        %v6159 = vsel %vm5951, %v6091, 0.0
        %6160 = vadd.xlane.f32.xlu0 %v6159
        %v6161 = vpop.xlane.xlu0 %6160
        %v6162 = vsel %vm5951, %v6093, 0.0
        %6163 = vadd.xlane.f32.xlu0 %v6162
        %v6164 = vpop.xlane.xlu0 %6163
        %v6165 = vsel %vm5951, %v6095, 0.0
        %6166 = vadd.xlane.f32.xlu0 %v6165
        %v6167 = vpop.xlane.xlu0 %6166
        %v6168 = vsel %vm5951, %v6097, 0.0
        %6169 = vadd.xlane.f32.xlu0 %v6168
        %v6170 = vpop.xlane.xlu0 %6169
        %v6171 = vsel %vm5951, %v6099, 0.0
        %6172 = vadd.xlane.f32.xlu0 %v6171
        %v6173 = vpop.xlane.xlu0 %6172
        %v6174 = vsel %vm5951, %v6101, 0.0
        %6175 = vadd.xlane.f32.xlu0 %v6174
        %v6176 = vpop.xlane.xlu0 %6175
        %v6177 = vsel %vm5951, %v6103, 0.0
        %6178 = vadd.xlane.f32.xlu0 %v6177
        %v6179 = vpop.xlane.xlu0 %6178
        %v6180 = vsel %vm5951, %v6105, 0.0
        %6181 = vadd.xlane.f32.xlu0 %v6180
        %v6182 = vpop.xlane.xlu0 %6181
        %v6183 = vsel %vm5951, %v6107, 0.0
        %6184 = vadd.xlane.f32.xlu0 %v6183
        %v6185 = vpop.xlane.xlu0 %6184
        %v6186 = vsel %vm5951, %v6109, 0.0
        %6187 = vadd.xlane.f32.xlu0 %v6186
        %v6188 = vpop.xlane.xlu0 %6187
        %v6189 = vsel %vm5951, %v6111, 0.0
        %6190 = vadd.xlane.f32.xlu0 %v6189
        %v6191 = vpop.xlane.xlu0 %6190
        %v6192 = vsel %vm5951, %v6113, 0.0
        %6193 = vadd.xlane.f32.xlu0 %v6192
        %v6194 = vpop.xlane.xlu0 %6193
        %v6195 = vsel %vm5951, %v6115, 0.0
        %6196 = vadd.xlane.f32.xlu0 %v6195
        %v6197 = vpop.xlane.xlu0 %6196
        %v6198 = vsel %vm5951, %v6117, 0.0
        %6199 = vadd.xlane.f32.xlu0 %v6198
        %v6200 = vpop.xlane.xlu0 %6199
        %v6201 = vsel %vm5951, %v6119, 0.0
        %6202 = vadd.xlane.f32.xlu0 %v6201
        %v6203 = vpop.xlane.xlu0 %6202
        %v6204 = vsel %vm5951, %v6121, 0.0
        %6205 = vadd.xlane.f32.xlu0 %v6204
        %v6206 = vpop.xlane.xlu0 %6205
        %v6207 = vsel %vm5951, %v6123, 0.0
        %6208 = vadd.xlane.f32.xlu0 %v6207
        %v6209 = vpop.xlane.xlu0 %6208
        %v6210 = vsel %vm5951, %v6125, 0.0
        %6211 = vadd.xlane.f32.xlu0 %v6210
        %v6212 = vpop.xlane.xlu0 %6211
        %v6213 = vsel %vm5951, %v6127, 0.0
        %6214 = vadd.xlane.f32.xlu0 %v6213
        %v6215 = vpop.xlane.xlu0 %6214
        %v6216 = vsel %vm5951, %v6129, 0.0
        %6217 = vadd.xlane.f32.xlu0 %v6216
        %v6218 = vpop.xlane.xlu0 %6217
        %v6219 = vsel %vm5951, %v6131, 0.0
        %6220 = vadd.xlane.f32.xlu0 %v6219
        %v6221 = vpop.xlane.xlu0 %6220
        %v6222 = vsel %vm5951, %v6133, 0.0
        %6223 = vadd.xlane.f32.xlu0 %v6222
        %v6224 = vpop.xlane.xlu0 %6223
        %v6225 = vsel %vm5951, %v6135, 0.0
        %6226 = vadd.xlane.f32.xlu0 %v6225
        %v6227 = vpop.xlane.xlu0 %6226
        %v6228 = vsel %vm5951, %v6137, 0.0
        %6229 = vadd.xlane.f32.xlu0 %v6228
        %v6230 = vpop.xlane.xlu0 %6229
        %v6231 = vsel %vm5951, %v6139, 0.0
        %6232 = vadd.xlane.f32.xlu0 %v6231
        %v6233 = vpop.xlane.xlu0 %6232
        %v6234 = vsel %vm5951, %v6141, 0.0
        %6235 = vadd.xlane.f32.xlu0 %v6234
        %v6236 = vpop.xlane.xlu0 %6235
        %v6237 = vsel %vm5951, %v6143, 0.0
        %6238 = vadd.xlane.f32.xlu0 %v6237
        %v6239 = vpop.xlane.xlu0 %6238
        %v6240 = vrcp.pop %v6146
        %v6241 = vmul.f32 1.0, %v6240
        %v6242 = vrcp.pop %v6149
        %v6243 = vmul.f32 1.0, %v6242
        %v6244 = vrcp.pop %v6152
        %v6245 = vmul.f32 1.0, %v6244
        %v6246 = vrcp.pop %v6155
        %v6247 = vmul.f32 1.0, %v6246
        %v6248 = vrcp.pop %v6158
        %v6249 = vmul.f32 1.0, %v6248
        %v6250 = vrcp.pop %v6161
        %v6251 = vmul.f32 1.0, %v6250
        %v6252 = vrcp.pop %v6164
        %v6253 = vmul.f32 1.0, %v6252
        %v6254 = vrcp.pop %v6167
        %v6255 = vmul.f32 1.0, %v6254
        %v6256 = vrcp.pop %v6170
        %v6257 = vmul.f32 1.0, %v6256
        %v6258 = vrcp.pop %v6173
        %v6259 = vmul.f32 1.0, %v6258
        %v6260 = vrcp.pop %v6176
        %v6261 = vmul.f32 1.0, %v6260
        %v6262 = vrcp.pop %v6179
        %v6263 = vmul.f32 1.0, %v6262
        %v6264 = vrcp.pop %v6182
        %v6265 = vmul.f32 1.0, %v6264
        %v6266 = vrcp.pop %v6185
        %v6267 = vmul.f32 1.0, %v6266
        %v6268 = vrcp.pop %v6188
        %v6269 = vmul.f32 1.0, %v6268
        %v6270 = vrcp.pop %v6191
        %v6271 = vmul.f32 1.0, %v6270
        %v6272 = vrcp.pop %v6194
        %v6273 = vmul.f32 1.0, %v6272
        %v6274 = vrcp.pop %v6197
        %v6275 = vmul.f32 1.0, %v6274
        %v6276 = vrcp.pop %v6200
        %v6277 = vmul.f32 1.0, %v6276
        %v6278 = vrcp.pop %v6203
        %v6279 = vmul.f32 1.0, %v6278
        %v6280 = vrcp.pop %v6206
        %v6281 = vmul.f32 1.0, %v6280
        %v6282 = vrcp.pop %v6209
        %v6283 = vmul.f32 1.0, %v6282
        %v6284 = vrcp.pop %v6212
        %v6285 = vmul.f32 1.0, %v6284
        %v6286 = vrcp.pop %v6215
        %v6287 = vmul.f32 1.0, %v6286
        %v6288 = vrcp.pop %v6218
        %v6289 = vmul.f32 1.0, %v6288
        %v6290 = vrcp.pop %v6221
        %v6291 = vmul.f32 1.0, %v6290
        %v6292 = vrcp.pop %v6224
        %v6293 = vmul.f32 1.0, %v6292
        %v6294 = vrcp.pop %v6227
        %v6295 = vmul.f32 1.0, %v6294
        %v6296 = vrcp.pop %v6230
        %v6297 = vmul.f32 1.0, %v6296
        %v6298 = vrcp.pop %v6233
        %v6299 = vmul.f32 1.0, %v6298
        %v6300 = vrcp.pop %v6236
        %v6301 = vmul.f32 1.0, %v6300
        %v6302 = vrcp.pop %v6239
        %v6303 = vmul.f32 1.0, %v6302
        %v6304 = vmul.f32 %v6081, %v6241
        %v6305 = vmul.f32 %v6083, %v6243
        %v6306 = vmul.f32 %v6085, %v6245
        %v6307 = vmul.f32 %v6087, %v6247
        %v6308 = vmul.f32 %v6089, %v6249
        %v6309 = vmul.f32 %v6091, %v6251
        %v6310 = vmul.f32 %v6093, %v6253
        %v6311 = vmul.f32 %v6095, %v6255
        %v6312 = vmul.f32 %v6097, %v6257
        %v6313 = vmul.f32 %v6099, %v6259
        %v6314 = vmul.f32 %v6101, %v6261
        %v6315 = vmul.f32 %v6103, %v6263
        %v6316 = vmul.f32 %v6105, %v6265
        %v6317 = vmul.f32 %v6107, %v6267
        %v6318 = vmul.f32 %v6109, %v6269
        %v6319 = vmul.f32 %v6111, %v6271
        %v6320 = vmul.f32 %v6113, %v6273
        %v6321 = vmul.f32 %v6115, %v6275
        %v6322 = vmul.f32 %v6117, %v6277
        %v6323 = vmul.f32 %v6119, %v6279
        %v6324 = vmul.f32 %v6121, %v6281
        %v6325 = vmul.f32 %v6123, %v6283
        %v6326 = vmul.f32 %v6125, %v6285
        %v6327 = vmul.f32 %v6127, %v6287
        %v6328 = vmul.f32 %v6129, %v6289
        %v6329 = vmul.f32 %v6131, %v6291
        %v6330 = vmul.f32 %v6133, %v6293
        %v6331 = vmul.f32 %v6135, %v6295
        %v6332 = vmul.f32 %v6137, %v6297
        %v6333 = vmul.f32 %v6139, %v6299
        %v6334 = vmul.f32 %v6141, %v6301
        %v6335 = vmul.f32 %v6143, %v6303
        %v6340 = vcombine.low %v3830, %v3864
        %v6341 = vcombine.low %v3898, %v3932
        %v6345 = vsel %vm5951, %v6304, 0
        %v6348 = vsel %vm5951, %v6305, 0
        %6350 = vmatprep.subr.mxu0 0.0
        %6351 = vmatpush1.msra.mxu0 0.0
        %6352 = vmatprep.subr.mxu0 0.0
        %6353 = vmatpush1.msra.mxu0 0.0
        %6354 = vmatprep.subr.mxu0 0.0
        %6355 = vmatpush1.msra.mxu0 0.0
        %6356 = vmatprep.subr.mxu0 0.0
        %6357 = vmatpush1.msra.mxu0 0.0
        %6358 = vmatprep.subr.mxu0 0.0
        %6359 = vmatpush1.msra.mxu0 0.0
        %6360 = vmatprep.subr.mxu0 0.0
        %6361 = vmatpush1.msra.mxu0 0.0
        %6362 = vmatprep.subr.mxu0 0.0
        %6363 = vmatpush1.msra.mxu0 0.0
        %6364 = vmatprep.subr.mxu0 0.0
        %6365 = vmatpush1.msra.mxu0 0.0
        %6366 = vmatprep.subr.mxu0 0.0
        %6367 = vmatpush1.msra.mxu0 0.0
        %6368 = vmatprep.subr.mxu0 0.0
        %6369 = vmatpush1.msra.mxu0 0.0
        %6370 = vmatprep.subr.mxu0 0.0
        %6371 = vmatpush1.msra.mxu0 0.0
        %6372 = vmatprep.subr.mxu0 0.0
        %6373 = vmatpush1.msra.mxu0 0.0
        %6374 = vmatprep.subr.mxu0 0.0
        %6375 = vmatpush1.msra.mxu0 0.0
        %6376 = vmatprep.subr.mxu0 0.0
        %6377 = vmatpush1.msra.mxu0 0.0
        %6378 = vmatprep.subr.mxu0 0.0
        %6379 = vmatpush1.msra.mxu0 %v6341
        %6380 = vmatprep.subr.mxu0 0.0
        %6381 = vmatpush1.msra.mxu0 %v6340
        %6382 = vmatprep.subr.mxu0 0.0
        %6383 = vmatpush2.msra.mxu0 0.0
        %6384 = vmatprep.subr.mxu0 0.0
        %6385 = vmatpush2.msra.mxu0 0.0
        %6386 = vmatprep.subr.mxu0 0.0
        %6387 = vmatpush2.msra.mxu0 0.0
        %6388 = vmatprep.subr.mxu0 0.0
        %6389 = vmatpush2.msra.mxu0 0.0
        %6390 = vmatprep.subr.mxu0 0.0
        %6391 = vmatpush2.msra.mxu0 0.0
        %6392 = vmatprep.subr.mxu0 0.0
        %6393 = vmatpush2.msra.mxu0 0.0
        %6394 = vmatprep.subr.mxu0 0.0
        %6395 = vmatpush2.msra.mxu0 0.0
        %6396 = vmatprep.subr.mxu0 0.0
        %6397 = vmatpush2.msra.mxu0 0.0
        %6398 = vmatprep.subr.mxu0 0.0
        %6399 = vmatpush2.msra.mxu0 0.0
        %6400 = vmatprep.subr.mxu0 0.0
        %6401 = vmatpush2.msra.mxu0 0.0
        %6402 = vmatprep.subr.mxu0 0.0
        %6403 = vmatpush2.msra.mxu0 0.0
        %6404 = vmatprep.subr.mxu0 0.0
        %6405 = vmatpush2.msra.mxu0 0.0
        %6406 = vmatprep.subr.mxu0 0.0
        %6407 = vmatpush2.msra.mxu0 0.0
        %6408 = vmatprep.subr.mxu0 0.0
        %6409 = vmatpush2.msra.mxu0 0.0
        %6410 = vmatprep.subr.mxu0 0.0
        %6411 = vmatpush2.msra.mxu0 0.0
        %6412 = vmatprep.subr.mxu0 0.0
        %6413 = vmatpush2.msra.mxu0 0.0
        %6414 = vmatprep.mubr.f32.mxu0 0.0
        %6415 = vmatmul.mubr.f32.gmra.mxu0 %v6345
        %v6416 = vpop.f32.mrf.mxu0
        %v6417 = vadd.f32 0.0, %v6416
        %v6418 = vpop.f32.mrf.mxu0
        %6419 = vmatprep.mubr.f32.mxu0 0.0
        %6420 = vmatmul.mubr.f32.gmra.mxu0 %v6348
        %v6421 = vpop.f32.mrf.mxu0
        %v6422 = vadd.f32 0.0, %v6421
        %v6423 = vpop.f32.mrf.mxu0
        %6424 = vdwg.mxu0
        %v6429 = vcombine.low %v3838, %v3872
        %v6430 = vcombine.low %v3906, %v3940
        %v6434 = vsel %vm5951, %v6306, 0
        %v6437 = vsel %vm5951, %v6307, 0
        %6439 = vmatprep.subr.mxu0 0.0
        %6440 = vmatpush1.msra.mxu0 0.0
        %6441 = vmatprep.subr.mxu0 0.0
        %6442 = vmatpush1.msra.mxu0 0.0
        %6443 = vmatprep.subr.mxu0 0.0
        %6444 = vmatpush1.msra.mxu0 0.0
        %6445 = vmatprep.subr.mxu0 0.0
        %6446 = vmatpush1.msra.mxu0 0.0
        %6447 = vmatprep.subr.mxu0 0.0
        %6448 = vmatpush1.msra.mxu0 0.0
        %6449 = vmatprep.subr.mxu0 0.0
        %6450 = vmatpush1.msra.mxu0 0.0
        %6451 = vmatprep.subr.mxu0 0.0
        %6452 = vmatpush1.msra.mxu0 0.0
        %6453 = vmatprep.subr.mxu0 0.0
        %6454 = vmatpush1.msra.mxu0 0.0
        %6455 = vmatprep.subr.mxu0 0.0
        %6456 = vmatpush1.msra.mxu0 0.0
        %6457 = vmatprep.subr.mxu0 0.0
        %6458 = vmatpush1.msra.mxu0 0.0
        %6459 = vmatprep.subr.mxu0 0.0
        %6460 = vmatpush1.msra.mxu0 0.0
        %6461 = vmatprep.subr.mxu0 0.0
        %6462 = vmatpush1.msra.mxu0 0.0
        %6463 = vmatprep.subr.mxu0 0.0
        %6464 = vmatpush1.msra.mxu0 0.0
        %6465 = vmatprep.subr.mxu0 0.0
        %6466 = vmatpush1.msra.mxu0 0.0
        %6467 = vmatprep.subr.mxu0 0.0
        %6468 = vmatpush1.msra.mxu0 %v6430
        %6469 = vmatprep.subr.mxu0 0.0
        %6470 = vmatpush1.msra.mxu0 %v6429
        %6471 = vmatprep.subr.mxu0 0.0
        %6472 = vmatpush2.msra.mxu0 0.0
        %6473 = vmatprep.subr.mxu0 0.0
        %6474 = vmatpush2.msra.mxu0 0.0
        %6475 = vmatprep.subr.mxu0 0.0
        %6476 = vmatpush2.msra.mxu0 0.0
        %6477 = vmatprep.subr.mxu0 0.0
        %6478 = vmatpush2.msra.mxu0 0.0
        %6479 = vmatprep.subr.mxu0 0.0
        %6480 = vmatpush2.msra.mxu0 0.0
        %6481 = vmatprep.subr.mxu0 0.0
        %6482 = vmatpush2.msra.mxu0 0.0
        %6483 = vmatprep.subr.mxu0 0.0
        %6484 = vmatpush2.msra.mxu0 0.0
        %6485 = vmatprep.subr.mxu0 0.0
        %6486 = vmatpush2.msra.mxu0 0.0
        %6487 = vmatprep.subr.mxu0 0.0
        %6488 = vmatpush2.msra.mxu0 0.0
        %6489 = vmatprep.subr.mxu0 0.0
        %6490 = vmatpush2.msra.mxu0 0.0
        %6491 = vmatprep.subr.mxu0 0.0
        %6492 = vmatpush2.msra.mxu0 0.0
        %6493 = vmatprep.subr.mxu0 0.0
        %6494 = vmatpush2.msra.mxu0 0.0
        %6495 = vmatprep.subr.mxu0 0.0
        %6496 = vmatpush2.msra.mxu0 0.0
        %6497 = vmatprep.subr.mxu0 0.0
        %6498 = vmatpush2.msra.mxu0 0.0
        %6499 = vmatprep.subr.mxu0 0.0
        %6500 = vmatpush2.msra.mxu0 0.0
        %6501 = vmatprep.subr.mxu0 0.0
        %6502 = vmatpush2.msra.mxu0 0.0
        %6503 = vmatprep.mubr.f32.mxu0 0.0
        %6504 = vmatmul.mubr.f32.gmra.mxu0 %v6434
        %v6505 = vpop.f32.mrf.mxu0
        %v6506 = vadd.f32 0.0, %v6505
        %v6507 = vpop.f32.mrf.mxu0
        %6508 = vmatprep.mubr.f32.mxu0 0.0
        %6509 = vmatmul.mubr.f32.gmra.mxu0 %v6437
        %v6510 = vpop.f32.mrf.mxu0
        %v6511 = vadd.f32 0.0, %v6510
        %v6512 = vpop.f32.mrf.mxu0
        %6513 = vdwg.mxu0
        %v6518 = vcombine.low %v3837, %v3871
        %v6519 = vcombine.low %v3905, %v3939
        %v6523 = vsel %vm5951, %v6308, 0
        %v6526 = vsel %vm5951, %v6309, 0
        %6528 = vmatprep.subr.mxu0 0.0
        %6529 = vmatpush1.msra.mxu0 0.0
        %6530 = vmatprep.subr.mxu0 0.0
        %6531 = vmatpush1.msra.mxu0 0.0
        %6532 = vmatprep.subr.mxu0 0.0
        %6533 = vmatpush1.msra.mxu0 0.0
        %6534 = vmatprep.subr.mxu0 0.0
        %6535 = vmatpush1.msra.mxu0 0.0
        %6536 = vmatprep.subr.mxu0 0.0
        %6537 = vmatpush1.msra.mxu0 0.0
        %6538 = vmatprep.subr.mxu0 0.0
        %6539 = vmatpush1.msra.mxu0 0.0
        %6540 = vmatprep.subr.mxu0 0.0
        %6541 = vmatpush1.msra.mxu0 0.0
        %6542 = vmatprep.subr.mxu0 0.0
        %6543 = vmatpush1.msra.mxu0 0.0
        %6544 = vmatprep.subr.mxu0 0.0
        %6545 = vmatpush1.msra.mxu0 0.0
        %6546 = vmatprep.subr.mxu0 0.0
        %6547 = vmatpush1.msra.mxu0 0.0
        %6548 = vmatprep.subr.mxu0 0.0
        %6549 = vmatpush1.msra.mxu0 0.0
        %6550 = vmatprep.subr.mxu0 0.0
        %6551 = vmatpush1.msra.mxu0 0.0
        %6552 = vmatprep.subr.mxu0 0.0
        %6553 = vmatpush1.msra.mxu0 0.0
        %6554 = vmatprep.subr.mxu0 0.0
        %6555 = vmatpush1.msra.mxu0 0.0
        %6556 = vmatprep.subr.mxu0 0.0
        %6557 = vmatpush1.msra.mxu0 %v6519
        %6558 = vmatprep.subr.mxu0 0.0
        %6559 = vmatpush1.msra.mxu0 %v6518
        %6560 = vmatprep.subr.mxu0 0.0
        %6561 = vmatpush2.msra.mxu0 0.0
        %6562 = vmatprep.subr.mxu0 0.0
        %6563 = vmatpush2.msra.mxu0 0.0
        %6564 = vmatprep.subr.mxu0 0.0
        %6565 = vmatpush2.msra.mxu0 0.0
        %6566 = vmatprep.subr.mxu0 0.0
        %6567 = vmatpush2.msra.mxu0 0.0
        %6568 = vmatprep.subr.mxu0 0.0
        %6569 = vmatpush2.msra.mxu0 0.0
        %6570 = vmatprep.subr.mxu0 0.0
        %6571 = vmatpush2.msra.mxu0 0.0
        %6572 = vmatprep.subr.mxu0 0.0
        %6573 = vmatpush2.msra.mxu0 0.0
        %6574 = vmatprep.subr.mxu0 0.0
        %6575 = vmatpush2.msra.mxu0 0.0
        %6576 = vmatprep.subr.mxu0 0.0
        %6577 = vmatpush2.msra.mxu0 0.0
        %6578 = vmatprep.subr.mxu0 0.0
        %6579 = vmatpush2.msra.mxu0 0.0
        %6580 = vmatprep.subr.mxu0 0.0
        %6581 = vmatpush2.msra.mxu0 0.0
        %6582 = vmatprep.subr.mxu0 0.0
        %6583 = vmatpush2.msra.mxu0 0.0
        %6584 = vmatprep.subr.mxu0 0.0
        %6585 = vmatpush2.msra.mxu0 0.0
        %6586 = vmatprep.subr.mxu0 0.0
        %6587 = vmatpush2.msra.mxu0 0.0
        %6588 = vmatprep.subr.mxu0 0.0
        %6589 = vmatpush2.msra.mxu0 0.0
        %6590 = vmatprep.subr.mxu0 0.0
        %6591 = vmatpush2.msra.mxu0 0.0
        %6592 = vmatprep.mubr.f32.mxu0 0.0
        %6593 = vmatmul.mubr.f32.gmra.mxu0 %v6523
        %v6594 = vpop.f32.mrf.mxu0
        %v6595 = vadd.f32 0.0, %v6594
        %v6596 = vpop.f32.mrf.mxu0
        %6597 = vmatprep.mubr.f32.mxu0 0.0
        %6598 = vmatmul.mubr.f32.gmra.mxu0 %v6526
        %v6599 = vpop.f32.mrf.mxu0
        %v6600 = vadd.f32 0.0, %v6599
        %v6601 = vpop.f32.mrf.mxu0
        %6602 = vdwg.mxu0
        %v6607 = vcombine.low %v3839, %v3873
        %v6608 = vcombine.low %v3907, %v3941
        %v6612 = vsel %vm5951, %v6310, 0
        %v6615 = vsel %vm5951, %v6311, 0
        %6617 = vmatprep.subr.mxu0 0.0
        %6618 = vmatpush1.msra.mxu0 0.0
        %6619 = vmatprep.subr.mxu0 0.0
        %6620 = vmatpush1.msra.mxu0 0.0
        %6621 = vmatprep.subr.mxu0 0.0
        %6622 = vmatpush1.msra.mxu0 0.0
        %6623 = vmatprep.subr.mxu0 0.0
        %6624 = vmatpush1.msra.mxu0 0.0
        %6625 = vmatprep.subr.mxu0 0.0
        %6626 = vmatpush1.msra.mxu0 0.0
        %6627 = vmatprep.subr.mxu0 0.0
        %6628 = vmatpush1.msra.mxu0 0.0
        %6629 = vmatprep.subr.mxu0 0.0
        %6630 = vmatpush1.msra.mxu0 0.0
        %6631 = vmatprep.subr.mxu0 0.0
        %6632 = vmatpush1.msra.mxu0 0.0
        %6633 = vmatprep.subr.mxu0 0.0
        %6634 = vmatpush1.msra.mxu0 0.0
        %6635 = vmatprep.subr.mxu0 0.0
        %6636 = vmatpush1.msra.mxu0 0.0
        %6637 = vmatprep.subr.mxu0 0.0
        %6638 = vmatpush1.msra.mxu0 0.0
        %6639 = vmatprep.subr.mxu0 0.0
        %6640 = vmatpush1.msra.mxu0 0.0
        %6641 = vmatprep.subr.mxu0 0.0
        %6642 = vmatpush1.msra.mxu0 0.0
        %6643 = vmatprep.subr.mxu0 0.0
        %6644 = vmatpush1.msra.mxu0 0.0
        %6645 = vmatprep.subr.mxu0 0.0
        %6646 = vmatpush1.msra.mxu0 %v6608
        %6647 = vmatprep.subr.mxu0 0.0
        %6648 = vmatpush1.msra.mxu0 %v6607
        %6649 = vmatprep.subr.mxu0 0.0
        %6650 = vmatpush2.msra.mxu0 0.0
        %6651 = vmatprep.subr.mxu0 0.0
        %6652 = vmatpush2.msra.mxu0 0.0
        %6653 = vmatprep.subr.mxu0 0.0
        %6654 = vmatpush2.msra.mxu0 0.0
        %6655 = vmatprep.subr.mxu0 0.0
        %6656 = vmatpush2.msra.mxu0 0.0
        %6657 = vmatprep.subr.mxu0 0.0
        %6658 = vmatpush2.msra.mxu0 0.0
        %6659 = vmatprep.subr.mxu0 0.0
        %6660 = vmatpush2.msra.mxu0 0.0
        %6661 = vmatprep.subr.mxu0 0.0
        %6662 = vmatpush2.msra.mxu0 0.0
        %6663 = vmatprep.subr.mxu0 0.0
        %6664 = vmatpush2.msra.mxu0 0.0
        %6665 = vmatprep.subr.mxu0 0.0
        %6666 = vmatpush2.msra.mxu0 0.0
        %6667 = vmatprep.subr.mxu0 0.0
        %6668 = vmatpush2.msra.mxu0 0.0
        %6669 = vmatprep.subr.mxu0 0.0
        %6670 = vmatpush2.msra.mxu0 0.0
        %6671 = vmatprep.subr.mxu0 0.0
        %6672 = vmatpush2.msra.mxu0 0.0
        %6673 = vmatprep.subr.mxu0 0.0
        %6674 = vmatpush2.msra.mxu0 0.0
        %6675 = vmatprep.subr.mxu0 0.0
        %6676 = vmatpush2.msra.mxu0 0.0
        %6677 = vmatprep.subr.mxu0 0.0
        %6678 = vmatpush2.msra.mxu0 0.0
        %6679 = vmatprep.subr.mxu0 0.0
        %6680 = vmatpush2.msra.mxu0 0.0
        %6681 = vmatprep.mubr.f32.mxu0 0.0
        %6682 = vmatmul.mubr.f32.gmra.mxu0 %v6612
        %v6683 = vpop.f32.mrf.mxu0
        %v6684 = vadd.f32 0.0, %v6683
        %v6685 = vpop.f32.mrf.mxu0
        %6686 = vmatprep.mubr.f32.mxu0 0.0
        %6687 = vmatmul.mubr.f32.gmra.mxu0 %v6615
        %v6688 = vpop.f32.mrf.mxu0
        %v6689 = vadd.f32 0.0, %v6688
        %v6690 = vpop.f32.mrf.mxu0
        %6691 = vdwg.mxu0
        %v6696 = vcombine.low %v3966, %v4000
        %v6697 = vcombine.low %v4034, %v4068
        %v6701 = vsel %vm5951, %v6312, 0
        %v6704 = vsel %vm5951, %v6313, 0
        %6706 = vmatprep.subr.mxu0 0.0
        %6707 = vmatpush1.msra.mxu0 0.0
        %6708 = vmatprep.subr.mxu0 0.0
        %6709 = vmatpush1.msra.mxu0 0.0
        %6710 = vmatprep.subr.mxu0 0.0
        %6711 = vmatpush1.msra.mxu0 0.0
        %6712 = vmatprep.subr.mxu0 0.0
        %6713 = vmatpush1.msra.mxu0 0.0
        %6714 = vmatprep.subr.mxu0 0.0
        %6715 = vmatpush1.msra.mxu0 0.0
        %6716 = vmatprep.subr.mxu0 0.0
        %6717 = vmatpush1.msra.mxu0 0.0
        %6718 = vmatprep.subr.mxu0 0.0
        %6719 = vmatpush1.msra.mxu0 0.0
        %6720 = vmatprep.subr.mxu0 0.0
        %6721 = vmatpush1.msra.mxu0 0.0
        %6722 = vmatprep.subr.mxu0 0.0
        %6723 = vmatpush1.msra.mxu0 0.0
        %6724 = vmatprep.subr.mxu0 0.0
        %6725 = vmatpush1.msra.mxu0 0.0
        %6726 = vmatprep.subr.mxu0 0.0
        %6727 = vmatpush1.msra.mxu0 0.0
        %6728 = vmatprep.subr.mxu0 0.0
        %6729 = vmatpush1.msra.mxu0 0.0
        %6730 = vmatprep.subr.mxu0 0.0
        %6731 = vmatpush1.msra.mxu0 0.0
        %6732 = vmatprep.subr.mxu0 0.0
        %6733 = vmatpush1.msra.mxu0 0.0
        %6734 = vmatprep.subr.mxu0 0.0
        %6735 = vmatpush1.msra.mxu0 %v6697
        %6736 = vmatprep.subr.mxu0 0.0
        %6737 = vmatpush1.msra.mxu0 %v6696
        %6738 = vmatprep.subr.mxu0 0.0
        %6739 = vmatpush2.msra.mxu0 0.0
        %6740 = vmatprep.subr.mxu0 0.0
        %6741 = vmatpush2.msra.mxu0 0.0
        %6742 = vmatprep.subr.mxu0 0.0
        %6743 = vmatpush2.msra.mxu0 0.0
        %6744 = vmatprep.subr.mxu0 0.0
        %6745 = vmatpush2.msra.mxu0 0.0
        %6746 = vmatprep.subr.mxu0 0.0
        %6747 = vmatpush2.msra.mxu0 0.0
        %6748 = vmatprep.subr.mxu0 0.0
        %6749 = vmatpush2.msra.mxu0 0.0
        %6750 = vmatprep.subr.mxu0 0.0
        %6751 = vmatpush2.msra.mxu0 0.0
        %6752 = vmatprep.subr.mxu0 0.0
        %6753 = vmatpush2.msra.mxu0 0.0
        %6754 = vmatprep.subr.mxu0 0.0
        %6755 = vmatpush2.msra.mxu0 0.0
        %6756 = vmatprep.subr.mxu0 0.0
        %6757 = vmatpush2.msra.mxu0 0.0
        %6758 = vmatprep.subr.mxu0 0.0
        %6759 = vmatpush2.msra.mxu0 0.0
        %6760 = vmatprep.subr.mxu0 0.0
        %6761 = vmatpush2.msra.mxu0 0.0
        %6762 = vmatprep.subr.mxu0 0.0
        %6763 = vmatpush2.msra.mxu0 0.0
        %6764 = vmatprep.subr.mxu0 0.0
        %6765 = vmatpush2.msra.mxu0 0.0
        %6766 = vmatprep.subr.mxu0 0.0
        %6767 = vmatpush2.msra.mxu0 0.0
        %6768 = vmatprep.subr.mxu0 0.0
        %6769 = vmatpush2.msra.mxu0 0.0
        %6770 = vmatprep.mubr.f32.mxu0 0.0
        %6771 = vmatmul.mubr.f32.gmra.mxu0 %v6701
        %v6772 = vpop.f32.mrf.mxu0
        %v6773 = vadd.f32 0.0, %v6772
        %v6774 = vpop.f32.mrf.mxu0
        %6775 = vmatprep.mubr.f32.mxu0 0.0
        %6776 = vmatmul.mubr.f32.gmra.mxu0 %v6704
        %v6777 = vpop.f32.mrf.mxu0
        %v6778 = vadd.f32 0.0, %v6777
        %v6779 = vpop.f32.mrf.mxu0
        %6780 = vdwg.mxu0
        %v6785 = vcombine.low %v3974, %v4008
        %v6786 = vcombine.low %v4042, %v4076
        %v6790 = vsel %vm5951, %v6314, 0
        %v6793 = vsel %vm5951, %v6315, 0
        %6795 = vmatprep.subr.mxu0 0.0
        %6796 = vmatpush1.msra.mxu0 0.0
        %6797 = vmatprep.subr.mxu0 0.0
        %6798 = vmatpush1.msra.mxu0 0.0
        %6799 = vmatprep.subr.mxu0 0.0
        %6800 = vmatpush1.msra.mxu0 0.0
        %6801 = vmatprep.subr.mxu0 0.0
        %6802 = vmatpush1.msra.mxu0 0.0
        %6803 = vmatprep.subr.mxu0 0.0
        %6804 = vmatpush1.msra.mxu0 0.0
        %6805 = vmatprep.subr.mxu0 0.0
        %6806 = vmatpush1.msra.mxu0 0.0
        %6807 = vmatprep.subr.mxu0 0.0
        %6808 = vmatpush1.msra.mxu0 0.0
        %6809 = vmatprep.subr.mxu0 0.0
        %6810 = vmatpush1.msra.mxu0 0.0
        %6811 = vmatprep.subr.mxu0 0.0
        %6812 = vmatpush1.msra.mxu0 0.0
        %6813 = vmatprep.subr.mxu0 0.0
        %6814 = vmatpush1.msra.mxu0 0.0
        %6815 = vmatprep.subr.mxu0 0.0
        %6816 = vmatpush1.msra.mxu0 0.0
        %6817 = vmatprep.subr.mxu0 0.0
        %6818 = vmatpush1.msra.mxu0 0.0
        %6819 = vmatprep.subr.mxu0 0.0
        %6820 = vmatpush1.msra.mxu0 0.0
        %6821 = vmatprep.subr.mxu0 0.0
        %6822 = vmatpush1.msra.mxu0 0.0
        %6823 = vmatprep.subr.mxu0 0.0
        %6824 = vmatpush1.msra.mxu0 %v6786
        %6825 = vmatprep.subr.mxu0 0.0
        %6826 = vmatpush1.msra.mxu0 %v6785
        %6827 = vmatprep.subr.mxu0 0.0
        %6828 = vmatpush2.msra.mxu0 0.0
        %6829 = vmatprep.subr.mxu0 0.0
        %6830 = vmatpush2.msra.mxu0 0.0
        %6831 = vmatprep.subr.mxu0 0.0
        %6832 = vmatpush2.msra.mxu0 0.0
        %6833 = vmatprep.subr.mxu0 0.0
        %6834 = vmatpush2.msra.mxu0 0.0
        %6835 = vmatprep.subr.mxu0 0.0
        %6836 = vmatpush2.msra.mxu0 0.0
        %6837 = vmatprep.subr.mxu0 0.0
        %6838 = vmatpush2.msra.mxu0 0.0
        %6839 = vmatprep.subr.mxu0 0.0
        %6840 = vmatpush2.msra.mxu0 0.0
        %6841 = vmatprep.subr.mxu0 0.0
        %6842 = vmatpush2.msra.mxu0 0.0
        %6843 = vmatprep.subr.mxu0 0.0
        %6844 = vmatpush2.msra.mxu0 0.0
        %6845 = vmatprep.subr.mxu0 0.0
        %6846 = vmatpush2.msra.mxu0 0.0
        %6847 = vmatprep.subr.mxu0 0.0
        %6848 = vmatpush2.msra.mxu0 0.0
        %6849 = vmatprep.subr.mxu0 0.0
        %6850 = vmatpush2.msra.mxu0 0.0
        %6851 = vmatprep.subr.mxu0 0.0
        %6852 = vmatpush2.msra.mxu0 0.0
        %6853 = vmatprep.subr.mxu0 0.0
        %6854 = vmatpush2.msra.mxu0 0.0
        %6855 = vmatprep.subr.mxu0 0.0
        %6856 = vmatpush2.msra.mxu0 0.0
        %6857 = vmatprep.subr.mxu0 0.0
        %6858 = vmatpush2.msra.mxu0 0.0
        %6859 = vmatprep.mubr.f32.mxu0 0.0
        %6860 = vmatmul.mubr.f32.gmra.mxu0 %v6790
        %v6861 = vpop.f32.mrf.mxu0
        %v6862 = vadd.f32 0.0, %v6861
        %v6863 = vpop.f32.mrf.mxu0
        %6864 = vmatprep.mubr.f32.mxu0 0.0
        %6865 = vmatmul.mubr.f32.gmra.mxu0 %v6793
        %v6866 = vpop.f32.mrf.mxu0
        %v6867 = vadd.f32 0.0, %v6866
        %v6868 = vpop.f32.mrf.mxu0
        %6869 = vdwg.mxu0
        %v6874 = vcombine.low %v3973, %v4007
        %v6875 = vcombine.low %v4041, %v4075
        %v6879 = vsel %vm5951, %v6316, 0
        %v6882 = vsel %vm5951, %v6317, 0
        %6884 = vmatprep.subr.mxu0 0.0
        %6885 = vmatpush1.msra.mxu0 0.0
        %6886 = vmatprep.subr.mxu0 0.0
        %6887 = vmatpush1.msra.mxu0 0.0
        %6888 = vmatprep.subr.mxu0 0.0
        %6889 = vmatpush1.msra.mxu0 0.0
        %6890 = vmatprep.subr.mxu0 0.0
        %6891 = vmatpush1.msra.mxu0 0.0
        %6892 = vmatprep.subr.mxu0 0.0
        %6893 = vmatpush1.msra.mxu0 0.0
        %6894 = vmatprep.subr.mxu0 0.0
        %6895 = vmatpush1.msra.mxu0 0.0
        %6896 = vmatprep.subr.mxu0 0.0
        %6897 = vmatpush1.msra.mxu0 0.0
        %6898 = vmatprep.subr.mxu0 0.0
        %6899 = vmatpush1.msra.mxu0 0.0
        %6900 = vmatprep.subr.mxu0 0.0
        %6901 = vmatpush1.msra.mxu0 0.0
        %6902 = vmatprep.subr.mxu0 0.0
        %6903 = vmatpush1.msra.mxu0 0.0
        %6904 = vmatprep.subr.mxu0 0.0
        %6905 = vmatpush1.msra.mxu0 0.0
        %6906 = vmatprep.subr.mxu0 0.0
        %6907 = vmatpush1.msra.mxu0 0.0
        %6908 = vmatprep.subr.mxu0 0.0
        %6909 = vmatpush1.msra.mxu0 0.0
        %6910 = vmatprep.subr.mxu0 0.0
        %6911 = vmatpush1.msra.mxu0 0.0
        %6912 = vmatprep.subr.mxu0 0.0
        %6913 = vmatpush1.msra.mxu0 %v6875
        %6914 = vmatprep.subr.mxu0 0.0
        %6915 = vmatpush1.msra.mxu0 %v6874
        %6916 = vmatprep.subr.mxu0 0.0
        %6917 = vmatpush2.msra.mxu0 0.0
        %6918 = vmatprep.subr.mxu0 0.0
        %6919 = vmatpush2.msra.mxu0 0.0
        %6920 = vmatprep.subr.mxu0 0.0
        %6921 = vmatpush2.msra.mxu0 0.0
        %6922 = vmatprep.subr.mxu0 0.0
        %6923 = vmatpush2.msra.mxu0 0.0
        %6924 = vmatprep.subr.mxu0 0.0
        %6925 = vmatpush2.msra.mxu0 0.0
        %6926 = vmatprep.subr.mxu0 0.0
        %6927 = vmatpush2.msra.mxu0 0.0
        %6928 = vmatprep.subr.mxu0 0.0
        %6929 = vmatpush2.msra.mxu0 0.0
        %6930 = vmatprep.subr.mxu0 0.0
        %6931 = vmatpush2.msra.mxu0 0.0
        %6932 = vmatprep.subr.mxu0 0.0
        %6933 = vmatpush2.msra.mxu0 0.0
        %6934 = vmatprep.subr.mxu0 0.0
        %6935 = vmatpush2.msra.mxu0 0.0
        %6936 = vmatprep.subr.mxu0 0.0
        %6937 = vmatpush2.msra.mxu0 0.0
        %6938 = vmatprep.subr.mxu0 0.0
        %6939 = vmatpush2.msra.mxu0 0.0
        %6940 = vmatprep.subr.mxu0 0.0
        %6941 = vmatpush2.msra.mxu0 0.0
        %6942 = vmatprep.subr.mxu0 0.0
        %6943 = vmatpush2.msra.mxu0 0.0
        %6944 = vmatprep.subr.mxu0 0.0
        %6945 = vmatpush2.msra.mxu0 0.0
        %6946 = vmatprep.subr.mxu0 0.0
        %6947 = vmatpush2.msra.mxu0 0.0
        %6948 = vmatprep.mubr.f32.mxu0 0.0
        %6949 = vmatmul.mubr.f32.gmra.mxu0 %v6879
        %v6950 = vpop.f32.mrf.mxu0
        %v6951 = vadd.f32 0.0, %v6950
        %v6952 = vpop.f32.mrf.mxu0
        %6953 = vmatprep.mubr.f32.mxu0 0.0
        %6954 = vmatmul.mubr.f32.gmra.mxu0 %v6882
        %v6955 = vpop.f32.mrf.mxu0
        %v6956 = vadd.f32 0.0, %v6955
        %v6957 = vpop.f32.mrf.mxu0
        %6958 = vdwg.mxu0
        %v6963 = vcombine.low %v3975, %v4009
        %v6964 = vcombine.low %v4043, %v4077
        %v6968 = vsel %vm5951, %v6318, 0
        %v6971 = vsel %vm5951, %v6319, 0
        %6973 = vmatprep.subr.mxu0 0.0
        %6974 = vmatpush1.msra.mxu0 0.0
        %6975 = vmatprep.subr.mxu0 0.0
        %6976 = vmatpush1.msra.mxu0 0.0
        %6977 = vmatprep.subr.mxu0 0.0
        %6978 = vmatpush1.msra.mxu0 0.0
        %6979 = vmatprep.subr.mxu0 0.0
        %6980 = vmatpush1.msra.mxu0 0.0
        %6981 = vmatprep.subr.mxu0 0.0
        %6982 = vmatpush1.msra.mxu0 0.0
        %6983 = vmatprep.subr.mxu0 0.0
        %6984 = vmatpush1.msra.mxu0 0.0
        %6985 = vmatprep.subr.mxu0 0.0
        %6986 = vmatpush1.msra.mxu0 0.0
        %6987 = vmatprep.subr.mxu0 0.0
        %6988 = vmatpush1.msra.mxu0 0.0
        %6989 = vmatprep.subr.mxu0 0.0
        %6990 = vmatpush1.msra.mxu0 0.0
        %6991 = vmatprep.subr.mxu0 0.0
        %6992 = vmatpush1.msra.mxu0 0.0
        %6993 = vmatprep.subr.mxu0 0.0
        %6994 = vmatpush1.msra.mxu0 0.0
        %6995 = vmatprep.subr.mxu0 0.0
        %6996 = vmatpush1.msra.mxu0 0.0
        %6997 = vmatprep.subr.mxu0 0.0
        %6998 = vmatpush1.msra.mxu0 0.0
        %6999 = vmatprep.subr.mxu0 0.0
        %7000 = vmatpush1.msra.mxu0 0.0
        %7001 = vmatprep.subr.mxu0 0.0
        %7002 = vmatpush1.msra.mxu0 %v6964
        %7003 = vmatprep.subr.mxu0 0.0
        %7004 = vmatpush1.msra.mxu0 %v6963
        %7005 = vmatprep.subr.mxu0 0.0
        %7006 = vmatpush2.msra.mxu0 0.0
        %7007 = vmatprep.subr.mxu0 0.0
        %7008 = vmatpush2.msra.mxu0 0.0
        %7009 = vmatprep.subr.mxu0 0.0
        %7010 = vmatpush2.msra.mxu0 0.0
        %7011 = vmatprep.subr.mxu0 0.0
        %7012 = vmatpush2.msra.mxu0 0.0
        %7013 = vmatprep.subr.mxu0 0.0
        %7014 = vmatpush2.msra.mxu0 0.0
        %7015 = vmatprep.subr.mxu0 0.0
        %7016 = vmatpush2.msra.mxu0 0.0
        %7017 = vmatprep.subr.mxu0 0.0
        %7018 = vmatpush2.msra.mxu0 0.0
        %7019 = vmatprep.subr.mxu0 0.0
        %7020 = vmatpush2.msra.mxu0 0.0
        %7021 = vmatprep.subr.mxu0 0.0
        %7022 = vmatpush2.msra.mxu0 0.0
        %7023 = vmatprep.subr.mxu0 0.0
        %7024 = vmatpush2.msra.mxu0 0.0
        %7025 = vmatprep.subr.mxu0 0.0
        %7026 = vmatpush2.msra.mxu0 0.0
        %7027 = vmatprep.subr.mxu0 0.0
        %7028 = vmatpush2.msra.mxu0 0.0
        %7029 = vmatprep.subr.mxu0 0.0
        %7030 = vmatpush2.msra.mxu0 0.0
        %7031 = vmatprep.subr.mxu0 0.0
        %7032 = vmatpush2.msra.mxu0 0.0
        %7033 = vmatprep.subr.mxu0 0.0
        %7034 = vmatpush2.msra.mxu0 0.0
        %7035 = vmatprep.subr.mxu0 0.0
        %7036 = vmatpush2.msra.mxu0 0.0
        %7037 = vmatprep.mubr.f32.mxu0 0.0
        %7038 = vmatmul.mubr.f32.gmra.mxu0 %v6968
        %v7039 = vpop.f32.mrf.mxu0
        %v7040 = vadd.f32 0.0, %v7039
        %v7041 = vpop.f32.mrf.mxu0
        %7042 = vmatprep.mubr.f32.mxu0 0.0
        %7043 = vmatmul.mubr.f32.gmra.mxu0 %v6971
        %v7044 = vpop.f32.mrf.mxu0
        %v7045 = vadd.f32 0.0, %v7044
        %v7046 = vpop.f32.mrf.mxu0
        %7047 = vdwg.mxu0
        %v7052 = vcombine.low %v4102, %v4136
        %v7053 = vcombine.low %v4170, %v4204
        %v7057 = vsel %vm5951, %v6320, 0
        %v7060 = vsel %vm5951, %v6321, 0
        %7062 = vmatprep.subr.mxu0 0.0
        %7063 = vmatpush1.msra.mxu0 0.0
        %7064 = vmatprep.subr.mxu0 0.0
        %7065 = vmatpush1.msra.mxu0 0.0
        %7066 = vmatprep.subr.mxu0 0.0
        %7067 = vmatpush1.msra.mxu0 0.0
        %7068 = vmatprep.subr.mxu0 0.0
        %7069 = vmatpush1.msra.mxu0 0.0
        %7070 = vmatprep.subr.mxu0 0.0
        %7071 = vmatpush1.msra.mxu0 0.0
        %7072 = vmatprep.subr.mxu0 0.0
        %7073 = vmatpush1.msra.mxu0 0.0
        %7074 = vmatprep.subr.mxu0 0.0
        %7075 = vmatpush1.msra.mxu0 0.0
        %7076 = vmatprep.subr.mxu0 0.0
        %7077 = vmatpush1.msra.mxu0 0.0
        %7078 = vmatprep.subr.mxu0 0.0
        %7079 = vmatpush1.msra.mxu0 0.0
        %7080 = vmatprep.subr.mxu0 0.0
        %7081 = vmatpush1.msra.mxu0 0.0
        %7082 = vmatprep.subr.mxu0 0.0
        %7083 = vmatpush1.msra.mxu0 0.0
        %7084 = vmatprep.subr.mxu0 0.0
        %7085 = vmatpush1.msra.mxu0 0.0
        %7086 = vmatprep.subr.mxu0 0.0
        %7087 = vmatpush1.msra.mxu0 0.0
        %7088 = vmatprep.subr.mxu0 0.0
        %7089 = vmatpush1.msra.mxu0 0.0
        %7090 = vmatprep.subr.mxu0 0.0
        %7091 = vmatpush1.msra.mxu0 %v7053
        %7092 = vmatprep.subr.mxu0 0.0
        %7093 = vmatpush1.msra.mxu0 %v7052
        %7094 = vmatprep.subr.mxu0 0.0
        %7095 = vmatpush2.msra.mxu0 0.0
        %7096 = vmatprep.subr.mxu0 0.0
        %7097 = vmatpush2.msra.mxu0 0.0
        %7098 = vmatprep.subr.mxu0 0.0
        %7099 = vmatpush2.msra.mxu0 0.0
        %7100 = vmatprep.subr.mxu0 0.0
        %7101 = vmatpush2.msra.mxu0 0.0
        %7102 = vmatprep.subr.mxu0 0.0
        %7103 = vmatpush2.msra.mxu0 0.0
        %7104 = vmatprep.subr.mxu0 0.0
        %7105 = vmatpush2.msra.mxu0 0.0
        %7106 = vmatprep.subr.mxu0 0.0
        %7107 = vmatpush2.msra.mxu0 0.0
        %7108 = vmatprep.subr.mxu0 0.0
        %7109 = vmatpush2.msra.mxu0 0.0
        %7110 = vmatprep.subr.mxu0 0.0
        %7111 = vmatpush2.msra.mxu0 0.0
        %7112 = vmatprep.subr.mxu0 0.0
        %7113 = vmatpush2.msra.mxu0 0.0
        %7114 = vmatprep.subr.mxu0 0.0
        %7115 = vmatpush2.msra.mxu0 0.0
        %7116 = vmatprep.subr.mxu0 0.0
        %7117 = vmatpush2.msra.mxu0 0.0
        %7118 = vmatprep.subr.mxu0 0.0
        %7119 = vmatpush2.msra.mxu0 0.0
        %7120 = vmatprep.subr.mxu0 0.0
        %7121 = vmatpush2.msra.mxu0 0.0
        %7122 = vmatprep.subr.mxu0 0.0
        %7123 = vmatpush2.msra.mxu0 0.0
        %7124 = vmatprep.subr.mxu0 0.0
        %7125 = vmatpush2.msra.mxu0 0.0
        %7126 = vmatprep.mubr.f32.mxu0 0.0
        %7127 = vmatmul.mubr.f32.gmra.mxu0 %v7057
        %v7128 = vpop.f32.mrf.mxu0
        %v7129 = vadd.f32 0.0, %v7128
        %v7130 = vpop.f32.mrf.mxu0
        %7131 = vmatprep.mubr.f32.mxu0 0.0
        %7132 = vmatmul.mubr.f32.gmra.mxu0 %v7060
        %v7133 = vpop.f32.mrf.mxu0
        %v7134 = vadd.f32 0.0, %v7133
        %v7135 = vpop.f32.mrf.mxu0
        %7136 = vdwg.mxu0
        %v7141 = vcombine.low %v4110, %v4144
        %v7142 = vcombine.low %v4178, %v4212
        %v7146 = vsel %vm5951, %v6322, 0
        %v7149 = vsel %vm5951, %v6323, 0
        %7151 = vmatprep.subr.mxu0 0.0
        %7152 = vmatpush1.msra.mxu0 0.0
        %7153 = vmatprep.subr.mxu0 0.0
        %7154 = vmatpush1.msra.mxu0 0.0
        %7155 = vmatprep.subr.mxu0 0.0
        %7156 = vmatpush1.msra.mxu0 0.0
        %7157 = vmatprep.subr.mxu0 0.0
        %7158 = vmatpush1.msra.mxu0 0.0
        %7159 = vmatprep.subr.mxu0 0.0
        %7160 = vmatpush1.msra.mxu0 0.0
        %7161 = vmatprep.subr.mxu0 0.0
        %7162 = vmatpush1.msra.mxu0 0.0
        %7163 = vmatprep.subr.mxu0 0.0
        %7164 = vmatpush1.msra.mxu0 0.0
        %7165 = vmatprep.subr.mxu0 0.0
        %7166 = vmatpush1.msra.mxu0 0.0
        %7167 = vmatprep.subr.mxu0 0.0
        %7168 = vmatpush1.msra.mxu0 0.0
        %7169 = vmatprep.subr.mxu0 0.0
        %7170 = vmatpush1.msra.mxu0 0.0
        %7171 = vmatprep.subr.mxu0 0.0
        %7172 = vmatpush1.msra.mxu0 0.0
        %7173 = vmatprep.subr.mxu0 0.0
        %7174 = vmatpush1.msra.mxu0 0.0
        %7175 = vmatprep.subr.mxu0 0.0
        %7176 = vmatpush1.msra.mxu0 0.0
        %7177 = vmatprep.subr.mxu0 0.0
        %7178 = vmatpush1.msra.mxu0 0.0
        %7179 = vmatprep.subr.mxu0 0.0
        %7180 = vmatpush1.msra.mxu0 %v7142
        %7181 = vmatprep.subr.mxu0 0.0
        %7182 = vmatpush1.msra.mxu0 %v7141
        %7183 = vmatprep.subr.mxu0 0.0
        %7184 = vmatpush2.msra.mxu0 0.0
        %7185 = vmatprep.subr.mxu0 0.0
        %7186 = vmatpush2.msra.mxu0 0.0
        %7187 = vmatprep.subr.mxu0 0.0
        %7188 = vmatpush2.msra.mxu0 0.0
        %7189 = vmatprep.subr.mxu0 0.0
        %7190 = vmatpush2.msra.mxu0 0.0
        %7191 = vmatprep.subr.mxu0 0.0
        %7192 = vmatpush2.msra.mxu0 0.0
        %7193 = vmatprep.subr.mxu0 0.0
        %7194 = vmatpush2.msra.mxu0 0.0
        %7195 = vmatprep.subr.mxu0 0.0
        %7196 = vmatpush2.msra.mxu0 0.0
        %7197 = vmatprep.subr.mxu0 0.0
        %7198 = vmatpush2.msra.mxu0 0.0
        %7199 = vmatprep.subr.mxu0 0.0
        %7200 = vmatpush2.msra.mxu0 0.0
        %7201 = vmatprep.subr.mxu0 0.0
        %7202 = vmatpush2.msra.mxu0 0.0
        %7203 = vmatprep.subr.mxu0 0.0
        %7204 = vmatpush2.msra.mxu0 0.0
        %7205 = vmatprep.subr.mxu0 0.0
        %7206 = vmatpush2.msra.mxu0 0.0
        %7207 = vmatprep.subr.mxu0 0.0
        %7208 = vmatpush2.msra.mxu0 0.0
        %7209 = vmatprep.subr.mxu0 0.0
        %7210 = vmatpush2.msra.mxu0 0.0
        %7211 = vmatprep.subr.mxu0 0.0
        %7212 = vmatpush2.msra.mxu0 0.0
        %7213 = vmatprep.subr.mxu0 0.0
        %7214 = vmatpush2.msra.mxu0 0.0
        %7215 = vmatprep.mubr.f32.mxu0 0.0
        %7216 = vmatmul.mubr.f32.gmra.mxu0 %v7146
        %v7217 = vpop.f32.mrf.mxu0
        %v7218 = vadd.f32 0.0, %v7217
        %v7219 = vpop.f32.mrf.mxu0
        %7220 = vmatprep.mubr.f32.mxu0 0.0
        %7221 = vmatmul.mubr.f32.gmra.mxu0 %v7149
        %v7222 = vpop.f32.mrf.mxu0
        %v7223 = vadd.f32 0.0, %v7222
        %v7224 = vpop.f32.mrf.mxu0
        %7225 = vdwg.mxu0
        %v7230 = vcombine.low %v4109, %v4143
        %v7231 = vcombine.low %v4177, %v4211
        %v7235 = vsel %vm5951, %v6324, 0
        %v7238 = vsel %vm5951, %v6325, 0
        %7240 = vmatprep.subr.mxu0 0.0
        %7241 = vmatpush1.msra.mxu0 0.0
        %7242 = vmatprep.subr.mxu0 0.0
        %7243 = vmatpush1.msra.mxu0 0.0
        %7244 = vmatprep.subr.mxu0 0.0
        %7245 = vmatpush1.msra.mxu0 0.0
        %7246 = vmatprep.subr.mxu0 0.0
        %7247 = vmatpush1.msra.mxu0 0.0
        %7248 = vmatprep.subr.mxu0 0.0
        %7249 = vmatpush1.msra.mxu0 0.0
        %7250 = vmatprep.subr.mxu0 0.0
        %7251 = vmatpush1.msra.mxu0 0.0
        %7252 = vmatprep.subr.mxu0 0.0
        %7253 = vmatpush1.msra.mxu0 0.0
        %7254 = vmatprep.subr.mxu0 0.0
        %7255 = vmatpush1.msra.mxu0 0.0
        %7256 = vmatprep.subr.mxu0 0.0
        %7257 = vmatpush1.msra.mxu0 0.0
        %7258 = vmatprep.subr.mxu0 0.0
        %7259 = vmatpush1.msra.mxu0 0.0
        %7260 = vmatprep.subr.mxu0 0.0
        %7261 = vmatpush1.msra.mxu0 0.0
        %7262 = vmatprep.subr.mxu0 0.0
        %7263 = vmatpush1.msra.mxu0 0.0
        %7264 = vmatprep.subr.mxu0 0.0
        %7265 = vmatpush1.msra.mxu0 0.0
        %7266 = vmatprep.subr.mxu0 0.0
        %7267 = vmatpush1.msra.mxu0 0.0
        %7268 = vmatprep.subr.mxu0 0.0
        %7269 = vmatpush1.msra.mxu0 %v7231
        %7270 = vmatprep.subr.mxu0 0.0
        %7271 = vmatpush1.msra.mxu0 %v7230
        %7272 = vmatprep.subr.mxu0 0.0
        %7273 = vmatpush2.msra.mxu0 0.0
        %7274 = vmatprep.subr.mxu0 0.0
        %7275 = vmatpush2.msra.mxu0 0.0
        %7276 = vmatprep.subr.mxu0 0.0
        %7277 = vmatpush2.msra.mxu0 0.0
        %7278 = vmatprep.subr.mxu0 0.0
        %7279 = vmatpush2.msra.mxu0 0.0
        %7280 = vmatprep.subr.mxu0 0.0
        %7281 = vmatpush2.msra.mxu0 0.0
        %7282 = vmatprep.subr.mxu0 0.0
        %7283 = vmatpush2.msra.mxu0 0.0
        %7284 = vmatprep.subr.mxu0 0.0
        %7285 = vmatpush2.msra.mxu0 0.0
        %7286 = vmatprep.subr.mxu0 0.0
        %7287 = vmatpush2.msra.mxu0 0.0
        %7288 = vmatprep.subr.mxu0 0.0
        %7289 = vmatpush2.msra.mxu0 0.0
        %7290 = vmatprep.subr.mxu0 0.0
        %7291 = vmatpush2.msra.mxu0 0.0
        %7292 = vmatprep.subr.mxu0 0.0
        %7293 = vmatpush2.msra.mxu0 0.0
        %7294 = vmatprep.subr.mxu0 0.0
        %7295 = vmatpush2.msra.mxu0 0.0
        %7296 = vmatprep.subr.mxu0 0.0
        %7297 = vmatpush2.msra.mxu0 0.0
        %7298 = vmatprep.subr.mxu0 0.0
        %7299 = vmatpush2.msra.mxu0 0.0
        %7300 = vmatprep.subr.mxu0 0.0
        %7301 = vmatpush2.msra.mxu0 0.0
        %7302 = vmatprep.subr.mxu0 0.0
        %7303 = vmatpush2.msra.mxu0 0.0
        %7304 = vmatprep.mubr.f32.mxu0 0.0
        %7305 = vmatmul.mubr.f32.gmra.mxu0 %v7235
        %v7306 = vpop.f32.mrf.mxu0
        %v7307 = vadd.f32 0.0, %v7306
        %v7308 = vpop.f32.mrf.mxu0
        %7309 = vmatprep.mubr.f32.mxu0 0.0
        %7310 = vmatmul.mubr.f32.gmra.mxu0 %v7238
        %v7311 = vpop.f32.mrf.mxu0
        %v7312 = vadd.f32 0.0, %v7311
        %v7313 = vpop.f32.mrf.mxu0
        %7314 = vdwg.mxu0
        %v7319 = vcombine.low %v4111, %v4145
        %v7320 = vcombine.low %v4179, %v4213
        %v7324 = vsel %vm5951, %v6326, 0
        %v7327 = vsel %vm5951, %v6327, 0
        %7329 = vmatprep.subr.mxu0 0.0
        %7330 = vmatpush1.msra.mxu0 0.0
        %7331 = vmatprep.subr.mxu0 0.0
        %7332 = vmatpush1.msra.mxu0 0.0
        %7333 = vmatprep.subr.mxu0 0.0
        %7334 = vmatpush1.msra.mxu0 0.0
        %7335 = vmatprep.subr.mxu0 0.0
        %7336 = vmatpush1.msra.mxu0 0.0
        %7337 = vmatprep.subr.mxu0 0.0
        %7338 = vmatpush1.msra.mxu0 0.0
        %7339 = vmatprep.subr.mxu0 0.0
        %7340 = vmatpush1.msra.mxu0 0.0
        %7341 = vmatprep.subr.mxu0 0.0
        %7342 = vmatpush1.msra.mxu0 0.0
        %7343 = vmatprep.subr.mxu0 0.0
        %7344 = vmatpush1.msra.mxu0 0.0
        %7345 = vmatprep.subr.mxu0 0.0
        %7346 = vmatpush1.msra.mxu0 0.0
        %7347 = vmatprep.subr.mxu0 0.0
        %7348 = vmatpush1.msra.mxu0 0.0
        %7349 = vmatprep.subr.mxu0 0.0
        %7350 = vmatpush1.msra.mxu0 0.0
        %7351 = vmatprep.subr.mxu0 0.0
        %7352 = vmatpush1.msra.mxu0 0.0
        %7353 = vmatprep.subr.mxu0 0.0
        %7354 = vmatpush1.msra.mxu0 0.0
        %7355 = vmatprep.subr.mxu0 0.0
        %7356 = vmatpush1.msra.mxu0 0.0
        %7357 = vmatprep.subr.mxu0 0.0
        %7358 = vmatpush1.msra.mxu0 %v7320
        %7359 = vmatprep.subr.mxu0 0.0
        %7360 = vmatpush1.msra.mxu0 %v7319
        %7361 = vmatprep.subr.mxu0 0.0
        %7362 = vmatpush2.msra.mxu0 0.0
        %7363 = vmatprep.subr.mxu0 0.0
        %7364 = vmatpush2.msra.mxu0 0.0
        %7365 = vmatprep.subr.mxu0 0.0
        %7366 = vmatpush2.msra.mxu0 0.0
        %7367 = vmatprep.subr.mxu0 0.0
        %7368 = vmatpush2.msra.mxu0 0.0
        %7369 = vmatprep.subr.mxu0 0.0
        %7370 = vmatpush2.msra.mxu0 0.0
        %7371 = vmatprep.subr.mxu0 0.0
        %7372 = vmatpush2.msra.mxu0 0.0
        %7373 = vmatprep.subr.mxu0 0.0
        %7374 = vmatpush2.msra.mxu0 0.0
        %7375 = vmatprep.subr.mxu0 0.0
        %7376 = vmatpush2.msra.mxu0 0.0
        %7377 = vmatprep.subr.mxu0 0.0
        %7378 = vmatpush2.msra.mxu0 0.0
        %7379 = vmatprep.subr.mxu0 0.0
        %7380 = vmatpush2.msra.mxu0 0.0
        %7381 = vmatprep.subr.mxu0 0.0
        %7382 = vmatpush2.msra.mxu0 0.0
        %7383 = vmatprep.subr.mxu0 0.0
        %7384 = vmatpush2.msra.mxu0 0.0
        %7385 = vmatprep.subr.mxu0 0.0
        %7386 = vmatpush2.msra.mxu0 0.0
        %7387 = vmatprep.subr.mxu0 0.0
        %7388 = vmatpush2.msra.mxu0 0.0
        %7389 = vmatprep.subr.mxu0 0.0
        %7390 = vmatpush2.msra.mxu0 0.0
        %7391 = vmatprep.subr.mxu0 0.0
        %7392 = vmatpush2.msra.mxu0 0.0
        %7393 = vmatprep.mubr.f32.mxu0 0.0
        %7394 = vmatmul.mubr.f32.gmra.mxu0 %v7324
        %v7395 = vpop.f32.mrf.mxu0
        %v7396 = vadd.f32 0.0, %v7395
        %v7397 = vpop.f32.mrf.mxu0
        %7398 = vmatprep.mubr.f32.mxu0 0.0
        %7399 = vmatmul.mubr.f32.gmra.mxu0 %v7327
        %v7400 = vpop.f32.mrf.mxu0
        %v7401 = vadd.f32 0.0, %v7400
        %v7402 = vpop.f32.mrf.mxu0
        %7403 = vdwg.mxu0
        %v7408 = vcombine.low %v4238, %v4272
        %v7409 = vcombine.low %v4306, %v4340
        %v7413 = vsel %vm5951, %v6328, 0
        %v7416 = vsel %vm5951, %v6329, 0
        %7418 = vmatprep.subr.mxu0 0.0
        %7419 = vmatpush1.msra.mxu0 0.0
        %7420 = vmatprep.subr.mxu0 0.0
        %7421 = vmatpush1.msra.mxu0 0.0
        %7422 = vmatprep.subr.mxu0 0.0
        %7423 = vmatpush1.msra.mxu0 0.0
        %7424 = vmatprep.subr.mxu0 0.0
        %7425 = vmatpush1.msra.mxu0 0.0
        %7426 = vmatprep.subr.mxu0 0.0
        %7427 = vmatpush1.msra.mxu0 0.0
        %7428 = vmatprep.subr.mxu0 0.0
        %7429 = vmatpush1.msra.mxu0 0.0
        %7430 = vmatprep.subr.mxu0 0.0
        %7431 = vmatpush1.msra.mxu0 0.0
        %7432 = vmatprep.subr.mxu0 0.0
        %7433 = vmatpush1.msra.mxu0 0.0
        %7434 = vmatprep.subr.mxu0 0.0
        %7435 = vmatpush1.msra.mxu0 0.0
        %7436 = vmatprep.subr.mxu0 0.0
        %7437 = vmatpush1.msra.mxu0 0.0
        %7438 = vmatprep.subr.mxu0 0.0
        %7439 = vmatpush1.msra.mxu0 0.0
        %7440 = vmatprep.subr.mxu0 0.0
        %7441 = vmatpush1.msra.mxu0 0.0
        %7442 = vmatprep.subr.mxu0 0.0
        %7443 = vmatpush1.msra.mxu0 0.0
        %7444 = vmatprep.subr.mxu0 0.0
        %7445 = vmatpush1.msra.mxu0 0.0
        %7446 = vmatprep.subr.mxu0 0.0
        %7447 = vmatpush1.msra.mxu0 %v7409
        %7448 = vmatprep.subr.mxu0 0.0
        %7449 = vmatpush1.msra.mxu0 %v7408
        %7450 = vmatprep.subr.mxu0 0.0
        %7451 = vmatpush2.msra.mxu0 0.0
        %7452 = vmatprep.subr.mxu0 0.0
        %7453 = vmatpush2.msra.mxu0 0.0
        %7454 = vmatprep.subr.mxu0 0.0
        %7455 = vmatpush2.msra.mxu0 0.0
        %7456 = vmatprep.subr.mxu0 0.0
        %7457 = vmatpush2.msra.mxu0 0.0
        %7458 = vmatprep.subr.mxu0 0.0
        %7459 = vmatpush2.msra.mxu0 0.0
        %7460 = vmatprep.subr.mxu0 0.0
        %7461 = vmatpush2.msra.mxu0 0.0
        %7462 = vmatprep.subr.mxu0 0.0
        %7463 = vmatpush2.msra.mxu0 0.0
        %7464 = vmatprep.subr.mxu0 0.0
        %7465 = vmatpush2.msra.mxu0 0.0
        %7466 = vmatprep.subr.mxu0 0.0
        %7467 = vmatpush2.msra.mxu0 0.0
        %7468 = vmatprep.subr.mxu0 0.0
        %7469 = vmatpush2.msra.mxu0 0.0
        %7470 = vmatprep.subr.mxu0 0.0
        %7471 = vmatpush2.msra.mxu0 0.0
        %7472 = vmatprep.subr.mxu0 0.0
        %7473 = vmatpush2.msra.mxu0 0.0
        %7474 = vmatprep.subr.mxu0 0.0
        %7475 = vmatpush2.msra.mxu0 0.0
        %7476 = vmatprep.subr.mxu0 0.0
        %7477 = vmatpush2.msra.mxu0 0.0
        %7478 = vmatprep.subr.mxu0 0.0
        %7479 = vmatpush2.msra.mxu0 0.0
        %7480 = vmatprep.subr.mxu0 0.0
        %7481 = vmatpush2.msra.mxu0 0.0
        %7482 = vmatprep.mubr.f32.mxu0 0.0
        %7483 = vmatmul.mubr.f32.gmra.mxu0 %v7413
        %v7484 = vpop.f32.mrf.mxu0
        %v7485 = vadd.f32 0.0, %v7484
        %v7486 = vpop.f32.mrf.mxu0
        %7487 = vmatprep.mubr.f32.mxu0 0.0
        %7488 = vmatmul.mubr.f32.gmra.mxu0 %v7416
        %v7489 = vpop.f32.mrf.mxu0
        %v7490 = vadd.f32 0.0, %v7489
        %v7491 = vpop.f32.mrf.mxu0
        %7492 = vdwg.mxu0
        %v7497 = vcombine.low %v4246, %v4280
        %v7498 = vcombine.low %v4314, %v4348
        %v7502 = vsel %vm5951, %v6330, 0
        %v7505 = vsel %vm5951, %v6331, 0
        %7507 = vmatprep.subr.mxu0 0.0
        %7508 = vmatpush1.msra.mxu0 0.0
        %7509 = vmatprep.subr.mxu0 0.0
        %7510 = vmatpush1.msra.mxu0 0.0
        %7511 = vmatprep.subr.mxu0 0.0
        %7512 = vmatpush1.msra.mxu0 0.0
        %7513 = vmatprep.subr.mxu0 0.0
        %7514 = vmatpush1.msra.mxu0 0.0
        %7515 = vmatprep.subr.mxu0 0.0
        %7516 = vmatpush1.msra.mxu0 0.0
        %7517 = vmatprep.subr.mxu0 0.0
        %7518 = vmatpush1.msra.mxu0 0.0
        %7519 = vmatprep.subr.mxu0 0.0
        %7520 = vmatpush1.msra.mxu0 0.0
        %7521 = vmatprep.subr.mxu0 0.0
        %7522 = vmatpush1.msra.mxu0 0.0
        %7523 = vmatprep.subr.mxu0 0.0
        %7524 = vmatpush1.msra.mxu0 0.0
        %7525 = vmatprep.subr.mxu0 0.0
        %7526 = vmatpush1.msra.mxu0 0.0
        %7527 = vmatprep.subr.mxu0 0.0
        %7528 = vmatpush1.msra.mxu0 0.0
        %7529 = vmatprep.subr.mxu0 0.0
        %7530 = vmatpush1.msra.mxu0 0.0
        %7531 = vmatprep.subr.mxu0 0.0
        %7532 = vmatpush1.msra.mxu0 0.0
        %7533 = vmatprep.subr.mxu0 0.0
        %7534 = vmatpush1.msra.mxu0 0.0
        %7535 = vmatprep.subr.mxu0 0.0
        %7536 = vmatpush1.msra.mxu0 %v7498
        %7537 = vmatprep.subr.mxu0 0.0
        %7538 = vmatpush1.msra.mxu0 %v7497
        %7539 = vmatprep.subr.mxu0 0.0
        %7540 = vmatpush2.msra.mxu0 0.0
        %7541 = vmatprep.subr.mxu0 0.0
        %7542 = vmatpush2.msra.mxu0 0.0
        %7543 = vmatprep.subr.mxu0 0.0
        %7544 = vmatpush2.msra.mxu0 0.0
        %7545 = vmatprep.subr.mxu0 0.0
        %7546 = vmatpush2.msra.mxu0 0.0
        %7547 = vmatprep.subr.mxu0 0.0
        %7548 = vmatpush2.msra.mxu0 0.0
        %7549 = vmatprep.subr.mxu0 0.0
        %7550 = vmatpush2.msra.mxu0 0.0
        %7551 = vmatprep.subr.mxu0 0.0
        %7552 = vmatpush2.msra.mxu0 0.0
        %7553 = vmatprep.subr.mxu0 0.0
        %7554 = vmatpush2.msra.mxu0 0.0
        %7555 = vmatprep.subr.mxu0 0.0
        %7556 = vmatpush2.msra.mxu0 0.0
        %7557 = vmatprep.subr.mxu0 0.0
        %7558 = vmatpush2.msra.mxu0 0.0
        %7559 = vmatprep.subr.mxu0 0.0
        %7560 = vmatpush2.msra.mxu0 0.0
        %7561 = vmatprep.subr.mxu0 0.0
        %7562 = vmatpush2.msra.mxu0 0.0
        %7563 = vmatprep.subr.mxu0 0.0
        %7564 = vmatpush2.msra.mxu0 0.0
        %7565 = vmatprep.subr.mxu0 0.0
        %7566 = vmatpush2.msra.mxu0 0.0
        %7567 = vmatprep.subr.mxu0 0.0
        %7568 = vmatpush2.msra.mxu0 0.0
        %7569 = vmatprep.subr.mxu0 0.0
        %7570 = vmatpush2.msra.mxu0 0.0
        %7571 = vmatprep.mubr.f32.mxu0 0.0
        %7572 = vmatmul.mubr.f32.gmra.mxu0 %v7502
        %v7573 = vpop.f32.mrf.mxu0
        %v7574 = vadd.f32 0.0, %v7573
        %v7575 = vpop.f32.mrf.mxu0
        %7576 = vmatprep.mubr.f32.mxu0 0.0
        %7577 = vmatmul.mubr.f32.gmra.mxu0 %v7505
        %v7578 = vpop.f32.mrf.mxu0
        %v7579 = vadd.f32 0.0, %v7578
        %v7580 = vpop.f32.mrf.mxu0
        %7581 = vdwg.mxu0
        %v7586 = vcombine.low %v4245, %v4279
        %v7587 = vcombine.low %v4313, %v4347
        %v7591 = vsel %vm5951, %v6332, 0
        %v7594 = vsel %vm5951, %v6333, 0
        %7596 = vmatprep.subr.mxu0 0.0
        %7597 = vmatpush1.msra.mxu0 0.0
        %7598 = vmatprep.subr.mxu0 0.0
        %7599 = vmatpush1.msra.mxu0 0.0
        %7600 = vmatprep.subr.mxu0 0.0
        %7601 = vmatpush1.msra.mxu0 0.0
        %7602 = vmatprep.subr.mxu0 0.0
        %7603 = vmatpush1.msra.mxu0 0.0
        %7604 = vmatprep.subr.mxu0 0.0
        %7605 = vmatpush1.msra.mxu0 0.0
        %7606 = vmatprep.subr.mxu0 0.0
        %7607 = vmatpush1.msra.mxu0 0.0
        %7608 = vmatprep.subr.mxu0 0.0
        %7609 = vmatpush1.msra.mxu0 0.0
        %7610 = vmatprep.subr.mxu0 0.0
        %7611 = vmatpush1.msra.mxu0 0.0
        %7612 = vmatprep.subr.mxu0 0.0
        %7613 = vmatpush1.msra.mxu0 0.0
        %7614 = vmatprep.subr.mxu0 0.0
        %7615 = vmatpush1.msra.mxu0 0.0
        %7616 = vmatprep.subr.mxu0 0.0
        %7617 = vmatpush1.msra.mxu0 0.0
        %7618 = vmatprep.subr.mxu0 0.0
        %7619 = vmatpush1.msra.mxu0 0.0
        %7620 = vmatprep.subr.mxu0 0.0
        %7621 = vmatpush1.msra.mxu0 0.0
        %7622 = vmatprep.subr.mxu0 0.0
        %7623 = vmatpush1.msra.mxu0 0.0
        %7624 = vmatprep.subr.mxu0 0.0
        %7625 = vmatpush1.msra.mxu0 %v7587
        %7626 = vmatprep.subr.mxu0 0.0
        %7627 = vmatpush1.msra.mxu0 %v7586
        %7628 = vmatprep.subr.mxu0 0.0
        %7629 = vmatpush2.msra.mxu0 0.0
        %7630 = vmatprep.subr.mxu0 0.0
        %7631 = vmatpush2.msra.mxu0 0.0
        %7632 = vmatprep.subr.mxu0 0.0
        %7633 = vmatpush2.msra.mxu0 0.0
        %7634 = vmatprep.subr.mxu0 0.0
        %7635 = vmatpush2.msra.mxu0 0.0
        %7636 = vmatprep.subr.mxu0 0.0
        %7637 = vmatpush2.msra.mxu0 0.0
        %7638 = vmatprep.subr.mxu0 0.0
        %7639 = vmatpush2.msra.mxu0 0.0
        %7640 = vmatprep.subr.mxu0 0.0
        %7641 = vmatpush2.msra.mxu0 0.0
        %7642 = vmatprep.subr.mxu0 0.0
        %7643 = vmatpush2.msra.mxu0 0.0
        %7644 = vmatprep.subr.mxu0 0.0
        %7645 = vmatpush2.msra.mxu0 0.0
        %7646 = vmatprep.subr.mxu0 0.0
        %7647 = vmatpush2.msra.mxu0 0.0
        %7648 = vmatprep.subr.mxu0 0.0
        %7649 = vmatpush2.msra.mxu0 0.0
        %7650 = vmatprep.subr.mxu0 0.0
        %7651 = vmatpush2.msra.mxu0 0.0
        %7652 = vmatprep.subr.mxu0 0.0
        %7653 = vmatpush2.msra.mxu0 0.0
        %7654 = vmatprep.subr.mxu0 0.0
        %7655 = vmatpush2.msra.mxu0 0.0
        %7656 = vmatprep.subr.mxu0 0.0
        %7657 = vmatpush2.msra.mxu0 0.0
        %7658 = vmatprep.subr.mxu0 0.0
        %7659 = vmatpush2.msra.mxu0 0.0
        %7660 = vmatprep.mubr.f32.mxu0 0.0
        %7661 = vmatmul.mubr.f32.gmra.mxu0 %v7591
        %v7662 = vpop.f32.mrf.mxu0
        %v7663 = vadd.f32 0.0, %v7662
        %v7664 = vpop.f32.mrf.mxu0
        %7665 = vmatprep.mubr.f32.mxu0 0.0
        %7666 = vmatmul.mubr.f32.gmra.mxu0 %v7594
        %v7667 = vpop.f32.mrf.mxu0
        %v7668 = vadd.f32 0.0, %v7667
        %v7669 = vpop.f32.mrf.mxu0
        %7670 = vdwg.mxu0
        %v7675 = vcombine.low %v4247, %v4281
        %v7676 = vcombine.low %v4315, %v4349
        %v7680 = vsel %vm5951, %v6334, 0
        %v7683 = vsel %vm5951, %v6335, 0
        %7685 = vmatprep.subr.mxu0 0.0
        %7686 = vmatpush1.msra.mxu0 0.0
        %7687 = vmatprep.subr.mxu0 0.0
        %7688 = vmatpush1.msra.mxu0 0.0
        %7689 = vmatprep.subr.mxu0 0.0
        %7690 = vmatpush1.msra.mxu0 0.0
        %7691 = vmatprep.subr.mxu0 0.0
        %7692 = vmatpush1.msra.mxu0 0.0
        %7693 = vmatprep.subr.mxu0 0.0
        %7694 = vmatpush1.msra.mxu0 0.0
        %7695 = vmatprep.subr.mxu0 0.0
        %7696 = vmatpush1.msra.mxu0 0.0
        %7697 = vmatprep.subr.mxu0 0.0
        %7698 = vmatpush1.msra.mxu0 0.0
        %7699 = vmatprep.subr.mxu0 0.0
        %7700 = vmatpush1.msra.mxu0 0.0
        %7701 = vmatprep.subr.mxu0 0.0
        %7702 = vmatpush1.msra.mxu0 0.0
        %7703 = vmatprep.subr.mxu0 0.0
        %7704 = vmatpush1.msra.mxu0 0.0
        %7705 = vmatprep.subr.mxu0 0.0
        %7706 = vmatpush1.msra.mxu0 0.0
        %7707 = vmatprep.subr.mxu0 0.0
        %7708 = vmatpush1.msra.mxu0 0.0
        %7709 = vmatprep.subr.mxu0 0.0
        %7710 = vmatpush1.msra.mxu0 0.0
        %7711 = vmatprep.subr.mxu0 0.0
        %7712 = vmatpush1.msra.mxu0 0.0
        %7713 = vmatprep.subr.mxu0 0.0
        %7714 = vmatpush1.msra.mxu0 %v7676
        %7715 = vmatprep.subr.mxu0 0.0
        %7716 = vmatpush1.msra.mxu0 %v7675
        %7717 = vmatprep.subr.mxu0 0.0
        %7718 = vmatpush2.msra.mxu0 0.0
        %7719 = vmatprep.subr.mxu0 0.0
        %7720 = vmatpush2.msra.mxu0 0.0
        %7721 = vmatprep.subr.mxu0 0.0
        %7722 = vmatpush2.msra.mxu0 0.0
        %7723 = vmatprep.subr.mxu0 0.0
        %7724 = vmatpush2.msra.mxu0 0.0
        %7725 = vmatprep.subr.mxu0 0.0
        %7726 = vmatpush2.msra.mxu0 0.0
        %7727 = vmatprep.subr.mxu0 0.0
        %7728 = vmatpush2.msra.mxu0 0.0
        %7729 = vmatprep.subr.mxu0 0.0
        %7730 = vmatpush2.msra.mxu0 0.0
        %7731 = vmatprep.subr.mxu0 0.0
        %7732 = vmatpush2.msra.mxu0 0.0
        %7733 = vmatprep.subr.mxu0 0.0
        %7734 = vmatpush2.msra.mxu0 0.0
        %7735 = vmatprep.subr.mxu0 0.0
        %7736 = vmatpush2.msra.mxu0 0.0
        %7737 = vmatprep.subr.mxu0 0.0
        %7738 = vmatpush2.msra.mxu0 0.0
        %7739 = vmatprep.subr.mxu0 0.0
        %7740 = vmatpush2.msra.mxu0 0.0
        %7741 = vmatprep.subr.mxu0 0.0
        %7742 = vmatpush2.msra.mxu0 0.0
        %7743 = vmatprep.subr.mxu0 0.0
        %7744 = vmatpush2.msra.mxu0 0.0
        %7745 = vmatprep.subr.mxu0 0.0
        %7746 = vmatpush2.msra.mxu0 0.0
        %7747 = vmatprep.subr.mxu0 0.0
        %7748 = vmatpush2.msra.mxu0 0.0
        %7749 = vmatprep.mubr.f32.mxu0 0.0
        %7750 = vmatmul.mubr.f32.gmra.mxu0 %v7680
        %v7751 = vpop.f32.mrf.mxu0
        %v7752 = vadd.f32 0.0, %v7751
        %v7753 = vpop.f32.mrf.mxu0
        %7754 = vmatprep.mubr.f32.mxu0 0.0
        %7755 = vmatmul.mubr.f32.gmra.mxu0 %v7683
        %v7756 = vpop.f32.mrf.mxu0
        %v7757 = vadd.f32 0.0, %v7756
        %v7758 = vpop.f32.mrf.mxu0
        %7759 = vdwg.mxu0
        %v7760 = vcombine.low %v6417, %v6595
        %v7761 = vcombine.high %v6417, %v6595
        %v7763 = vunpack.c.l.s4 1983009808
        %v7764 = vunpack.c.0.s8 %v7763
        %v7765 = vlaneseq
        %v7766 = vshrl.u32 %v7765, 7
        %v7767 = vsub.s32 %v7764, %v7766
        %v7768 = vrot.slane %v7760, %v7767
        %v7770 = vunpack.c.l.s4 1983009808
        %v7771 = vunpack.c.0.s8 %v7770
        %v7772 = vlaneseq
        %v7773 = vshrl.u32 %v7772, 7
        %v7774 = vsub.s32 %v7771, %v7773
        %v7775 = vrot.slane %v7761, %v7774
        %v7776 = vcombine.low %v6506, %v6684
        %v7777 = vcombine.high %v6506, %v6684
        %v7779 = vunpack.c.l.s4 1983009808
        %v7780 = vunpack.c.0.s8 %v7779
        %v7781 = vlaneseq
        %v7782 = vshrl.u32 %v7781, 7
        %v7783 = vsub.s32 %v7780, %v7782
        %v7784 = vrot.slane %v7776, %v7783
        %v7786 = vunpack.c.l.s4 1983009808
        %v7787 = vunpack.c.0.s8 %v7786
        %v7788 = vlaneseq
        %v7789 = vshrl.u32 %v7788, 7
        %v7790 = vsub.s32 %v7787, %v7789
        %v7791 = vrot.slane %v7777, %v7790
        %v7792 = vcombine.low %v7768, %v7784
        %v7793 = vcombine.high %v7768, %v7784
        %v7795 = vunpack.c.l.s4 1934713408
        %v7796 = vunpack.c.0.s8 %v7795
        %v7797 = vlaneseq
        %v7798 = vshrl.u32 %v7797, 7
        %v7799 = vsub.s32 %v7796, %v7798
        %v7800 = vrot.slane %v7792, %v7799
        %v7802 = vunpack.c.l.s4 1934713408
        %v7803 = vunpack.c.0.s8 %v7802
        %v7804 = vlaneseq
        %v7805 = vshrl.u32 %v7804, 7
        %v7806 = vsub.s32 %v7803, %v7805
        %v7807 = vrot.slane %v7793, %v7806
        %v7808 = vcombine.low %v7775, %v7791
        %v7809 = vcombine.high %v7775, %v7791
        %v7811 = vunpack.c.l.s4 1934713408
        %v7812 = vunpack.c.0.s8 %v7811
        %v7813 = vlaneseq
        %v7814 = vshrl.u32 %v7813, 7
        %v7815 = vsub.s32 %v7812, %v7814
        %v7816 = vrot.slane %v7808, %v7815
        %v7818 = vunpack.c.l.s4 1934713408
        %v7819 = vunpack.c.0.s8 %v7818
        %v7820 = vlaneseq
        %v7821 = vshrl.u32 %v7820, 7
        %v7822 = vsub.s32 %v7819, %v7821
        %v7823 = vrot.slane %v7809, %v7822
        %v7824 = vcombine.high %v7800, 0.0
        %v7825 = vcombine.high %v7807, 0.0
        %v7826 = vcombine.high %v7816, 0.0
        %v7827 = vcombine.high %v7823, 0.0
        %v7828 = vcombine.low %v6422, %v6600
        %v7829 = vcombine.high %v6422, %v6600
        %v7831 = vunpack.c.l.s4 1983009808
        %v7832 = vunpack.c.0.s8 %v7831
        %v7833 = vlaneseq
        %v7834 = vshrl.u32 %v7833, 7
        %v7835 = vsub.s32 %v7832, %v7834
        %v7836 = vrot.slane %v7828, %v7835
        %v7838 = vunpack.c.l.s4 1983009808
        %v7839 = vunpack.c.0.s8 %v7838
        %v7840 = vlaneseq
        %v7841 = vshrl.u32 %v7840, 7
        %v7842 = vsub.s32 %v7839, %v7841
        %v7843 = vrot.slane %v7829, %v7842
        %v7844 = vcombine.low %v6511, %v6689
        %v7845 = vcombine.high %v6511, %v6689
        %v7847 = vunpack.c.l.s4 1983009808
        %v7848 = vunpack.c.0.s8 %v7847
        %v7849 = vlaneseq
        %v7850 = vshrl.u32 %v7849, 7
        %v7851 = vsub.s32 %v7848, %v7850
        %v7852 = vrot.slane %v7844, %v7851
        %v7854 = vunpack.c.l.s4 1983009808
        %v7855 = vunpack.c.0.s8 %v7854
        %v7856 = vlaneseq
        %v7857 = vshrl.u32 %v7856, 7
        %v7858 = vsub.s32 %v7855, %v7857
        %v7859 = vrot.slane %v7845, %v7858
        %v7860 = vcombine.low %v7836, %v7852
        %v7861 = vcombine.high %v7836, %v7852
        %v7863 = vunpack.c.l.s4 1934713408
        %v7864 = vunpack.c.0.s8 %v7863
        %v7865 = vlaneseq
        %v7866 = vshrl.u32 %v7865, 7
        %v7867 = vsub.s32 %v7864, %v7866
        %v7868 = vrot.slane %v7860, %v7867
        %v7870 = vunpack.c.l.s4 1934713408
        %v7871 = vunpack.c.0.s8 %v7870
        %v7872 = vlaneseq
        %v7873 = vshrl.u32 %v7872, 7
        %v7874 = vsub.s32 %v7871, %v7873
        %v7875 = vrot.slane %v7861, %v7874
        %v7876 = vcombine.low %v7843, %v7859
        %v7877 = vcombine.high %v7843, %v7859
        %v7879 = vunpack.c.l.s4 1934713408
        %v7880 = vunpack.c.0.s8 %v7879
        %v7881 = vlaneseq
        %v7882 = vshrl.u32 %v7881, 7
        %v7883 = vsub.s32 %v7880, %v7882
        %v7884 = vrot.slane %v7876, %v7883
        %v7886 = vunpack.c.l.s4 1934713408
        %v7887 = vunpack.c.0.s8 %v7886
        %v7888 = vlaneseq
        %v7889 = vshrl.u32 %v7888, 7
        %v7890 = vsub.s32 %v7887, %v7889
        %v7891 = vrot.slane %v7877, %v7890
        %v7892 = vcombine.high %v7868, 0.0
        %v7893 = vcombine.high %v7875, 0.0
        %v7894 = vcombine.high %v7884, 0.0
        %v7895 = vcombine.high %v7891, 0.0
        %v7896 = vcombine.low %v6773, %v6951
        %v7897 = vcombine.high %v6773, %v6951
        %v7899 = vunpack.c.l.s4 1983009808
        %v7900 = vunpack.c.0.s8 %v7899
        %v7901 = vlaneseq
        %v7902 = vshrl.u32 %v7901, 7
        %v7903 = vsub.s32 %v7900, %v7902
        %v7904 = vrot.slane %v7896, %v7903
        %v7906 = vunpack.c.l.s4 1983009808
        %v7907 = vunpack.c.0.s8 %v7906
        %v7908 = vlaneseq
        %v7909 = vshrl.u32 %v7908, 7
        %v7910 = vsub.s32 %v7907, %v7909
        %v7911 = vrot.slane %v7897, %v7910
        %v7912 = vcombine.low %v6862, %v7040
        %v7913 = vcombine.high %v6862, %v7040
        %v7915 = vunpack.c.l.s4 1983009808
        %v7916 = vunpack.c.0.s8 %v7915
        %v7917 = vlaneseq
        %v7918 = vshrl.u32 %v7917, 7
        %v7919 = vsub.s32 %v7916, %v7918
        %v7920 = vrot.slane %v7912, %v7919
        %v7922 = vunpack.c.l.s4 1983009808
        %v7923 = vunpack.c.0.s8 %v7922
        %v7924 = vlaneseq
        %v7925 = vshrl.u32 %v7924, 7
        %v7926 = vsub.s32 %v7923, %v7925
        %v7927 = vrot.slane %v7913, %v7926
        %v7928 = vcombine.low %v7904, %v7920
        %v7929 = vcombine.high %v7904, %v7920
        %v7931 = vunpack.c.l.s4 1934713408
        %v7932 = vunpack.c.0.s8 %v7931
        %v7933 = vlaneseq
        %v7934 = vshrl.u32 %v7933, 7
        %v7935 = vsub.s32 %v7932, %v7934
        %v7936 = vrot.slane %v7928, %v7935
        %v7938 = vunpack.c.l.s4 1934713408
        %v7939 = vunpack.c.0.s8 %v7938
        %v7940 = vlaneseq
        %v7941 = vshrl.u32 %v7940, 7
        %v7942 = vsub.s32 %v7939, %v7941
        %v7943 = vrot.slane %v7929, %v7942
        %v7944 = vcombine.low %v7911, %v7927
        %v7945 = vcombine.high %v7911, %v7927
        %v7947 = vunpack.c.l.s4 1934713408
        %v7948 = vunpack.c.0.s8 %v7947
        %v7949 = vlaneseq
        %v7950 = vshrl.u32 %v7949, 7
        %v7951 = vsub.s32 %v7948, %v7950
        %v7952 = vrot.slane %v7944, %v7951
        %v7954 = vunpack.c.l.s4 1934713408
        %v7955 = vunpack.c.0.s8 %v7954
        %v7956 = vlaneseq
        %v7957 = vshrl.u32 %v7956, 7
        %v7958 = vsub.s32 %v7955, %v7957
        %v7959 = vrot.slane %v7945, %v7958
        %v7960 = vcombine.high %v7936, 0.0
        %v7961 = vcombine.high %v7943, 0.0
        %v7962 = vcombine.high %v7952, 0.0
        %v7963 = vcombine.high %v7959, 0.0
        %v7964 = vcombine.low %v6778, %v6956
        %v7965 = vcombine.high %v6778, %v6956
        %v7967 = vunpack.c.l.s4 1983009808
        %v7968 = vunpack.c.0.s8 %v7967
        %v7969 = vlaneseq
        %v7970 = vshrl.u32 %v7969, 7
        %v7971 = vsub.s32 %v7968, %v7970
        %v7972 = vrot.slane %v7964, %v7971
        %v7974 = vunpack.c.l.s4 1983009808
        %v7975 = vunpack.c.0.s8 %v7974
        %v7976 = vlaneseq
        %v7977 = vshrl.u32 %v7976, 7
        %v7978 = vsub.s32 %v7975, %v7977
        %v7979 = vrot.slane %v7965, %v7978
        %v7980 = vcombine.low %v6867, %v7045
        %v7981 = vcombine.high %v6867, %v7045
        %v7983 = vunpack.c.l.s4 1983009808
        %v7984 = vunpack.c.0.s8 %v7983
        %v7985 = vlaneseq
        %v7986 = vshrl.u32 %v7985, 7
        %v7987 = vsub.s32 %v7984, %v7986
        %v7988 = vrot.slane %v7980, %v7987
        %v7990 = vunpack.c.l.s4 1983009808
        %v7991 = vunpack.c.0.s8 %v7990
        %v7992 = vlaneseq
        %v7993 = vshrl.u32 %v7992, 7
        %v7994 = vsub.s32 %v7991, %v7993
        %v7995 = vrot.slane %v7981, %v7994
        %v7996 = vcombine.low %v7972, %v7988
        %v7997 = vcombine.high %v7972, %v7988
        %v7999 = vunpack.c.l.s4 1934713408
        %v8000 = vunpack.c.0.s8 %v7999
        %v8001 = vlaneseq
        %v8002 = vshrl.u32 %v8001, 7
        %v8003 = vsub.s32 %v8000, %v8002
        %v8004 = vrot.slane %v7996, %v8003
        %v8006 = vunpack.c.l.s4 1934713408
        %v8007 = vunpack.c.0.s8 %v8006
        %v8008 = vlaneseq
        %v8009 = vshrl.u32 %v8008, 7
        %v8010 = vsub.s32 %v8007, %v8009
        %v8011 = vrot.slane %v7997, %v8010
        %v8012 = vcombine.low %v7979, %v7995
        %v8013 = vcombine.high %v7979, %v7995
        %v8015 = vunpack.c.l.s4 1934713408
        %v8016 = vunpack.c.0.s8 %v8015
        %v8017 = vlaneseq
        %v8018 = vshrl.u32 %v8017, 7
        %v8019 = vsub.s32 %v8016, %v8018
        %v8020 = vrot.slane %v8012, %v8019
        %v8022 = vunpack.c.l.s4 1934713408
        %v8023 = vunpack.c.0.s8 %v8022
        %v8024 = vlaneseq
        %v8025 = vshrl.u32 %v8024, 7
        %v8026 = vsub.s32 %v8023, %v8025
        %v8027 = vrot.slane %v8013, %v8026
        %v8028 = vcombine.high %v8004, 0.0
        %v8029 = vcombine.high %v8011, 0.0
        %v8030 = vcombine.high %v8020, 0.0
        %v8031 = vcombine.high %v8027, 0.0
        %v8032 = vcombine.low %v7129, %v7307
        %v8033 = vcombine.high %v7129, %v7307
        %v8035 = vunpack.c.l.s4 1983009808
        %v8036 = vunpack.c.0.s8 %v8035
        %v8037 = vlaneseq
        %v8038 = vshrl.u32 %v8037, 7
        %v8039 = vsub.s32 %v8036, %v8038
        %v8040 = vrot.slane %v8032, %v8039
        %v8042 = vunpack.c.l.s4 1983009808
        %v8043 = vunpack.c.0.s8 %v8042
        %v8044 = vlaneseq
        %v8045 = vshrl.u32 %v8044, 7
        %v8046 = vsub.s32 %v8043, %v8045
        %v8047 = vrot.slane %v8033, %v8046
        %v8048 = vcombine.low %v7218, %v7396
        %v8049 = vcombine.high %v7218, %v7396
        %v8051 = vunpack.c.l.s4 1983009808
        %v8052 = vunpack.c.0.s8 %v8051
        %v8053 = vlaneseq
        %v8054 = vshrl.u32 %v8053, 7
        %v8055 = vsub.s32 %v8052, %v8054
        %v8056 = vrot.slane %v8048, %v8055
        %v8058 = vunpack.c.l.s4 1983009808
        %v8059 = vunpack.c.0.s8 %v8058
        %v8060 = vlaneseq
        %v8061 = vshrl.u32 %v8060, 7
        %v8062 = vsub.s32 %v8059, %v8061
        %v8063 = vrot.slane %v8049, %v8062
        %v8064 = vcombine.low %v8040, %v8056
        %v8065 = vcombine.high %v8040, %v8056
        %v8067 = vunpack.c.l.s4 1934713408
        %v8068 = vunpack.c.0.s8 %v8067
        %v8069 = vlaneseq
        %v8070 = vshrl.u32 %v8069, 7
        %v8071 = vsub.s32 %v8068, %v8070
        %v8072 = vrot.slane %v8064, %v8071
        %v8074 = vunpack.c.l.s4 1934713408
        %v8075 = vunpack.c.0.s8 %v8074
        %v8076 = vlaneseq
        %v8077 = vshrl.u32 %v8076, 7
        %v8078 = vsub.s32 %v8075, %v8077
        %v8079 = vrot.slane %v8065, %v8078
        %v8080 = vcombine.low %v8047, %v8063
        %v8081 = vcombine.high %v8047, %v8063
        %v8083 = vunpack.c.l.s4 1934713408
        %v8084 = vunpack.c.0.s8 %v8083
        %v8085 = vlaneseq
        %v8086 = vshrl.u32 %v8085, 7
        %v8087 = vsub.s32 %v8084, %v8086
        %v8088 = vrot.slane %v8080, %v8087
        %v8090 = vunpack.c.l.s4 1934713408
        %v8091 = vunpack.c.0.s8 %v8090
        %v8092 = vlaneseq
        %v8093 = vshrl.u32 %v8092, 7
        %v8094 = vsub.s32 %v8091, %v8093
        %v8095 = vrot.slane %v8081, %v8094
        %v8096 = vcombine.high %v8072, 0.0
        %v8097 = vcombine.high %v8079, 0.0
        %v8098 = vcombine.high %v8088, 0.0
        %v8099 = vcombine.high %v8095, 0.0
        %v8100 = vcombine.low %v7134, %v7312
        %v8101 = vcombine.high %v7134, %v7312
        %v8103 = vunpack.c.l.s4 1983009808
        %v8104 = vunpack.c.0.s8 %v8103
        %v8105 = vlaneseq
        %v8106 = vshrl.u32 %v8105, 7
        %v8107 = vsub.s32 %v8104, %v8106
        %v8108 = vrot.slane %v8100, %v8107
        %v8110 = vunpack.c.l.s4 1983009808
        %v8111 = vunpack.c.0.s8 %v8110
        %v8112 = vlaneseq
        %v8113 = vshrl.u32 %v8112, 7
        %v8114 = vsub.s32 %v8111, %v8113
        %v8115 = vrot.slane %v8101, %v8114
        %v8116 = vcombine.low %v7223, %v7401
        %v8117 = vcombine.high %v7223, %v7401
        %v8119 = vunpack.c.l.s4 1983009808
        %v8120 = vunpack.c.0.s8 %v8119
        %v8121 = vlaneseq
        %v8122 = vshrl.u32 %v8121, 7
        %v8123 = vsub.s32 %v8120, %v8122
        %v8124 = vrot.slane %v8116, %v8123
        %v8126 = vunpack.c.l.s4 1983009808
        %v8127 = vunpack.c.0.s8 %v8126
        %v8128 = vlaneseq
        %v8129 = vshrl.u32 %v8128, 7
        %v8130 = vsub.s32 %v8127, %v8129
        %v8131 = vrot.slane %v8117, %v8130
        %v8132 = vcombine.low %v8108, %v8124
        %v8133 = vcombine.high %v8108, %v8124
        %v8135 = vunpack.c.l.s4 1934713408
        %v8136 = vunpack.c.0.s8 %v8135
        %v8137 = vlaneseq
        %v8138 = vshrl.u32 %v8137, 7
        %v8139 = vsub.s32 %v8136, %v8138
        %v8140 = vrot.slane %v8132, %v8139
        %v8142 = vunpack.c.l.s4 1934713408
        %v8143 = vunpack.c.0.s8 %v8142
        %v8144 = vlaneseq
        %v8145 = vshrl.u32 %v8144, 7
        %v8146 = vsub.s32 %v8143, %v8145
        %v8147 = vrot.slane %v8133, %v8146
        %v8148 = vcombine.low %v8115, %v8131
        %v8149 = vcombine.high %v8115, %v8131
        %v8151 = vunpack.c.l.s4 1934713408
        %v8152 = vunpack.c.0.s8 %v8151
        %v8153 = vlaneseq
        %v8154 = vshrl.u32 %v8153, 7
        %v8155 = vsub.s32 %v8152, %v8154
        %v8156 = vrot.slane %v8148, %v8155
        %v8158 = vunpack.c.l.s4 1934713408
        %v8159 = vunpack.c.0.s8 %v8158
        %v8160 = vlaneseq
        %v8161 = vshrl.u32 %v8160, 7
        %v8162 = vsub.s32 %v8159, %v8161
        %v8163 = vrot.slane %v8149, %v8162
        %v8164 = vcombine.high %v8140, 0.0
        %v8165 = vcombine.high %v8147, 0.0
        %v8166 = vcombine.high %v8156, 0.0
        %v8167 = vcombine.high %v8163, 0.0
        %v8168 = vcombine.low %v7485, %v7663
        %v8169 = vcombine.high %v7485, %v7663
        %v8171 = vunpack.c.l.s4 1983009808
        %v8172 = vunpack.c.0.s8 %v8171
        %v8173 = vlaneseq
        %v8174 = vshrl.u32 %v8173, 7
        %v8175 = vsub.s32 %v8172, %v8174
        %v8176 = vrot.slane %v8168, %v8175
        %v8178 = vunpack.c.l.s4 1983009808
        %v8179 = vunpack.c.0.s8 %v8178
        %v8180 = vlaneseq
        %v8181 = vshrl.u32 %v8180, 7
        %v8182 = vsub.s32 %v8179, %v8181
        %v8183 = vrot.slane %v8169, %v8182
        %v8184 = vcombine.low %v7574, %v7752
        %v8185 = vcombine.high %v7574, %v7752
        %v8187 = vunpack.c.l.s4 1983009808
        %v8188 = vunpack.c.0.s8 %v8187
        %v8189 = vlaneseq
        %v8190 = vshrl.u32 %v8189, 7
        %v8191 = vsub.s32 %v8188, %v8190
        %v8192 = vrot.slane %v8184, %v8191
        %v8194 = vunpack.c.l.s4 1983009808
        %v8195 = vunpack.c.0.s8 %v8194
        %v8196 = vlaneseq
        %v8197 = vshrl.u32 %v8196, 7
        %v8198 = vsub.s32 %v8195, %v8197
        %v8199 = vrot.slane %v8185, %v8198
        %v8200 = vcombine.low %v8176, %v8192
        %v8201 = vcombine.high %v8176, %v8192
        %v8203 = vunpack.c.l.s4 1934713408
        %v8204 = vunpack.c.0.s8 %v8203
        %v8205 = vlaneseq
        %v8206 = vshrl.u32 %v8205, 7
        %v8207 = vsub.s32 %v8204, %v8206
        %v8208 = vrot.slane %v8200, %v8207
        %v8210 = vunpack.c.l.s4 1934713408
        %v8211 = vunpack.c.0.s8 %v8210
        %v8212 = vlaneseq
        %v8213 = vshrl.u32 %v8212, 7
        %v8214 = vsub.s32 %v8211, %v8213
        %v8215 = vrot.slane %v8201, %v8214
        %v8216 = vcombine.low %v8183, %v8199
        %v8217 = vcombine.high %v8183, %v8199
        %v8219 = vunpack.c.l.s4 1934713408
        %v8220 = vunpack.c.0.s8 %v8219
        %v8221 = vlaneseq
        %v8222 = vshrl.u32 %v8221, 7
        %v8223 = vsub.s32 %v8220, %v8222
        %v8224 = vrot.slane %v8216, %v8223
        %v8226 = vunpack.c.l.s4 1934713408
        %v8227 = vunpack.c.0.s8 %v8226
        %v8228 = vlaneseq
        %v8229 = vshrl.u32 %v8228, 7
        %v8230 = vsub.s32 %v8227, %v8229
        %v8231 = vrot.slane %v8217, %v8230
        %v8232 = vcombine.high %v8208, 0.0
        %v8233 = vcombine.high %v8215, 0.0
        %v8234 = vcombine.high %v8224, 0.0
        %v8235 = vcombine.high %v8231, 0.0
        %v8236 = vcombine.low %v7490, %v7668
        %v8237 = vcombine.high %v7490, %v7668
        %v8239 = vunpack.c.l.s4 1983009808
        %v8240 = vunpack.c.0.s8 %v8239
        %v8241 = vlaneseq
        %v8242 = vshrl.u32 %v8241, 7
        %v8243 = vsub.s32 %v8240, %v8242
        %v8244 = vrot.slane %v8236, %v8243
        %v8246 = vunpack.c.l.s4 1983009808
        %v8247 = vunpack.c.0.s8 %v8246
        %v8248 = vlaneseq
        %v8249 = vshrl.u32 %v8248, 7
        %v8250 = vsub.s32 %v8247, %v8249
        %v8251 = vrot.slane %v8237, %v8250
        %v8252 = vcombine.low %v7579, %v7757
        %v8253 = vcombine.high %v7579, %v7757
        %v8255 = vunpack.c.l.s4 1983009808
        %v8256 = vunpack.c.0.s8 %v8255
        %v8257 = vlaneseq
        %v8258 = vshrl.u32 %v8257, 7
        %v8259 = vsub.s32 %v8256, %v8258
        %v8260 = vrot.slane %v8252, %v8259
        %v8262 = vunpack.c.l.s4 1983009808
        %v8263 = vunpack.c.0.s8 %v8262
        %v8264 = vlaneseq
        %v8265 = vshrl.u32 %v8264, 7
        %v8266 = vsub.s32 %v8263, %v8265
        %v8267 = vrot.slane %v8253, %v8266
        %v8268 = vcombine.low %v8244, %v8260
        %v8269 = vcombine.high %v8244, %v8260
        %v8271 = vunpack.c.l.s4 1934713408
        %v8272 = vunpack.c.0.s8 %v8271
        %v8273 = vlaneseq
        %v8274 = vshrl.u32 %v8273, 7
        %v8275 = vsub.s32 %v8272, %v8274
        %v8276 = vrot.slane %v8268, %v8275
        %v8278 = vunpack.c.l.s4 1934713408
        %v8279 = vunpack.c.0.s8 %v8278
        %v8280 = vlaneseq
        %v8281 = vshrl.u32 %v8280, 7
        %v8282 = vsub.s32 %v8279, %v8281
        %v8283 = vrot.slane %v8269, %v8282
        %v8284 = vcombine.low %v8251, %v8267
        %v8285 = vcombine.high %v8251, %v8267
        %v8287 = vunpack.c.l.s4 1934713408
        %v8288 = vunpack.c.0.s8 %v8287
        %v8289 = vlaneseq
        %v8290 = vshrl.u32 %v8289, 7
        %v8291 = vsub.s32 %v8288, %v8290
        %v8292 = vrot.slane %v8284, %v8291
        %v8294 = vunpack.c.l.s4 1934713408
        %v8295 = vunpack.c.0.s8 %v8294
        %v8296 = vlaneseq
        %v8297 = vshrl.u32 %v8296, 7
        %v8298 = vsub.s32 %v8295, %v8297
        %v8299 = vrot.slane %v8285, %v8298
        %v8300 = vcombine.high %v8276, 0.0
        %v8301 = vcombine.high %v8283, 0.0
        %v8302 = vcombine.high %v8292, 0.0
        %v8303 = vcombine.high %v8299, 0.0
        %v8304 = vcombine.low %v7800, %v7807
        %v8306 = vunpack.c.l.s4 1983009808
        %v8307 = vunpack.c.0.s8 %v8306
        %v8308 = vlaneseq
        %v8309 = vshrl.u32 %v8308, 7
        %v8310 = vsub.s32 %v8307, %v8309
        %v8311 = vrot.slane %v8304, %v8310
        %v8312 = vcombine.low %v7824, %v7825
        %v8314 = vunpack.c.l.s4 1983009808
        %v8315 = vunpack.c.0.s8 %v8314
        %v8316 = vlaneseq
        %v8317 = vshrl.u32 %v8316, 7
        %v8318 = vsub.s32 %v8315, %v8317
        %v8319 = vrot.slane %v8312, %v8318
        %v8320 = vcombine.low %v7816, %v7823
        %v8322 = vunpack.c.l.s4 1983009808
        %v8323 = vunpack.c.0.s8 %v8322
        %v8324 = vlaneseq
        %v8325 = vshrl.u32 %v8324, 7
        %v8326 = vsub.s32 %v8323, %v8325
        %v8327 = vrot.slane %v8320, %v8326
        %v8328 = vcombine.low %v7826, %v7827
        %v8330 = vunpack.c.l.s4 1983009808
        %v8331 = vunpack.c.0.s8 %v8330
        %v8332 = vlaneseq
        %v8333 = vshrl.u32 %v8332, 7
        %v8334 = vsub.s32 %v8331, %v8333
        %v8335 = vrot.slane %v8328, %v8334
        %v8336 = vcombine.low %v8311, %v8319
        %v8337 = vcombine.high %v8311, %v8319
        %v8339 = vunpack.c.l.s4 1934713408
        %v8340 = vunpack.c.0.s8 %v8339
        %v8341 = vlaneseq
        %v8342 = vshrl.u32 %v8341, 7
        %v8343 = vsub.s32 %v8340, %v8342
        %v8344 = vrot.slane %v8336, %v8343
        %v8346 = vunpack.c.l.s4 1934713408
        %v8347 = vunpack.c.0.s8 %v8346
        %v8348 = vlaneseq
        %v8349 = vshrl.u32 %v8348, 7
        %v8350 = vsub.s32 %v8347, %v8349
        %v8351 = vrot.slane %v8337, %v8350
        %v8352 = vcombine.low %v8327, %v8335
        %v8353 = vcombine.high %v8327, %v8335
        %v8355 = vunpack.c.l.s4 1934713408
        %v8356 = vunpack.c.0.s8 %v8355
        %v8357 = vlaneseq
        %v8358 = vshrl.u32 %v8357, 7
        %v8359 = vsub.s32 %v8356, %v8358
        %v8360 = vrot.slane %v8352, %v8359
        %v8362 = vunpack.c.l.s4 1934713408
        %v8363 = vunpack.c.0.s8 %v8362
        %v8364 = vlaneseq
        %v8365 = vshrl.u32 %v8364, 7
        %v8366 = vsub.s32 %v8363, %v8365
        %v8367 = vrot.slane %v8353, %v8366
        %v8368 = vcombine.low %v8344, %v8360
        %v8369 = vcombine.high %v8344, %v8360
        %v8370 = vcombine.low %v8351, %v8367
        %v8371 = vcombine.high %v8351, %v8367
        %v8372 = vcombine.low %v7868, %v7875
        %v8374 = vunpack.c.l.s4 1983009808
        %v8375 = vunpack.c.0.s8 %v8374
        %v8376 = vlaneseq
        %v8377 = vshrl.u32 %v8376, 7
        %v8378 = vsub.s32 %v8375, %v8377
        %v8379 = vrot.slane %v8372, %v8378
        %v8380 = vcombine.low %v7892, %v7893
        %v8382 = vunpack.c.l.s4 1983009808
        %v8383 = vunpack.c.0.s8 %v8382
        %v8384 = vlaneseq
        %v8385 = vshrl.u32 %v8384, 7
        %v8386 = vsub.s32 %v8383, %v8385
        %v8387 = vrot.slane %v8380, %v8386
        %v8388 = vcombine.low %v7884, %v7891
        %v8390 = vunpack.c.l.s4 1983009808
        %v8391 = vunpack.c.0.s8 %v8390
        %v8392 = vlaneseq
        %v8393 = vshrl.u32 %v8392, 7
        %v8394 = vsub.s32 %v8391, %v8393
        %v8395 = vrot.slane %v8388, %v8394
        %v8396 = vcombine.low %v7894, %v7895
        %v8398 = vunpack.c.l.s4 1983009808
        %v8399 = vunpack.c.0.s8 %v8398
        %v8400 = vlaneseq
        %v8401 = vshrl.u32 %v8400, 7
        %v8402 = vsub.s32 %v8399, %v8401
        %v8403 = vrot.slane %v8396, %v8402
        %v8404 = vcombine.low %v8379, %v8387
        %v8405 = vcombine.high %v8379, %v8387
        %v8407 = vunpack.c.l.s4 1934713408
        %v8408 = vunpack.c.0.s8 %v8407
        %v8409 = vlaneseq
        %v8410 = vshrl.u32 %v8409, 7
        %v8411 = vsub.s32 %v8408, %v8410
        %v8412 = vrot.slane %v8404, %v8411
        %v8414 = vunpack.c.l.s4 1934713408
        %v8415 = vunpack.c.0.s8 %v8414
        %v8416 = vlaneseq
        %v8417 = vshrl.u32 %v8416, 7
        %v8418 = vsub.s32 %v8415, %v8417
        %v8419 = vrot.slane %v8405, %v8418
        %v8420 = vcombine.low %v8395, %v8403
        %v8421 = vcombine.high %v8395, %v8403
        %v8423 = vunpack.c.l.s4 1934713408
        %v8424 = vunpack.c.0.s8 %v8423
        %v8425 = vlaneseq
        %v8426 = vshrl.u32 %v8425, 7
        %v8427 = vsub.s32 %v8424, %v8426
        %v8428 = vrot.slane %v8420, %v8427
        %v8430 = vunpack.c.l.s4 1934713408
        %v8431 = vunpack.c.0.s8 %v8430
        %v8432 = vlaneseq
        %v8433 = vshrl.u32 %v8432, 7
        %v8434 = vsub.s32 %v8431, %v8433
        %v8435 = vrot.slane %v8421, %v8434
        %v8436 = vcombine.low %v8412, %v8428
        %v8437 = vcombine.high %v8412, %v8428
        %v8438 = vcombine.low %v8419, %v8435
        %v8439 = vcombine.high %v8419, %v8435
        %v8440 = vcombine.low %v7936, %v7943
        %v8442 = vunpack.c.l.s4 1983009808
        %v8443 = vunpack.c.0.s8 %v8442
        %v8444 = vlaneseq
        %v8445 = vshrl.u32 %v8444, 7
        %v8446 = vsub.s32 %v8443, %v8445
        %v8447 = vrot.slane %v8440, %v8446
        %v8448 = vcombine.low %v7960, %v7961
        %v8450 = vunpack.c.l.s4 1983009808
        %v8451 = vunpack.c.0.s8 %v8450
        %v8452 = vlaneseq
        %v8453 = vshrl.u32 %v8452, 7
        %v8454 = vsub.s32 %v8451, %v8453
        %v8455 = vrot.slane %v8448, %v8454
        %v8456 = vcombine.low %v7952, %v7959
        %v8458 = vunpack.c.l.s4 1983009808
        %v8459 = vunpack.c.0.s8 %v8458
        %v8460 = vlaneseq
        %v8461 = vshrl.u32 %v8460, 7
        %v8462 = vsub.s32 %v8459, %v8461
        %v8463 = vrot.slane %v8456, %v8462
        %v8464 = vcombine.low %v7962, %v7963
        %v8466 = vunpack.c.l.s4 1983009808
        %v8467 = vunpack.c.0.s8 %v8466
        %v8468 = vlaneseq
        %v8469 = vshrl.u32 %v8468, 7
        %v8470 = vsub.s32 %v8467, %v8469
        %v8471 = vrot.slane %v8464, %v8470
        %v8472 = vcombine.low %v8447, %v8455
        %v8473 = vcombine.high %v8447, %v8455
        %v8475 = vunpack.c.l.s4 1934713408
        %v8476 = vunpack.c.0.s8 %v8475
        %v8477 = vlaneseq
        %v8478 = vshrl.u32 %v8477, 7
        %v8479 = vsub.s32 %v8476, %v8478
        %v8480 = vrot.slane %v8472, %v8479
        %v8482 = vunpack.c.l.s4 1934713408
        %v8483 = vunpack.c.0.s8 %v8482
        %v8484 = vlaneseq
        %v8485 = vshrl.u32 %v8484, 7
        %v8486 = vsub.s32 %v8483, %v8485
        %v8487 = vrot.slane %v8473, %v8486
        %v8488 = vcombine.low %v8463, %v8471
        %v8489 = vcombine.high %v8463, %v8471
        %v8491 = vunpack.c.l.s4 1934713408
        %v8492 = vunpack.c.0.s8 %v8491
        %v8493 = vlaneseq
        %v8494 = vshrl.u32 %v8493, 7
        %v8495 = vsub.s32 %v8492, %v8494
        %v8496 = vrot.slane %v8488, %v8495
        %v8498 = vunpack.c.l.s4 1934713408
        %v8499 = vunpack.c.0.s8 %v8498
        %v8500 = vlaneseq
        %v8501 = vshrl.u32 %v8500, 7
        %v8502 = vsub.s32 %v8499, %v8501
        %v8503 = vrot.slane %v8489, %v8502
        %v8504 = vcombine.low %v8480, %v8496
        %v8505 = vcombine.high %v8480, %v8496
        %v8506 = vcombine.low %v8487, %v8503
        %v8507 = vcombine.high %v8487, %v8503
        %v8508 = vcombine.low %v8004, %v8011
        %v8510 = vunpack.c.l.s4 1983009808
        %v8511 = vunpack.c.0.s8 %v8510
        %v8512 = vlaneseq
        %v8513 = vshrl.u32 %v8512, 7
        %v8514 = vsub.s32 %v8511, %v8513
        %v8515 = vrot.slane %v8508, %v8514
        %v8516 = vcombine.low %v8028, %v8029
        %v8518 = vunpack.c.l.s4 1983009808
        %v8519 = vunpack.c.0.s8 %v8518
        %v8520 = vlaneseq
        %v8521 = vshrl.u32 %v8520, 7
        %v8522 = vsub.s32 %v8519, %v8521
        %v8523 = vrot.slane %v8516, %v8522
        %v8524 = vcombine.low %v8020, %v8027
        %v8526 = vunpack.c.l.s4 1983009808
        %v8527 = vunpack.c.0.s8 %v8526
        %v8528 = vlaneseq
        %v8529 = vshrl.u32 %v8528, 7
        %v8530 = vsub.s32 %v8527, %v8529
        %v8531 = vrot.slane %v8524, %v8530
        %v8532 = vcombine.low %v8030, %v8031
        %v8534 = vunpack.c.l.s4 1983009808
        %v8535 = vunpack.c.0.s8 %v8534
        %v8536 = vlaneseq
        %v8537 = vshrl.u32 %v8536, 7
        %v8538 = vsub.s32 %v8535, %v8537
        %v8539 = vrot.slane %v8532, %v8538
        %v8540 = vcombine.low %v8515, %v8523
        %v8541 = vcombine.high %v8515, %v8523
        %v8543 = vunpack.c.l.s4 1934713408
        %v8544 = vunpack.c.0.s8 %v8543
        %v8545 = vlaneseq
        %v8546 = vshrl.u32 %v8545, 7
        %v8547 = vsub.s32 %v8544, %v8546
        %v8548 = vrot.slane %v8540, %v8547
        %v8550 = vunpack.c.l.s4 1934713408
        %v8551 = vunpack.c.0.s8 %v8550
        %v8552 = vlaneseq
        %v8553 = vshrl.u32 %v8552, 7
        %v8554 = vsub.s32 %v8551, %v8553
        %v8555 = vrot.slane %v8541, %v8554
        %v8556 = vcombine.low %v8531, %v8539
        %v8557 = vcombine.high %v8531, %v8539
        %v8559 = vunpack.c.l.s4 1934713408
        %v8560 = vunpack.c.0.s8 %v8559
        %v8561 = vlaneseq
        %v8562 = vshrl.u32 %v8561, 7
        %v8563 = vsub.s32 %v8560, %v8562
        %v8564 = vrot.slane %v8556, %v8563
        %v8566 = vunpack.c.l.s4 1934713408
        %v8567 = vunpack.c.0.s8 %v8566
        %v8568 = vlaneseq
        %v8569 = vshrl.u32 %v8568, 7
        %v8570 = vsub.s32 %v8567, %v8569
        %v8571 = vrot.slane %v8557, %v8570
        %v8572 = vcombine.low %v8548, %v8564
        %v8573 = vcombine.high %v8548, %v8564
        %v8574 = vcombine.low %v8555, %v8571
        %v8575 = vcombine.high %v8555, %v8571
        %v8576 = vcombine.low %v8072, %v8079
        %v8578 = vunpack.c.l.s4 1983009808
        %v8579 = vunpack.c.0.s8 %v8578
        %v8580 = vlaneseq
        %v8581 = vshrl.u32 %v8580, 7
        %v8582 = vsub.s32 %v8579, %v8581
        %v8583 = vrot.slane %v8576, %v8582
        %v8584 = vcombine.low %v8096, %v8097
        %v8586 = vunpack.c.l.s4 1983009808
        %v8587 = vunpack.c.0.s8 %v8586
        %v8588 = vlaneseq
        %v8589 = vshrl.u32 %v8588, 7
        %v8590 = vsub.s32 %v8587, %v8589
        %v8591 = vrot.slane %v8584, %v8590
        %v8592 = vcombine.low %v8088, %v8095
        %v8594 = vunpack.c.l.s4 1983009808
        %v8595 = vunpack.c.0.s8 %v8594
        %v8596 = vlaneseq
        %v8597 = vshrl.u32 %v8596, 7
        %v8598 = vsub.s32 %v8595, %v8597
        %v8599 = vrot.slane %v8592, %v8598
        %v8600 = vcombine.low %v8098, %v8099
        %v8602 = vunpack.c.l.s4 1983009808
        %v8603 = vunpack.c.0.s8 %v8602
        %v8604 = vlaneseq
        %v8605 = vshrl.u32 %v8604, 7
        %v8606 = vsub.s32 %v8603, %v8605
        %v8607 = vrot.slane %v8600, %v8606
        %v8608 = vcombine.low %v8583, %v8591
        %v8609 = vcombine.high %v8583, %v8591
        %v8611 = vunpack.c.l.s4 1934713408
        %v8612 = vunpack.c.0.s8 %v8611
        %v8613 = vlaneseq
        %v8614 = vshrl.u32 %v8613, 7
        %v8615 = vsub.s32 %v8612, %v8614
        %v8616 = vrot.slane %v8608, %v8615
        %v8618 = vunpack.c.l.s4 1934713408
        %v8619 = vunpack.c.0.s8 %v8618
        %v8620 = vlaneseq
        %v8621 = vshrl.u32 %v8620, 7
        %v8622 = vsub.s32 %v8619, %v8621
        %v8623 = vrot.slane %v8609, %v8622
        %v8624 = vcombine.low %v8599, %v8607
        %v8625 = vcombine.high %v8599, %v8607
        %v8627 = vunpack.c.l.s4 1934713408
        %v8628 = vunpack.c.0.s8 %v8627
        %v8629 = vlaneseq
        %v8630 = vshrl.u32 %v8629, 7
        %v8631 = vsub.s32 %v8628, %v8630
        %v8632 = vrot.slane %v8624, %v8631
        %v8634 = vunpack.c.l.s4 1934713408
        %v8635 = vunpack.c.0.s8 %v8634
        %v8636 = vlaneseq
        %v8637 = vshrl.u32 %v8636, 7
        %v8638 = vsub.s32 %v8635, %v8637
        %v8639 = vrot.slane %v8625, %v8638
        %v8640 = vcombine.low %v8616, %v8632
        %v8641 = vcombine.high %v8616, %v8632
        %v8642 = vcombine.low %v8623, %v8639
        %v8643 = vcombine.high %v8623, %v8639
        %v8644 = vcombine.low %v8140, %v8147
        %v8646 = vunpack.c.l.s4 1983009808
        %v8647 = vunpack.c.0.s8 %v8646
        %v8648 = vlaneseq
        %v8649 = vshrl.u32 %v8648, 7
        %v8650 = vsub.s32 %v8647, %v8649
        %v8651 = vrot.slane %v8644, %v8650
        %v8652 = vcombine.low %v8164, %v8165
        %v8654 = vunpack.c.l.s4 1983009808
        %v8655 = vunpack.c.0.s8 %v8654
        %v8656 = vlaneseq
        %v8657 = vshrl.u32 %v8656, 7
        %v8658 = vsub.s32 %v8655, %v8657
        %v8659 = vrot.slane %v8652, %v8658
        %v8660 = vcombine.low %v8156, %v8163
        %v8662 = vunpack.c.l.s4 1983009808
        %v8663 = vunpack.c.0.s8 %v8662
        %v8664 = vlaneseq
        %v8665 = vshrl.u32 %v8664, 7
        %v8666 = vsub.s32 %v8663, %v8665
        %v8667 = vrot.slane %v8660, %v8666
        %v8668 = vcombine.low %v8166, %v8167
        %v8670 = vunpack.c.l.s4 1983009808
        %v8671 = vunpack.c.0.s8 %v8670
        %v8672 = vlaneseq
        %v8673 = vshrl.u32 %v8672, 7
        %v8674 = vsub.s32 %v8671, %v8673
        %v8675 = vrot.slane %v8668, %v8674
        %v8676 = vcombine.low %v8651, %v8659
        %v8677 = vcombine.high %v8651, %v8659
        %v8679 = vunpack.c.l.s4 1934713408
        %v8680 = vunpack.c.0.s8 %v8679
        %v8681 = vlaneseq
        %v8682 = vshrl.u32 %v8681, 7
        %v8683 = vsub.s32 %v8680, %v8682
        %v8684 = vrot.slane %v8676, %v8683
        %v8686 = vunpack.c.l.s4 1934713408
        %v8687 = vunpack.c.0.s8 %v8686
        %v8688 = vlaneseq
        %v8689 = vshrl.u32 %v8688, 7
        %v8690 = vsub.s32 %v8687, %v8689
        %v8691 = vrot.slane %v8677, %v8690
        %v8692 = vcombine.low %v8667, %v8675
        %v8693 = vcombine.high %v8667, %v8675
        %v8695 = vunpack.c.l.s4 1934713408
        %v8696 = vunpack.c.0.s8 %v8695
        %v8697 = vlaneseq
        %v8698 = vshrl.u32 %v8697, 7
        %v8699 = vsub.s32 %v8696, %v8698
        %v8700 = vrot.slane %v8692, %v8699
        %v8702 = vunpack.c.l.s4 1934713408
        %v8703 = vunpack.c.0.s8 %v8702
        %v8704 = vlaneseq
        %v8705 = vshrl.u32 %v8704, 7
        %v8706 = vsub.s32 %v8703, %v8705
        %v8707 = vrot.slane %v8693, %v8706
        %v8708 = vcombine.low %v8684, %v8700
        %v8709 = vcombine.high %v8684, %v8700
        %v8710 = vcombine.low %v8691, %v8707
        %v8711 = vcombine.high %v8691, %v8707
        %v8712 = vcombine.low %v8208, %v8215
        %v8714 = vunpack.c.l.s4 1983009808
        %v8715 = vunpack.c.0.s8 %v8714
        %v8716 = vlaneseq
        %v8717 = vshrl.u32 %v8716, 7
        %v8718 = vsub.s32 %v8715, %v8717
        %v8719 = vrot.slane %v8712, %v8718
        %v8720 = vcombine.low %v8232, %v8233
        %v8722 = vunpack.c.l.s4 1983009808
        %v8723 = vunpack.c.0.s8 %v8722
        %v8724 = vlaneseq
        %v8725 = vshrl.u32 %v8724, 7
        %v8726 = vsub.s32 %v8723, %v8725
        %v8727 = vrot.slane %v8720, %v8726
        %v8728 = vcombine.low %v8224, %v8231
        %v8730 = vunpack.c.l.s4 1983009808
        %v8731 = vunpack.c.0.s8 %v8730
        %v8732 = vlaneseq
        %v8733 = vshrl.u32 %v8732, 7
        %v8734 = vsub.s32 %v8731, %v8733
        %v8735 = vrot.slane %v8728, %v8734
        %v8736 = vcombine.low %v8234, %v8235
        %v8738 = vunpack.c.l.s4 1983009808
        %v8739 = vunpack.c.0.s8 %v8738
        %v8740 = vlaneseq
        %v8741 = vshrl.u32 %v8740, 7
        %v8742 = vsub.s32 %v8739, %v8741
        %v8743 = vrot.slane %v8736, %v8742
        %v8744 = vcombine.low %v8719, %v8727
        %v8745 = vcombine.high %v8719, %v8727
        %v8747 = vunpack.c.l.s4 1934713408
        %v8748 = vunpack.c.0.s8 %v8747
        %v8749 = vlaneseq
        %v8750 = vshrl.u32 %v8749, 7
        %v8751 = vsub.s32 %v8748, %v8750
        %v8752 = vrot.slane %v8744, %v8751
        %v8754 = vunpack.c.l.s4 1934713408
        %v8755 = vunpack.c.0.s8 %v8754
        %v8756 = vlaneseq
        %v8757 = vshrl.u32 %v8756, 7
        %v8758 = vsub.s32 %v8755, %v8757
        %v8759 = vrot.slane %v8745, %v8758
        %v8760 = vcombine.low %v8735, %v8743
        %v8761 = vcombine.high %v8735, %v8743
        %v8763 = vunpack.c.l.s4 1934713408
        %v8764 = vunpack.c.0.s8 %v8763
        %v8765 = vlaneseq
        %v8766 = vshrl.u32 %v8765, 7
        %v8767 = vsub.s32 %v8764, %v8766
        %v8768 = vrot.slane %v8760, %v8767
        %v8770 = vunpack.c.l.s4 1934713408
        %v8771 = vunpack.c.0.s8 %v8770
        %v8772 = vlaneseq
        %v8773 = vshrl.u32 %v8772, 7
        %v8774 = vsub.s32 %v8771, %v8773
        %v8775 = vrot.slane %v8761, %v8774
        %v8776 = vcombine.low %v8752, %v8768
        %v8777 = vcombine.high %v8752, %v8768
        %v8778 = vcombine.low %v8759, %v8775
        %v8779 = vcombine.high %v8759, %v8775
        %v8780 = vcombine.low %v8276, %v8283
        %v8782 = vunpack.c.l.s4 1983009808
        %v8783 = vunpack.c.0.s8 %v8782
        %v8784 = vlaneseq
        %v8785 = vshrl.u32 %v8784, 7
        %v8786 = vsub.s32 %v8783, %v8785
        %v8787 = vrot.slane %v8780, %v8786
        %v8788 = vcombine.low %v8300, %v8301
        %v8790 = vunpack.c.l.s4 1983009808
        %v8791 = vunpack.c.0.s8 %v8790
        %v8792 = vlaneseq
        %v8793 = vshrl.u32 %v8792, 7
        %v8794 = vsub.s32 %v8791, %v8793
        %v8795 = vrot.slane %v8788, %v8794
        %v8796 = vcombine.low %v8292, %v8299
        %v8798 = vunpack.c.l.s4 1983009808
        %v8799 = vunpack.c.0.s8 %v8798
        %v8800 = vlaneseq
        %v8801 = vshrl.u32 %v8800, 7
        %v8802 = vsub.s32 %v8799, %v8801
        %v8803 = vrot.slane %v8796, %v8802
        %v8804 = vcombine.low %v8302, %v8303
        %v8806 = vunpack.c.l.s4 1983009808
        %v8807 = vunpack.c.0.s8 %v8806
        %v8808 = vlaneseq
        %v8809 = vshrl.u32 %v8808, 7
        %v8810 = vsub.s32 %v8807, %v8809
        %v8811 = vrot.slane %v8804, %v8810
        %v8812 = vcombine.low %v8787, %v8795
        %v8813 = vcombine.high %v8787, %v8795
        %v8815 = vunpack.c.l.s4 1934713408
        %v8816 = vunpack.c.0.s8 %v8815
        %v8817 = vlaneseq
        %v8818 = vshrl.u32 %v8817, 7
        %v8819 = vsub.s32 %v8816, %v8818
        %v8820 = vrot.slane %v8812, %v8819
        %v8822 = vunpack.c.l.s4 1934713408
        %v8823 = vunpack.c.0.s8 %v8822
        %v8824 = vlaneseq
        %v8825 = vshrl.u32 %v8824, 7
        %v8826 = vsub.s32 %v8823, %v8825
        %v8827 = vrot.slane %v8813, %v8826
        %v8828 = vcombine.low %v8803, %v8811
        %v8829 = vcombine.high %v8803, %v8811
        %v8831 = vunpack.c.l.s4 1934713408
        %v8832 = vunpack.c.0.s8 %v8831
        %v8833 = vlaneseq
        %v8834 = vshrl.u32 %v8833, 7
        %v8835 = vsub.s32 %v8832, %v8834
        %v8836 = vrot.slane %v8828, %v8835
        %v8838 = vunpack.c.l.s4 1934713408
        %v8839 = vunpack.c.0.s8 %v8838
        %v8840 = vlaneseq
        %v8841 = vshrl.u32 %v8840, 7
        %v8842 = vsub.s32 %v8839, %v8841
        %v8843 = vrot.slane %v8829, %v8842
        %v8844 = vcombine.low %v8820, %v8836
        %v8845 = vcombine.high %v8820, %v8836
        %v8846 = vcombine.low %v8827, %v8843
        %v8847 = vcombine.high %v8827, %v8843
        %8856 = vrot.lane.b32.xlu0 %v8369, 8
        %v8857 = vpop.permute.xlu0 %8856
        %8858 = vrot.lane.b32.xlu0 %v8437, 8
        %v8859 = vpop.permute.xlu0 %8858
        %8860 = vrot.lane.b32.xlu0 %v8505, 8
        %v8861 = vpop.permute.xlu0 %8860
        %8862 = vrot.lane.b32.xlu0 %v8573, 8
        %v8863 = vpop.permute.xlu0 %8862
        %8864 = vrot.lane.b32.xlu0 %v8641, 8
        %v8865 = vpop.permute.xlu0 %8864
        %8866 = vrot.lane.b32.xlu0 %v8709, 8
        %v8867 = vpop.permute.xlu0 %8866
        %8868 = vrot.lane.b32.xlu0 %v8777, 8
        %v8869 = vpop.permute.xlu0 %8868
        %8870 = vrot.lane.b32.xlu0 %v8845, 8
        %v8871 = vpop.permute.xlu0 %8870
        %8888 = vrot.lane.b32.xlu0 %v8370, 16
        %v8889 = vpop.permute.xlu0 %8888
        %8890 = vrot.lane.b32.xlu0 %v8438, 16
        %v8891 = vpop.permute.xlu0 %8890
        %8892 = vrot.lane.b32.xlu0 %v8506, 16
        %v8893 = vpop.permute.xlu0 %8892
        %8894 = vrot.lane.b32.xlu0 %v8574, 16
        %v8895 = vpop.permute.xlu0 %8894
        %8896 = vrot.lane.b32.xlu0 %v8642, 16
        %v8897 = vpop.permute.xlu0 %8896
        %8898 = vrot.lane.b32.xlu0 %v8710, 16
        %v8899 = vpop.permute.xlu0 %8898
        %8900 = vrot.lane.b32.xlu0 %v8778, 16
        %v8901 = vpop.permute.xlu0 %8900
        %8902 = vrot.lane.b32.xlu0 %v8846, 16
        %v8903 = vpop.permute.xlu0 %8902
        %8920 = vrot.lane.b32.xlu0 %v8371, 24
        %v8921 = vpop.permute.xlu0 %8920
        %8922 = vrot.lane.b32.xlu0 %v8439, 24
        %v8923 = vpop.permute.xlu0 %8922
        %8924 = vrot.lane.b32.xlu0 %v8507, 24
        %v8925 = vpop.permute.xlu0 %8924
        %8926 = vrot.lane.b32.xlu0 %v8575, 24
        %v8927 = vpop.permute.xlu0 %8926
        %8928 = vrot.lane.b32.xlu0 %v8643, 24
        %v8929 = vpop.permute.xlu0 %8928
        %8930 = vrot.lane.b32.xlu0 %v8711, 24
        %v8931 = vpop.permute.xlu0 %8930
        %8932 = vrot.lane.b32.xlu0 %v8779, 24
        %v8933 = vpop.permute.xlu0 %8932
        %8934 = vrot.lane.b32.xlu0 %v8847, 24
        %v8935 = vpop.permute.xlu0 %8934
        %v8944 = vsel %vm4362, %v8368, %v8857
        %v8945 = vsel %vm4362, %v8436, %v8859
        %v8946 = vsel %vm4362, %v8504, %v8861
        %v8947 = vsel %vm4362, %v8572, %v8863
        %v8948 = vsel %vm4362, %v8640, %v8865
        %v8949 = vsel %vm4362, %v8708, %v8867
        %v8950 = vsel %vm4362, %v8776, %v8869
        %v8951 = vsel %vm4362, %v8844, %v8871
        %v8952 = vsel %vm5951, %v8944, %v8889
        %v8953 = vsel %vm5951, %v8945, %v8891
        %v8954 = vsel %vm5951, %v8946, %v8893
        %v8955 = vsel %vm5951, %v8947, %v8895
        %v8956 = vsel %vm5951, %v8948, %v8897
        %v8957 = vsel %vm5951, %v8949, %v8899
        %v8958 = vsel %vm5951, %v8950, %v8901
        %v8959 = vsel %vm5951, %v8951, %v8903
        %vm8960 = vcmask 195584
        %v8961 = vsel %vm8960, %v8952, %v8921
        %v8962 = vsel %vm8960, %v8953, %v8923
        %v8963 = vsel %vm8960, %v8954, %v8925
        %v8964 = vsel %vm8960, %v8955, %v8927
        %v8965 = vsel %vm8960, %v8956, %v8929
        %v8966 = vsel %vm8960, %v8957, %v8931
        %v8967 = vsel %vm8960, %v8958, %v8933
        %v8968 = vsel %vm8960, %v8959, %v8935
        %v8969 = vld [vmem:[#allocation7] sm:$0xff]
        %v8970 = vld [vmem:[#allocation7 + $0x8] sm:$0xff]
        %v8971 = vld [vmem:[#allocation7 + $0x10] sm:$0xff]
        %v8972 = vld [vmem:[#allocation7 + $0x18] sm:$0xff]
        %v8973 = vld [vmem:[%s4] sm:$0x1]
        %v8975 = vlaneseq
        %v8976 = vshrl.u32 %v8975, 7
        %v8977 = vsub.s32 0, %v8976
        %v8978 = vrot.slane %v8973, %v8977
        %v8981 = vsel %vm404, %v8961, 0
        %v8984 = vsel %vm404, %v8962, 0
        %v8987 = vsel %vm404, %v8963, 0
        %v8990 = vsel %vm404, %v8964, 0
        %v8993 = vsel %vm404, %v8965, 0
        %v8996 = vsel %vm404, %v8966, 0
        %v8999 = vsel %vm404, %v8967, 0
        %v9002 = vsel %vm404, %v8968, 0
        %9004 = vmatprep.subr.mxu0 0.0
        %9005 = vmatpush1.msra.mxu0 0.0
        %9006 = vmatprep.subr.mxu0 0.0
        %9007 = vmatpush1.msra.mxu0 0.0
        %9008 = vmatprep.subr.mxu0 0.0
        %9009 = vmatpush1.msra.mxu0 0.0
        %9010 = vmatprep.subr.mxu0 0.0
        %9011 = vmatpush1.msra.mxu0 0.0
        %9012 = vmatprep.subr.mxu0 0.0
        %9013 = vmatpush1.msra.mxu0 0.0
        %9014 = vmatprep.subr.mxu0 0.0
        %9015 = vmatpush1.msra.mxu0 0.0
        %9016 = vmatprep.subr.mxu0 0.0
        %9017 = vmatpush1.msra.mxu0 0.0
        %9018 = vmatprep.subr.mxu0 0.0
        %9019 = vmatpush1.msra.mxu0 0.0
        %9020 = vmatprep.subr.mxu0 0.0
        %9021 = vmatpush1.msra.mxu0 0.0
        %9022 = vmatprep.subr.mxu0 0.0
        %9023 = vmatpush1.msra.mxu0 0.0
        %9024 = vmatprep.subr.mxu0 0.0
        %9025 = vmatpush1.msra.mxu0 0.0
        %9026 = vmatprep.subr.mxu0 0.0
        %9027 = vmatpush1.msra.mxu0 0.0
        %9028 = vmatprep.subr.mxu0 0.0
        %9029 = vmatpush1.msra.mxu0 %v8972
        %9030 = vmatprep.subr.mxu0 0.0
        %9031 = vmatpush1.msra.mxu0 %v8971
        %9032 = vmatprep.subr.mxu0 0.0
        %9033 = vmatpush1.msra.mxu0 %v8970
        %9034 = vmatprep.subr.mxu0 0.0
        %9035 = vmatpush1.msra.mxu0 %v8969
        %9036 = vmatprep.subr.mxu0 0.0
        %9037 = vmatpush2.msra.mxu0 0.0
        %9038 = vmatprep.subr.mxu0 0.0
        %9039 = vmatpush2.msra.mxu0 0.0
        %9040 = vmatprep.subr.mxu0 0.0
        %9041 = vmatpush2.msra.mxu0 0.0
        %9042 = vmatprep.subr.mxu0 0.0
        %9043 = vmatpush2.msra.mxu0 0.0
        %9044 = vmatprep.subr.mxu0 0.0
        %9045 = vmatpush2.msra.mxu0 0.0
        %9046 = vmatprep.subr.mxu0 0.0
        %9047 = vmatpush2.msra.mxu0 0.0
        %9048 = vmatprep.subr.mxu0 0.0
        %9049 = vmatpush2.msra.mxu0 0.0
        %9050 = vmatprep.subr.mxu0 0.0
        %9051 = vmatpush2.msra.mxu0 0.0
        %9052 = vmatprep.subr.mxu0 0.0
        %9053 = vmatpush2.msra.mxu0 0.0
        %9054 = vmatprep.subr.mxu0 0.0
        %9055 = vmatpush2.msra.mxu0 0.0
        %9056 = vmatprep.subr.mxu0 0.0
        %9057 = vmatpush2.msra.mxu0 0.0
        %9058 = vmatprep.subr.mxu0 0.0
        %9059 = vmatpush2.msra.mxu0 0.0
        %9060 = vmatprep.subr.mxu0 0.0
        %9061 = vmatpush2.msra.mxu0 0.0
        %9062 = vmatprep.subr.mxu0 0.0
        %9063 = vmatpush2.msra.mxu0 0.0
        %9064 = vmatprep.subr.mxu0 0.0
        %9065 = vmatpush2.msra.mxu0 0.0
        %9066 = vmatprep.subr.mxu0 0.0
        %9067 = vmatpush2.msra.mxu0 0.0
        %9068 = vmatprep.mubr.f32.mxu0 0.0
        %9069 = vmatmul.mubr.f32.gmra.mxu0 %v8981
        %v9070 = vpop.f32.mrf.mxu0
        %v9071 = vadd.f32 %v8978, %v9070
        %v9072 = vpop.f32.mrf.mxu0
        %9073 = vmatprep.mubr.f32.mxu0 0.0
        %9074 = vmatmul.mubr.f32.gmra.mxu0 %v8984
        %v9075 = vpop.f32.mrf.mxu0
        %v9076 = vadd.f32 %v8978, %v9075
        %v9077 = vpop.f32.mrf.mxu0
        %9078 = vmatprep.mubr.f32.mxu0 0.0
        %9079 = vmatmul.mubr.f32.gmra.mxu0 %v8987
        %v9080 = vpop.f32.mrf.mxu0
        %v9081 = vadd.f32 %v8978, %v9080
        %v9082 = vpop.f32.mrf.mxu0
        %9083 = vmatprep.mubr.f32.mxu0 0.0
        %9084 = vmatmul.mubr.f32.gmra.mxu0 %v8990
        %v9085 = vpop.f32.mrf.mxu0
        %v9086 = vadd.f32 %v8978, %v9085
        %v9087 = vpop.f32.mrf.mxu0
        %9088 = vmatprep.mubr.f32.mxu0 0.0
        %9089 = vmatmul.mubr.f32.gmra.mxu0 %v8993
        %v9090 = vpop.f32.mrf.mxu0
        %v9091 = vadd.f32 %v8978, %v9090
        %v9092 = vpop.f32.mrf.mxu0
        %9093 = vmatprep.mubr.f32.mxu0 0.0
        %9094 = vmatmul.mubr.f32.gmra.mxu0 %v8996
        %v9095 = vpop.f32.mrf.mxu0
        %v9096 = vadd.f32 %v8978, %v9095
        %v9097 = vpop.f32.mrf.mxu0
        %9098 = vmatprep.mubr.f32.mxu0 0.0
        %9099 = vmatmul.mubr.f32.gmra.mxu0 %v8999
        %v9100 = vpop.f32.mrf.mxu0
        %v9101 = vadd.f32 %v8978, %v9100
        %v9102 = vpop.f32.mrf.mxu0
        %9103 = vmatprep.mubr.f32.mxu0 0.0
        %9104 = vmatmul.mubr.f32.gmra.mxu0 %v9002
        %v9105 = vpop.f32.mrf.mxu0
        %v9106 = vadd.f32 %v8978, %v9105
        %v9107 = vpop.f32.mrf.mxu0
        %9108 = vdwg.mxu0
        %v9117 = vcombine.high %v9071, %v9071
        %v9118 = vcombine.high %v9076, %v9076
        %v9119 = vcombine.high %v9081, %v9081
        %v9120 = vcombine.high %v9086, %v9086
        %v9121 = vcombine.high %v9091, %v9091
        %v9122 = vcombine.high %v9096, %v9096
        %v9123 = vcombine.high %v9101, %v9101
        %v9124 = vcombine.high %v9106, %v9106
        %v9125 = vcombine.low %v9071, %v9081
        %v9126 = vcombine.low %v9117, %v9119
        %v9127 = vcombine.low %v9076, %v9086
        %v9128 = vcombine.low %v9118, %v9120
        %v9129 = vcombine.low %v9091, %v9101
        %v9130 = vcombine.low %v9121, %v9123
        %v9131 = vcombine.low %v9096, %v9106
        %v9132 = vcombine.low %v9122, %v9124
        %9141 = vst.msk [vmem:[%s381] sm:$0xff] %vm404, %v9125
        %9142 = vst.msk [vmem:[%s381 + $0x8] sm:$0xff] %vm404, %v9126
        %9143 = vst.msk [vmem:[%s381 + $0x10] sm:$0xff] %vm404, %v9127
        %9144 = vst.msk [vmem:[%s381 + $0x18] sm:$0xff] %vm404, %v9128
        %9145 = vst.msk [vmem:[%s381 + $0x20] sm:$0xff] %vm404, %v9129
        %9146 = vst.msk [vmem:[%s381 + $0x28] sm:$0xff] %vm404, %v9130
        %9147 = vst.msk [vmem:[%s381 + $0x30] sm:$0xff] %vm404, %v9131
        %9148 = vst.msk [vmem:[%s381 + $0x38] sm:$0xff] %vm404, %v9132
        %s9149 = sand.u32 %s207, 1
        %s9150 = scalar_lea.sflag [#allocation4], %s9149
        %s9151 = sand.u32 %s207, 1
        %s9152 = smul.addr %s9151, 64
        %s9153 = scalar_lea.vmem [#allocation11], %s9152
        // Predicated region
        $region69: #{tpu_custom_call.1} parent=47 // pred_check
          %p9154 = pneg %p217
        $region70: #{tpu_custom_call.1} parent=47 // pred_check_branch
          %9156 = sbr.rel (%p9154) target = $region72
        $region71: #{tpu_custom_call.1} parent=47 // pred_region
          %s9157 = smul.u32 8, %s31
          %s9159 = ssub.s32 1024, 1024
          %9160 = vsyncadd %s9150, %s9159
          %s9161 = smul.addr %s30, 8
          %s9162 = sadd.s32 %s9157, %s9161
          %s9163 = smul.addr %s9162, 128
          %s9164 = scalar_lea.hbm %s7, %s9163
          %s9165 = sshll.u32 %s9153, 4
          %s9166 = int_to_ptr.vmem [resolvable:$true] %s9165
          %9171 = dma.vmem_to_hbm [thread:$0]  %s9166, 1024, %s9164, %s9150, 128, 128, 8
        $region72: #{tpu_custom_call.1} parent=47 // pred_fallthru
          _
      $region48: #{tpu_custom_call.1} parent=5 // pred_fallthru
        _
      %p9172 = scmp.le.s32.totalorder 2, %s21
      // Predicated region
      $region73: #{tpu_custom_call.1} parent=5 // pred_check
        %p9173 = pneg %p9172
      $region74: #{tpu_custom_call.1} parent=5 // pred_check_branch
        %9175 = sbr.rel (%p9173) target = $region76
      $region75: #{tpu_custom_call.1} parent=5 // pred_region
        %s9176 = ssub.s32 %s21, 2
        // Predicated region
        $region77: #{tpu_custom_call.1} parent=75 // pred_check
          %p9177 = pneg %p223
        $region78: #{tpu_custom_call.1} parent=75 // pred_check_branch
          %9179 = sbr.rel (%p9177) target = $region80
        $region79: #{tpu_custom_call.1} parent=75 // pred_region
          %s9180 = sand.u32 %s208, 1
          %s9181 = scalar_lea.sflag [#allocation4], %s9180
          %s9182 = sand.u32 %s208, 1
          %s9183 = smul.addr %s9182, 64
          %s9184 = scalar_lea.vmem [#allocation11], %s9183
          %9185 = dma.done %s9181, 1024
        $region80: #{tpu_custom_call.1} parent=75 // pred_fallthru
          _
      $region76: #{tpu_custom_call.1} parent=5 // pred_fallthru
        _
    $region6: #{tpu_custom_call.1} parent=1 // loop_footer
      %s25 = sadd.s32 1, %s21
    $region7: #{tpu_custom_call.1} parent=1 // loop_footer_branch
      %20 = sbr.rel target = $region3
    $region8: #{tpu_custom_call.1} parent=1 // loop_exit
      _
    %9186 = vsyncpa [#allocation3], 1
    %s9187 = scalar_lea.sflag [#allocation3], 1
    %9188 = vsyncpa %s9187, 1
    %9189 = vsyncpa [#allocation6], 1
    %9190 = vsyncpa [#allocation9], 1
    %9191 = vsyncpa [#allocation4], 1
    %s9192 = scalar_lea.sflag [#allocation4], 1
    %9193 = vsyncpa %s9192, 1

</llo_original>
